<compile_context>
chip_gen: v7x
topology: tpu7x:2x2x1
jax: 0.10.0
libtpu: 0.0.40
codegen_flags: <defaults>
</compile_context>

<pallas_src>
import jax
import jax.numpy as jnp
from jax.experimental import pallas as pl
from jax.experimental.pallas import tpu as pltpu

TAU = 2.0        # LIF membrane time constant
V_TH = 1.0       # LIF firing threshold
BN_EPS = 1e-5    # nn.BatchNorm2d default eps
N_STEPS = 4      # glv.network_config['n_steps']
VMEM_LIMIT = 32 * 1024 * 1024   # well under v7x 64 MiB / v5e 128 MiB physical


# ----------------------------- Pallas kernels ------------------------------ #

def conv_bn_lif_step_kernel(p_ref, w_ref, b_ref, g_ref, beta_ref,
                            spk_ref, v_ref):
    """One timestep of Conv2d (im2col matmul) + BatchNorm2d (batch stats,
    training mode) + LIF.  grid axis 0 = time; v_ref is persistent scratch."""
    @pl.when(pl.program_id(0) == 0)
    def _():
        v_ref[...] = jnp.zeros_like(v_ref)

    # bf16 x bf16 matmul, f32 accumulation on the MXU.
    y = jnp.dot(p_ref[0], w_ref[...], preferred_element_type=jnp.float32)
    y = y + b_ref[...]

    # BatchNorm2d training-mode statistics over (B, OH, OW) == rows, one pass.
    inv_m = 1.0 / y.shape[0]
    s1 = jnp.sum(y, axis=0, keepdims=True)
    s2 = jnp.sum(y * y, axis=0, keepdims=True)
    mu = s1 * inv_m
    var = s2 * inv_m - mu * mu                    # biased variance (torch)
    z = (y - mu) * jax.lax.rsqrt(var + BN_EPS) * g_ref[...] + beta_ref[...]

    # LIF: h = v + (x - v)/tau ; spike = (h >= V_TH) ; hard reset to 0.
    v = v_ref[...]
    h = v + (z - v) * (1.0 / TAU)
    spk = h >= V_TH
    spk_ref[0] = spk.astype(spk_ref.dtype)
    v_ref[...] = jnp.where(spk, 0.0, h)


def make_fc_fused_kernel(inv_steps):
    """fc1 + LIF + fc2 + MPNode fused; grid axis 0 = time.  The (B,1) output
    block has a constant index_map, so the last timestep's write survives."""
    def fc_fused_kernel(x_ref, w1_ref, b1_ref, w2_ref, b2_ref,
                        out_ref, v3_ref, v4_ref):
        @pl.when(pl.program_id(0) == 0)
        def _():
            v3_ref[...] = jnp.zeros_like(v3_ref)
            v4_ref[...] = jnp.zeros_like(v4_ref)

        y = jnp.dot(x_ref[0], w1_ref[...], preferred_element_type=jnp.float32)
        y = y + b1_ref[...]

        v3 = v3_ref[...]
        h = v3 + (y - v3) * (1.0 / TAU)
        spk = h >= V_TH
        v3_ref[...] = jnp.where(spk, 0.0, h)
        spk_f = spk.astype(jnp.float32)

        # fc2 (1024 -> 1) as a lane reduction on the spikes already in vregs.
        y2 = jnp.sum(spk_f * w2_ref[...], axis=1, keepdims=True) + b2_ref[...]

        # MPNode: non-firing membrane accumulation; readout = membrane / T.
        v4_new = v4_ref[...] + y2
        v4_ref[...] = v4_new
        out_ref[...] = v4_new * inv_steps
    return fc_fused_kernel


# ------------------------------ kernel callers ------------------------------ #

def conv_bn_lif_seq(patches, w, b, gamma, beta):
    """patches: (T, M, K) bf16, w: (K, N) bf16 -> spikes (T, M, N) bf16."""
    T, M, K = patches.shape
    N = w.shape[1]
    return pl.pallas_call(
        conv_bn_lif_step_kernel,
        out_shape=jax.ShapeDtypeStruct((T, M, N), jnp.bfloat16),
        grid_spec=pltpu.PrefetchScalarGridSpec(
            num_scalar_prefetch=0,
            grid=(T,),
            in_specs=[
                pl.BlockSpec((1, M, K), lambda t: (t, 0, 0)),   # per-step patches
                pl.BlockSpec((K, N), lambda t: (0, 0)),         # weight: resident
                pl.BlockSpec((1, N), lambda t: (0, 0)),         # conv bias
                pl.BlockSpec((1, N), lambda t: (0, 0)),         # BN gamma
                pl.BlockSpec((1, N), lambda t: (0, 0)),         # BN beta
            ],
            out_specs=pl.BlockSpec((1, M, N), lambda t: (t, 0, 0)),
            scratch_shapes=[pltpu.VMEM((M, N), jnp.float32)],   # LIF membrane
        ),
        compiler_params=pltpu.CompilerParams(
            dimension_semantics=("arbitrary",),
            vmem_limit_bytes=VMEM_LIMIT),
    )(patches, w, b, gamma, beta)


def fc_fused_seq(flat, w1, b1, w2, b2):
    """flat: (T, B, 1024) bf16 -> MPNode membrane / T at the last step, (B, 1)."""
    T, B, D = flat.shape
    H = w1.shape[1]
    return pl.pallas_call(
        make_fc_fused_kernel(1.0 / T),
        out_shape=jax.ShapeDtypeStruct((B, 1), jnp.float32),
        grid_spec=pltpu.PrefetchScalarGridSpec(
            num_scalar_prefetch=0,
            grid=(T,),
            in_specs=[
                pl.BlockSpec((1, B, D), lambda t: (t, 0, 0)),   # per-step input
                pl.BlockSpec((D, H), lambda t: (0, 0)),         # fc1 weight: resident
                pl.BlockSpec((1, H), lambda t: (0, 0)),         # fc1 bias
                pl.BlockSpec((1, D), lambda t: (0, 0)),         # fc2 weight row
                pl.BlockSpec((1, 1), lambda t: (0, 0)),         # fc2 bias
            ],
            out_specs=pl.BlockSpec((B, 1), lambda t: (0, 0)),   # last write wins
            scratch_shapes=[pltpu.VMEM((B, H), jnp.float32),    # fc1 LIF membrane
                            pltpu.VMEM((B, 1), jnp.float32)],   # MPNode membrane
        ),
        compiler_params=pltpu.CompilerParams(
            dimension_semantics=("arbitrary",),
            vmem_limit_bytes=VMEM_LIMIT),
    )(flat, w1, b1, w2, b2)


# --------------------------------- XLA glue --------------------------------- #

def im2col_conv1(x):
    """x: (T, B, 28, 28) single-channel -> (T, B*24*24, 32); K 25 -> 32 padded."""
    T, B, H, W = x.shape
    OH, OW = H - 4, W - 4
    cols = [x[:, :, i:i + OH, j:j + OW] for i in range(5) for j in range(5)]
    p = jnp.stack(cols, axis=-1)                                # (T,B,OH,OW,25)
    p = jnp.pad(p, ((0, 0), (0, 0), (0, 0), (0, 0), (0, 7)))    # zero-pad K
    return p.reshape(T, B * OH * OW, 32)


def im2col_conv2(x):
    """x: (T, B, 12, 12, 32) NHWC -> (T, B*8*8, 800), columns ordered (k, c)."""
    T, B, H, W, C = x.shape
    OH, OW = H - 4, W - 4
    cols = [x[:, :, i:i + OH, j:j + OW, :] for i in range(5) for j in range(5)]
    p = jnp.stack(cols, axis=4)                                 # (T,B,OH,OW,25,C)
    return p.reshape(T, B * OH * OW, 25 * C)


def avgpool2_nhwc(x):
    """nn.AvgPool2d(2, stride=2) on (T, B, H, W, C); exact for spike values."""
    T, B, H, W, C = x.shape
    return x.reshape(T, B, H // 2, 2, W // 2, 2, C).mean(axis=(3, 5))


def init_params(key):
    """PyTorch-default-style init (kaiming-uniform bounds), converted from the
    torch NCHW layouts to the channels-last matmul layouts used here."""
    ks = jax.random.split(key, 8)

    def uni(k, shape, fan_in):
        bound = 1.0 / jnp.sqrt(jnp.float32(fan_in))
        return jax.random.uniform(k, shape, jnp.float32, -bound, bound)

    # Conv2d(1, 32, 5): torch (32,1,5,5) -> matmul (25,32), zero-padded to (32,32).
    w1_t = uni(ks[0], (32, 1, 5, 5), 25)
    w1 = jnp.pad(w1_t.reshape(32, 25).T, ((0, 7), (0, 0))).astype(jnp.bfloat16)
    b1 = uni(ks[1], (1, 32), 25)

    # Conv2d(32, 64, 5): torch (64,32,5,5) -> rows ordered (di, dj, cin) -> (800,64).
    w2_t = uni(ks[2], (64, 32, 5, 5), 800)
    w2 = w2_t.transpose(2, 3, 1, 0).reshape(800, 64).astype(jnp.bfloat16)
    b2 = uni(ks[3], (1, 64), 800)

    # Linear(1024, 1024): torch in-index ordered (c,h,w); our flatten is (h,w,c).
    wf1_t = uni(ks[4], (1024, 1024), 1024)
    wf1 = (wf1_t.reshape(1024, 64, 4, 4).transpose(0, 2, 3, 1)
           .reshape(1024, 1024).T.astype(jnp.bfloat16))          # (in_nhwc, out)
    bf1 = uni(ks[5], (1, 1024), 1024)

    # Linear(1024, 1): keep the torch row layout for the lane reduction.
    wf2 = uni(ks[6], (1, 1024), 1024)
    bf2 = uni(ks[7], (1, 1), 1024)

    return dict(
        w1=w1, b1=b1, g1=jnp.ones((1, 32), jnp.float32), be1=jnp.zeros((1, 32), jnp.float32),
        w2=w2, b2=b2, g2=jnp.ones((1, 64), jnp.float32), be2=jnp.zeros((1, 64), jnp.float32),
        wf1=wf1, bf1=bf1, wf2=wf2, bf2=bf2,
    )


@jax.jit
def discriminator_forward(spike_seq, params):
    """spike_seq: (T, B, 1, 28, 28) float32 spike tensor (already encoded)."""
    T, B = spike_seq.shape[0], spike_seq.shape[1]
    x = spike_seq.reshape(T, B, 28, 28).astype(jnp.bfloat16)    # C=1, exact cast

    # conv1 + BN + LIF over all timesteps (state & weight resident in VMEM).
    p1 = im2col_conv1(x)                                        # (T, B*576, 32)
    spk1 = conv_bn_lif_seq(p1, params['w1'], params['b1'],
                           params['g1'], params['be1'])         # (T, B*576, 32)
    f1 = avgpool2_nhwc(spk1.reshape(T, B, 24, 24, 32))          # (T, B, 12, 12, 32)

    # conv2 + BN + LIF.
    p2 = im2col_conv2(f1)                                       # (T, B*64, 800)
    spk2 = conv_bn_lif_seq(p2, params['w2'], params['b2'],
                           params['g2'], params['be2'])         # (T, B*64, 64)
    f2 = avgpool2_nhwc(spk2.reshape(T, B, 8, 8, 64))            # (T, B, 4, 4, 64)

    # fc1 + LIF + fc2 + MPNode (fused); returns last-step membrane / T.
    flat = f2.reshape(T, B, 64 * 4 * 4)                         # (h,w,c) flatten; fc1
    return fc_fused_seq(flat, params['wf1'], params['bf1'],     # weight permuted to match
                        params['wf2'], params['bf2'])           # (B, 1)


if __name__ == "__main__":
    key = jax.random.PRNGKey(0)
    k_in, k_par = jax.random.split(key)

    params = init_params(k_par)
    # Encoded spike sequence: (n_steps, B, 1, 28, 28) binary spikes.
    spikes = jax.random.bernoulli(
        k_in, 0.5, (N_STEPS, 2, 1, 28, 28)).astype(jnp.float32)

    res_mem = discriminator_forward(spikes, params)
    jax.block_until_ready(res_mem)

    assert res_mem.shape == (2, 1), res_mem.shape
    assert bool(jnp.all(jnp.isfinite(res_mem)))
    print("KERNEL_OK")
</pallas_src>

<mosaic_0001>
module attributes {stable_mosaic.version = 11 : i64} {
  func.func @conv_bn_lif_step_kernel(%arg0: i32, %arg1: memref<1x1152x32xbf16, #tpu.memory_space<vmem>>, %arg2: memref<32x32xbf16, #tpu.memory_space<vmem>>, %arg3: memref<1x32xf32, #tpu.memory_space<vmem>>, %arg4: memref<1x32xf32, #tpu.memory_space<vmem>>, %arg5: memref<1x32xf32, #tpu.memory_space<vmem>>, %arg6: memref<1x1152x32xbf16, #tpu.memory_space<vmem>>, %arg7: memref<1152x32xf32, #tpu.memory_space<vmem>>) attributes {dimension_semantics = [#tpu.dimension_semantics<arbitrary>], iteration_bounds = array<i64: 4>, scalar_prefetch = 0 : i64, scratch_operands = 1 : i64, tpu.core_type = #tpu.core_type<tc>, window_params = [{transform_indices = @transform_0, window_bounds = array<i64: 1, 1152, 32>}, {pipeline_mode = #tpu.pipeline_mode<synchronous>, transform_indices = @transform_1, window_bounds = array<i64: 32, 32>}, {pipeline_mode = #tpu.pipeline_mode<synchronous>, transform_indices = @transform_2, window_bounds = array<i64: 1, 32>}, {pipeline_mode = #tpu.pipeline_mode<synchronous>, transform_indices = @transform_3, window_bounds = array<i64: 1, 32>}, {pipeline_mode = #tpu.pipeline_mode<synchronous>, transform_indices = @transform_4, window_bounds = array<i64: 1, 32>}, {transform_indices = @transform_5, window_bounds = array<i64: 1, 1152, 32>}]} {
    %c0_i32 = arith.constant 0 : i32
    %0 = arith.cmpi eq, %arg0, %c0_i32 : i32
    %1 = arith.extui %0 : i1 to i32
    %c0_i32_0 = arith.constant 0 : i32
    %2 = arith.cmpi ne, %1, %c0_i32_0 : i32
    scf.if %2 {
      %cst_26 = arith.constant 0.000000e+00 : f32
      %50 = vector.broadcast %cst_26 : f32 to vector<1152x32xf32>
      %c0_27 = arith.constant 0 : index
      %c0_28 = arith.constant 0 : index
      %51 = vector.load %arg7[%c0_27, %c0_28] : memref<1152x32xf32, #tpu.memory_space<vmem>>, vector<1152x32xf32>
      tpu.vector_store %arg7[%c0_27, %c0_28], %50 {strides = array<i32>} : memref<1152x32xf32, #tpu.memory_space<vmem>>, vector<1152x32xf32>,
    } else {
    }
    %c0 = arith.constant 0 : index
    %c0_1 = arith.constant 0 : index
    %c0_2 = arith.constant 0 : index
    %3 = vector.load %arg1[%c0, %c0_1, %c0_2] : memref<1x1152x32xbf16, #tpu.memory_space<vmem>>, vector<1x1152x32xbf16>
    %4 = vector.shape_cast %3 : vector<1x1152x32xbf16> to vector<1152x32xbf16>
    %c0_3 = arith.constant 0 : index
    %c0_4 = arith.constant 0 : index
    %5 = vector.load %arg2[%c0_3, %c0_4] : memref<32x32xbf16, #tpu.memory_space<vmem>>, vector<32x32xbf16>
    %cst = arith.constant dense<0.000000e+00> : vector<1152x32xf32>
    %6 = tpu.matmul %4, %5, %cst {dimension_numbers = #tpu.dot_dimension_numbers<[1], [0], [0], [1], [0, 0, 1, 1], [], []>} : vector<1152x32xbf16>, vector<32x32xbf16>, vector<1152x32xf32> -> vector<1152x32xf32>
    %c0_5 = arith.constant 0 : index
    %c0_6 = arith.constant 0 : index
    %7 = vector.load %arg3[%c0_5, %c0_6] : memref<1x32xf32, #tpu.memory_space<vmem>>, vector<1x32xf32>
    %8 = vector.broadcast %7 : vector<1x32xf32> to vector<1152x32xf32>
    %9 = arith.addf %6, %8 : vector<1152x32xf32>
    %cst_7 = arith.constant dense<0.000000e+00> : vector<32xf32>
    %10 = vector.multi_reduction <add>, %9, %cst_7 [0] : vector<1152x32xf32> to vector<32xf32>
    %11 = vector.shape_cast %10 : vector<32xf32> to vector<1x32xf32>
    %12 = arith.mulf %9, %9 : vector<1152x32xf32>
    %cst_8 = arith.constant dense<0.000000e+00> : vector<32xf32>
    %13 = vector.multi_reduction <add>, %12, %cst_8 [0] : vector<1152x32xf32> to vector<32xf32>
    %14 = vector.shape_cast %13 : vector<32xf32> to vector<1x32xf32>
    %cst_9 = arith.constant 8.68055562E-4 : f32
    %15 = vector.broadcast %cst_9 : f32 to vector<1x32xf32>
    %16 = arith.mulf %11, %15 : vector<1x32xf32>
    %cst_10 = arith.constant 8.68055562E-4 : f32
    %17 = vector.broadcast %cst_10 : f32 to vector<1x32xf32>
    %18 = arith.mulf %14, %17 : vector<1x32xf32>
    %19 = arith.mulf %16, %16 : vector<1x32xf32>
    %20 = arith.subf %18, %19 : vector<1x32xf32>
    %21 = vector.broadcast %16 : vector<1x32xf32> to vector<1152x32xf32>
    %22 = arith.subf %9, %21 : vector<1152x32xf32>
    %cst_11 = arith.constant 9.99999974E-6 : f32
    %23 = vector.broadcast %cst_11 : f32 to vector<1x32xf32>
    %24 = arith.addf %20, %23 : vector<1x32xf32>
    %25 = math.rsqrt %24 : vector<1x32xf32>
    %26 = vector.broadcast %25 : vector<1x32xf32> to vector<1152x32xf32>
    %27 = arith.mulf %22, %26 : vector<1152x32xf32>
    %c0_12 = arith.constant 0 : index
    %c0_13 = arith.constant 0 : index
    %28 = vector.load %arg4[%c0_12, %c0_13] : memref<1x32xf32, #tpu.memory_space<vmem>>, vector<1x32xf32>
    %29 = vector.broadcast %28 : vector<1x32xf32> to vector<1152x32xf32>
    %30 = arith.mulf %27, %29 : vector<1152x32xf32>
    %c0_14 = arith.constant 0 : index
    %c0_15 = arith.constant 0 : index
    %31 = vector.load %arg5[%c0_14, %c0_15] : memref<1x32xf32, #tpu.memory_space<vmem>>, vector<1x32xf32>
    %32 = vector.broadcast %31 : vector<1x32xf32> to vector<1152x32xf32>
    %33 = arith.addf %30, %32 : vector<1152x32xf32>
    %c0_16 = arith.constant 0 : index
    %c0_17 = arith.constant 0 : index
    %34 = vector.load %arg7[%c0_16, %c0_17] : memref<1152x32xf32, #tpu.memory_space<vmem>>, vector<1152x32xf32>
    %35 = arith.subf %33, %34 : vector<1152x32xf32>
    %cst_18 = arith.constant 5.000000e-01 : f32
    %36 = vector.broadcast %cst_18 : f32 to vector<1152x32xf32>
    %37 = arith.mulf %35, %36 : vector<1152x32xf32>
    %38 = arith.addf %34, %37 : vector<1152x32xf32>
    %cst_19 = arith.constant 1.000000e+00 : f32
    %39 = vector.broadcast %cst_19 : f32 to vector<1152x32xf32>
    %40 = arith.cmpf oge, %38, %39 : vector<1152x32xf32>
    %41 = arith.extui %40 : vector<1152x32xi1> to vector<1152x32xi32>
    %42 = arith.sitofp %41 : vector<1152x32xi32> to vector<1152x32xf32>
    %43 = arith.truncf %42 : vector<1152x32xf32> to vector<1152x32xbf16>
    %c0_20 = arith.constant 0 : index
    %c0_21 = arith.constant 0 : index
    %c0_22 = arith.constant 0 : index
    %44 = vector.load %arg6[%c0_20, %c0_21, %c0_22] : memref<1x1152x32xbf16, #tpu.memory_space<vmem>>, vector<1x1152x32xbf16>
    %45 = vector.shape_cast %44 : vector<1x1152x32xbf16> to vector<1152x32xbf16>
    %46 = vector.shape_cast %43 : vector<1152x32xbf16> to vector<1x1152x32xbf16>
    tpu.vector_store %arg6[%c0_20, %c0_21, %c0_22], %46 {strides = array<i32>} : memref<1x1152x32xbf16, #tpu.memory_space<vmem>>, vector<1x1152x32xbf16>,
    %cst_23 = arith.constant 0.000000e+00 : f32
    %47 = vector.broadcast %cst_23 : f32 to vector<1152x32xf32>
    %48 = arith.select %40, %47, %38 : vector<1152x32xi1>, vector<1152x32xf32>
    %c0_24 = arith.constant 0 : index
    %c0_25 = arith.constant 0 : index
    %49 = vector.load %arg7[%c0_24, %c0_25] : memref<1152x32xf32, #tpu.memory_space<vmem>>, vector<1152x32xf32>
    tpu.vector_store %arg7[%c0_24, %c0_25], %48 {strides = array<i32>} : memref<1152x32xf32, #tpu.memory_space<vmem>>, vector<1152x32xf32>,
    return
  }
  func.func @transform_0(%arg0: i32) -> (i32, i32, i32) {
    %c0_i32 = arith.constant 0 : i32
    %c0_i32_0 = arith.constant 0 : i32
    %c0_i32_1 = arith.constant 0 : i32
    return %arg0, %c0_i32, %c0_i32_0 : i32, i32, i32
  }
  func.func @transform_1(%arg0: i32) -> (i32, i32) {
    %c0_i32 = arith.constant 0 : i32
    %c0_i32_0 = arith.constant 0 : i32
    %c0_i32_1 = arith.constant 0 : i32
    return %c0_i32, %c0_i32_0 : i32, i32
  }
  func.func @transform_2(%arg0: i32) -> (i32, i32) {
    %c0_i32 = arith.constant 0 : i32
    %c0_i32_0 = arith.constant 0 : i32
    %c0_i32_1 = arith.constant 0 : i32
    return %c0_i32, %c0_i32_0 : i32, i32
  }
  func.func @transform_3(%arg0: i32) -> (i32, i32) {
    %c0_i32 = arith.constant 0 : i32
    %c0_i32_0 = arith.constant 0 : i32
    %c0_i32_1 = arith.constant 0 : i32
    return %c0_i32, %c0_i32_0 : i32, i32
  }
  func.func @transform_4(%arg0: i32) -> (i32, i32) {
    %c0_i32 = arith.constant 0 : i32
    %c0_i32_0 = arith.constant 0 : i32
    %c0_i32_1 = arith.constant 0 : i32
    return %c0_i32, %c0_i32_0 : i32, i32
  }
  func.func @transform_5(%arg0: i32) -> (i32, i32, i32) {
    %c0_i32 = arith.constant 0 : i32
    %c0_i32_0 = arith.constant 0 : i32
    %c0_i32_1 = arith.constant 0 : i32
    return %arg0, %c0_i32, %c0_i32_0 : i32, i32, i32
  }
}

module attributes {stable_mosaic.version = 11 : i64} {
  func.func @conv_bn_lif_step_kernel(%arg0: i32, %arg1: memref<1x128x800xbf16, #tpu.memory_space<vmem>>, %arg2: memref<800x64xbf16, #tpu.memory_space<vmem>>, %arg3: memref<1x64xf32, #tpu.memory_space<vmem>>, %arg4: memref<1x64xf32, #tpu.memory_space<vmem>>, %arg5: memref<1x64xf32, #tpu.memory_space<vmem>>, %arg6: memref<1x128x64xbf16, #tpu.memory_space<vmem>>, %arg7: memref<128x64xf32, #tpu.memory_space<vmem>>) attributes {dimension_semantics = [#tpu.dimension_semantics<arbitrary>], iteration_bounds = array<i64: 4>, scalar_prefetch = 0 : i64, scratch_operands = 1 : i64, tpu.core_type = #tpu.core_type<tc>, window_params = [{transform_indices = @transform_0, window_bounds = array<i64: 1, 128, 800>}, {pipeline_mode = #tpu.pipeline_mode<synchronous>, transform_indices = @transform_1, window_bounds = array<i64: 800, 64>}, {pipeline_mode = #tpu.pipeline_mode<synchronous>, transform_indices = @transform_2, window_bounds = array<i64: 1, 64>}, {pipeline_mode = #tpu.pipeline_mode<synchronous>, transform_indices = @transform_3, window_bounds = array<i64: 1, 64>}, {pipeline_mode = #tpu.pipeline_mode<synchronous>, transform_indices = @transform_4, window_bounds = array<i64: 1, 64>}, {transform_indices = @transform_5, window_bounds = array<i64: 1, 128, 64>}]} {
    %c0_i32 = arith.constant 0 : i32
    %0 = arith.cmpi eq, %arg0, %c0_i32 : i32
    %1 = arith.extui %0 : i1 to i32
    %c0_i32_0 = arith.constant 0 : i32
    %2 = arith.cmpi ne, %1, %c0_i32_0 : i32
    scf.if %2 {
      %cst_26 = arith.constant 0.000000e+00 : f32
      %50 = vector.broadcast %cst_26 : f32 to vector<128x64xf32>
      %c0_27 = arith.constant 0 : index
      %c0_28 = arith.constant 0 : index
      %51 = vector.load %arg7[%c0_27, %c0_28] : memref<128x64xf32, #tpu.memory_space<vmem>>, vector<128x64xf32>
      tpu.vector_store %arg7[%c0_27, %c0_28], %50 {strides = array<i32>} : memref<128x64xf32, #tpu.memory_space<vmem>>, vector<128x64xf32>,
    } else {
    }
    %c0 = arith.constant 0 : index
    %c0_1 = arith.constant 0 : index
    %c0_2 = arith.constant 0 : index
    %3 = vector.load %arg1[%c0, %c0_1, %c0_2] : memref<1x128x800xbf16, #tpu.memory_space<vmem>>, vector<1x128x800xbf16>
    %4 = vector.shape_cast %3 : vector<1x128x800xbf16> to vector<128x800xbf16>
    %c0_3 = arith.constant 0 : index
    %c0_4 = arith.constant 0 : index
    %5 = vector.load %arg2[%c0_3, %c0_4] : memref<800x64xbf16, #tpu.memory_space<vmem>>, vector<800x64xbf16>
    %cst = arith.constant dense<0.000000e+00> : vector<128x64xf32>
    %6 = tpu.matmul %4, %5, %cst {dimension_numbers = #tpu.dot_dimension_numbers<[1], [0], [0], [1], [0, 0, 1, 1], [], []>} : vector<128x800xbf16>, vector<800x64xbf16>, vector<128x64xf32> -> vector<128x64xf32>
    %c0_5 = arith.constant 0 : index
    %c0_6 = arith.constant 0 : index
    %7 = vector.load %arg3[%c0_5, %c0_6] : memref<1x64xf32, #tpu.memory_space<vmem>>, vector<1x64xf32>
    %8 = vector.broadcast %7 : vector<1x64xf32> to vector<128x64xf32>
    %9 = arith.addf %6, %8 : vector<128x64xf32>
    %cst_7 = arith.constant dense<0.000000e+00> : vector<64xf32>
    %10 = vector.multi_reduction <add>, %9, %cst_7 [0] : vector<128x64xf32> to vector<64xf32>
    %11 = vector.shape_cast %10 : vector<64xf32> to vector<1x64xf32>
    %12 = arith.mulf %9, %9 : vector<128x64xf32>
    %cst_8 = arith.constant dense<0.000000e+00> : vector<64xf32>
    %13 = vector.multi_reduction <add>, %12, %cst_8 [0] : vector<128x64xf32> to vector<64xf32>
    %14 = vector.shape_cast %13 : vector<64xf32> to vector<1x64xf32>
    %cst_9 = arith.constant 7.812500e-03 : f32
    %15 = vector.broadcast %cst_9 : f32 to vector<1x64xf32>
    %16 = arith.mulf %11, %15 : vector<1x64xf32>
    %cst_10 = arith.constant 7.812500e-03 : f32
    %17 = vector.broadcast %cst_10 : f32 to vector<1x64xf32>
    %18 = arith.mulf %14, %17 : vector<1x64xf32>
    %19 = arith.mulf %16, %16 : vector<1x64xf32>
    %20 = arith.subf %18, %19 : vector<1x64xf32>
    %21 = vector.broadcast %16 : vector<1x64xf32> to vector<128x64xf32>
    %22 = arith.subf %9, %21 : vector<128x64xf32>
    %cst_11 = arith.constant 9.99999974E-6 : f32
    %23 = vector.broadcast %cst_11 : f32 to vector<1x64xf32>
    %24 = arith.addf %20, %23 : vector<1x64xf32>
    %25 = math.rsqrt %24 : vector<1x64xf32>
    %26 = vector.broadcast %25 : vector<1x64xf32> to vector<128x64xf32>
    %27 = arith.mulf %22, %26 : vector<128x64xf32>
    %c0_12 = arith.constant 0 : index
    %c0_13 = arith.constant 0 : index
    %28 = vector.load %arg4[%c0_12, %c0_13] : memref<1x64xf32, #tpu.memory_space<vmem>>, vector<1x64xf32>
    %29 = vector.broadcast %28 : vector<1x64xf32> to vector<128x64xf32>
    %30 = arith.mulf %27, %29 : vector<128x64xf32>
    %c0_14 = arith.constant 0 : index
    %c0_15 = arith.constant 0 : index
    %31 = vector.load %arg5[%c0_14, %c0_15] : memref<1x64xf32, #tpu.memory_space<vmem>>, vector<1x64xf32>
    %32 = vector.broadcast %31 : vector<1x64xf32> to vector<128x64xf32>
    %33 = arith.addf %30, %32 : vector<128x64xf32>
    %c0_16 = arith.constant 0 : index
    %c0_17 = arith.constant 0 : index
    %34 = vector.load %arg7[%c0_16, %c0_17] : memref<128x64xf32, #tpu.memory_space<vmem>>, vector<128x64xf32>
    %35 = arith.subf %33, %34 : vector<128x64xf32>
    %cst_18 = arith.constant 5.000000e-01 : f32
    %36 = vector.broadcast %cst_18 : f32 to vector<128x64xf32>
    %37 = arith.mulf %35, %36 : vector<128x64xf32>
    %38 = arith.addf %34, %37 : vector<128x64xf32>
    %cst_19 = arith.constant 1.000000e+00 : f32
    %39 = vector.broadcast %cst_19 : f32 to vector<128x64xf32>
    %40 = arith.cmpf oge, %38, %39 : vector<128x64xf32>
    %41 = arith.extui %40 : vector<128x64xi1> to vector<128x64xi32>
    %42 = arith.sitofp %41 : vector<128x64xi32> to vector<128x64xf32>
    %43 = arith.truncf %42 : vector<128x64xf32> to vector<128x64xbf16>
    %c0_20 = arith.constant 0 : index
    %c0_21 = arith.constant 0 : index
    %c0_22 = arith.constant 0 : index
    %44 = vector.load %arg6[%c0_20, %c0_21, %c0_22] : memref<1x128x64xbf16, #tpu.memory_space<vmem>>, vector<1x128x64xbf16>
    %45 = vector.shape_cast %44 : vector<1x128x64xbf16> to vector<128x64xbf16>
    %46 = vector.shape_cast %43 : vector<128x64xbf16> to vector<1x128x64xbf16>
    tpu.vector_store %arg6[%c0_20, %c0_21, %c0_22], %46 {strides = array<i32>} : memref<1x128x64xbf16, #tpu.memory_space<vmem>>, vector<1x128x64xbf16>,
    %cst_23 = arith.constant 0.000000e+00 : f32
    %47 = vector.broadcast %cst_23 : f32 to vector<128x64xf32>
    %48 = arith.select %40, %47, %38 : vector<128x64xi1>, vector<128x64xf32>
    %c0_24 = arith.constant 0 : index
    %c0_25 = arith.constant 0 : index
    %49 = vector.load %arg7[%c0_24, %c0_25] : memref<128x64xf32, #tpu.memory_space<vmem>>, vector<128x64xf32>
    tpu.vector_store %arg7[%c0_24, %c0_25], %48 {strides = array<i32>} : memref<128x64xf32, #tpu.memory_space<vmem>>, vector<128x64xf32>,
    return
  }
  func.func @transform_0(%arg0: i32) -> (i32, i32, i32) {
    %c0_i32 = arith.constant 0 : i32
    %c0_i32_0 = arith.constant 0 : i32
    %c0_i32_1 = arith.constant 0 : i32
    return %arg0, %c0_i32, %c0_i32_0 : i32, i32, i32
  }
  func.func @transform_1(%arg0: i32) -> (i32, i32) {
    %c0_i32 = arith.constant 0 : i32
    %c0_i32_0 = arith.constant 0 : i32
    %c0_i32_1 = arith.constant 0 : i32
    return %c0_i32, %c0_i32_0 : i32, i32
  }
  func.func @transform_2(%arg0: i32) -> (i32, i32) {
    %c0_i32 = arith.constant 0 : i32
    %c0_i32_0 = arith.constant 0 : i32
    %c0_i32_1 = arith.constant 0 : i32
    return %c0_i32, %c0_i32_0 : i32, i32
  }
  func.func @transform_3(%arg0: i32) -> (i32, i32) {
    %c0_i32 = arith.constant 0 : i32
    %c0_i32_0 = arith.constant 0 : i32
    %c0_i32_1 = arith.constant 0 : i32
    return %c0_i32, %c0_i32_0 : i32, i32
  }
  func.func @transform_4(%arg0: i32) -> (i32, i32) {
    %c0_i32 = arith.constant 0 : i32
    %c0_i32_0 = arith.constant 0 : i32
    %c0_i32_1 = arith.constant 0 : i32
    return %c0_i32, %c0_i32_0 : i32, i32
  }
  func.func @transform_5(%arg0: i32) -> (i32, i32, i32) {
    %c0_i32 = arith.constant 0 : i32
    %c0_i32_0 = arith.constant 0 : i32
    %c0_i32_1 = arith.constant 0 : i32
    return %arg0, %c0_i32, %c0_i32_0 : i32, i32, i32
  }
}

module attributes {stable_mosaic.version = 11 : i64} {
  func.func @fc_fused_kernel(%arg0: i32, %arg1: memref<1x2x1024xbf16, #tpu.memory_space<vmem>>, %arg2: memref<1024x1024xbf16, #tpu.memory_space<vmem>>, %arg3: memref<1x1024xf32, #tpu.memory_space<vmem>>, %arg4: memref<1x1024xf32, #tpu.memory_space<vmem>>, %arg5: memref<1x1xf32, #tpu.memory_space<vmem>>, %arg6: memref<2x1xf32, #tpu.memory_space<vmem>>, %arg7: memref<2x1024xf32, #tpu.memory_space<vmem>>, %arg8: memref<2x1xf32, #tpu.memory_space<vmem>>) attributes {dimension_semantics = [#tpu.dimension_semantics<arbitrary>], iteration_bounds = array<i64: 4>, scalar_prefetch = 0 : i64, scratch_operands = 2 : i64, tpu.core_type = #tpu.core_type<tc>, window_params = [{transform_indices = @transform_0, window_bounds = array<i64: 1, 2, 1024>}, {pipeline_mode = #tpu.pipeline_mode<synchronous>, transform_indices = @transform_1, window_bounds = array<i64: 1024, 1024>}, {pipeline_mode = #tpu.pipeline_mode<synchronous>, transform_indices = @transform_2, window_bounds = array<i64: 1, 1024>}, {pipeline_mode = #tpu.pipeline_mode<synchronous>, transform_indices = @transform_3, window_bounds = array<i64: 1, 1024>}, {pipeline_mode = #tpu.pipeline_mode<synchronous>, transform_indices = @transform_4, window_bounds = array<i64: 1, 1>}, {pipeline_mode = #tpu.pipeline_mode<synchronous>, transform_indices = @transform_5, window_bounds = array<i64: 2, 1>}]} {
    %c0_i32 = arith.constant 0 : i32
    %0 = arith.cmpi eq, %arg0, %c0_i32 : i32
    %1 = arith.extui %0 : i1 to i32
    %c0_i32_0 = arith.constant 0 : i32
    %2 = arith.cmpi ne, %1, %c0_i32_0 : i32
    scf.if %2 {
      %cst_26 = arith.constant 0.000000e+00 : f32
      %36 = vector.broadcast %cst_26 : f32 to vector<2x1024xf32>
      %c0_27 = arith.constant 0 : index
      %c0_28 = arith.constant 0 : index
      %37 = vector.load %arg7[%c0_27, %c0_28] : memref<2x1024xf32, #tpu.memory_space<vmem>>, vector<2x1024xf32>
      tpu.vector_store %arg7[%c0_27, %c0_28], %36 {strides = array<i32>} : memref<2x1024xf32, #tpu.memory_space<vmem>>, vector<2x1024xf32>,
      %cst_29 = arith.constant 0.000000e+00 : f32
      %38 = vector.broadcast %cst_29 : f32 to vector<2x1xf32>
      %c0_30 = arith.constant 0 : index
      %c0_31 = arith.constant 0 : index
      %39 = vector.load %arg8[%c0_30, %c0_31] : memref<2x1xf32, #tpu.memory_space<vmem>>, vector<2x1xf32>
      tpu.vector_store %arg8[%c0_30, %c0_31], %38 {strides = array<i32>} : memref<2x1xf32, #tpu.memory_space<vmem>>, vector<2x1xf32>,
    } else {
    }
    %c0 = arith.constant 0 : index
    %c0_1 = arith.constant 0 : index
    %c0_2 = arith.constant 0 : index
    %3 = vector.load %arg1[%c0, %c0_1, %c0_2] : memref<1x2x1024xbf16, #tpu.memory_space<vmem>>, vector<1x2x1024xbf16>
    %4 = vector.shape_cast %3 : vector<1x2x1024xbf16> to vector<2x1024xbf16>
    %c0_3 = arith.constant 0 : index
    %c0_4 = arith.constant 0 : index
    %5 = vector.load %arg2[%c0_3, %c0_4] : memref<1024x1024xbf16, #tpu.memory_space<vmem>>, vector<1024x1024xbf16>
    %cst = arith.constant dense<0.000000e+00> : vector<2x1024xf32>
    %6 = tpu.matmul %4, %5, %cst {dimension_numbers = #tpu.dot_dimension_numbers<[1], [0], [0], [1], [0, 0, 1, 1], [], []>} : vector<2x1024xbf16>, vector<1024x1024xbf16>, vector<2x1024xf32> -> vector<2x1024xf32>
    %c0_5 = arith.constant 0 : index
    %c0_6 = arith.constant 0 : index
    %7 = vector.load %arg3[%c0_5, %c0_6] : memref<1x1024xf32, #tpu.memory_space<vmem>>, vector<1x1024xf32>
    %8 = vector.broadcast %7 : vector<1x1024xf32> to vector<2x1024xf32>
    %9 = arith.addf %6, %8 : vector<2x1024xf32>
    %c0_7 = arith.constant 0 : index
    %c0_8 = arith.constant 0 : index
    %10 = vector.load %arg7[%c0_7, %c0_8] : memref<2x1024xf32, #tpu.memory_space<vmem>>, vector<2x1024xf32>
    %11 = arith.subf %9, %10 : vector<2x1024xf32>
    %cst_9 = arith.constant 5.000000e-01 : f32
    %12 = vector.broadcast %cst_9 : f32 to vector<2x1024xf32>
    %13 = arith.mulf %11, %12 : vector<2x1024xf32>
    %14 = arith.addf %10, %13 : vector<2x1024xf32>
    %cst_10 = arith.constant 1.000000e+00 : f32
    %15 = vector.broadcast %cst_10 : f32 to vector<2x1024xf32>
    %16 = arith.cmpf oge, %14, %15 : vector<2x1024xf32>
    %cst_11 = arith.constant 0.000000e+00 : f32
    %17 = vector.broadcast %cst_11 : f32 to vector<2x1024xf32>
    %18 = arith.select %16, %17, %14 : vector<2x1024xi1>, vector<2x1024xf32>
    %c0_12 = arith.constant 0 : index
    %c0_13 = arith.constant 0 : index
    %19 = vector.load %arg7[%c0_12, %c0_13] : memref<2x1024xf32, #tpu.memory_space<vmem>>, vector<2x1024xf32>
    tpu.vector_store %arg7[%c0_12, %c0_13], %18 {strides = array<i32>} : memref<2x1024xf32, #tpu.memory_space<vmem>>, vector<2x1024xf32>,
    %20 = arith.extui %16 : vector<2x1024xi1> to vector<2x1024xi32>
    %21 = arith.sitofp %20 : vector<2x1024xi32> to vector<2x1024xf32>
    %c0_14 = arith.constant 0 : index
    %c0_15 = arith.constant 0 : index
    %22 = vector.load %arg4[%c0_14, %c0_15] : memref<1x1024xf32, #tpu.memory_space<vmem>>, vector<1x1024xf32>
    %23 = vector.broadcast %22 : vector<1x1024xf32> to vector<2x1024xf32>
    %24 = arith.mulf %21, %23 : vector<2x1024xf32>
    %cst_16 = arith.constant dense<0.000000e+00> : vector<2xf32>
    %25 = vector.multi_reduction <add>, %24, %cst_16 [1] : vector<2x1024xf32> to vector<2xf32>
    %26 = vector.shape_cast %25 : vector<2xf32> to vector<2x1xf32>
    %c0_17 = arith.constant 0 : index
    %c0_18 = arith.constant 0 : index
    %27 = vector.load %arg5[%c0_17, %c0_18] : memref<1x1xf32, #tpu.memory_space<vmem>>, vector<1x1xf32>
    %28 = vector.broadcast %27 : vector<1x1xf32> to vector<2x1xf32>
    %29 = arith.addf %26, %28 : vector<2x1xf32>
    %c0_19 = arith.constant 0 : index
    %c0_20 = arith.constant 0 : index
    %30 = vector.load %arg8[%c0_19, %c0_20] : memref<2x1xf32, #tpu.memory_space<vmem>>, vector<2x1xf32>
    %31 = arith.addf %30, %29 : vector<2x1xf32>
    %c0_21 = arith.constant 0 : index
    %c0_22 = arith.constant 0 : index
    %32 = vector.load %arg8[%c0_21, %c0_22] : memref<2x1xf32, #tpu.memory_space<vmem>>, vector<2x1xf32>
    tpu.vector_store %arg8[%c0_21, %c0_22], %31 {strides = array<i32>} : memref<2x1xf32, #tpu.memory_space<vmem>>, vector<2x1xf32>,
    %cst_23 = arith.constant 2.500000e-01 : f32
    %33 = vector.broadcast %cst_23 : f32 to vector<2x1xf32>
    %34 = arith.mulf %31, %33 : vector<2x1xf32>
    %c0_24 = arith.constant 0 : index
    %c0_25 = arith.constant 0 : index
    %35 = vector.load %arg6[%c0_24, %c0_25] : memref<2x1xf32, #tpu.memory_space<vmem>>, vector<2x1xf32>
    tpu.vector_store %arg6[%c0_24, %c0_25], %34 {strides = array<i32>} : memref<2x1xf32, #tpu.memory_space<vmem>>, vector<2x1xf32>,
    return
  }
  func.func @transform_0(%arg0: i32) -> (i32, i32, i32) {
    %c0_i32 = arith.constant 0 : i32
    %c0_i32_0 = arith.constant 0 : i32
    %c0_i32_1 = arith.constant 0 : i32
    return %arg0, %c0_i32, %c0_i32_0 : i32, i32, i32
  }
  func.func @transform_1(%arg0: i32) -> (i32, i32) {
    %c0_i32 = arith.constant 0 : i32
    %c0_i32_0 = arith.constant 0 : i32
    %c0_i32_1 = arith.constant 0 : i32
    return %c0_i32, %c0_i32_0 : i32, i32
  }
  func.func @transform_2(%arg0: i32) -> (i32, i32) {
    %c0_i32 = arith.constant 0 : i32
    %c0_i32_0 = arith.constant 0 : i32
    %c0_i32_1 = arith.constant 0 : i32
    return %c0_i32, %c0_i32_0 : i32, i32
  }
  func.func @transform_3(%arg0: i32) -> (i32, i32) {
    %c0_i32 = arith.constant 0 : i32
    %c0_i32_0 = arith.constant 0 : i32
    %c0_i32_1 = arith.constant 0 : i32
    return %c0_i32, %c0_i32_0 : i32, i32
  }
  func.func @transform_4(%arg0: i32) -> (i32, i32) {
    %c0_i32 = arith.constant 0 : i32
    %c0_i32_0 = arith.constant 0 : i32
    %c0_i32_1 = arith.constant 0 : i32
    return %c0_i32, %c0_i32_0 : i32, i32
  }
  func.func @transform_5(%arg0: i32) -> (i32, i32) {
    %c0_i32 = arith.constant 0 : i32
    %c0_i32_0 = arith.constant 0 : i32
    %c0_i32_1 = arith.constant 0 : i32
    return %c0_i32, %c0_i32_0 : i32, i32
  }
}

</mosaic_0001>

<llo_original>
// kernel: discriminator_forward.3
$region0: #{discriminator_forward.3}
  #allocation0 [shape = 'u32[]', space=smem, size = 0x4, offset = 0x4, fixed_abs, tag = 'smem constant byte address 0x4 - core index']
  #allocation1 [shape = 'u32[144,128]{1,0:T(1,128)}', space=vmem, size = 0x12000, scoped, tag = 'internal scratch']
  #allocation2 [shape = 'f32[1152,32]{1,0:T(8,128)}', space=vmem, size = 0x90000, scoped, tag = 'scratch operand']
  %s0 = inlined_call_operand.vmem [shape: bf16[4,1152,32], index: 0, kind: input, shape index: {}]
  %s1 = inlined_call_operand.vmem [shape: bf16[32,32], index: 1, kind: input, shape index: {}]
  %s2 = inlined_call_operand.vmem [shape: f32[1,32], index: 2, kind: input, shape index: {}]
  %s3 = inlined_call_operand.vmem [shape: f32[1,32], index: 3, kind: input, shape index: {}]
  %s4 = inlined_call_operand.vmem [shape: f32[1,32], index: 4, kind: input, shape index: {}]
  %s5 = inlined_call_operand.vmem [shape: bf16[4,1152,32], index: 5, kind: output, shape index: {}]
  %s6 = sld [smem:[#allocation0]]
  $region57: #{discriminator_forward.3} parent=0
    _
  %s8 = ssub.s32 1, %s6
  %s9 = scalar_select 0, %s8, %s6
  loop: start=0, step=1, limit=6
  $region2: #{discriminator_forward.3} parent=0 // loop_pre_header
    _
  $region3: #{discriminator_forward.3} parent=0 // loop_header
    %s11 = sphi 0, %s15
    %p12 = scmp.ge.s32.totalorder %s11, 6
    %s21 = sphi 0, %s23
    %s24 = sphi 0, %s21
    %s25 = sphi 0, %s24
    %s41 = sphi 0, %s25
    %s45 = sphi 0, %s45
    %s47 = sphi 0, %s45
    %s48 = sphi 0, %s47
    %s62 = sphi 0, %s48
    %s66 = sphi 0, %s66
    %s68 = sphi 0, %s66
    %s69 = sphi 0, %s68
    %s83 = sphi 0, %s69
    %s87 = sphi 0, %s87
    %s89 = sphi 0, %s87
    %s90 = sphi 0, %s89
    %s104 = sphi 0, %s90
    %s108 = sphi 0, %s108
    %s110 = sphi 0, %s108
    %s111 = sphi 0, %s110
    %s125 = sphi 0, %s111
    %s131 = sphi 0, %s133
    %s134 = sphi 0, %s131
    %s135 = sphi 0, %s134
    %s151 = sphi 0, %s135
  $region4: #{discriminator_forward.3} parent=0 // loop_header_branch
    %14 = sbr.rel (%p12) target = $region8
  $region5: #{discriminator_forward.3} parent=0 // loop_body
    %s16 = ssub.s32 %s11, 1
    %s17 = ssub.s32 %s11, 2
    %s18 = sadd.s32 %s11, 1
    %s19 = ssub.s32 %s11, %s18
    %p20 = scmp.eq.s32.totalorder %s19, 0
    %s22 = sadd.s32 %s21, 1
    %s23 = scalar_select %p20, %s21, %s22
    %p26 = pneg %p20
    %p27 = scmp.eq.s32.totalorder %s11, 3
    %p28 = por %p26, %p27
    %p29 = scmp.ne.s32.totalorder %s21, %s24
    %p30 = scmp.eq.s32.totalorder %s11, 0
    %p31 = por %p29, %p30
    %p32 = scmp.ne.s32.totalorder %s21, %s24
    %p33 = scmp.eq.s32.totalorder %s16, 3
    %p34 = por %p32, %p33
    %p35 = scmp.ne.s32.totalorder %s24, %s25
    %p36 = scmp.eq.s32.totalorder %s16, 0
    %p37 = por %p35, %p36
    %p38 = scmp.ne.s32.totalorder %s24, %s25
    %p39 = scmp.eq.s32.totalorder %s17, 3
    %p40 = por %p38, %p39
    %p42 = scmp.ne.s32.totalorder %s25, %s41
    %p43 = scmp.eq.s32.totalorder %s17, 0
    %p44 = por %p42, %p43
    %s46 = sadd.s32 %s45, 1
    %p49 = scmp.eq.s32.totalorder %s11, 3
    %p50 = scmp.ne.s32.totalorder %s45, %s47
    %p51 = scmp.eq.s32.totalorder %s11, 0
    %p52 = por %p50, %p51
    %p53 = scmp.ne.s32.totalorder %s45, %s47
    %p54 = scmp.eq.s32.totalorder %s16, 3
    %p55 = por %p53, %p54
    %p56 = scmp.ne.s32.totalorder %s47, %s48
    %p57 = scmp.eq.s32.totalorder %s16, 0
    %p58 = por %p56, %p57
    %p59 = scmp.ne.s32.totalorder %s47, %s48
    %p60 = scmp.eq.s32.totalorder %s17, 3
    %p61 = por %p59, %p60
    %p63 = scmp.ne.s32.totalorder %s48, %s62
    %p64 = scmp.eq.s32.totalorder %s17, 0
    %p65 = por %p63, %p64
    %s67 = sadd.s32 %s66, 1
    %p70 = scmp.eq.s32.totalorder %s11, 3
    %p71 = scmp.ne.s32.totalorder %s66, %s68
    %p72 = scmp.eq.s32.totalorder %s11, 0
    %p73 = por %p71, %p72
    %p74 = scmp.ne.s32.totalorder %s66, %s68
    %p75 = scmp.eq.s32.totalorder %s16, 3
    %p76 = por %p74, %p75
    %p77 = scmp.ne.s32.totalorder %s68, %s69
    %p78 = scmp.eq.s32.totalorder %s16, 0
    %p79 = por %p77, %p78
    %p80 = scmp.ne.s32.totalorder %s68, %s69
    %p81 = scmp.eq.s32.totalorder %s17, 3
    %p82 = por %p80, %p81
    %p84 = scmp.ne.s32.totalorder %s69, %s83
    %p85 = scmp.eq.s32.totalorder %s17, 0
    %p86 = por %p84, %p85
    %s88 = sadd.s32 %s87, 1
    %p91 = scmp.eq.s32.totalorder %s11, 3
    %p92 = scmp.ne.s32.totalorder %s87, %s89
    %p93 = scmp.eq.s32.totalorder %s11, 0
    %p94 = por %p92, %p93
    %p95 = scmp.ne.s32.totalorder %s87, %s89
    %p96 = scmp.eq.s32.totalorder %s16, 3
    %p97 = por %p95, %p96
    %p98 = scmp.ne.s32.totalorder %s89, %s90
    %p99 = scmp.eq.s32.totalorder %s16, 0
    %p100 = por %p98, %p99
    %p101 = scmp.ne.s32.totalorder %s89, %s90
    %p102 = scmp.eq.s32.totalorder %s17, 3
    %p103 = por %p101, %p102
    %p105 = scmp.ne.s32.totalorder %s90, %s104
    %p106 = scmp.eq.s32.totalorder %s17, 0
    %p107 = por %p105, %p106
    %s109 = sadd.s32 %s108, 1
    %p112 = scmp.eq.s32.totalorder %s11, 3
    %p113 = scmp.ne.s32.totalorder %s108, %s110
    %p114 = scmp.eq.s32.totalorder %s11, 0
    %p115 = por %p113, %p114
    %p116 = scmp.ne.s32.totalorder %s108, %s110
    %p117 = scmp.eq.s32.totalorder %s16, 3
    %p118 = por %p116, %p117
    %p119 = scmp.ne.s32.totalorder %s110, %s111
    %p120 = scmp.eq.s32.totalorder %s16, 0
    %p121 = por %p119, %p120
    %p122 = scmp.ne.s32.totalorder %s110, %s111
    %p123 = scmp.eq.s32.totalorder %s17, 3
    %p124 = por %p122, %p123
    %p126 = scmp.ne.s32.totalorder %s111, %s125
    %p127 = scmp.eq.s32.totalorder %s17, 0
    %p128 = por %p126, %p127
    %s129 = ssub.s32 %s11, %s18
    %p130 = scmp.eq.s32.totalorder %s129, 0
    %s132 = sadd.s32 %s131, 1
    %s133 = scalar_select %p130, %s131, %s132
    %p136 = pneg %p130
    %p137 = scmp.eq.s32.totalorder %s11, 3
    %p138 = por %p136, %p137
    %p139 = scmp.ne.s32.totalorder %s131, %s134
    %p140 = scmp.eq.s32.totalorder %s11, 0
    %p141 = por %p139, %p140
    %p142 = scmp.ne.s32.totalorder %s131, %s134
    %p143 = scmp.eq.s32.totalorder %s16, 3
    %p144 = por %p142, %p143
    %p145 = scmp.ne.s32.totalorder %s134, %s135
    %p146 = scmp.eq.s32.totalorder %s16, 0
    %p147 = por %p145, %p146
    %p148 = scmp.ne.s32.totalorder %s134, %s135
    %p149 = scmp.eq.s32.totalorder %s17, 3
    %p150 = por %p148, %p149
    %p152 = scmp.ne.s32.totalorder %s135, %s151
    %p153 = scmp.eq.s32.totalorder %s17, 0
    %p154 = por %p152, %p153
    %p155 = scmp.le.s32.totalorder 1, %s11
    %p156 = scmp.lt.s32.totalorder %s11, 5
    %p157 = pnand %p155, %p156
    %p158 = pneg %p157
    // Predicated region
    $region9: #{discriminator_forward.3} parent=5 // pred_check
      _
    $region10: #{discriminator_forward.3} parent=5 // pred_check_branch
      %160 = sbr.rel (%p157) target = $region12
    $region11: #{discriminator_forward.3} parent=5 // pred_region
      %s161 = ssub.s32 %s11, 1
      // Predicated region
      $region13: #{discriminator_forward.3} parent=11 // pred_check
        %p162 = pneg %p58
      $region14: #{discriminator_forward.3} parent=11 // pred_check_branch
        %164 = sbr.rel (%p162) target = $region16
      $region15: #{discriminator_forward.3} parent=11 // pred_region
        _
      $region16: #{discriminator_forward.3} parent=11 // pred_fallthru
        _
      // Predicated region
      $region17: #{discriminator_forward.3} parent=11 // pred_check
        %p165 = pneg %p79
      $region18: #{discriminator_forward.3} parent=11 // pred_check_branch
        %167 = sbr.rel (%p165) target = $region20
      $region19: #{discriminator_forward.3} parent=11 // pred_region
        _
      $region20: #{discriminator_forward.3} parent=11 // pred_fallthru
        _
      // Predicated region
      $region21: #{discriminator_forward.3} parent=11 // pred_check
        %p168 = pneg %p100
      $region22: #{discriminator_forward.3} parent=11 // pred_check_branch
        %170 = sbr.rel (%p168) target = $region24
      $region23: #{discriminator_forward.3} parent=11 // pred_region
        _
      $region24: #{discriminator_forward.3} parent=11 // pred_fallthru
        _
      // Predicated region
      $region25: #{discriminator_forward.3} parent=11 // pred_check
        %p171 = pneg %p121
      $region26: #{discriminator_forward.3} parent=11 // pred_check_branch
        %173 = sbr.rel (%p171) target = $region28
      $region27: #{discriminator_forward.3} parent=11 // pred_region
        _
      $region28: #{discriminator_forward.3} parent=11 // pred_fallthru
        _
    $region12: #{discriminator_forward.3} parent=5 // pred_fallthru
      _
    %p174 = scmp.lt.s32.totalorder %s11, 4
    // Predicated region
    $region29: #{discriminator_forward.3} parent=5 // pred_check
      %p175 = pneg %p174
    $region30: #{discriminator_forward.3} parent=5 // pred_check_branch
      %177 = sbr.rel (%p175) target = $region32
    $region31: #{discriminator_forward.3} parent=5 // pred_region
      // Predicated region
      $region33: #{discriminator_forward.3} parent=31 // pred_check
        %p178 = pneg %p31
      $region34: #{discriminator_forward.3} parent=31 // pred_check_branch
        %180 = sbr.rel (%p178) target = $region36
      $region35: #{discriminator_forward.3} parent=31 // pred_region
        %p181 = scmp.lt.s32.totalorder %s11, 3
        %s182 = scalar_select %p181, %s11, 3
        %s183 = smul.addr %s182, 144
        %s184 = smul.addr %s183, 4
        %s185 = scalar_lea.vmem %s0, %s184
      $region36: #{discriminator_forward.3} parent=31 // pred_fallthru
        _
    $region32: #{discriminator_forward.3} parent=5 // pred_fallthru
      _
    %p186 = scmp.le.s32.totalorder 1, %s11
    %p187 = scmp.lt.s32.totalorder %s11, 5
    %p188 = pnand %p186, %p187
    %p189 = pneg %p188
    // Predicated region
    $region37: #{discriminator_forward.3} parent=5 // pred_check
      _
    $region38: #{discriminator_forward.3} parent=5 // pred_check_branch
      %191 = sbr.rel (%p188) target = $region40
    $region39: #{discriminator_forward.3} parent=5 // pred_region
      %s192 = ssub.s32 %s11, 1
      %p193 = scmp.lt.s32.totalorder %s16, 3
      %s194 = scalar_select %p193, %s16, 3
      %s195 = smul.addr %s194, 144
      %s196 = smul.addr %s195, 4
      %s197 = scalar_lea.vmem %s0, %s196
      %p198 = pneg %p37
      %p199 = pneg %p34
      %p200 = pneg %p58
      %p201 = pneg %p55
      %p202 = pneg %p79
      %p203 = pneg %p76
      %p204 = pneg %p100
      %p205 = pneg %p97
      %p206 = pneg %p121
      %p207 = pneg %p118
      %p208 = pneg %p147
      %p209 = pneg %p144
      %p210 = scmp.lt.s32.totalorder %s16, 3
      %s211 = scalar_select %p210, %s16, 3
      %s212 = smul.addr %s211, 144
      %s213 = smul.addr %s212, 4
      %s214 = scalar_lea.vmem %s5, %s213
      %p215 = scmp.lt.s32.totalorder %s16, 3
      %s216 = scalar_select %p215, %s16, 3
      %s217 = smul.addr %s216, 144
      %s218 = smul.addr %s217, 4
      %s219 = scalar_lea.vmem %s0, %s218
      %p220 = scmp.lt.s32.totalorder %s16, 3
      %s221 = scalar_select %p220, %s16, 3
      %s222 = smul.addr %s221, 144
      %s223 = smul.addr %s222, 4
      %s224 = scalar_lea.vmem %s5, %s223
      %p226 = scmp.eq.s32.totalorder %s16, 0
      // Predicated region
      $region41: #{discriminator_forward.3} parent=39 // pred_check
        %p227 = pneg %p226
      $region42: #{discriminator_forward.3} parent=39 // pred_check_branch
        %229 = sbr.rel (%p227) target = $region44
      $region43: #{discriminator_forward.3} parent=39 // pred_region
        %vm230 = vcmask 261120
        %231 = vst.msk [vmem:[#allocation2] sm:$0xff] %vm230, 0.0
        %232 = vst.msk [vmem:[#allocation2 + $0x8] sm:$0xff] %vm230, 0.0
        %233 = vst.msk [vmem:[#allocation2 + $0x10] sm:$0xff] %vm230, 0.0
        %234 = vst.msk [vmem:[#allocation2 + $0x18] sm:$0xff] %vm230, 0.0
        %235 = vst.msk [vmem:[#allocation2 + $0x20] sm:$0xff] %vm230, 0.0
        %236 = vst.msk [vmem:[#allocation2 + $0x28] sm:$0xff] %vm230, 0.0
        %237 = vst.msk [vmem:[#allocation2 + $0x30] sm:$0xff] %vm230, 0.0
        %238 = vst.msk [vmem:[#allocation2 + $0x38] sm:$0xff] %vm230, 0.0
        %239 = vst.msk [vmem:[#allocation2 + $0x40] sm:$0xff] %vm230, 0.0
        %240 = vst.msk [vmem:[#allocation2 + $0x48] sm:$0xff] %vm230, 0.0
        %241 = vst.msk [vmem:[#allocation2 + $0x50] sm:$0xff] %vm230, 0.0
        %242 = vst.msk [vmem:[#allocation2 + $0x58] sm:$0xff] %vm230, 0.0
        %243 = vst.msk [vmem:[#allocation2 + $0x60] sm:$0xff] %vm230, 0.0
        %244 = vst.msk [vmem:[#allocation2 + $0x68] sm:$0xff] %vm230, 0.0
        %245 = vst.msk [vmem:[#allocation2 + $0x70] sm:$0xff] %vm230, 0.0
        %246 = vst.msk [vmem:[#allocation2 + $0x78] sm:$0xff] %vm230, 0.0
        %247 = vst.msk [vmem:[#allocation2 + $0x80] sm:$0xff] %vm230, 0.0
        %248 = vst.msk [vmem:[#allocation2 + $0x88] sm:$0xff] %vm230, 0.0
        %249 = vst.msk [vmem:[#allocation2 + $0x90] sm:$0xff] %vm230, 0.0
        %250 = vst.msk [vmem:[#allocation2 + $0x98] sm:$0xff] %vm230, 0.0
        %251 = vst.msk [vmem:[#allocation2 + $0xa0] sm:$0xff] %vm230, 0.0
        %252 = vst.msk [vmem:[#allocation2 + $0xa8] sm:$0xff] %vm230, 0.0
        %253 = vst.msk [vmem:[#allocation2 + $0xb0] sm:$0xff] %vm230, 0.0
        %254 = vst.msk [vmem:[#allocation2 + $0xb8] sm:$0xff] %vm230, 0.0
        %255 = vst.msk [vmem:[#allocation2 + $0xc0] sm:$0xff] %vm230, 0.0
        %256 = vst.msk [vmem:[#allocation2 + $0xc8] sm:$0xff] %vm230, 0.0
        %257 = vst.msk [vmem:[#allocation2 + $0xd0] sm:$0xff] %vm230, 0.0
        %258 = vst.msk [vmem:[#allocation2 + $0xd8] sm:$0xff] %vm230, 0.0
        %259 = vst.msk [vmem:[#allocation2 + $0xe0] sm:$0xff] %vm230, 0.0
        %260 = vst.msk [vmem:[#allocation2 + $0xe8] sm:$0xff] %vm230, 0.0
        %261 = vst.msk [vmem:[#allocation2 + $0xf0] sm:$0xff] %vm230, 0.0
        %262 = vst.msk [vmem:[#allocation2 + $0xf8] sm:$0xff] %vm230, 0.0
        %263 = vst.msk [vmem:[#allocation2 + $0x100] sm:$0xff] %vm230, 0.0
        %264 = vst.msk [vmem:[#allocation2 + $0x108] sm:$0xff] %vm230, 0.0
        %265 = vst.msk [vmem:[#allocation2 + $0x110] sm:$0xff] %vm230, 0.0
        %266 = vst.msk [vmem:[#allocation2 + $0x118] sm:$0xff] %vm230, 0.0
        %267 = vst.msk [vmem:[#allocation2 + $0x120] sm:$0xff] %vm230, 0.0
        %268 = vst.msk [vmem:[#allocation2 + $0x128] sm:$0xff] %vm230, 0.0
        %269 = vst.msk [vmem:[#allocation2 + $0x130] sm:$0xff] %vm230, 0.0
        %270 = vst.msk [vmem:[#allocation2 + $0x138] sm:$0xff] %vm230, 0.0
        %271 = vst.msk [vmem:[#allocation2 + $0x140] sm:$0xff] %vm230, 0.0
        %272 = vst.msk [vmem:[#allocation2 + $0x148] sm:$0xff] %vm230, 0.0
        %273 = vst.msk [vmem:[#allocation2 + $0x150] sm:$0xff] %vm230, 0.0
        %274 = vst.msk [vmem:[#allocation2 + $0x158] sm:$0xff] %vm230, 0.0
        %275 = vst.msk [vmem:[#allocation2 + $0x160] sm:$0xff] %vm230, 0.0
        %276 = vst.msk [vmem:[#allocation2 + $0x168] sm:$0xff] %vm230, 0.0
        %277 = vst.msk [vmem:[#allocation2 + $0x170] sm:$0xff] %vm230, 0.0
        %278 = vst.msk [vmem:[#allocation2 + $0x178] sm:$0xff] %vm230, 0.0
        %279 = vst.msk [vmem:[#allocation2 + $0x180] sm:$0xff] %vm230, 0.0
        %280 = vst.msk [vmem:[#allocation2 + $0x188] sm:$0xff] %vm230, 0.0
        %281 = vst.msk [vmem:[#allocation2 + $0x190] sm:$0xff] %vm230, 0.0
        %282 = vst.msk [vmem:[#allocation2 + $0x198] sm:$0xff] %vm230, 0.0
        %283 = vst.msk [vmem:[#allocation2 + $0x1a0] sm:$0xff] %vm230, 0.0
        %284 = vst.msk [vmem:[#allocation2 + $0x1a8] sm:$0xff] %vm230, 0.0
        %285 = vst.msk [vmem:[#allocation2 + $0x1b0] sm:$0xff] %vm230, 0.0
        %286 = vst.msk [vmem:[#allocation2 + $0x1b8] sm:$0xff] %vm230, 0.0
        %287 = vst.msk [vmem:[#allocation2 + $0x1c0] sm:$0xff] %vm230, 0.0
        %288 = vst.msk [vmem:[#allocation2 + $0x1c8] sm:$0xff] %vm230, 0.0
        %289 = vst.msk [vmem:[#allocation2 + $0x1d0] sm:$0xff] %vm230, 0.0
        %290 = vst.msk [vmem:[#allocation2 + $0x1d8] sm:$0xff] %vm230, 0.0
        %291 = vst.msk [vmem:[#allocation2 + $0x1e0] sm:$0xff] %vm230, 0.0
        %292 = vst.msk [vmem:[#allocation2 + $0x1e8] sm:$0xff] %vm230, 0.0
        %293 = vst.msk [vmem:[#allocation2 + $0x1f0] sm:$0xff] %vm230, 0.0
        %294 = vst.msk [vmem:[#allocation2 + $0x1f8] sm:$0xff] %vm230, 0.0
        %295 = vst.msk [vmem:[#allocation2 + $0x200] sm:$0xff] %vm230, 0.0
        %296 = vst.msk [vmem:[#allocation2 + $0x208] sm:$0xff] %vm230, 0.0
        %297 = vst.msk [vmem:[#allocation2 + $0x210] sm:$0xff] %vm230, 0.0
        %298 = vst.msk [vmem:[#allocation2 + $0x218] sm:$0xff] %vm230, 0.0
        %299 = vst.msk [vmem:[#allocation2 + $0x220] sm:$0xff] %vm230, 0.0
        %300 = vst.msk [vmem:[#allocation2 + $0x228] sm:$0xff] %vm230, 0.0
        %301 = vst.msk [vmem:[#allocation2 + $0x230] sm:$0xff] %vm230, 0.0
        %302 = vst.msk [vmem:[#allocation2 + $0x238] sm:$0xff] %vm230, 0.0
        %303 = vst.msk [vmem:[#allocation2 + $0x240] sm:$0xff] %vm230, 0.0
        %304 = vst.msk [vmem:[#allocation2 + $0x248] sm:$0xff] %vm230, 0.0
        %305 = vst.msk [vmem:[#allocation2 + $0x250] sm:$0xff] %vm230, 0.0
        %306 = vst.msk [vmem:[#allocation2 + $0x258] sm:$0xff] %vm230, 0.0
        %307 = vst.msk [vmem:[#allocation2 + $0x260] sm:$0xff] %vm230, 0.0
        %308 = vst.msk [vmem:[#allocation2 + $0x268] sm:$0xff] %vm230, 0.0
        %309 = vst.msk [vmem:[#allocation2 + $0x270] sm:$0xff] %vm230, 0.0
        %310 = vst.msk [vmem:[#allocation2 + $0x278] sm:$0xff] %vm230, 0.0
        %311 = vst.msk [vmem:[#allocation2 + $0x280] sm:$0xff] %vm230, 0.0
        %312 = vst.msk [vmem:[#allocation2 + $0x288] sm:$0xff] %vm230, 0.0
        %313 = vst.msk [vmem:[#allocation2 + $0x290] sm:$0xff] %vm230, 0.0
        %314 = vst.msk [vmem:[#allocation2 + $0x298] sm:$0xff] %vm230, 0.0
        %315 = vst.msk [vmem:[#allocation2 + $0x2a0] sm:$0xff] %vm230, 0.0
        %316 = vst.msk [vmem:[#allocation2 + $0x2a8] sm:$0xff] %vm230, 0.0
        %317 = vst.msk [vmem:[#allocation2 + $0x2b0] sm:$0xff] %vm230, 0.0
        %318 = vst.msk [vmem:[#allocation2 + $0x2b8] sm:$0xff] %vm230, 0.0
        %319 = vst.msk [vmem:[#allocation2 + $0x2c0] sm:$0xff] %vm230, 0.0
        %320 = vst.msk [vmem:[#allocation2 + $0x2c8] sm:$0xff] %vm230, 0.0
        %321 = vst.msk [vmem:[#allocation2 + $0x2d0] sm:$0xff] %vm230, 0.0
        %322 = vst.msk [vmem:[#allocation2 + $0x2d8] sm:$0xff] %vm230, 0.0
        %323 = vst.msk [vmem:[#allocation2 + $0x2e0] sm:$0xff] %vm230, 0.0
        %324 = vst.msk [vmem:[#allocation2 + $0x2e8] sm:$0xff] %vm230, 0.0
        %325 = vst.msk [vmem:[#allocation2 + $0x2f0] sm:$0xff] %vm230, 0.0
        %326 = vst.msk [vmem:[#allocation2 + $0x2f8] sm:$0xff] %vm230, 0.0
        %327 = vst.msk [vmem:[#allocation2 + $0x300] sm:$0xff] %vm230, 0.0
        %328 = vst.msk [vmem:[#allocation2 + $0x308] sm:$0xff] %vm230, 0.0
        %329 = vst.msk [vmem:[#allocation2 + $0x310] sm:$0xff] %vm230, 0.0
        %330 = vst.msk [vmem:[#allocation2 + $0x318] sm:$0xff] %vm230, 0.0
        %331 = vst.msk [vmem:[#allocation2 + $0x320] sm:$0xff] %vm230, 0.0
        %332 = vst.msk [vmem:[#allocation2 + $0x328] sm:$0xff] %vm230, 0.0
        %333 = vst.msk [vmem:[#allocation2 + $0x330] sm:$0xff] %vm230, 0.0
        %334 = vst.msk [vmem:[#allocation2 + $0x338] sm:$0xff] %vm230, 0.0
        %335 = vst.msk [vmem:[#allocation2 + $0x340] sm:$0xff] %vm230, 0.0
        %336 = vst.msk [vmem:[#allocation2 + $0x348] sm:$0xff] %vm230, 0.0
        %337 = vst.msk [vmem:[#allocation2 + $0x350] sm:$0xff] %vm230, 0.0
        %338 = vst.msk [vmem:[#allocation2 + $0x358] sm:$0xff] %vm230, 0.0
        %339 = vst.msk [vmem:[#allocation2 + $0x360] sm:$0xff] %vm230, 0.0
        %340 = vst.msk [vmem:[#allocation2 + $0x368] sm:$0xff] %vm230, 0.0
        %341 = vst.msk [vmem:[#allocation2 + $0x370] sm:$0xff] %vm230, 0.0
        %342 = vst.msk [vmem:[#allocation2 + $0x378] sm:$0xff] %vm230, 0.0
        %343 = vst.msk [vmem:[#allocation2 + $0x380] sm:$0xff] %vm230, 0.0
        %344 = vst.msk [vmem:[#allocation2 + $0x388] sm:$0xff] %vm230, 0.0
        %345 = vst.msk [vmem:[#allocation2 + $0x390] sm:$0xff] %vm230, 0.0
        %346 = vst.msk [vmem:[#allocation2 + $0x398] sm:$0xff] %vm230, 0.0
        %347 = vst.msk [vmem:[#allocation2 + $0x3a0] sm:$0xff] %vm230, 0.0
        %348 = vst.msk [vmem:[#allocation2 + $0x3a8] sm:$0xff] %vm230, 0.0
        %349 = vst.msk [vmem:[#allocation2 + $0x3b0] sm:$0xff] %vm230, 0.0
        %350 = vst.msk [vmem:[#allocation2 + $0x3b8] sm:$0xff] %vm230, 0.0
        %351 = vst.msk [vmem:[#allocation2 + $0x3c0] sm:$0xff] %vm230, 0.0
        %352 = vst.msk [vmem:[#allocation2 + $0x3c8] sm:$0xff] %vm230, 0.0
        %353 = vst.msk [vmem:[#allocation2 + $0x3d0] sm:$0xff] %vm230, 0.0
        %354 = vst.msk [vmem:[#allocation2 + $0x3d8] sm:$0xff] %vm230, 0.0
        %355 = vst.msk [vmem:[#allocation2 + $0x3e0] sm:$0xff] %vm230, 0.0
        %356 = vst.msk [vmem:[#allocation2 + $0x3e8] sm:$0xff] %vm230, 0.0
        %357 = vst.msk [vmem:[#allocation2 + $0x3f0] sm:$0xff] %vm230, 0.0
        %358 = vst.msk [vmem:[#allocation2 + $0x3f8] sm:$0xff] %vm230, 0.0
        %359 = vst.msk [vmem:[#allocation2 + $0x400] sm:$0xff] %vm230, 0.0
        %360 = vst.msk [vmem:[#allocation2 + $0x408] sm:$0xff] %vm230, 0.0
        %361 = vst.msk [vmem:[#allocation2 + $0x410] sm:$0xff] %vm230, 0.0
        %362 = vst.msk [vmem:[#allocation2 + $0x418] sm:$0xff] %vm230, 0.0
        %363 = vst.msk [vmem:[#allocation2 + $0x420] sm:$0xff] %vm230, 0.0
        %364 = vst.msk [vmem:[#allocation2 + $0x428] sm:$0xff] %vm230, 0.0
        %365 = vst.msk [vmem:[#allocation2 + $0x430] sm:$0xff] %vm230, 0.0
        %366 = vst.msk [vmem:[#allocation2 + $0x438] sm:$0xff] %vm230, 0.0
        %367 = vst.msk [vmem:[#allocation2 + $0x440] sm:$0xff] %vm230, 0.0
        %368 = vst.msk [vmem:[#allocation2 + $0x448] sm:$0xff] %vm230, 0.0
        %369 = vst.msk [vmem:[#allocation2 + $0x450] sm:$0xff] %vm230, 0.0
        %370 = vst.msk [vmem:[#allocation2 + $0x458] sm:$0xff] %vm230, 0.0
        %371 = vst.msk [vmem:[#allocation2 + $0x460] sm:$0xff] %vm230, 0.0
        %372 = vst.msk [vmem:[#allocation2 + $0x468] sm:$0xff] %vm230, 0.0
        %373 = vst.msk [vmem:[#allocation2 + $0x470] sm:$0xff] %vm230, 0.0
        %374 = vst.msk [vmem:[#allocation2 + $0x478] sm:$0xff] %vm230, 0.0
      $region44: #{discriminator_forward.3} parent=39 // pred_fallthru
        _
      %v375 = vld [vmem:[%s219] sm:$0xf]
      %v376 = vld [vmem:[%s219 + $0x4] sm:$0xf]
      %v377 = vld [vmem:[%s219 + $0x8] sm:$0xf]
      %v378 = vld [vmem:[%s219 + $0xc] sm:$0xf]
      %v379 = vld [vmem:[%s219 + $0x10] sm:$0xf]
      %v380 = vld [vmem:[%s219 + $0x14] sm:$0xf]
      %v381 = vld [vmem:[%s219 + $0x18] sm:$0xf]
      %v382 = vld [vmem:[%s219 + $0x1c] sm:$0xf]
      %v383 = vld [vmem:[%s219 + $0x20] sm:$0xf]
      %v384 = vld [vmem:[%s219 + $0x24] sm:$0xf]
      %v385 = vld [vmem:[%s219 + $0x28] sm:$0xf]
      %v386 = vld [vmem:[%s219 + $0x2c] sm:$0xf]
      %v387 = vld [vmem:[%s219 + $0x30] sm:$0xf]
      %v388 = vld [vmem:[%s219 + $0x34] sm:$0xf]
      %v389 = vld [vmem:[%s219 + $0x38] sm:$0xf]
      %v390 = vld [vmem:[%s219 + $0x3c] sm:$0xf]
      %v391 = vld [vmem:[%s219 + $0x40] sm:$0xf]
      %v392 = vld [vmem:[%s219 + $0x44] sm:$0xf]
      %v393 = vld [vmem:[%s219 + $0x48] sm:$0xf]
      %v394 = vld [vmem:[%s219 + $0x4c] sm:$0xf]
      %v395 = vld [vmem:[%s219 + $0x50] sm:$0xf]
      %v396 = vld [vmem:[%s219 + $0x54] sm:$0xf]
      %v397 = vld [vmem:[%s219 + $0x58] sm:$0xf]
      %v398 = vld [vmem:[%s219 + $0x5c] sm:$0xf]
      %v399 = vld [vmem:[%s219 + $0x60] sm:$0xf]
      %v400 = vld [vmem:[%s219 + $0x64] sm:$0xf]
      %v401 = vld [vmem:[%s219 + $0x68] sm:$0xf]
      %v402 = vld [vmem:[%s219 + $0x6c] sm:$0xf]
      %v403 = vld [vmem:[%s219 + $0x70] sm:$0xf]
      %v404 = vld [vmem:[%s219 + $0x74] sm:$0xf]
      %v405 = vld [vmem:[%s219 + $0x78] sm:$0xf]
      %v406 = vld [vmem:[%s219 + $0x7c] sm:$0xf]
      %v407 = vld [vmem:[%s219 + $0x80] sm:$0xf]
      %v408 = vld [vmem:[%s219 + $0x84] sm:$0xf]
      %v409 = vld [vmem:[%s219 + $0x88] sm:$0xf]
      %v410 = vld [vmem:[%s219 + $0x8c] sm:$0xf]
      %v411 = vld [vmem:[%s219 + $0x90] sm:$0xf]
      %v412 = vld [vmem:[%s219 + $0x94] sm:$0xf]
      %v413 = vld [vmem:[%s219 + $0x98] sm:$0xf]
      %v414 = vld [vmem:[%s219 + $0x9c] sm:$0xf]
      %v415 = vld [vmem:[%s219 + $0xa0] sm:$0xf]
      %v416 = vld [vmem:[%s219 + $0xa4] sm:$0xf]
      %v417 = vld [vmem:[%s219 + $0xa8] sm:$0xf]
      %v418 = vld [vmem:[%s219 + $0xac] sm:$0xf]
      %v419 = vld [vmem:[%s219 + $0xb0] sm:$0xf]
      %v420 = vld [vmem:[%s219 + $0xb4] sm:$0xf]
      %v421 = vld [vmem:[%s219 + $0xb8] sm:$0xf]
      %v422 = vld [vmem:[%s219 + $0xbc] sm:$0xf]
      %v423 = vld [vmem:[%s219 + $0xc0] sm:$0xf]
      %v424 = vld [vmem:[%s219 + $0xc4] sm:$0xf]
      %v425 = vld [vmem:[%s219 + $0xc8] sm:$0xf]
      %v426 = vld [vmem:[%s219 + $0xcc] sm:$0xf]
      %v427 = vld [vmem:[%s219 + $0xd0] sm:$0xf]
      %v428 = vld [vmem:[%s219 + $0xd4] sm:$0xf]
      %v429 = vld [vmem:[%s219 + $0xd8] sm:$0xf]
      %v430 = vld [vmem:[%s219 + $0xdc] sm:$0xf]
      %v431 = vld [vmem:[%s219 + $0xe0] sm:$0xf]
      %v432 = vld [vmem:[%s219 + $0xe4] sm:$0xf]
      %v433 = vld [vmem:[%s219 + $0xe8] sm:$0xf]
      %v434 = vld [vmem:[%s219 + $0xec] sm:$0xf]
      %v435 = vld [vmem:[%s219 + $0xf0] sm:$0xf]
      %v436 = vld [vmem:[%s219 + $0xf4] sm:$0xf]
      %v437 = vld [vmem:[%s219 + $0xf8] sm:$0xf]
      %v438 = vld [vmem:[%s219 + $0xfc] sm:$0xf]
      %v439 = vld [vmem:[%s219 + $0x100] sm:$0xf]
      %v440 = vld [vmem:[%s219 + $0x104] sm:$0xf]
      %v441 = vld [vmem:[%s219 + $0x108] sm:$0xf]
      %v442 = vld [vmem:[%s219 + $0x10c] sm:$0xf]
      %v443 = vld [vmem:[%s219 + $0x110] sm:$0xf]
      %v444 = vld [vmem:[%s219 + $0x114] sm:$0xf]
      %v445 = vld [vmem:[%s219 + $0x118] sm:$0xf]
      %v446 = vld [vmem:[%s219 + $0x11c] sm:$0xf]
      %v447 = vld [vmem:[%s219 + $0x120] sm:$0xf]
      %v448 = vld [vmem:[%s219 + $0x124] sm:$0xf]
      %v449 = vld [vmem:[%s219 + $0x128] sm:$0xf]
      %v450 = vld [vmem:[%s219 + $0x12c] sm:$0xf]
      %v451 = vld [vmem:[%s219 + $0x130] sm:$0xf]
      %v452 = vld [vmem:[%s219 + $0x134] sm:$0xf]
      %v453 = vld [vmem:[%s219 + $0x138] sm:$0xf]
      %v454 = vld [vmem:[%s219 + $0x13c] sm:$0xf]
      %v455 = vld [vmem:[%s219 + $0x140] sm:$0xf]
      %v456 = vld [vmem:[%s219 + $0x144] sm:$0xf]
      %v457 = vld [vmem:[%s219 + $0x148] sm:$0xf]
      %v458 = vld [vmem:[%s219 + $0x14c] sm:$0xf]
      %v459 = vld [vmem:[%s219 + $0x150] sm:$0xf]
      %v460 = vld [vmem:[%s219 + $0x154] sm:$0xf]
      %v461 = vld [vmem:[%s219 + $0x158] sm:$0xf]
      %v462 = vld [vmem:[%s219 + $0x15c] sm:$0xf]
      %v463 = vld [vmem:[%s219 + $0x160] sm:$0xf]
      %v464 = vld [vmem:[%s219 + $0x164] sm:$0xf]
      %v465 = vld [vmem:[%s219 + $0x168] sm:$0xf]
      %v466 = vld [vmem:[%s219 + $0x16c] sm:$0xf]
      %v467 = vld [vmem:[%s219 + $0x170] sm:$0xf]
      %v468 = vld [vmem:[%s219 + $0x174] sm:$0xf]
      %v469 = vld [vmem:[%s219 + $0x178] sm:$0xf]
      %v470 = vld [vmem:[%s219 + $0x17c] sm:$0xf]
      %v471 = vld [vmem:[%s219 + $0x180] sm:$0xf]
      %v472 = vld [vmem:[%s219 + $0x184] sm:$0xf]
      %v473 = vld [vmem:[%s219 + $0x188] sm:$0xf]
      %v474 = vld [vmem:[%s219 + $0x18c] sm:$0xf]
      %v475 = vld [vmem:[%s219 + $0x190] sm:$0xf]
      %v476 = vld [vmem:[%s219 + $0x194] sm:$0xf]
      %v477 = vld [vmem:[%s219 + $0x198] sm:$0xf]
      %v478 = vld [vmem:[%s219 + $0x19c] sm:$0xf]
      %v479 = vld [vmem:[%s219 + $0x1a0] sm:$0xf]
      %v480 = vld [vmem:[%s219 + $0x1a4] sm:$0xf]
      %v481 = vld [vmem:[%s219 + $0x1a8] sm:$0xf]
      %v482 = vld [vmem:[%s219 + $0x1ac] sm:$0xf]
      %v483 = vld [vmem:[%s219 + $0x1b0] sm:$0xf]
      %v484 = vld [vmem:[%s219 + $0x1b4] sm:$0xf]
      %v485 = vld [vmem:[%s219 + $0x1b8] sm:$0xf]
      %v486 = vld [vmem:[%s219 + $0x1bc] sm:$0xf]
      %v487 = vld [vmem:[%s219 + $0x1c0] sm:$0xf]
      %v488 = vld [vmem:[%s219 + $0x1c4] sm:$0xf]
      %v489 = vld [vmem:[%s219 + $0x1c8] sm:$0xf]
      %v490 = vld [vmem:[%s219 + $0x1cc] sm:$0xf]
      %v491 = vld [vmem:[%s219 + $0x1d0] sm:$0xf]
      %v492 = vld [vmem:[%s219 + $0x1d4] sm:$0xf]
      %v493 = vld [vmem:[%s219 + $0x1d8] sm:$0xf]
      %v494 = vld [vmem:[%s219 + $0x1dc] sm:$0xf]
      %v495 = vld [vmem:[%s219 + $0x1e0] sm:$0xf]
      %v496 = vld [vmem:[%s219 + $0x1e4] sm:$0xf]
      %v497 = vld [vmem:[%s219 + $0x1e8] sm:$0xf]
      %v498 = vld [vmem:[%s219 + $0x1ec] sm:$0xf]
      %v499 = vld [vmem:[%s219 + $0x1f0] sm:$0xf]
      %v500 = vld [vmem:[%s219 + $0x1f4] sm:$0xf]
      %v501 = vld [vmem:[%s219 + $0x1f8] sm:$0xf]
      %v502 = vld [vmem:[%s219 + $0x1fc] sm:$0xf]
      %v503 = vld [vmem:[%s219 + $0x200] sm:$0xf]
      %v504 = vld [vmem:[%s219 + $0x204] sm:$0xf]
      %v505 = vld [vmem:[%s219 + $0x208] sm:$0xf]
      %v506 = vld [vmem:[%s219 + $0x20c] sm:$0xf]
      %v507 = vld [vmem:[%s219 + $0x210] sm:$0xf]
      %v508 = vld [vmem:[%s219 + $0x214] sm:$0xf]
      %v509 = vld [vmem:[%s219 + $0x218] sm:$0xf]
      %v510 = vld [vmem:[%s219 + $0x21c] sm:$0xf]
      %v511 = vld [vmem:[%s219 + $0x220] sm:$0xf]
      %v512 = vld [vmem:[%s219 + $0x224] sm:$0xf]
      %v513 = vld [vmem:[%s219 + $0x228] sm:$0xf]
      %v514 = vld [vmem:[%s219 + $0x22c] sm:$0xf]
      %v515 = vld [vmem:[%s219 + $0x230] sm:$0xf]
      %v516 = vld [vmem:[%s219 + $0x234] sm:$0xf]
      %v517 = vld [vmem:[%s219 + $0x238] sm:$0xf]
      %v518 = vld [vmem:[%s219 + $0x23c] sm:$0xf]
      %v519 = vld [vmem:[%s1] sm:$0xf]
      %v520 = vld [vmem:[%s1 + $0x4] sm:$0xf]
      %v521 = vld [vmem:[%s1 + $0x8] sm:$0xf]
      %v522 = vld [vmem:[%s1 + $0xc] sm:$0xf]
      %v523 = vld [vmem:[%s2] sm:$0x1]
      %v525 = vlaneseq
      %v526 = vshrl.u32 %v525, 7
      %v527 = vsub.s32 0, %v526
      %v528 = vrot.slane %v523, %v527
      %v674 = vunpack.c.l.b16 %v375
      %v675 = vunpack.c.l.b16 %v376
      %v676 = vunpack.c.l.b16 %v377
      %v677 = vunpack.c.l.b16 %v378
      %v678 = vunpack.c.l.b16 %v379
      %v679 = vunpack.c.l.b16 %v380
      %v680 = vunpack.c.l.b16 %v381
      %v681 = vunpack.c.l.b16 %v382
      %v682 = vunpack.c.l.b16 %v383
      %v683 = vunpack.c.l.b16 %v384
      %v684 = vunpack.c.l.b16 %v385
      %v685 = vunpack.c.l.b16 %v386
      %v686 = vunpack.c.l.b16 %v387
      %v687 = vunpack.c.l.b16 %v388
      %v688 = vunpack.c.l.b16 %v389
      %v689 = vunpack.c.l.b16 %v390
      %v690 = vunpack.c.l.b16 %v391
      %v691 = vunpack.c.l.b16 %v392
      %v692 = vunpack.c.l.b16 %v393
      %v693 = vunpack.c.l.b16 %v394
      %v694 = vunpack.c.l.b16 %v395
      %v695 = vunpack.c.l.b16 %v396
      %v696 = vunpack.c.l.b16 %v397
      %v697 = vunpack.c.l.b16 %v398
      %v698 = vunpack.c.l.b16 %v399
      %v699 = vunpack.c.l.b16 %v400
      %v700 = vunpack.c.l.b16 %v401
      %v701 = vunpack.c.l.b16 %v402
      %v702 = vunpack.c.l.b16 %v403
      %v703 = vunpack.c.l.b16 %v404
      %v704 = vunpack.c.l.b16 %v405
      %v705 = vunpack.c.l.b16 %v406
      %v706 = vunpack.c.l.b16 %v407
      %v707 = vunpack.c.l.b16 %v408
      %v708 = vunpack.c.l.b16 %v409
      %v709 = vunpack.c.l.b16 %v410
      %v710 = vunpack.c.l.b16 %v411
      %v711 = vunpack.c.l.b16 %v412
      %v712 = vunpack.c.l.b16 %v413
      %v713 = vunpack.c.l.b16 %v414
      %v714 = vunpack.c.l.b16 %v415
      %v715 = vunpack.c.l.b16 %v416
      %v716 = vunpack.c.l.b16 %v417
      %v717 = vunpack.c.l.b16 %v418
      %v718 = vunpack.c.l.b16 %v419
      %v719 = vunpack.c.l.b16 %v420
      %v720 = vunpack.c.l.b16 %v421
      %v721 = vunpack.c.l.b16 %v422
      %v722 = vunpack.c.l.b16 %v423
      %v723 = vunpack.c.l.b16 %v424
      %v724 = vunpack.c.l.b16 %v425
      %v725 = vunpack.c.l.b16 %v426
      %v726 = vunpack.c.l.b16 %v427
      %v727 = vunpack.c.l.b16 %v428
      %v728 = vunpack.c.l.b16 %v429
      %v729 = vunpack.c.l.b16 %v430
      %v730 = vunpack.c.l.b16 %v431
      %v731 = vunpack.c.l.b16 %v432
      %v732 = vunpack.c.l.b16 %v433
      %v733 = vunpack.c.l.b16 %v434
      %v734 = vunpack.c.l.b16 %v435
      %v735 = vunpack.c.l.b16 %v436
      %v736 = vunpack.c.l.b16 %v437
      %v737 = vunpack.c.l.b16 %v438
      %v738 = vunpack.c.l.b16 %v439
      %v739 = vunpack.c.l.b16 %v440
      %v740 = vunpack.c.l.b16 %v441
      %v741 = vunpack.c.l.b16 %v442
      %v742 = vunpack.c.l.b16 %v443
      %v743 = vunpack.c.l.b16 %v444
      %v744 = vunpack.c.l.b16 %v445
      %v745 = vunpack.c.l.b16 %v446
      %v746 = vunpack.c.l.b16 %v447
      %v747 = vunpack.c.l.b16 %v448
      %v748 = vunpack.c.l.b16 %v449
      %v749 = vunpack.c.l.b16 %v450
      %v750 = vunpack.c.l.b16 %v451
      %v751 = vunpack.c.l.b16 %v452
      %v752 = vunpack.c.l.b16 %v453
      %v753 = vunpack.c.l.b16 %v454
      %v754 = vunpack.c.l.b16 %v455
      %v755 = vunpack.c.l.b16 %v456
      %v756 = vunpack.c.l.b16 %v457
      %v757 = vunpack.c.l.b16 %v458
      %v758 = vunpack.c.l.b16 %v459
      %v759 = vunpack.c.l.b16 %v460
      %v760 = vunpack.c.l.b16 %v461
      %v761 = vunpack.c.l.b16 %v462
      %v762 = vunpack.c.l.b16 %v463
      %v763 = vunpack.c.l.b16 %v464
      %v764 = vunpack.c.l.b16 %v465
      %v765 = vunpack.c.l.b16 %v466
      %v766 = vunpack.c.l.b16 %v467
      %v767 = vunpack.c.l.b16 %v468
      %v768 = vunpack.c.l.b16 %v469
      %v769 = vunpack.c.l.b16 %v470
      %v770 = vunpack.c.l.b16 %v471
      %v771 = vunpack.c.l.b16 %v472
      %v772 = vunpack.c.l.b16 %v473
      %v773 = vunpack.c.l.b16 %v474
      %v774 = vunpack.c.l.b16 %v475
      %v775 = vunpack.c.l.b16 %v476
      %v776 = vunpack.c.l.b16 %v477
      %v777 = vunpack.c.l.b16 %v478
      %v778 = vunpack.c.l.b16 %v479
      %v779 = vunpack.c.l.b16 %v480
      %v780 = vunpack.c.l.b16 %v481
      %v781 = vunpack.c.l.b16 %v482
      %v782 = vunpack.c.l.b16 %v483
      %v783 = vunpack.c.l.b16 %v484
      %v784 = vunpack.c.l.b16 %v485
      %v785 = vunpack.c.l.b16 %v486
      %v786 = vunpack.c.l.b16 %v487
      %v787 = vunpack.c.l.b16 %v488
      %v788 = vunpack.c.l.b16 %v489
      %v789 = vunpack.c.l.b16 %v490
      %v790 = vunpack.c.l.b16 %v491
      %v791 = vunpack.c.l.b16 %v492
      %v792 = vunpack.c.l.b16 %v493
      %v793 = vunpack.c.l.b16 %v494
      %v794 = vunpack.c.l.b16 %v495
      %v795 = vunpack.c.l.b16 %v496
      %v796 = vunpack.c.l.b16 %v497
      %v797 = vunpack.c.l.b16 %v498
      %v798 = vunpack.c.l.b16 %v499
      %v799 = vunpack.c.l.b16 %v500
      %v800 = vunpack.c.l.b16 %v501
      %v801 = vunpack.c.l.b16 %v502
      %v802 = vunpack.c.l.b16 %v503
      %v803 = vunpack.c.l.b16 %v504
      %v804 = vunpack.c.l.b16 %v505
      %v805 = vunpack.c.l.b16 %v506
      %v806 = vunpack.c.l.b16 %v507
      %v807 = vunpack.c.l.b16 %v508
      %v808 = vunpack.c.l.b16 %v509
      %v809 = vunpack.c.l.b16 %v510
      %v810 = vunpack.c.l.b16 %v511
      %v811 = vunpack.c.l.b16 %v512
      %v812 = vunpack.c.l.b16 %v513
      %v813 = vunpack.c.l.b16 %v514
      %v814 = vunpack.c.l.b16 %v515
      %v815 = vunpack.c.l.b16 %v516
      %v816 = vunpack.c.l.b16 %v517
      %v817 = vunpack.c.l.b16 %v518
      %v818 = vpack.c.b16 %v675, %v674
      %v819 = vpack.c.b16 %v677, %v676
      %v820 = vpack.c.b16 %v679, %v678
      %v821 = vpack.c.b16 %v681, %v680
      %v822 = vpack.c.b16 %v683, %v682
      %v823 = vpack.c.b16 %v685, %v684
      %v824 = vpack.c.b16 %v687, %v686
      %v825 = vpack.c.b16 %v689, %v688
      %v826 = vpack.c.b16 %v691, %v690
      %v827 = vpack.c.b16 %v693, %v692
      %v828 = vpack.c.b16 %v695, %v694
      %v829 = vpack.c.b16 %v697, %v696
      %v830 = vpack.c.b16 %v699, %v698
      %v831 = vpack.c.b16 %v701, %v700
      %v832 = vpack.c.b16 %v703, %v702
      %v833 = vpack.c.b16 %v705, %v704
      %v834 = vpack.c.b16 %v707, %v706
      %v835 = vpack.c.b16 %v709, %v708
      %v836 = vpack.c.b16 %v711, %v710
      %v837 = vpack.c.b16 %v713, %v712
      %v838 = vpack.c.b16 %v715, %v714
      %v839 = vpack.c.b16 %v717, %v716
      %v840 = vpack.c.b16 %v719, %v718
      %v841 = vpack.c.b16 %v721, %v720
      %v842 = vpack.c.b16 %v723, %v722
      %v843 = vpack.c.b16 %v725, %v724
      %v844 = vpack.c.b16 %v727, %v726
      %v845 = vpack.c.b16 %v729, %v728
      %v846 = vpack.c.b16 %v731, %v730
      %v847 = vpack.c.b16 %v733, %v732
      %v848 = vpack.c.b16 %v735, %v734
      %v849 = vpack.c.b16 %v737, %v736
      %v850 = vpack.c.b16 %v739, %v738
      %v851 = vpack.c.b16 %v741, %v740
      %v852 = vpack.c.b16 %v743, %v742
      %v853 = vpack.c.b16 %v745, %v744
      %v854 = vpack.c.b16 %v747, %v746
      %v855 = vpack.c.b16 %v749, %v748
      %v856 = vpack.c.b16 %v751, %v750
      %v857 = vpack.c.b16 %v753, %v752
      %v858 = vpack.c.b16 %v755, %v754
      %v859 = vpack.c.b16 %v757, %v756
      %v860 = vpack.c.b16 %v759, %v758
      %v861 = vpack.c.b16 %v761, %v760
      %v862 = vpack.c.b16 %v763, %v762
      %v863 = vpack.c.b16 %v765, %v764
      %v864 = vpack.c.b16 %v767, %v766
      %v865 = vpack.c.b16 %v769, %v768
      %v866 = vpack.c.b16 %v771, %v770
      %v867 = vpack.c.b16 %v773, %v772
      %v868 = vpack.c.b16 %v775, %v774
      %v869 = vpack.c.b16 %v777, %v776
      %v870 = vpack.c.b16 %v779, %v778
      %v871 = vpack.c.b16 %v781, %v780
      %v872 = vpack.c.b16 %v783, %v782
      %v873 = vpack.c.b16 %v785, %v784
      %v874 = vpack.c.b16 %v787, %v786
      %v875 = vpack.c.b16 %v789, %v788
      %v876 = vpack.c.b16 %v791, %v790
      %v877 = vpack.c.b16 %v793, %v792
      %v878 = vpack.c.b16 %v795, %v794
      %v879 = vpack.c.b16 %v797, %v796
      %v880 = vpack.c.b16 %v799, %v798
      %v881 = vpack.c.b16 %v801, %v800
      %v882 = vpack.c.b16 %v803, %v802
      %v883 = vpack.c.b16 %v805, %v804
      %v884 = vpack.c.b16 %v807, %v806
      %v885 = vpack.c.b16 %v809, %v808
      %v886 = vpack.c.b16 %v811, %v810
      %v887 = vpack.c.b16 %v813, %v812
      %v888 = vpack.c.b16 %v815, %v814
      %v889 = vpack.c.b16 %v817, %v816
      %v894 = vunpack.c.l.b16 %v519
      %v895 = vunpack.c.l.b16 %v520
      %v896 = vunpack.c.l.b16 %v521
      %v897 = vunpack.c.l.b16 %v522
      %v898 = vpack.c.b16 %v895, %v894
      %v899 = vpack.c.b16 %v897, %v896
      %vm902 = vcmask 261120
      %v904 = vsel %vm902, %v818, 0
      %v907 = vsel %vm902, %v819, 0
      %v910 = vsel %vm902, %v820, 0
      %v913 = vsel %vm902, %v821, 0
      %v916 = vsel %vm902, %v822, 0
      %v919 = vsel %vm902, %v823, 0
      %v922 = vsel %vm902, %v824, 0
      %v925 = vsel %vm902, %v825, 0
      %v928 = vsel %vm902, %v826, 0
      %v931 = vsel %vm902, %v827, 0
      %v934 = vsel %vm902, %v828, 0
      %v937 = vsel %vm902, %v829, 0
      %v940 = vsel %vm902, %v830, 0
      %v943 = vsel %vm902, %v831, 0
      %v946 = vsel %vm902, %v832, 0
      %v949 = vsel %vm902, %v833, 0
      %v952 = vsel %vm902, %v834, 0
      %v955 = vsel %vm902, %v835, 0
      %v958 = vsel %vm902, %v836, 0
      %v961 = vsel %vm902, %v837, 0
      %v964 = vsel %vm902, %v838, 0
      %v967 = vsel %vm902, %v839, 0
      %v970 = vsel %vm902, %v840, 0
      %v973 = vsel %vm902, %v841, 0
      %v976 = vsel %vm902, %v842, 0
      %v979 = vsel %vm902, %v843, 0
      %v982 = vsel %vm902, %v844, 0
      %v985 = vsel %vm902, %v845, 0
      %v988 = vsel %vm902, %v846, 0
      %v991 = vsel %vm902, %v847, 0
      %v994 = vsel %vm902, %v848, 0
      %v997 = vsel %vm902, %v849, 0
      %v1000 = vsel %vm902, %v850, 0
      %v1003 = vsel %vm902, %v851, 0
      %v1006 = vsel %vm902, %v852, 0
      %v1009 = vsel %vm902, %v853, 0
      %v1012 = vsel %vm902, %v854, 0
      %v1015 = vsel %vm902, %v855, 0
      %v1018 = vsel %vm902, %v856, 0
      %v1021 = vsel %vm902, %v857, 0
      %v1024 = vsel %vm902, %v858, 0
      %v1027 = vsel %vm902, %v859, 0
      %v1030 = vsel %vm902, %v860, 0
      %v1033 = vsel %vm902, %v861, 0
      %v1036 = vsel %vm902, %v862, 0
      %v1039 = vsel %vm902, %v863, 0
      %v1042 = vsel %vm902, %v864, 0
      %v1045 = vsel %vm902, %v865, 0
      %v1048 = vsel %vm902, %v866, 0
      %v1051 = vsel %vm902, %v867, 0
      %v1054 = vsel %vm902, %v868, 0
      %v1057 = vsel %vm902, %v869, 0
      %v1060 = vsel %vm902, %v870, 0
      %v1063 = vsel %vm902, %v871, 0
      %v1066 = vsel %vm902, %v872, 0
      %v1069 = vsel %vm902, %v873, 0
      %v1072 = vsel %vm902, %v874, 0
      %v1075 = vsel %vm902, %v875, 0
      %v1078 = vsel %vm902, %v876, 0
      %v1081 = vsel %vm902, %v877, 0
      %v1084 = vsel %vm902, %v878, 0
      %v1087 = vsel %vm902, %v879, 0
      %v1090 = vsel %vm902, %v880, 0
      %v1093 = vsel %vm902, %v881, 0
      %v1096 = vsel %vm902, %v882, 0
      %v1099 = vsel %vm902, %v883, 0
      %v1102 = vsel %vm902, %v884, 0
      %v1105 = vsel %vm902, %v885, 0
      %v1108 = vsel %vm902, %v886, 0
      %v1111 = vsel %vm902, %v887, 0
      %v1114 = vsel %vm902, %v888, 0
      %v1117 = vsel %vm902, %v889, 0
      %1119 = vmatprep.subr.bf16.mxu0 0
      %1120 = vmatpush1.bf16.msra.mxu0 %v898
      %1121 = vmatprep.subr.bf16.mxu0 0
      %1122 = vmatpush1.bf16.msra.mxu0 %v899
      %1123 = vmatprep.subr.bf16.mxu0 0
      %1124 = vmatpush1.bf16.msra.mxu0 0
      %1125 = vmatprep.subr.bf16.mxu0 0
      %1126 = vmatpush1.bf16.msra.mxu0 0
      %1127 = vmatprep.subr.bf16.mxu0 0
      %1128 = vmatpush1.bf16.msra.mxu0 0
      %1129 = vmatprep.subr.bf16.mxu0 0
      %1130 = vmatpush1.bf16.msra.mxu0 0
      %1131 = vmatprep.subr.bf16.mxu0 0
      %1132 = vmatpush1.bf16.msra.mxu0 0
      %1133 = vmatprep.subr.bf16.mxu0 0
      %1134 = vmatpush1.bf16.msra.mxu0 0
      %1135 = vmatprep.subr.bf16.mxu0 0
      %1136 = vmatpush1.bf16.msra.mxu0 0
      %1137 = vmatprep.subr.bf16.mxu0 0
      %1138 = vmatpush1.bf16.msra.mxu0 0
      %1139 = vmatprep.subr.bf16.mxu0 0
      %1140 = vmatpush1.bf16.msra.mxu0 0
      %1141 = vmatprep.subr.bf16.mxu0 0
      %1142 = vmatpush1.bf16.msra.mxu0 0
      %1143 = vmatprep.subr.bf16.mxu0 0
      %1144 = vmatpush1.bf16.msra.mxu0 0
      %1145 = vmatprep.subr.bf16.mxu0 0
      %1146 = vmatpush1.bf16.msra.mxu0 0
      %1147 = vmatprep.subr.bf16.mxu0 0
      %1148 = vmatpush1.bf16.msra.mxu0 0
      %1149 = vmatprep.subr.bf16.mxu0 0
      %1150 = vmatpush1.bf16.msra.mxu0 0
      %1151 = vmatprep.mubr.bf16.mxu0 0
      %1152 = vmatmul.mubr.bf16.gmra.mrb[0].mxu0 %v904
      %v1153 = vpop.f32.mrb[0].mxu0
      %v1154 = vadd.f32 %v528, %v1153
      %v1155 = vpop.f32.mrb[0].mxu0
      %v1156 = vpop.f32.mrb[0].mxu0
      %v1157 = vadd.f32 %v528, %v1156
      %v1158 = vpop.f32.mrb[0].mxu0
      %1159 = vmatprep.mubr.bf16.mxu0 0
      %1160 = vmatmul.mubr.bf16.gmra.mrb[0].mxu0 %v907
      %v1161 = vpop.f32.mrb[0].mxu0
      %v1162 = vadd.f32 %v528, %v1161
      %v1163 = vpop.f32.mrb[0].mxu0
      %v1164 = vpop.f32.mrb[0].mxu0
      %v1165 = vadd.f32 %v528, %v1164
      %v1166 = vpop.f32.mrb[0].mxu0
      %1167 = vmatprep.mubr.bf16.mxu0 0
      %1168 = vmatmul.mubr.bf16.gmra.mrb[0].mxu0 %v910
      %v1169 = vpop.f32.mrb[0].mxu0
      %v1170 = vadd.f32 %v528, %v1169
      %v1171 = vpop.f32.mrb[0].mxu0
      %v1172 = vpop.f32.mrb[0].mxu0
      %v1173 = vadd.f32 %v528, %v1172
      %v1174 = vpop.f32.mrb[0].mxu0
      %1175 = vmatprep.mubr.bf16.mxu0 0
      %1176 = vmatmul.mubr.bf16.gmra.mrb[0].mxu0 %v913
      %v1177 = vpop.f32.mrb[0].mxu0
      %v1178 = vadd.f32 %v528, %v1177
      %v1179 = vpop.f32.mrb[0].mxu0
      %v1180 = vpop.f32.mrb[0].mxu0
      %v1181 = vadd.f32 %v528, %v1180
      %v1182 = vpop.f32.mrb[0].mxu0
      %1183 = vmatprep.mubr.bf16.mxu0 0
      %1184 = vmatmul.mubr.bf16.gmra.mrb[0].mxu0 %v916
      %v1185 = vpop.f32.mrb[0].mxu0
      %v1186 = vadd.f32 %v528, %v1185
      %v1187 = vpop.f32.mrb[0].mxu0
      %v1188 = vpop.f32.mrb[0].mxu0
      %v1189 = vadd.f32 %v528, %v1188
      %v1190 = vpop.f32.mrb[0].mxu0
      %1191 = vmatprep.mubr.bf16.mxu0 0
      %1192 = vmatmul.mubr.bf16.gmra.mrb[0].mxu0 %v919
      %v1193 = vpop.f32.mrb[0].mxu0
      %v1194 = vadd.f32 %v528, %v1193
      %v1195 = vpop.f32.mrb[0].mxu0
      %v1196 = vpop.f32.mrb[0].mxu0
      %v1197 = vadd.f32 %v528, %v1196
      %v1198 = vpop.f32.mrb[0].mxu0
      %1199 = vmatprep.mubr.bf16.mxu0 0
      %1200 = vmatmul.mubr.bf16.gmra.mrb[0].mxu0 %v922
      %v1201 = vpop.f32.mrb[0].mxu0
      %v1202 = vadd.f32 %v528, %v1201
      %v1203 = vpop.f32.mrb[0].mxu0
      %v1204 = vpop.f32.mrb[0].mxu0
      %v1205 = vadd.f32 %v528, %v1204
      %v1206 = vpop.f32.mrb[0].mxu0
      %1207 = vmatprep.mubr.bf16.mxu0 0
      %1208 = vmatmul.mubr.bf16.gmra.mrb[0].mxu0 %v925
      %v1209 = vpop.f32.mrb[0].mxu0
      %v1210 = vadd.f32 %v528, %v1209
      %v1211 = vpop.f32.mrb[0].mxu0
      %v1212 = vpop.f32.mrb[0].mxu0
      %v1213 = vadd.f32 %v528, %v1212
      %v1214 = vpop.f32.mrb[0].mxu0
      %1215 = vmatprep.mubr.bf16.mxu0 0
      %1216 = vmatmul.mubr.bf16.gmra.mrb[0].mxu0 %v928
      %v1217 = vpop.f32.mrb[0].mxu0
      %v1218 = vadd.f32 %v528, %v1217
      %v1219 = vpop.f32.mrb[0].mxu0
      %v1220 = vpop.f32.mrb[0].mxu0
      %v1221 = vadd.f32 %v528, %v1220
      %v1222 = vpop.f32.mrb[0].mxu0
      %1223 = vmatprep.mubr.bf16.mxu0 0
      %1224 = vmatmul.mubr.bf16.gmra.mrb[0].mxu0 %v931
      %v1225 = vpop.f32.mrb[0].mxu0
      %v1226 = vadd.f32 %v528, %v1225
      %v1227 = vpop.f32.mrb[0].mxu0
      %v1228 = vpop.f32.mrb[0].mxu0
      %v1229 = vadd.f32 %v528, %v1228
      %v1230 = vpop.f32.mrb[0].mxu0
      %1231 = vmatprep.mubr.bf16.mxu0 0
      %1232 = vmatmul.mubr.bf16.gmra.mrb[0].mxu0 %v934
      %v1233 = vpop.f32.mrb[0].mxu0
      %v1234 = vadd.f32 %v528, %v1233
      %v1235 = vpop.f32.mrb[0].mxu0
      %v1236 = vpop.f32.mrb[0].mxu0
      %v1237 = vadd.f32 %v528, %v1236
      %v1238 = vpop.f32.mrb[0].mxu0
      %1239 = vmatprep.mubr.bf16.mxu0 0
      %1240 = vmatmul.mubr.bf16.gmra.mrb[0].mxu0 %v937
      %v1241 = vpop.f32.mrb[0].mxu0
      %v1242 = vadd.f32 %v528, %v1241
      %v1243 = vpop.f32.mrb[0].mxu0
      %v1244 = vpop.f32.mrb[0].mxu0
      %v1245 = vadd.f32 %v528, %v1244
      %v1246 = vpop.f32.mrb[0].mxu0
      %1247 = vmatprep.mubr.bf16.mxu0 0
      %1248 = vmatmul.mubr.bf16.gmra.mrb[0].mxu0 %v940
      %v1249 = vpop.f32.mrb[0].mxu0
      %v1250 = vadd.f32 %v528, %v1249
      %v1251 = vpop.f32.mrb[0].mxu0
      %v1252 = vpop.f32.mrb[0].mxu0
      %v1253 = vadd.f32 %v528, %v1252
      %v1254 = vpop.f32.mrb[0].mxu0
      %1255 = vmatprep.mubr.bf16.mxu0 0
      %1256 = vmatmul.mubr.bf16.gmra.mrb[0].mxu0 %v943
      %v1257 = vpop.f32.mrb[0].mxu0
      %v1258 = vadd.f32 %v528, %v1257
      %v1259 = vpop.f32.mrb[0].mxu0
      %v1260 = vpop.f32.mrb[0].mxu0
      %v1261 = vadd.f32 %v528, %v1260
      %v1262 = vpop.f32.mrb[0].mxu0
      %1263 = vmatprep.mubr.bf16.mxu0 0
      %1264 = vmatmul.mubr.bf16.gmra.mrb[0].mxu0 %v946
      %v1265 = vpop.f32.mrb[0].mxu0
      %v1266 = vadd.f32 %v528, %v1265
      %v1267 = vpop.f32.mrb[0].mxu0
      %v1268 = vpop.f32.mrb[0].mxu0
      %v1269 = vadd.f32 %v528, %v1268
      %v1270 = vpop.f32.mrb[0].mxu0
      %1271 = vmatprep.mubr.bf16.mxu0 0
      %1272 = vmatmul.mubr.bf16.gmra.mrb[0].mxu0 %v949
      %v1273 = vpop.f32.mrb[0].mxu0
      %v1274 = vadd.f32 %v528, %v1273
      %v1275 = vpop.f32.mrb[0].mxu0
      %v1276 = vpop.f32.mrb[0].mxu0
      %v1277 = vadd.f32 %v528, %v1276
      %v1278 = vpop.f32.mrb[0].mxu0
      %1279 = vmatprep.mubr.bf16.mxu0 0
      %1280 = vmatmul.mubr.bf16.gmra.mrb[0].mxu0 %v952
      %v1281 = vpop.f32.mrb[0].mxu0
      %v1282 = vadd.f32 %v528, %v1281
      %v1283 = vpop.f32.mrb[0].mxu0
      %v1284 = vpop.f32.mrb[0].mxu0
      %v1285 = vadd.f32 %v528, %v1284
      %v1286 = vpop.f32.mrb[0].mxu0
      %1287 = vmatprep.mubr.bf16.mxu0 0
      %1288 = vmatmul.mubr.bf16.gmra.mrb[0].mxu0 %v955
      %v1289 = vpop.f32.mrb[0].mxu0
      %v1290 = vadd.f32 %v528, %v1289
      %v1291 = vpop.f32.mrb[0].mxu0
      %v1292 = vpop.f32.mrb[0].mxu0
      %v1293 = vadd.f32 %v528, %v1292
      %v1294 = vpop.f32.mrb[0].mxu0
      %1295 = vmatprep.mubr.bf16.mxu0 0
      %1296 = vmatmul.mubr.bf16.gmra.mrb[0].mxu0 %v958
      %v1297 = vpop.f32.mrb[0].mxu0
      %v1298 = vadd.f32 %v528, %v1297
      %v1299 = vpop.f32.mrb[0].mxu0
      %v1300 = vpop.f32.mrb[0].mxu0
      %v1301 = vadd.f32 %v528, %v1300
      %v1302 = vpop.f32.mrb[0].mxu0
      %1303 = vmatprep.mubr.bf16.mxu0 0
      %1304 = vmatmul.mubr.bf16.gmra.mrb[0].mxu0 %v961
      %v1305 = vpop.f32.mrb[0].mxu0
      %v1306 = vadd.f32 %v528, %v1305
      %v1307 = vpop.f32.mrb[0].mxu0
      %v1308 = vpop.f32.mrb[0].mxu0
      %v1309 = vadd.f32 %v528, %v1308
      %v1310 = vpop.f32.mrb[0].mxu0
      %1311 = vmatprep.mubr.bf16.mxu0 0
      %1312 = vmatmul.mubr.bf16.gmra.mrb[0].mxu0 %v964
      %v1313 = vpop.f32.mrb[0].mxu0
      %v1314 = vadd.f32 %v528, %v1313
      %v1315 = vpop.f32.mrb[0].mxu0
      %v1316 = vpop.f32.mrb[0].mxu0
      %v1317 = vadd.f32 %v528, %v1316
      %v1318 = vpop.f32.mrb[0].mxu0
      %1319 = vmatprep.mubr.bf16.mxu0 0
      %1320 = vmatmul.mubr.bf16.gmra.mrb[0].mxu0 %v967
      %v1321 = vpop.f32.mrb[0].mxu0
      %v1322 = vadd.f32 %v528, %v1321
      %v1323 = vpop.f32.mrb[0].mxu0
      %v1324 = vpop.f32.mrb[0].mxu0
      %v1325 = vadd.f32 %v528, %v1324
      %v1326 = vpop.f32.mrb[0].mxu0
      %1327 = vmatprep.mubr.bf16.mxu0 0
      %1328 = vmatmul.mubr.bf16.gmra.mrb[0].mxu0 %v970
      %v1329 = vpop.f32.mrb[0].mxu0
      %v1330 = vadd.f32 %v528, %v1329
      %v1331 = vpop.f32.mrb[0].mxu0
      %v1332 = vpop.f32.mrb[0].mxu0
      %v1333 = vadd.f32 %v528, %v1332
      %v1334 = vpop.f32.mrb[0].mxu0
      %1335 = vmatprep.mubr.bf16.mxu0 0
      %1336 = vmatmul.mubr.bf16.gmra.mrb[0].mxu0 %v973
      %v1337 = vpop.f32.mrb[0].mxu0
      %v1338 = vadd.f32 %v528, %v1337
      %v1339 = vpop.f32.mrb[0].mxu0
      %v1340 = vpop.f32.mrb[0].mxu0
      %v1341 = vadd.f32 %v528, %v1340
      %v1342 = vpop.f32.mrb[0].mxu0
      %1343 = vmatprep.mubr.bf16.mxu0 0
      %1344 = vmatmul.mubr.bf16.gmra.mrb[0].mxu0 %v976
      %v1345 = vpop.f32.mrb[0].mxu0
      %v1346 = vadd.f32 %v528, %v1345
      %v1347 = vpop.f32.mrb[0].mxu0
      %v1348 = vpop.f32.mrb[0].mxu0
      %v1349 = vadd.f32 %v528, %v1348
      %v1350 = vpop.f32.mrb[0].mxu0
      %1351 = vmatprep.mubr.bf16.mxu0 0
      %1352 = vmatmul.mubr.bf16.gmra.mrb[0].mxu0 %v979
      %v1353 = vpop.f32.mrb[0].mxu0
      %v1354 = vadd.f32 %v528, %v1353
      %v1355 = vpop.f32.mrb[0].mxu0
      %v1356 = vpop.f32.mrb[0].mxu0
      %v1357 = vadd.f32 %v528, %v1356
      %v1358 = vpop.f32.mrb[0].mxu0
      %1359 = vmatprep.mubr.bf16.mxu0 0
      %1360 = vmatmul.mubr.bf16.gmra.mrb[0].mxu0 %v982
      %v1361 = vpop.f32.mrb[0].mxu0
      %v1362 = vadd.f32 %v528, %v1361
      %v1363 = vpop.f32.mrb[0].mxu0
      %v1364 = vpop.f32.mrb[0].mxu0
      %v1365 = vadd.f32 %v528, %v1364
      %v1366 = vpop.f32.mrb[0].mxu0
      %1367 = vmatprep.mubr.bf16.mxu0 0
      %1368 = vmatmul.mubr.bf16.gmra.mrb[0].mxu0 %v985
      %v1369 = vpop.f32.mrb[0].mxu0
      %v1370 = vadd.f32 %v528, %v1369
      %v1371 = vpop.f32.mrb[0].mxu0
      %v1372 = vpop.f32.mrb[0].mxu0
      %v1373 = vadd.f32 %v528, %v1372
      %v1374 = vpop.f32.mrb[0].mxu0
      %1375 = vmatprep.mubr.bf16.mxu0 0
      %1376 = vmatmul.mubr.bf16.gmra.mrb[0].mxu0 %v988
      %v1377 = vpop.f32.mrb[0].mxu0
      %v1378 = vadd.f32 %v528, %v1377
      %v1379 = vpop.f32.mrb[0].mxu0
      %v1380 = vpop.f32.mrb[0].mxu0
      %v1381 = vadd.f32 %v528, %v1380
      %v1382 = vpop.f32.mrb[0].mxu0
      %1383 = vmatprep.mubr.bf16.mxu0 0
      %1384 = vmatmul.mubr.bf16.gmra.mrb[0].mxu0 %v991
      %v1385 = vpop.f32.mrb[0].mxu0
      %v1386 = vadd.f32 %v528, %v1385
      %v1387 = vpop.f32.mrb[0].mxu0
      %v1388 = vpop.f32.mrb[0].mxu0
      %v1389 = vadd.f32 %v528, %v1388
      %v1390 = vpop.f32.mrb[0].mxu0
      %1391 = vmatprep.mubr.bf16.mxu0 0
      %1392 = vmatmul.mubr.bf16.gmra.mrb[0].mxu0 %v994
      %v1393 = vpop.f32.mrb[0].mxu0
      %v1394 = vadd.f32 %v528, %v1393
      %v1395 = vpop.f32.mrb[0].mxu0
      %v1396 = vpop.f32.mrb[0].mxu0
      %v1397 = vadd.f32 %v528, %v1396
      %v1398 = vpop.f32.mrb[0].mxu0
      %1399 = vmatprep.mubr.bf16.mxu0 0
      %1400 = vmatmul.mubr.bf16.gmra.mrb[0].mxu0 %v997
      %v1401 = vpop.f32.mrb[0].mxu0
      %v1402 = vadd.f32 %v528, %v1401
      %v1403 = vpop.f32.mrb[0].mxu0
      %v1404 = vpop.f32.mrb[0].mxu0
      %v1405 = vadd.f32 %v528, %v1404
      %v1406 = vpop.f32.mrb[0].mxu0
      %1407 = vmatprep.mubr.bf16.mxu0 0
      %1408 = vmatmul.mubr.bf16.gmra.mrb[0].mxu0 %v1000
      %v1409 = vpop.f32.mrb[0].mxu0
      %v1410 = vadd.f32 %v528, %v1409
      %v1411 = vpop.f32.mrb[0].mxu0
      %v1412 = vpop.f32.mrb[0].mxu0
      %v1413 = vadd.f32 %v528, %v1412
      %v1414 = vpop.f32.mrb[0].mxu0
      %1415 = vmatprep.mubr.bf16.mxu0 0
      %1416 = vmatmul.mubr.bf16.gmra.mrb[0].mxu0 %v1003
      %v1417 = vpop.f32.mrb[0].mxu0
      %v1418 = vadd.f32 %v528, %v1417
      %v1419 = vpop.f32.mrb[0].mxu0
      %v1420 = vpop.f32.mrb[0].mxu0
      %v1421 = vadd.f32 %v528, %v1420
      %v1422 = vpop.f32.mrb[0].mxu0
      %1423 = vmatprep.mubr.bf16.mxu0 0
      %1424 = vmatmul.mubr.bf16.gmra.mrb[0].mxu0 %v1006
      %v1425 = vpop.f32.mrb[0].mxu0
      %v1426 = vadd.f32 %v528, %v1425
      %v1427 = vpop.f32.mrb[0].mxu0
      %v1428 = vpop.f32.mrb[0].mxu0
      %v1429 = vadd.f32 %v528, %v1428
      %v1430 = vpop.f32.mrb[0].mxu0
      %1431 = vmatprep.mubr.bf16.mxu0 0
      %1432 = vmatmul.mubr.bf16.gmra.mrb[0].mxu0 %v1009
      %v1433 = vpop.f32.mrb[0].mxu0
      %v1434 = vadd.f32 %v528, %v1433
      %v1435 = vpop.f32.mrb[0].mxu0
      %v1436 = vpop.f32.mrb[0].mxu0
      %v1437 = vadd.f32 %v528, %v1436
      %v1438 = vpop.f32.mrb[0].mxu0
      %1439 = vmatprep.mubr.bf16.mxu0 0
      %1440 = vmatmul.mubr.bf16.gmra.mrb[0].mxu0 %v1012
      %v1441 = vpop.f32.mrb[0].mxu0
      %v1442 = vadd.f32 %v528, %v1441
      %v1443 = vpop.f32.mrb[0].mxu0
      %v1444 = vpop.f32.mrb[0].mxu0
      %v1445 = vadd.f32 %v528, %v1444
      %v1446 = vpop.f32.mrb[0].mxu0
      %1447 = vmatprep.mubr.bf16.mxu0 0
      %1448 = vmatmul.mubr.bf16.gmra.mrb[0].mxu0 %v1015
      %v1449 = vpop.f32.mrb[0].mxu0
      %v1450 = vadd.f32 %v528, %v1449
      %v1451 = vpop.f32.mrb[0].mxu0
      %v1452 = vpop.f32.mrb[0].mxu0
      %v1453 = vadd.f32 %v528, %v1452
      %v1454 = vpop.f32.mrb[0].mxu0
      %1455 = vmatprep.mubr.bf16.mxu0 0
      %1456 = vmatmul.mubr.bf16.gmra.mrb[0].mxu0 %v1018
      %v1457 = vpop.f32.mrb[0].mxu0
      %v1458 = vadd.f32 %v528, %v1457
      %v1459 = vpop.f32.mrb[0].mxu0
      %v1460 = vpop.f32.mrb[0].mxu0
      %v1461 = vadd.f32 %v528, %v1460
      %v1462 = vpop.f32.mrb[0].mxu0
      %1463 = vmatprep.mubr.bf16.mxu0 0
      %1464 = vmatmul.mubr.bf16.gmra.mrb[0].mxu0 %v1021
      %v1465 = vpop.f32.mrb[0].mxu0
      %v1466 = vadd.f32 %v528, %v1465
      %v1467 = vpop.f32.mrb[0].mxu0
      %v1468 = vpop.f32.mrb[0].mxu0
      %v1469 = vadd.f32 %v528, %v1468
      %v1470 = vpop.f32.mrb[0].mxu0
      %1471 = vmatprep.mubr.bf16.mxu0 0
      %1472 = vmatmul.mubr.bf16.gmra.mrb[0].mxu0 %v1024
      %v1473 = vpop.f32.mrb[0].mxu0
      %v1474 = vadd.f32 %v528, %v1473
      %v1475 = vpop.f32.mrb[0].mxu0
      %v1476 = vpop.f32.mrb[0].mxu0
      %v1477 = vadd.f32 %v528, %v1476
      %v1478 = vpop.f32.mrb[0].mxu0
      %1479 = vmatprep.mubr.bf16.mxu0 0
      %1480 = vmatmul.mubr.bf16.gmra.mrb[0].mxu0 %v1027
      %v1481 = vpop.f32.mrb[0].mxu0
      %v1482 = vadd.f32 %v528, %v1481
      %v1483 = vpop.f32.mrb[0].mxu0
      %v1484 = vpop.f32.mrb[0].mxu0
      %v1485 = vadd.f32 %v528, %v1484
      %v1486 = vpop.f32.mrb[0].mxu0
      %1487 = vmatprep.mubr.bf16.mxu0 0
      %1488 = vmatmul.mubr.bf16.gmra.mrb[0].mxu0 %v1030
      %v1489 = vpop.f32.mrb[0].mxu0
      %v1490 = vadd.f32 %v528, %v1489
      %v1491 = vpop.f32.mrb[0].mxu0
      %v1492 = vpop.f32.mrb[0].mxu0
      %v1493 = vadd.f32 %v528, %v1492
      %v1494 = vpop.f32.mrb[0].mxu0
      %1495 = vmatprep.mubr.bf16.mxu0 0
      %1496 = vmatmul.mubr.bf16.gmra.mrb[0].mxu0 %v1033
      %v1497 = vpop.f32.mrb[0].mxu0
      %v1498 = vadd.f32 %v528, %v1497
      %v1499 = vpop.f32.mrb[0].mxu0
      %v1500 = vpop.f32.mrb[0].mxu0
      %v1501 = vadd.f32 %v528, %v1500
      %v1502 = vpop.f32.mrb[0].mxu0
      %1503 = vmatprep.mubr.bf16.mxu0 0
      %1504 = vmatmul.mubr.bf16.gmra.mrb[0].mxu0 %v1036
      %v1505 = vpop.f32.mrb[0].mxu0
      %v1506 = vadd.f32 %v528, %v1505
      %v1507 = vpop.f32.mrb[0].mxu0
      %v1508 = vpop.f32.mrb[0].mxu0
      %v1509 = vadd.f32 %v528, %v1508
      %v1510 = vpop.f32.mrb[0].mxu0
      %1511 = vmatprep.mubr.bf16.mxu0 0
      %1512 = vmatmul.mubr.bf16.gmra.mrb[0].mxu0 %v1039
      %v1513 = vpop.f32.mrb[0].mxu0
      %v1514 = vadd.f32 %v528, %v1513
      %v1515 = vpop.f32.mrb[0].mxu0
      %v1516 = vpop.f32.mrb[0].mxu0
      %v1517 = vadd.f32 %v528, %v1516
      %v1518 = vpop.f32.mrb[0].mxu0
      %1519 = vmatprep.mubr.bf16.mxu0 0
      %1520 = vmatmul.mubr.bf16.gmra.mrb[0].mxu0 %v1042
      %v1521 = vpop.f32.mrb[0].mxu0
      %v1522 = vadd.f32 %v528, %v1521
      %v1523 = vpop.f32.mrb[0].mxu0
      %v1524 = vpop.f32.mrb[0].mxu0
      %v1525 = vadd.f32 %v528, %v1524
      %v1526 = vpop.f32.mrb[0].mxu0
      %1527 = vmatprep.mubr.bf16.mxu0 0
      %1528 = vmatmul.mubr.bf16.gmra.mrb[0].mxu0 %v1045
      %v1529 = vpop.f32.mrb[0].mxu0
      %v1530 = vadd.f32 %v528, %v1529
      %v1531 = vpop.f32.mrb[0].mxu0
      %v1532 = vpop.f32.mrb[0].mxu0
      %v1533 = vadd.f32 %v528, %v1532
      %v1534 = vpop.f32.mrb[0].mxu0
      %1535 = vmatprep.mubr.bf16.mxu0 0
      %1536 = vmatmul.mubr.bf16.gmra.mrb[0].mxu0 %v1048
      %v1537 = vpop.f32.mrb[0].mxu0
      %v1538 = vadd.f32 %v528, %v1537
      %v1539 = vpop.f32.mrb[0].mxu0
      %v1540 = vpop.f32.mrb[0].mxu0
      %v1541 = vadd.f32 %v528, %v1540
      %v1542 = vpop.f32.mrb[0].mxu0
      %1543 = vmatprep.mubr.bf16.mxu0 0
      %1544 = vmatmul.mubr.bf16.gmra.mrb[0].mxu0 %v1051
      %v1545 = vpop.f32.mrb[0].mxu0
      %v1546 = vadd.f32 %v528, %v1545
      %v1547 = vpop.f32.mrb[0].mxu0
      %v1548 = vpop.f32.mrb[0].mxu0
      %v1549 = vadd.f32 %v528, %v1548
      %v1550 = vpop.f32.mrb[0].mxu0
      %1551 = vmatprep.mubr.bf16.mxu0 0
      %1552 = vmatmul.mubr.bf16.gmra.mrb[0].mxu0 %v1054
      %v1553 = vpop.f32.mrb[0].mxu0
      %v1554 = vadd.f32 %v528, %v1553
      %v1555 = vpop.f32.mrb[0].mxu0
      %v1556 = vpop.f32.mrb[0].mxu0
      %v1557 = vadd.f32 %v528, %v1556
      %v1558 = vpop.f32.mrb[0].mxu0
      %1559 = vmatprep.mubr.bf16.mxu0 0
      %1560 = vmatmul.mubr.bf16.gmra.mrb[0].mxu0 %v1057
      %v1561 = vpop.f32.mrb[0].mxu0
      %v1562 = vadd.f32 %v528, %v1561
      %v1563 = vpop.f32.mrb[0].mxu0
      %v1564 = vpop.f32.mrb[0].mxu0
      %v1565 = vadd.f32 %v528, %v1564
      %v1566 = vpop.f32.mrb[0].mxu0
      %1567 = vmatprep.mubr.bf16.mxu0 0
      %1568 = vmatmul.mubr.bf16.gmra.mrb[0].mxu0 %v1060
      %v1569 = vpop.f32.mrb[0].mxu0
      %v1570 = vadd.f32 %v528, %v1569
      %v1571 = vpop.f32.mrb[0].mxu0
      %v1572 = vpop.f32.mrb[0].mxu0
      %v1573 = vadd.f32 %v528, %v1572
      %v1574 = vpop.f32.mrb[0].mxu0
      %1575 = vmatprep.mubr.bf16.mxu0 0
      %1576 = vmatmul.mubr.bf16.gmra.mrb[0].mxu0 %v1063
      %v1577 = vpop.f32.mrb[0].mxu0
      %v1578 = vadd.f32 %v528, %v1577
      %v1579 = vpop.f32.mrb[0].mxu0
      %v1580 = vpop.f32.mrb[0].mxu0
      %v1581 = vadd.f32 %v528, %v1580
      %v1582 = vpop.f32.mrb[0].mxu0
      %1583 = vmatprep.mubr.bf16.mxu0 0
      %1584 = vmatmul.mubr.bf16.gmra.mrb[0].mxu0 %v1066
      %v1585 = vpop.f32.mrb[0].mxu0
      %v1586 = vadd.f32 %v528, %v1585
      %v1587 = vpop.f32.mrb[0].mxu0
      %v1588 = vpop.f32.mrb[0].mxu0
      %v1589 = vadd.f32 %v528, %v1588
      %v1590 = vpop.f32.mrb[0].mxu0
      %1591 = vmatprep.mubr.bf16.mxu0 0
      %1592 = vmatmul.mubr.bf16.gmra.mrb[0].mxu0 %v1069
      %v1593 = vpop.f32.mrb[0].mxu0
      %v1594 = vadd.f32 %v528, %v1593
      %v1595 = vpop.f32.mrb[0].mxu0
      %v1596 = vpop.f32.mrb[0].mxu0
      %v1597 = vadd.f32 %v528, %v1596
      %v1598 = vpop.f32.mrb[0].mxu0
      %1599 = vmatprep.mubr.bf16.mxu0 0
      %1600 = vmatmul.mubr.bf16.gmra.mrb[0].mxu0 %v1072
      %v1601 = vpop.f32.mrb[0].mxu0
      %v1602 = vadd.f32 %v528, %v1601
      %v1603 = vpop.f32.mrb[0].mxu0
      %v1604 = vpop.f32.mrb[0].mxu0
      %v1605 = vadd.f32 %v528, %v1604
      %v1606 = vpop.f32.mrb[0].mxu0
      %1607 = vmatprep.mubr.bf16.mxu0 0
      %1608 = vmatmul.mubr.bf16.gmra.mrb[0].mxu0 %v1075
      %v1609 = vpop.f32.mrb[0].mxu0
      %v1610 = vadd.f32 %v528, %v1609
      %v1611 = vpop.f32.mrb[0].mxu0
      %v1612 = vpop.f32.mrb[0].mxu0
      %v1613 = vadd.f32 %v528, %v1612
      %v1614 = vpop.f32.mrb[0].mxu0
      %1615 = vmatprep.mubr.bf16.mxu0 0
      %1616 = vmatmul.mubr.bf16.gmra.mrb[0].mxu0 %v1078
      %v1617 = vpop.f32.mrb[0].mxu0
      %v1618 = vadd.f32 %v528, %v1617
      %v1619 = vpop.f32.mrb[0].mxu0
      %v1620 = vpop.f32.mrb[0].mxu0
      %v1621 = vadd.f32 %v528, %v1620
      %v1622 = vpop.f32.mrb[0].mxu0
      %1623 = vmatprep.mubr.bf16.mxu0 0
      %1624 = vmatmul.mubr.bf16.gmra.mrb[0].mxu0 %v1081
      %v1625 = vpop.f32.mrb[0].mxu0
      %v1626 = vadd.f32 %v528, %v1625
      %v1627 = vpop.f32.mrb[0].mxu0
      %v1628 = vpop.f32.mrb[0].mxu0
      %v1629 = vadd.f32 %v528, %v1628
      %v1630 = vpop.f32.mrb[0].mxu0
      %1631 = vmatprep.mubr.bf16.mxu0 0
      %1632 = vmatmul.mubr.bf16.gmra.mrb[0].mxu0 %v1084
      %v1633 = vpop.f32.mrb[0].mxu0
      %v1634 = vadd.f32 %v528, %v1633
      %v1635 = vpop.f32.mrb[0].mxu0
      %v1636 = vpop.f32.mrb[0].mxu0
      %v1637 = vadd.f32 %v528, %v1636
      %v1638 = vpop.f32.mrb[0].mxu0
      %1639 = vmatprep.mubr.bf16.mxu0 0
      %1640 = vmatmul.mubr.bf16.gmra.mrb[0].mxu0 %v1087
      %v1641 = vpop.f32.mrb[0].mxu0
      %v1642 = vadd.f32 %v528, %v1641
      %v1643 = vpop.f32.mrb[0].mxu0
      %v1644 = vpop.f32.mrb[0].mxu0
      %v1645 = vadd.f32 %v528, %v1644
      %v1646 = vpop.f32.mrb[0].mxu0
      %1647 = vmatprep.mubr.bf16.mxu0 0
      %1648 = vmatmul.mubr.bf16.gmra.mrb[0].mxu0 %v1090
      %v1649 = vpop.f32.mrb[0].mxu0
      %v1650 = vadd.f32 %v528, %v1649
      %v1651 = vpop.f32.mrb[0].mxu0
      %v1652 = vpop.f32.mrb[0].mxu0
      %v1653 = vadd.f32 %v528, %v1652
      %v1654 = vpop.f32.mrb[0].mxu0
      %1655 = vmatprep.mubr.bf16.mxu0 0
      %1656 = vmatmul.mubr.bf16.gmra.mrb[0].mxu0 %v1093
      %v1657 = vpop.f32.mrb[0].mxu0
      %v1658 = vadd.f32 %v528, %v1657
      %v1659 = vpop.f32.mrb[0].mxu0
      %v1660 = vpop.f32.mrb[0].mxu0
      %v1661 = vadd.f32 %v528, %v1660
      %v1662 = vpop.f32.mrb[0].mxu0
      %1663 = vmatprep.mubr.bf16.mxu0 0
      %1664 = vmatmul.mubr.bf16.gmra.mrb[0].mxu0 %v1096
      %v1665 = vpop.f32.mrb[0].mxu0
      %v1666 = vadd.f32 %v528, %v1665
      %v1667 = vpop.f32.mrb[0].mxu0
      %v1668 = vpop.f32.mrb[0].mxu0
      %v1669 = vadd.f32 %v528, %v1668
      %v1670 = vpop.f32.mrb[0].mxu0
      %1671 = vmatprep.mubr.bf16.mxu0 0
      %1672 = vmatmul.mubr.bf16.gmra.mrb[0].mxu0 %v1099
      %v1673 = vpop.f32.mrb[0].mxu0
      %v1674 = vadd.f32 %v528, %v1673
      %v1675 = vpop.f32.mrb[0].mxu0
      %v1676 = vpop.f32.mrb[0].mxu0
      %v1677 = vadd.f32 %v528, %v1676
      %v1678 = vpop.f32.mrb[0].mxu0
      %1679 = vmatprep.mubr.bf16.mxu0 0
      %1680 = vmatmul.mubr.bf16.gmra.mrb[0].mxu0 %v1102
      %v1681 = vpop.f32.mrb[0].mxu0
      %v1682 = vadd.f32 %v528, %v1681
      %v1683 = vpop.f32.mrb[0].mxu0
      %v1684 = vpop.f32.mrb[0].mxu0
      %v1685 = vadd.f32 %v528, %v1684
      %v1686 = vpop.f32.mrb[0].mxu0
      %1687 = vmatprep.mubr.bf16.mxu0 0
      %1688 = vmatmul.mubr.bf16.gmra.mrb[0].mxu0 %v1105
      %v1689 = vpop.f32.mrb[0].mxu0
      %v1690 = vadd.f32 %v528, %v1689
      %v1691 = vpop.f32.mrb[0].mxu0
      %v1692 = vpop.f32.mrb[0].mxu0
      %v1693 = vadd.f32 %v528, %v1692
      %v1694 = vpop.f32.mrb[0].mxu0
      %1695 = vmatprep.mubr.bf16.mxu0 0
      %1696 = vmatmul.mubr.bf16.gmra.mrb[0].mxu0 %v1108
      %v1697 = vpop.f32.mrb[0].mxu0
      %v1698 = vadd.f32 %v528, %v1697
      %v1699 = vpop.f32.mrb[0].mxu0
      %v1700 = vpop.f32.mrb[0].mxu0
      %v1701 = vadd.f32 %v528, %v1700
      %v1702 = vpop.f32.mrb[0].mxu0
      %1703 = vmatprep.mubr.bf16.mxu0 0
      %1704 = vmatmul.mubr.bf16.gmra.mrb[0].mxu0 %v1111
      %v1705 = vpop.f32.mrb[0].mxu0
      %v1706 = vadd.f32 %v528, %v1705
      %v1707 = vpop.f32.mrb[0].mxu0
      %v1708 = vpop.f32.mrb[0].mxu0
      %v1709 = vadd.f32 %v528, %v1708
      %v1710 = vpop.f32.mrb[0].mxu0
      %1711 = vmatprep.mubr.bf16.mxu0 0
      %1712 = vmatmul.mubr.bf16.gmra.mrb[0].mxu0 %v1114
      %v1713 = vpop.f32.mrb[0].mxu0
      %v1714 = vadd.f32 %v528, %v1713
      %v1715 = vpop.f32.mrb[0].mxu0
      %v1716 = vpop.f32.mrb[0].mxu0
      %v1717 = vadd.f32 %v528, %v1716
      %v1718 = vpop.f32.mrb[0].mxu0
      %1719 = vmatprep.mubr.bf16.mxu0 0
      %1720 = vmatmul.mubr.bf16.gmra.mrb[0].mxu0 %v1117
      %v1721 = vpop.f32.mrb[0].mxu0
      %v1722 = vadd.f32 %v528, %v1721
      %v1723 = vpop.f32.mrb[0].mxu0
      %v1724 = vpop.f32.mrb[0].mxu0
      %v1725 = vadd.f32 %v528, %v1724
      %v1726 = vpop.f32.mrb[0].mxu0
      %1727 = vdwg.mxu0
      %v1728 = vsel %vm902, %v1154, 0.0
      %v1729 = vsel %vm902, %v1157, 0.0
      %v1730 = vadd.f32 %v1728, %v1729
      %v1731 = vsel %vm902, %v1162, 0.0
      %v1732 = vadd.f32 %v1730, %v1731
      %v1733 = vsel %vm902, %v1165, 0.0
      %v1734 = vadd.f32 %v1732, %v1733
      %v1735 = vsel %vm902, %v1170, 0.0
      %v1736 = vadd.f32 %v1734, %v1735
      %v1737 = vsel %vm902, %v1173, 0.0
      %v1738 = vadd.f32 %v1736, %v1737
      %v1739 = vsel %vm902, %v1178, 0.0
      %v1740 = vadd.f32 %v1738, %v1739
      %v1741 = vsel %vm902, %v1181, 0.0
      %v1742 = vadd.f32 %v1740, %v1741
      %v1743 = vsel %vm902, %v1186, 0.0
      %v1744 = vadd.f32 %v1742, %v1743
      %v1745 = vsel %vm902, %v1189, 0.0
      %v1746 = vadd.f32 %v1744, %v1745
      %v1747 = vsel %vm902, %v1194, 0.0
      %v1748 = vadd.f32 %v1746, %v1747
      %v1749 = vsel %vm902, %v1197, 0.0
      %v1750 = vadd.f32 %v1748, %v1749
      %v1751 = vsel %vm902, %v1202, 0.0
      %v1752 = vadd.f32 %v1750, %v1751
      %v1753 = vsel %vm902, %v1205, 0.0
      %v1754 = vadd.f32 %v1752, %v1753
      %v1755 = vsel %vm902, %v1210, 0.0
      %v1756 = vadd.f32 %v1754, %v1755
      %v1757 = vsel %vm902, %v1213, 0.0
      %v1758 = vadd.f32 %v1756, %v1757
      %v1759 = vsel %vm902, %v1218, 0.0
      %v1760 = vadd.f32 %v1758, %v1759
      %v1761 = vsel %vm902, %v1221, 0.0
      %v1762 = vadd.f32 %v1760, %v1761
      %v1763 = vsel %vm902, %v1226, 0.0
      %v1764 = vadd.f32 %v1762, %v1763
      %v1765 = vsel %vm902, %v1229, 0.0
      %v1766 = vadd.f32 %v1764, %v1765
      %v1767 = vsel %vm902, %v1234, 0.0
      %v1768 = vadd.f32 %v1766, %v1767
      %v1769 = vsel %vm902, %v1237, 0.0
      %v1770 = vadd.f32 %v1768, %v1769
      %v1771 = vsel %vm902, %v1242, 0.0
      %v1772 = vadd.f32 %v1770, %v1771
      %v1773 = vsel %vm902, %v1245, 0.0
      %v1774 = vadd.f32 %v1772, %v1773
      %v1775 = vsel %vm902, %v1250, 0.0
      %v1776 = vadd.f32 %v1774, %v1775
      %v1777 = vsel %vm902, %v1253, 0.0
      %v1778 = vadd.f32 %v1776, %v1777
      %v1779 = vsel %vm902, %v1258, 0.0
      %v1780 = vadd.f32 %v1778, %v1779
      %v1781 = vsel %vm902, %v1261, 0.0
      %v1782 = vadd.f32 %v1780, %v1781
      %v1783 = vsel %vm902, %v1266, 0.0
      %v1784 = vadd.f32 %v1782, %v1783
      %v1785 = vsel %vm902, %v1269, 0.0
      %v1786 = vadd.f32 %v1784, %v1785
      %v1787 = vsel %vm902, %v1274, 0.0
      %v1788 = vadd.f32 %v1786, %v1787
      %v1789 = vsel %vm902, %v1277, 0.0
      %v1790 = vadd.f32 %v1788, %v1789
      %v1791 = vsel %vm902, %v1282, 0.0
      %v1792 = vadd.f32 %v1790, %v1791
      %v1793 = vsel %vm902, %v1285, 0.0
      %v1794 = vadd.f32 %v1792, %v1793
      %v1795 = vsel %vm902, %v1290, 0.0
      %v1796 = vadd.f32 %v1794, %v1795
      %v1797 = vsel %vm902, %v1293, 0.0
      %v1798 = vadd.f32 %v1796, %v1797
      %v1799 = vsel %vm902, %v1298, 0.0
      %v1800 = vadd.f32 %v1798, %v1799
      %v1801 = vsel %vm902, %v1301, 0.0
      %v1802 = vadd.f32 %v1800, %v1801
      %v1803 = vsel %vm902, %v1306, 0.0
      %v1804 = vadd.f32 %v1802, %v1803
      %v1805 = vsel %vm902, %v1309, 0.0
      %v1806 = vadd.f32 %v1804, %v1805
      %v1807 = vsel %vm902, %v1314, 0.0
      %v1808 = vadd.f32 %v1806, %v1807
      %v1809 = vsel %vm902, %v1317, 0.0
      %v1810 = vadd.f32 %v1808, %v1809
      %v1811 = vsel %vm902, %v1322, 0.0
      %v1812 = vadd.f32 %v1810, %v1811
      %v1813 = vsel %vm902, %v1325, 0.0
      %v1814 = vadd.f32 %v1812, %v1813
      %v1815 = vsel %vm902, %v1330, 0.0
      %v1816 = vadd.f32 %v1814, %v1815
      %v1817 = vsel %vm902, %v1333, 0.0
      %v1818 = vadd.f32 %v1816, %v1817
      %v1819 = vsel %vm902, %v1338, 0.0
      %v1820 = vadd.f32 %v1818, %v1819
      %v1821 = vsel %vm902, %v1341, 0.0
      %v1822 = vadd.f32 %v1820, %v1821
      %v1823 = vsel %vm902, %v1346, 0.0
      %v1824 = vadd.f32 %v1822, %v1823
      %v1825 = vsel %vm902, %v1349, 0.0
      %v1826 = vadd.f32 %v1824, %v1825
      %v1827 = vsel %vm902, %v1354, 0.0
      %v1828 = vadd.f32 %v1826, %v1827
      %v1829 = vsel %vm902, %v1357, 0.0
      %v1830 = vadd.f32 %v1828, %v1829
      %v1831 = vsel %vm902, %v1362, 0.0
      %v1832 = vadd.f32 %v1830, %v1831
      %v1833 = vsel %vm902, %v1365, 0.0
      %v1834 = vadd.f32 %v1832, %v1833
      %v1835 = vsel %vm902, %v1370, 0.0
      %v1836 = vadd.f32 %v1834, %v1835
      %v1837 = vsel %vm902, %v1373, 0.0
      %v1838 = vadd.f32 %v1836, %v1837
      %v1839 = vsel %vm902, %v1378, 0.0
      %v1840 = vadd.f32 %v1838, %v1839
      %v1841 = vsel %vm902, %v1381, 0.0
      %v1842 = vadd.f32 %v1840, %v1841
      %v1843 = vsel %vm902, %v1386, 0.0
      %v1844 = vadd.f32 %v1842, %v1843
      %v1845 = vsel %vm902, %v1389, 0.0
      %v1846 = vadd.f32 %v1844, %v1845
      %v1847 = vsel %vm902, %v1394, 0.0
      %v1848 = vadd.f32 %v1846, %v1847
      %v1849 = vsel %vm902, %v1397, 0.0
      %v1850 = vadd.f32 %v1848, %v1849
      %v1851 = vsel %vm902, %v1402, 0.0
      %v1852 = vadd.f32 %v1850, %v1851
      %v1853 = vsel %vm902, %v1405, 0.0
      %v1854 = vadd.f32 %v1852, %v1853
      %v1855 = vsel %vm902, %v1410, 0.0
      %v1856 = vadd.f32 %v1854, %v1855
      %v1857 = vsel %vm902, %v1413, 0.0
      %v1858 = vadd.f32 %v1856, %v1857
      %v1859 = vsel %vm902, %v1418, 0.0
      %v1860 = vadd.f32 %v1858, %v1859
      %v1861 = vsel %vm902, %v1421, 0.0
      %v1862 = vadd.f32 %v1860, %v1861
      %v1863 = vsel %vm902, %v1426, 0.0
      %v1864 = vadd.f32 %v1862, %v1863
      %v1865 = vsel %vm902, %v1429, 0.0
      %v1866 = vadd.f32 %v1864, %v1865
      %v1867 = vsel %vm902, %v1434, 0.0
      %v1868 = vadd.f32 %v1866, %v1867
      %v1869 = vsel %vm902, %v1437, 0.0
      %v1870 = vadd.f32 %v1868, %v1869
      %v1871 = vsel %vm902, %v1442, 0.0
      %v1872 = vadd.f32 %v1870, %v1871
      %v1873 = vsel %vm902, %v1445, 0.0
      %v1874 = vadd.f32 %v1872, %v1873
      %v1875 = vsel %vm902, %v1450, 0.0
      %v1876 = vadd.f32 %v1874, %v1875
      %v1877 = vsel %vm902, %v1453, 0.0
      %v1878 = vadd.f32 %v1876, %v1877
      %v1879 = vsel %vm902, %v1458, 0.0
      %v1880 = vadd.f32 %v1878, %v1879
      %v1881 = vsel %vm902, %v1461, 0.0
      %v1882 = vadd.f32 %v1880, %v1881
      %v1883 = vsel %vm902, %v1466, 0.0
      %v1884 = vadd.f32 %v1882, %v1883
      %v1885 = vsel %vm902, %v1469, 0.0
      %v1886 = vadd.f32 %v1884, %v1885
      %v1887 = vsel %vm902, %v1474, 0.0
      %v1888 = vadd.f32 %v1886, %v1887
      %v1889 = vsel %vm902, %v1477, 0.0
      %v1890 = vadd.f32 %v1888, %v1889
      %v1891 = vsel %vm902, %v1482, 0.0
      %v1892 = vadd.f32 %v1890, %v1891
      %v1893 = vsel %vm902, %v1485, 0.0
      %v1894 = vadd.f32 %v1892, %v1893
      %v1895 = vsel %vm902, %v1490, 0.0
      %v1896 = vadd.f32 %v1894, %v1895
      %v1897 = vsel %vm902, %v1493, 0.0
      %v1898 = vadd.f32 %v1896, %v1897
      %v1899 = vsel %vm902, %v1498, 0.0
      %v1900 = vadd.f32 %v1898, %v1899
      %v1901 = vsel %vm902, %v1501, 0.0
      %v1902 = vadd.f32 %v1900, %v1901
      %v1903 = vsel %vm902, %v1506, 0.0
      %v1904 = vadd.f32 %v1902, %v1903
      %v1905 = vsel %vm902, %v1509, 0.0
      %v1906 = vadd.f32 %v1904, %v1905
      %v1907 = vsel %vm902, %v1514, 0.0
      %v1908 = vadd.f32 %v1906, %v1907
      %v1909 = vsel %vm902, %v1517, 0.0
      %v1910 = vadd.f32 %v1908, %v1909
      %v1911 = vsel %vm902, %v1522, 0.0
      %v1912 = vadd.f32 %v1910, %v1911
      %v1913 = vsel %vm902, %v1525, 0.0
      %v1914 = vadd.f32 %v1912, %v1913
      %v1915 = vsel %vm902, %v1530, 0.0
      %v1916 = vadd.f32 %v1914, %v1915
      %v1917 = vsel %vm902, %v1533, 0.0
      %v1918 = vadd.f32 %v1916, %v1917
      %v1919 = vsel %vm902, %v1538, 0.0
      %v1920 = vadd.f32 %v1918, %v1919
      %v1921 = vsel %vm902, %v1541, 0.0
      %v1922 = vadd.f32 %v1920, %v1921
      %v1923 = vsel %vm902, %v1546, 0.0
      %v1924 = vadd.f32 %v1922, %v1923
      %v1925 = vsel %vm902, %v1549, 0.0
      %v1926 = vadd.f32 %v1924, %v1925
      %v1927 = vsel %vm902, %v1554, 0.0
      %v1928 = vadd.f32 %v1926, %v1927
      %v1929 = vsel %vm902, %v1557, 0.0
      %v1930 = vadd.f32 %v1928, %v1929
      %v1931 = vsel %vm902, %v1562, 0.0
      %v1932 = vadd.f32 %v1930, %v1931
      %v1933 = vsel %vm902, %v1565, 0.0
      %v1934 = vadd.f32 %v1932, %v1933
      %v1935 = vsel %vm902, %v1570, 0.0
      %v1936 = vadd.f32 %v1934, %v1935
      %v1937 = vsel %vm902, %v1573, 0.0
      %v1938 = vadd.f32 %v1936, %v1937
      %v1939 = vsel %vm902, %v1578, 0.0
      %v1940 = vadd.f32 %v1938, %v1939
      %v1941 = vsel %vm902, %v1581, 0.0
      %v1942 = vadd.f32 %v1940, %v1941
      %v1943 = vsel %vm902, %v1586, 0.0
      %v1944 = vadd.f32 %v1942, %v1943
      %v1945 = vsel %vm902, %v1589, 0.0
      %v1946 = vadd.f32 %v1944, %v1945
      %v1947 = vsel %vm902, %v1594, 0.0
      %v1948 = vadd.f32 %v1946, %v1947
      %v1949 = vsel %vm902, %v1597, 0.0
      %v1950 = vadd.f32 %v1948, %v1949
      %v1951 = vsel %vm902, %v1602, 0.0
      %v1952 = vadd.f32 %v1950, %v1951
      %v1953 = vsel %vm902, %v1605, 0.0
      %v1954 = vadd.f32 %v1952, %v1953
      %v1955 = vsel %vm902, %v1610, 0.0
      %v1956 = vadd.f32 %v1954, %v1955
      %v1957 = vsel %vm902, %v1613, 0.0
      %v1958 = vadd.f32 %v1956, %v1957
      %v1959 = vsel %vm902, %v1618, 0.0
      %v1960 = vadd.f32 %v1958, %v1959
      %v1961 = vsel %vm902, %v1621, 0.0
      %v1962 = vadd.f32 %v1960, %v1961
      %v1963 = vsel %vm902, %v1626, 0.0
      %v1964 = vadd.f32 %v1962, %v1963
      %v1965 = vsel %vm902, %v1629, 0.0
      %v1966 = vadd.f32 %v1964, %v1965
      %v1967 = vsel %vm902, %v1634, 0.0
      %v1968 = vadd.f32 %v1966, %v1967
      %v1969 = vsel %vm902, %v1637, 0.0
      %v1970 = vadd.f32 %v1968, %v1969
      %v1971 = vsel %vm902, %v1642, 0.0
      %v1972 = vadd.f32 %v1970, %v1971
      %v1973 = vsel %vm902, %v1645, 0.0
      %v1974 = vadd.f32 %v1972, %v1973
      %v1975 = vsel %vm902, %v1650, 0.0
      %v1976 = vadd.f32 %v1974, %v1975
      %v1977 = vsel %vm902, %v1653, 0.0
      %v1978 = vadd.f32 %v1976, %v1977
      %v1979 = vsel %vm902, %v1658, 0.0
      %v1980 = vadd.f32 %v1978, %v1979
      %v1981 = vsel %vm902, %v1661, 0.0
      %v1982 = vadd.f32 %v1980, %v1981
      %v1983 = vsel %vm902, %v1666, 0.0
      %v1984 = vadd.f32 %v1982, %v1983
      %v1985 = vsel %vm902, %v1669, 0.0
      %v1986 = vadd.f32 %v1984, %v1985
      %v1987 = vsel %vm902, %v1674, 0.0
      %v1988 = vadd.f32 %v1986, %v1987
      %v1989 = vsel %vm902, %v1677, 0.0
      %v1990 = vadd.f32 %v1988, %v1989
      %v1991 = vsel %vm902, %v1682, 0.0
      %v1992 = vadd.f32 %v1990, %v1991
      %v1993 = vsel %vm902, %v1685, 0.0
      %v1994 = vadd.f32 %v1992, %v1993
      %v1995 = vsel %vm902, %v1690, 0.0
      %v1996 = vadd.f32 %v1994, %v1995
      %v1997 = vsel %vm902, %v1693, 0.0
      %v1998 = vadd.f32 %v1996, %v1997
      %v1999 = vsel %vm902, %v1698, 0.0
      %v2000 = vadd.f32 %v1998, %v1999
      %v2001 = vsel %vm902, %v1701, 0.0
      %v2002 = vadd.f32 %v2000, %v2001
      %v2003 = vsel %vm902, %v1706, 0.0
      %v2004 = vadd.f32 %v2002, %v2003
      %v2005 = vsel %vm902, %v1709, 0.0
      %v2006 = vadd.f32 %v2004, %v2005
      %v2007 = vsel %vm902, %v1714, 0.0
      %v2008 = vadd.f32 %v2006, %v2007
      %v2009 = vsel %vm902, %v1717, 0.0
      %v2010 = vadd.f32 %v2008, %v2009
      %v2011 = vsel %vm902, %v1722, 0.0
      %v2012 = vadd.f32 %v2010, %v2011
      %v2013 = vsel %vm902, %v1725, 0.0
      %v2014 = vadd.f32 %v2012, %v2013
      %v2015 = vrot.slane %v2014, 4
      %v2016 = vadd.f32 %v2014, %v2015
      %v2017 = vrot.slane %v2016, 2
      %v2018 = vadd.f32 %v2016, %v2017
      %v2019 = vrot.slane %v2018, 1
      %v2020 = vadd.f32 %v2018, %v2019
      %v2021 = vmul.f32 %v1154, %v1154
      %v2022 = vmul.f32 %v1157, %v1157
      %v2023 = vmul.f32 %v1162, %v1162
      %v2024 = vmul.f32 %v1165, %v1165
      %v2025 = vmul.f32 %v1170, %v1170
      %v2026 = vmul.f32 %v1173, %v1173
      %v2027 = vmul.f32 %v1178, %v1178
      %v2028 = vmul.f32 %v1181, %v1181
      %v2029 = vmul.f32 %v1186, %v1186
      %v2030 = vmul.f32 %v1189, %v1189
      %v2031 = vmul.f32 %v1194, %v1194
      %v2032 = vmul.f32 %v1197, %v1197
      %v2033 = vmul.f32 %v1202, %v1202
      %v2034 = vmul.f32 %v1205, %v1205
      %v2035 = vmul.f32 %v1210, %v1210
      %v2036 = vmul.f32 %v1213, %v1213
      %v2037 = vmul.f32 %v1218, %v1218
      %v2038 = vmul.f32 %v1221, %v1221
      %v2039 = vmul.f32 %v1226, %v1226
      %v2040 = vmul.f32 %v1229, %v1229
      %v2041 = vmul.f32 %v1234, %v1234
      %v2042 = vmul.f32 %v1237, %v1237
      %v2043 = vmul.f32 %v1242, %v1242
      %v2044 = vmul.f32 %v1245, %v1245
      %v2045 = vmul.f32 %v1250, %v1250
      %v2046 = vmul.f32 %v1253, %v1253
      %v2047 = vmul.f32 %v1258, %v1258
      %v2048 = vmul.f32 %v1261, %v1261
      %v2049 = vmul.f32 %v1266, %v1266
      %v2050 = vmul.f32 %v1269, %v1269
      %v2051 = vmul.f32 %v1274, %v1274
      %v2052 = vmul.f32 %v1277, %v1277
      %v2053 = vmul.f32 %v1282, %v1282
      %v2054 = vmul.f32 %v1285, %v1285
      %v2055 = vmul.f32 %v1290, %v1290
      %v2056 = vmul.f32 %v1293, %v1293
      %v2057 = vmul.f32 %v1298, %v1298
      %v2058 = vmul.f32 %v1301, %v1301
      %v2059 = vmul.f32 %v1306, %v1306
      %v2060 = vmul.f32 %v1309, %v1309
      %v2061 = vmul.f32 %v1314, %v1314
      %v2062 = vmul.f32 %v1317, %v1317
      %v2063 = vmul.f32 %v1322, %v1322
      %v2064 = vmul.f32 %v1325, %v1325
      %v2065 = vmul.f32 %v1330, %v1330
      %v2066 = vmul.f32 %v1333, %v1333
      %v2067 = vmul.f32 %v1338, %v1338
      %v2068 = vmul.f32 %v1341, %v1341
      %v2069 = vmul.f32 %v1346, %v1346
      %v2070 = vmul.f32 %v1349, %v1349
      %v2071 = vmul.f32 %v1354, %v1354
      %v2072 = vmul.f32 %v1357, %v1357
      %v2073 = vmul.f32 %v1362, %v1362
      %v2074 = vmul.f32 %v1365, %v1365
      %v2075 = vmul.f32 %v1370, %v1370
      %v2076 = vmul.f32 %v1373, %v1373
      %v2077 = vmul.f32 %v1378, %v1378
      %v2078 = vmul.f32 %v1381, %v1381
      %v2079 = vmul.f32 %v1386, %v1386
      %v2080 = vmul.f32 %v1389, %v1389
      %v2081 = vmul.f32 %v1394, %v1394
      %v2082 = vmul.f32 %v1397, %v1397
      %v2083 = vmul.f32 %v1402, %v1402
      %v2084 = vmul.f32 %v1405, %v1405
      %v2085 = vmul.f32 %v1410, %v1410
      %v2086 = vmul.f32 %v1413, %v1413
      %v2087 = vmul.f32 %v1418, %v1418
      %v2088 = vmul.f32 %v1421, %v1421
      %v2089 = vmul.f32 %v1426, %v1426
      %v2090 = vmul.f32 %v1429, %v1429
      %v2091 = vmul.f32 %v1434, %v1434
      %v2092 = vmul.f32 %v1437, %v1437
      %v2093 = vmul.f32 %v1442, %v1442
      %v2094 = vmul.f32 %v1445, %v1445
      %v2095 = vmul.f32 %v1450, %v1450
      %v2096 = vmul.f32 %v1453, %v1453
      %v2097 = vmul.f32 %v1458, %v1458
      %v2098 = vmul.f32 %v1461, %v1461
      %v2099 = vmul.f32 %v1466, %v1466
      %v2100 = vmul.f32 %v1469, %v1469
      %v2101 = vmul.f32 %v1474, %v1474
      %v2102 = vmul.f32 %v1477, %v1477
      %v2103 = vmul.f32 %v1482, %v1482
      %v2104 = vmul.f32 %v1485, %v1485
      %v2105 = vmul.f32 %v1490, %v1490
      %v2106 = vmul.f32 %v1493, %v1493
      %v2107 = vmul.f32 %v1498, %v1498
      %v2108 = vmul.f32 %v1501, %v1501
      %v2109 = vmul.f32 %v1506, %v1506
      %v2110 = vmul.f32 %v1509, %v1509
      %v2111 = vmul.f32 %v1514, %v1514
      %v2112 = vmul.f32 %v1517, %v1517
      %v2113 = vmul.f32 %v1522, %v1522
      %v2114 = vmul.f32 %v1525, %v1525
      %v2115 = vmul.f32 %v1530, %v1530
      %v2116 = vmul.f32 %v1533, %v1533
      %v2117 = vmul.f32 %v1538, %v1538
      %v2118 = vmul.f32 %v1541, %v1541
      %v2119 = vmul.f32 %v1546, %v1546
      %v2120 = vmul.f32 %v1549, %v1549
      %v2121 = vmul.f32 %v1554, %v1554
      %v2122 = vmul.f32 %v1557, %v1557
      %v2123 = vmul.f32 %v1562, %v1562
      %v2124 = vmul.f32 %v1565, %v1565
      %v2125 = vmul.f32 %v1570, %v1570
      %v2126 = vmul.f32 %v1573, %v1573
      %v2127 = vmul.f32 %v1578, %v1578
      %v2128 = vmul.f32 %v1581, %v1581
      %v2129 = vmul.f32 %v1586, %v1586
      %v2130 = vmul.f32 %v1589, %v1589
      %v2131 = vmul.f32 %v1594, %v1594
      %v2132 = vmul.f32 %v1597, %v1597
      %v2133 = vmul.f32 %v1602, %v1602
      %v2134 = vmul.f32 %v1605, %v1605
      %v2135 = vmul.f32 %v1610, %v1610
      %v2136 = vmul.f32 %v1613, %v1613
      %v2137 = vmul.f32 %v1618, %v1618
      %v2138 = vmul.f32 %v1621, %v1621
      %v2139 = vmul.f32 %v1626, %v1626
      %v2140 = vmul.f32 %v1629, %v1629
      %v2141 = vmul.f32 %v1634, %v1634
      %v2142 = vmul.f32 %v1637, %v1637
      %v2143 = vmul.f32 %v1642, %v1642
      %v2144 = vmul.f32 %v1645, %v1645
      %v2145 = vmul.f32 %v1650, %v1650
      %v2146 = vmul.f32 %v1653, %v1653
      %v2147 = vmul.f32 %v1658, %v1658
      %v2148 = vmul.f32 %v1661, %v1661
      %v2149 = vmul.f32 %v1666, %v1666
      %v2150 = vmul.f32 %v1669, %v1669
      %v2151 = vmul.f32 %v1674, %v1674
      %v2152 = vmul.f32 %v1677, %v1677
      %v2153 = vmul.f32 %v1682, %v1682
      %v2154 = vmul.f32 %v1685, %v1685
      %v2155 = vmul.f32 %v1690, %v1690
      %v2156 = vmul.f32 %v1693, %v1693
      %v2157 = vmul.f32 %v1698, %v1698
      %v2158 = vmul.f32 %v1701, %v1701
      %v2159 = vmul.f32 %v1706, %v1706
      %v2160 = vmul.f32 %v1709, %v1709
      %v2161 = vmul.f32 %v1714, %v1714
      %v2162 = vmul.f32 %v1717, %v1717
      %v2163 = vmul.f32 %v1722, %v1722
      %v2164 = vmul.f32 %v1725, %v1725
      %v2165 = vsel %vm902, %v2021, 0.0
      %v2166 = vsel %vm902, %v2022, 0.0
      %v2167 = vadd.f32 %v2165, %v2166
      %v2168 = vsel %vm902, %v2023, 0.0
      %v2169 = vadd.f32 %v2167, %v2168
      %v2170 = vsel %vm902, %v2024, 0.0
      %v2171 = vadd.f32 %v2169, %v2170
      %v2172 = vsel %vm902, %v2025, 0.0
      %v2173 = vadd.f32 %v2171, %v2172
      %v2174 = vsel %vm902, %v2026, 0.0
      %v2175 = vadd.f32 %v2173, %v2174
      %v2176 = vsel %vm902, %v2027, 0.0
      %v2177 = vadd.f32 %v2175, %v2176
      %v2178 = vsel %vm902, %v2028, 0.0
      %v2179 = vadd.f32 %v2177, %v2178
      %v2180 = vsel %vm902, %v2029, 0.0
      %v2181 = vadd.f32 %v2179, %v2180
      %v2182 = vsel %vm902, %v2030, 0.0
      %v2183 = vadd.f32 %v2181, %v2182
      %v2184 = vsel %vm902, %v2031, 0.0
      %v2185 = vadd.f32 %v2183, %v2184
      %v2186 = vsel %vm902, %v2032, 0.0
      %v2187 = vadd.f32 %v2185, %v2186
      %v2188 = vsel %vm902, %v2033, 0.0
      %v2189 = vadd.f32 %v2187, %v2188
      %v2190 = vsel %vm902, %v2034, 0.0
      %v2191 = vadd.f32 %v2189, %v2190
      %v2192 = vsel %vm902, %v2035, 0.0
      %v2193 = vadd.f32 %v2191, %v2192
      %v2194 = vsel %vm902, %v2036, 0.0
      %v2195 = vadd.f32 %v2193, %v2194
      %v2196 = vsel %vm902, %v2037, 0.0
      %v2197 = vadd.f32 %v2195, %v2196
      %v2198 = vsel %vm902, %v2038, 0.0
      %v2199 = vadd.f32 %v2197, %v2198
      %v2200 = vsel %vm902, %v2039, 0.0
      %v2201 = vadd.f32 %v2199, %v2200
      %v2202 = vsel %vm902, %v2040, 0.0
      %v2203 = vadd.f32 %v2201, %v2202
      %v2204 = vsel %vm902, %v2041, 0.0
      %v2205 = vadd.f32 %v2203, %v2204
      %v2206 = vsel %vm902, %v2042, 0.0
      %v2207 = vadd.f32 %v2205, %v2206
      %v2208 = vsel %vm902, %v2043, 0.0
      %v2209 = vadd.f32 %v2207, %v2208
      %v2210 = vsel %vm902, %v2044, 0.0
      %v2211 = vadd.f32 %v2209, %v2210
      %v2212 = vsel %vm902, %v2045, 0.0
      %v2213 = vadd.f32 %v2211, %v2212
      %v2214 = vsel %vm902, %v2046, 0.0
      %v2215 = vadd.f32 %v2213, %v2214
      %v2216 = vsel %vm902, %v2047, 0.0
      %v2217 = vadd.f32 %v2215, %v2216
      %v2218 = vsel %vm902, %v2048, 0.0
      %v2219 = vadd.f32 %v2217, %v2218
      %v2220 = vsel %vm902, %v2049, 0.0
      %v2221 = vadd.f32 %v2219, %v2220
      %v2222 = vsel %vm902, %v2050, 0.0
      %v2223 = vadd.f32 %v2221, %v2222
      %v2224 = vsel %vm902, %v2051, 0.0
      %v2225 = vadd.f32 %v2223, %v2224
      %v2226 = vsel %vm902, %v2052, 0.0
      %v2227 = vadd.f32 %v2225, %v2226
      %v2228 = vsel %vm902, %v2053, 0.0
      %v2229 = vadd.f32 %v2227, %v2228
      %v2230 = vsel %vm902, %v2054, 0.0
      %v2231 = vadd.f32 %v2229, %v2230
      %v2232 = vsel %vm902, %v2055, 0.0
      %v2233 = vadd.f32 %v2231, %v2232
      %v2234 = vsel %vm902, %v2056, 0.0
      %v2235 = vadd.f32 %v2233, %v2234
      %v2236 = vsel %vm902, %v2057, 0.0
      %v2237 = vadd.f32 %v2235, %v2236
      %v2238 = vsel %vm902, %v2058, 0.0
      %v2239 = vadd.f32 %v2237, %v2238
      %v2240 = vsel %vm902, %v2059, 0.0
      %v2241 = vadd.f32 %v2239, %v2240
      %v2242 = vsel %vm902, %v2060, 0.0
      %v2243 = vadd.f32 %v2241, %v2242
      %v2244 = vsel %vm902, %v2061, 0.0
      %v2245 = vadd.f32 %v2243, %v2244
      %v2246 = vsel %vm902, %v2062, 0.0
      %v2247 = vadd.f32 %v2245, %v2246
      %v2248 = vsel %vm902, %v2063, 0.0
      %v2249 = vadd.f32 %v2247, %v2248
      %v2250 = vsel %vm902, %v2064, 0.0
      %v2251 = vadd.f32 %v2249, %v2250
      %v2252 = vsel %vm902, %v2065, 0.0
      %v2253 = vadd.f32 %v2251, %v2252
      %v2254 = vsel %vm902, %v2066, 0.0
      %v2255 = vadd.f32 %v2253, %v2254
      %v2256 = vsel %vm902, %v2067, 0.0
      %v2257 = vadd.f32 %v2255, %v2256
      %v2258 = vsel %vm902, %v2068, 0.0
      %v2259 = vadd.f32 %v2257, %v2258
      %v2260 = vsel %vm902, %v2069, 0.0
      %v2261 = vadd.f32 %v2259, %v2260
      %v2262 = vsel %vm902, %v2070, 0.0
      %v2263 = vadd.f32 %v2261, %v2262
      %v2264 = vsel %vm902, %v2071, 0.0
      %v2265 = vadd.f32 %v2263, %v2264
      %v2266 = vsel %vm902, %v2072, 0.0
      %v2267 = vadd.f32 %v2265, %v2266
      %v2268 = vsel %vm902, %v2073, 0.0
      %v2269 = vadd.f32 %v2267, %v2268
      %v2270 = vsel %vm902, %v2074, 0.0
      %v2271 = vadd.f32 %v2269, %v2270
      %v2272 = vsel %vm902, %v2075, 0.0
      %v2273 = vadd.f32 %v2271, %v2272
      %v2274 = vsel %vm902, %v2076, 0.0
      %v2275 = vadd.f32 %v2273, %v2274
      %v2276 = vsel %vm902, %v2077, 0.0
      %v2277 = vadd.f32 %v2275, %v2276
      %v2278 = vsel %vm902, %v2078, 0.0
      %v2279 = vadd.f32 %v2277, %v2278
      %v2280 = vsel %vm902, %v2079, 0.0
      %v2281 = vadd.f32 %v2279, %v2280
      %v2282 = vsel %vm902, %v2080, 0.0
      %v2283 = vadd.f32 %v2281, %v2282
      %v2284 = vsel %vm902, %v2081, 0.0
      %v2285 = vadd.f32 %v2283, %v2284
      %v2286 = vsel %vm902, %v2082, 0.0
      %v2287 = vadd.f32 %v2285, %v2286
      %v2288 = vsel %vm902, %v2083, 0.0
      %v2289 = vadd.f32 %v2287, %v2288
      %v2290 = vsel %vm902, %v2084, 0.0
      %v2291 = vadd.f32 %v2289, %v2290
      %v2292 = vsel %vm902, %v2085, 0.0
      %v2293 = vadd.f32 %v2291, %v2292
      %v2294 = vsel %vm902, %v2086, 0.0
      %v2295 = vadd.f32 %v2293, %v2294
      %v2296 = vsel %vm902, %v2087, 0.0
      %v2297 = vadd.f32 %v2295, %v2296
      %v2298 = vsel %vm902, %v2088, 0.0
      %v2299 = vadd.f32 %v2297, %v2298
      %v2300 = vsel %vm902, %v2089, 0.0
      %v2301 = vadd.f32 %v2299, %v2300
      %v2302 = vsel %vm902, %v2090, 0.0
      %v2303 = vadd.f32 %v2301, %v2302
      %v2304 = vsel %vm902, %v2091, 0.0
      %v2305 = vadd.f32 %v2303, %v2304
      %v2306 = vsel %vm902, %v2092, 0.0
      %v2307 = vadd.f32 %v2305, %v2306
      %v2308 = vsel %vm902, %v2093, 0.0
      %v2309 = vadd.f32 %v2307, %v2308
      %v2310 = vsel %vm902, %v2094, 0.0
      %v2311 = vadd.f32 %v2309, %v2310
      %v2312 = vsel %vm902, %v2095, 0.0
      %v2313 = vadd.f32 %v2311, %v2312
      %v2314 = vsel %vm902, %v2096, 0.0
      %v2315 = vadd.f32 %v2313, %v2314
      %v2316 = vsel %vm902, %v2097, 0.0
      %v2317 = vadd.f32 %v2315, %v2316
      %v2318 = vsel %vm902, %v2098, 0.0
      %v2319 = vadd.f32 %v2317, %v2318
      %v2320 = vsel %vm902, %v2099, 0.0
      %v2321 = vadd.f32 %v2319, %v2320
      %v2322 = vsel %vm902, %v2100, 0.0
      %v2323 = vadd.f32 %v2321, %v2322
      %v2324 = vsel %vm902, %v2101, 0.0
      %v2325 = vadd.f32 %v2323, %v2324
      %v2326 = vsel %vm902, %v2102, 0.0
      %v2327 = vadd.f32 %v2325, %v2326
      %v2328 = vsel %vm902, %v2103, 0.0
      %v2329 = vadd.f32 %v2327, %v2328
      %v2330 = vsel %vm902, %v2104, 0.0
      %v2331 = vadd.f32 %v2329, %v2330
      %v2332 = vsel %vm902, %v2105, 0.0
      %v2333 = vadd.f32 %v2331, %v2332
      %v2334 = vsel %vm902, %v2106, 0.0
      %v2335 = vadd.f32 %v2333, %v2334
      %v2336 = vsel %vm902, %v2107, 0.0
      %v2337 = vadd.f32 %v2335, %v2336
      %v2338 = vsel %vm902, %v2108, 0.0
      %v2339 = vadd.f32 %v2337, %v2338
      %v2340 = vsel %vm902, %v2109, 0.0
      %v2341 = vadd.f32 %v2339, %v2340
      %v2342 = vsel %vm902, %v2110, 0.0
      %v2343 = vadd.f32 %v2341, %v2342
      %v2344 = vsel %vm902, %v2111, 0.0
      %v2345 = vadd.f32 %v2343, %v2344
      %v2346 = vsel %vm902, %v2112, 0.0
      %v2347 = vadd.f32 %v2345, %v2346
      %v2348 = vsel %vm902, %v2113, 0.0
      %v2349 = vadd.f32 %v2347, %v2348
      %v2350 = vsel %vm902, %v2114, 0.0
      %v2351 = vadd.f32 %v2349, %v2350
      %v2352 = vsel %vm902, %v2115, 0.0
      %v2353 = vadd.f32 %v2351, %v2352
      %v2354 = vsel %vm902, %v2116, 0.0
      %v2355 = vadd.f32 %v2353, %v2354
      %v2356 = vsel %vm902, %v2117, 0.0
      %v2357 = vadd.f32 %v2355, %v2356
      %v2358 = vsel %vm902, %v2118, 0.0
      %v2359 = vadd.f32 %v2357, %v2358
      %v2360 = vsel %vm902, %v2119, 0.0
      %v2361 = vadd.f32 %v2359, %v2360
      %v2362 = vsel %vm902, %v2120, 0.0
      %v2363 = vadd.f32 %v2361, %v2362
      %v2364 = vsel %vm902, %v2121, 0.0
      %v2365 = vadd.f32 %v2363, %v2364
      %v2366 = vsel %vm902, %v2122, 0.0
      %v2367 = vadd.f32 %v2365, %v2366
      %v2368 = vsel %vm902, %v2123, 0.0
      %v2369 = vadd.f32 %v2367, %v2368
      %v2370 = vsel %vm902, %v2124, 0.0
      %v2371 = vadd.f32 %v2369, %v2370
      %v2372 = vsel %vm902, %v2125, 0.0
      %v2373 = vadd.f32 %v2371, %v2372
      %v2374 = vsel %vm902, %v2126, 0.0
      %v2375 = vadd.f32 %v2373, %v2374
      %v2376 = vsel %vm902, %v2127, 0.0
      %v2377 = vadd.f32 %v2375, %v2376
      %v2378 = vsel %vm902, %v2128, 0.0
      %v2379 = vadd.f32 %v2377, %v2378
      %v2380 = vsel %vm902, %v2129, 0.0
      %v2381 = vadd.f32 %v2379, %v2380
      %v2382 = vsel %vm902, %v2130, 0.0
      %v2383 = vadd.f32 %v2381, %v2382
      %v2384 = vsel %vm902, %v2131, 0.0
      %v2385 = vadd.f32 %v2383, %v2384
      %v2386 = vsel %vm902, %v2132, 0.0
      %v2387 = vadd.f32 %v2385, %v2386
      %v2388 = vsel %vm902, %v2133, 0.0
      %v2389 = vadd.f32 %v2387, %v2388
      %v2390 = vsel %vm902, %v2134, 0.0
      %v2391 = vadd.f32 %v2389, %v2390
      %v2392 = vsel %vm902, %v2135, 0.0
      %v2393 = vadd.f32 %v2391, %v2392
      %v2394 = vsel %vm902, %v2136, 0.0
      %v2395 = vadd.f32 %v2393, %v2394
      %v2396 = vsel %vm902, %v2137, 0.0
      %v2397 = vadd.f32 %v2395, %v2396
      %v2398 = vsel %vm902, %v2138, 0.0
      %v2399 = vadd.f32 %v2397, %v2398
      %v2400 = vsel %vm902, %v2139, 0.0
      %v2401 = vadd.f32 %v2399, %v2400
      %v2402 = vsel %vm902, %v2140, 0.0
      %v2403 = vadd.f32 %v2401, %v2402
      %v2404 = vsel %vm902, %v2141, 0.0
      %v2405 = vadd.f32 %v2403, %v2404
      %v2406 = vsel %vm902, %v2142, 0.0
      %v2407 = vadd.f32 %v2405, %v2406
      %v2408 = vsel %vm902, %v2143, 0.0
      %v2409 = vadd.f32 %v2407, %v2408
      %v2410 = vsel %vm902, %v2144, 0.0
      %v2411 = vadd.f32 %v2409, %v2410
      %v2412 = vsel %vm902, %v2145, 0.0
      %v2413 = vadd.f32 %v2411, %v2412
      %v2414 = vsel %vm902, %v2146, 0.0
      %v2415 = vadd.f32 %v2413, %v2414
      %v2416 = vsel %vm902, %v2147, 0.0
      %v2417 = vadd.f32 %v2415, %v2416
      %v2418 = vsel %vm902, %v2148, 0.0
      %v2419 = vadd.f32 %v2417, %v2418
      %v2420 = vsel %vm902, %v2149, 0.0
      %v2421 = vadd.f32 %v2419, %v2420
      %v2422 = vsel %vm902, %v2150, 0.0
      %v2423 = vadd.f32 %v2421, %v2422
      %v2424 = vsel %vm902, %v2151, 0.0
      %v2425 = vadd.f32 %v2423, %v2424
      %v2426 = vsel %vm902, %v2152, 0.0
      %v2427 = vadd.f32 %v2425, %v2426
      %v2428 = vsel %vm902, %v2153, 0.0
      %v2429 = vadd.f32 %v2427, %v2428
      %v2430 = vsel %vm902, %v2154, 0.0
      %v2431 = vadd.f32 %v2429, %v2430
      %v2432 = vsel %vm902, %v2155, 0.0
      %v2433 = vadd.f32 %v2431, %v2432
      %v2434 = vsel %vm902, %v2156, 0.0
      %v2435 = vadd.f32 %v2433, %v2434
      %v2436 = vsel %vm902, %v2157, 0.0
      %v2437 = vadd.f32 %v2435, %v2436
      %v2438 = vsel %vm902, %v2158, 0.0
      %v2439 = vadd.f32 %v2437, %v2438
      %v2440 = vsel %vm902, %v2159, 0.0
      %v2441 = vadd.f32 %v2439, %v2440
      %v2442 = vsel %vm902, %v2160, 0.0
      %v2443 = vadd.f32 %v2441, %v2442
      %v2444 = vsel %vm902, %v2161, 0.0
      %v2445 = vadd.f32 %v2443, %v2444
      %v2446 = vsel %vm902, %v2162, 0.0
      %v2447 = vadd.f32 %v2445, %v2446
      %v2448 = vsel %vm902, %v2163, 0.0
      %v2449 = vadd.f32 %v2447, %v2448
      %v2450 = vsel %vm902, %v2164, 0.0
      %v2451 = vadd.f32 %v2449, %v2450
      %v2452 = vrot.slane %v2451, 4
      %v2453 = vadd.f32 %v2451, %v2452
      %v2454 = vrot.slane %v2453, 2
      %v2455 = vadd.f32 %v2453, %v2454
      %v2456 = vrot.slane %v2455, 1
      %v2457 = vadd.f32 %v2455, %v2456
      %v2458 = vmul.f32 %v2020, 0.00086805556
      %v2459 = vmul.f32 %v2457, 0.00086805556
      %v2460 = vmul.f32 %v2458, %v2458
      %v2461 = vsub.f32 %v2459, %v2460
      %v2462 = vsub.f32 %v1154, %v2458
      %v2463 = vsub.f32 %v1157, %v2458
      %v2464 = vsub.f32 %v1162, %v2458
      %v2465 = vsub.f32 %v1165, %v2458
      %v2466 = vsub.f32 %v1170, %v2458
      %v2467 = vsub.f32 %v1173, %v2458
      %v2468 = vsub.f32 %v1178, %v2458
      %v2469 = vsub.f32 %v1181, %v2458
      %v2470 = vsub.f32 %v1186, %v2458
      %v2471 = vsub.f32 %v1189, %v2458
      %v2472 = vsub.f32 %v1194, %v2458
      %v2473 = vsub.f32 %v1197, %v2458
      %v2474 = vsub.f32 %v1202, %v2458
      %v2475 = vsub.f32 %v1205, %v2458
      %v2476 = vsub.f32 %v1210, %v2458
      %v2477 = vsub.f32 %v1213, %v2458
      %v2478 = vsub.f32 %v1218, %v2458
      %v2479 = vsub.f32 %v1221, %v2458
      %v2480 = vsub.f32 %v1226, %v2458
      %v2481 = vsub.f32 %v1229, %v2458
      %v2482 = vsub.f32 %v1234, %v2458
      %v2483 = vsub.f32 %v1237, %v2458
      %v2484 = vsub.f32 %v1242, %v2458
      %v2485 = vsub.f32 %v1245, %v2458
      %v2486 = vsub.f32 %v1250, %v2458
      %v2487 = vsub.f32 %v1253, %v2458
      %v2488 = vsub.f32 %v1258, %v2458
      %v2489 = vsub.f32 %v1261, %v2458
      %v2490 = vsub.f32 %v1266, %v2458
      %v2491 = vsub.f32 %v1269, %v2458
      %v2492 = vsub.f32 %v1274, %v2458
      %v2493 = vsub.f32 %v1277, %v2458
      %v2494 = vsub.f32 %v1282, %v2458
      %v2495 = vsub.f32 %v1285, %v2458
      %v2496 = vsub.f32 %v1290, %v2458
      %v2497 = vsub.f32 %v1293, %v2458
      %v2498 = vsub.f32 %v1298, %v2458
      %v2499 = vsub.f32 %v1301, %v2458
      %v2500 = vsub.f32 %v1306, %v2458
      %v2501 = vsub.f32 %v1309, %v2458
      %v2502 = vsub.f32 %v1314, %v2458
      %v2503 = vsub.f32 %v1317, %v2458
      %v2504 = vsub.f32 %v1322, %v2458
      %v2505 = vsub.f32 %v1325, %v2458
      %v2506 = vsub.f32 %v1330, %v2458
      %v2507 = vsub.f32 %v1333, %v2458
      %v2508 = vsub.f32 %v1338, %v2458
      %v2509 = vsub.f32 %v1341, %v2458
      %v2510 = vsub.f32 %v1346, %v2458
      %v2511 = vsub.f32 %v1349, %v2458
      %v2512 = vsub.f32 %v1354, %v2458
      %v2513 = vsub.f32 %v1357, %v2458
      %v2514 = vsub.f32 %v1362, %v2458
      %v2515 = vsub.f32 %v1365, %v2458
      %v2516 = vsub.f32 %v1370, %v2458
      %v2517 = vsub.f32 %v1373, %v2458
      %v2518 = vsub.f32 %v1378, %v2458
      %v2519 = vsub.f32 %v1381, %v2458
      %v2520 = vsub.f32 %v1386, %v2458
      %v2521 = vsub.f32 %v1389, %v2458
      %v2522 = vsub.f32 %v1394, %v2458
      %v2523 = vsub.f32 %v1397, %v2458
      %v2524 = vsub.f32 %v1402, %v2458
      %v2525 = vsub.f32 %v1405, %v2458
      %v2526 = vsub.f32 %v1410, %v2458
      %v2527 = vsub.f32 %v1413, %v2458
      %v2528 = vsub.f32 %v1418, %v2458
      %v2529 = vsub.f32 %v1421, %v2458
      %v2530 = vsub.f32 %v1426, %v2458
      %v2531 = vsub.f32 %v1429, %v2458
      %v2532 = vsub.f32 %v1434, %v2458
      %v2533 = vsub.f32 %v1437, %v2458
      %v2534 = vsub.f32 %v1442, %v2458
      %v2535 = vsub.f32 %v1445, %v2458
      %v2536 = vsub.f32 %v1450, %v2458
      %v2537 = vsub.f32 %v1453, %v2458
      %v2538 = vsub.f32 %v1458, %v2458
      %v2539 = vsub.f32 %v1461, %v2458
      %v2540 = vsub.f32 %v1466, %v2458
      %v2541 = vsub.f32 %v1469, %v2458
      %v2542 = vsub.f32 %v1474, %v2458
      %v2543 = vsub.f32 %v1477, %v2458
      %v2544 = vsub.f32 %v1482, %v2458
      %v2545 = vsub.f32 %v1485, %v2458
      %v2546 = vsub.f32 %v1490, %v2458
      %v2547 = vsub.f32 %v1493, %v2458
      %v2548 = vsub.f32 %v1498, %v2458
      %v2549 = vsub.f32 %v1501, %v2458
      %v2550 = vsub.f32 %v1506, %v2458
      %v2551 = vsub.f32 %v1509, %v2458
      %v2552 = vsub.f32 %v1514, %v2458
      %v2553 = vsub.f32 %v1517, %v2458
      %v2554 = vsub.f32 %v1522, %v2458
      %v2555 = vsub.f32 %v1525, %v2458
      %v2556 = vsub.f32 %v1530, %v2458
      %v2557 = vsub.f32 %v1533, %v2458
      %v2558 = vsub.f32 %v1538, %v2458
      %v2559 = vsub.f32 %v1541, %v2458
      %v2560 = vsub.f32 %v1546, %v2458
      %v2561 = vsub.f32 %v1549, %v2458
      %v2562 = vsub.f32 %v1554, %v2458
      %v2563 = vsub.f32 %v1557, %v2458
      %v2564 = vsub.f32 %v1562, %v2458
      %v2565 = vsub.f32 %v1565, %v2458
      %v2566 = vsub.f32 %v1570, %v2458
      %v2567 = vsub.f32 %v1573, %v2458
      %v2568 = vsub.f32 %v1578, %v2458
      %v2569 = vsub.f32 %v1581, %v2458
      %v2570 = vsub.f32 %v1586, %v2458
      %v2571 = vsub.f32 %v1589, %v2458
      %v2572 = vsub.f32 %v1594, %v2458
      %v2573 = vsub.f32 %v1597, %v2458
      %v2574 = vsub.f32 %v1602, %v2458
      %v2575 = vsub.f32 %v1605, %v2458
      %v2576 = vsub.f32 %v1610, %v2458
      %v2577 = vsub.f32 %v1613, %v2458
      %v2578 = vsub.f32 %v1618, %v2458
      %v2579 = vsub.f32 %v1621, %v2458
      %v2580 = vsub.f32 %v1626, %v2458
      %v2581 = vsub.f32 %v1629, %v2458
      %v2582 = vsub.f32 %v1634, %v2458
      %v2583 = vsub.f32 %v1637, %v2458
      %v2584 = vsub.f32 %v1642, %v2458
      %v2585 = vsub.f32 %v1645, %v2458
      %v2586 = vsub.f32 %v1650, %v2458
      %v2587 = vsub.f32 %v1653, %v2458
      %v2588 = vsub.f32 %v1658, %v2458
      %v2589 = vsub.f32 %v1661, %v2458
      %v2590 = vsub.f32 %v1666, %v2458
      %v2591 = vsub.f32 %v1669, %v2458
      %v2592 = vsub.f32 %v1674, %v2458
      %v2593 = vsub.f32 %v1677, %v2458
      %v2594 = vsub.f32 %v1682, %v2458
      %v2595 = vsub.f32 %v1685, %v2458
      %v2596 = vsub.f32 %v1690, %v2458
      %v2597 = vsub.f32 %v1693, %v2458
      %v2598 = vsub.f32 %v1698, %v2458
      %v2599 = vsub.f32 %v1701, %v2458
      %v2600 = vsub.f32 %v1706, %v2458
      %v2601 = vsub.f32 %v1709, %v2458
      %v2602 = vsub.f32 %v1714, %v2458
      %v2603 = vsub.f32 %v1717, %v2458
      %v2604 = vsub.f32 %v1722, %v2458
      %v2605 = vsub.f32 %v1725, %v2458
      %v2606 = vadd.f32 %v2461, 1e-05
      %v2607 = vrsqrt.pop %v2606
      %v2608 = vmul.f32 %v2462, %v2607
      %v2609 = vmul.f32 %v2463, %v2607
      %v2610 = vmul.f32 %v2464, %v2607
      %v2611 = vmul.f32 %v2465, %v2607
      %v2612 = vmul.f32 %v2466, %v2607
      %v2613 = vmul.f32 %v2467, %v2607
      %v2614 = vmul.f32 %v2468, %v2607
      %v2615 = vmul.f32 %v2469, %v2607
      %v2616 = vmul.f32 %v2470, %v2607
      %v2617 = vmul.f32 %v2471, %v2607
      %v2618 = vmul.f32 %v2472, %v2607
      %v2619 = vmul.f32 %v2473, %v2607
      %v2620 = vmul.f32 %v2474, %v2607
      %v2621 = vmul.f32 %v2475, %v2607
      %v2622 = vmul.f32 %v2476, %v2607
      %v2623 = vmul.f32 %v2477, %v2607
      %v2624 = vmul.f32 %v2478, %v2607
      %v2625 = vmul.f32 %v2479, %v2607
      %v2626 = vmul.f32 %v2480, %v2607
      %v2627 = vmul.f32 %v2481, %v2607
      %v2628 = vmul.f32 %v2482, %v2607
      %v2629 = vmul.f32 %v2483, %v2607
      %v2630 = vmul.f32 %v2484, %v2607
      %v2631 = vmul.f32 %v2485, %v2607
      %v2632 = vmul.f32 %v2486, %v2607
      %v2633 = vmul.f32 %v2487, %v2607
      %v2634 = vmul.f32 %v2488, %v2607
      %v2635 = vmul.f32 %v2489, %v2607
      %v2636 = vmul.f32 %v2490, %v2607
      %v2637 = vmul.f32 %v2491, %v2607
      %v2638 = vmul.f32 %v2492, %v2607
      %v2639 = vmul.f32 %v2493, %v2607
      %v2640 = vmul.f32 %v2494, %v2607
      %v2641 = vmul.f32 %v2495, %v2607
      %v2642 = vmul.f32 %v2496, %v2607
      %v2643 = vmul.f32 %v2497, %v2607
      %v2644 = vmul.f32 %v2498, %v2607
      %v2645 = vmul.f32 %v2499, %v2607
      %v2646 = vmul.f32 %v2500, %v2607
      %v2647 = vmul.f32 %v2501, %v2607
      %v2648 = vmul.f32 %v2502, %v2607
      %v2649 = vmul.f32 %v2503, %v2607
      %v2650 = vmul.f32 %v2504, %v2607
      %v2651 = vmul.f32 %v2505, %v2607
      %v2652 = vmul.f32 %v2506, %v2607
      %v2653 = vmul.f32 %v2507, %v2607
      %v2654 = vmul.f32 %v2508, %v2607
      %v2655 = vmul.f32 %v2509, %v2607
      %v2656 = vmul.f32 %v2510, %v2607
      %v2657 = vmul.f32 %v2511, %v2607
      %v2658 = vmul.f32 %v2512, %v2607
      %v2659 = vmul.f32 %v2513, %v2607
      %v2660 = vmul.f32 %v2514, %v2607
      %v2661 = vmul.f32 %v2515, %v2607
      %v2662 = vmul.f32 %v2516, %v2607
      %v2663 = vmul.f32 %v2517, %v2607
      %v2664 = vmul.f32 %v2518, %v2607
      %v2665 = vmul.f32 %v2519, %v2607
      %v2666 = vmul.f32 %v2520, %v2607
      %v2667 = vmul.f32 %v2521, %v2607
      %v2668 = vmul.f32 %v2522, %v2607
      %v2669 = vmul.f32 %v2523, %v2607
      %v2670 = vmul.f32 %v2524, %v2607
      %v2671 = vmul.f32 %v2525, %v2607
      %v2672 = vmul.f32 %v2526, %v2607
      %v2673 = vmul.f32 %v2527, %v2607
      %v2674 = vmul.f32 %v2528, %v2607
      %v2675 = vmul.f32 %v2529, %v2607
      %v2676 = vmul.f32 %v2530, %v2607
      %v2677 = vmul.f32 %v2531, %v2607
      %v2678 = vmul.f32 %v2532, %v2607
      %v2679 = vmul.f32 %v2533, %v2607
      %v2680 = vmul.f32 %v2534, %v2607
      %v2681 = vmul.f32 %v2535, %v2607
      %v2682 = vmul.f32 %v2536, %v2607
      %v2683 = vmul.f32 %v2537, %v2607
      %v2684 = vmul.f32 %v2538, %v2607
      %v2685 = vmul.f32 %v2539, %v2607
      %v2686 = vmul.f32 %v2540, %v2607
      %v2687 = vmul.f32 %v2541, %v2607
      %v2688 = vmul.f32 %v2542, %v2607
      %v2689 = vmul.f32 %v2543, %v2607
      %v2690 = vmul.f32 %v2544, %v2607
      %v2691 = vmul.f32 %v2545, %v2607
      %v2692 = vmul.f32 %v2546, %v2607
      %v2693 = vmul.f32 %v2547, %v2607
      %v2694 = vmul.f32 %v2548, %v2607
      %v2695 = vmul.f32 %v2549, %v2607
      %v2696 = vmul.f32 %v2550, %v2607
      %v2697 = vmul.f32 %v2551, %v2607
      %v2698 = vmul.f32 %v2552, %v2607
      %v2699 = vmul.f32 %v2553, %v2607
      %v2700 = vmul.f32 %v2554, %v2607
      %v2701 = vmul.f32 %v2555, %v2607
      %v2702 = vmul.f32 %v2556, %v2607
      %v2703 = vmul.f32 %v2557, %v2607
      %v2704 = vmul.f32 %v2558, %v2607
      %v2705 = vmul.f32 %v2559, %v2607
      %v2706 = vmul.f32 %v2560, %v2607
      %v2707 = vmul.f32 %v2561, %v2607
      %v2708 = vmul.f32 %v2562, %v2607
      %v2709 = vmul.f32 %v2563, %v2607
      %v2710 = vmul.f32 %v2564, %v2607
      %v2711 = vmul.f32 %v2565, %v2607
      %v2712 = vmul.f32 %v2566, %v2607
      %v2713 = vmul.f32 %v2567, %v2607
      %v2714 = vmul.f32 %v2568, %v2607
      %v2715 = vmul.f32 %v2569, %v2607
      %v2716 = vmul.f32 %v2570, %v2607
      %v2717 = vmul.f32 %v2571, %v2607
      %v2718 = vmul.f32 %v2572, %v2607
      %v2719 = vmul.f32 %v2573, %v2607
      %v2720 = vmul.f32 %v2574, %v2607
      %v2721 = vmul.f32 %v2575, %v2607
      %v2722 = vmul.f32 %v2576, %v2607
      %v2723 = vmul.f32 %v2577, %v2607
      %v2724 = vmul.f32 %v2578, %v2607
      %v2725 = vmul.f32 %v2579, %v2607
      %v2726 = vmul.f32 %v2580, %v2607
      %v2727 = vmul.f32 %v2581, %v2607
      %v2728 = vmul.f32 %v2582, %v2607
      %v2729 = vmul.f32 %v2583, %v2607
      %v2730 = vmul.f32 %v2584, %v2607
      %v2731 = vmul.f32 %v2585, %v2607
      %v2732 = vmul.f32 %v2586, %v2607
      %v2733 = vmul.f32 %v2587, %v2607
      %v2734 = vmul.f32 %v2588, %v2607
      %v2735 = vmul.f32 %v2589, %v2607
      %v2736 = vmul.f32 %v2590, %v2607
      %v2737 = vmul.f32 %v2591, %v2607
      %v2738 = vmul.f32 %v2592, %v2607
      %v2739 = vmul.f32 %v2593, %v2607
      %v2740 = vmul.f32 %v2594, %v2607
      %v2741 = vmul.f32 %v2595, %v2607
      %v2742 = vmul.f32 %v2596, %v2607
      %v2743 = vmul.f32 %v2597, %v2607
      %v2744 = vmul.f32 %v2598, %v2607
      %v2745 = vmul.f32 %v2599, %v2607
      %v2746 = vmul.f32 %v2600, %v2607
      %v2747 = vmul.f32 %v2601, %v2607
      %v2748 = vmul.f32 %v2602, %v2607
      %v2749 = vmul.f32 %v2603, %v2607
      %v2750 = vmul.f32 %v2604, %v2607
      %v2751 = vmul.f32 %v2605, %v2607
      %v2752 = vld [vmem:[%s3] sm:$0x1]
      %v2754 = vlaneseq
      %v2755 = vshrl.u32 %v2754, 7
      %v2756 = vsub.s32 0, %v2755
      %v2757 = vrot.slane %v2752, %v2756
      %v2759 = vmul.f32 %v2608, %v2757
      %v2760 = vmul.f32 %v2609, %v2757
      %v2761 = vmul.f32 %v2610, %v2757
      %v2762 = vmul.f32 %v2611, %v2757
      %v2763 = vmul.f32 %v2612, %v2757
      %v2764 = vmul.f32 %v2613, %v2757
      %v2765 = vmul.f32 %v2614, %v2757
      %v2766 = vmul.f32 %v2615, %v2757
      %v2767 = vmul.f32 %v2616, %v2757
      %v2768 = vmul.f32 %v2617, %v2757
      %v2769 = vmul.f32 %v2618, %v2757
      %v2770 = vmul.f32 %v2619, %v2757
      %v2771 = vmul.f32 %v2620, %v2757
      %v2772 = vmul.f32 %v2621, %v2757
      %v2773 = vmul.f32 %v2622, %v2757
      %v2774 = vmul.f32 %v2623, %v2757
      %v2775 = vmul.f32 %v2624, %v2757
      %v2776 = vmul.f32 %v2625, %v2757
      %v2777 = vmul.f32 %v2626, %v2757
      %v2778 = vmul.f32 %v2627, %v2757
      %v2779 = vmul.f32 %v2628, %v2757
      %v2780 = vmul.f32 %v2629, %v2757
      %v2781 = vmul.f32 %v2630, %v2757
      %v2782 = vmul.f32 %v2631, %v2757
      %v2783 = vmul.f32 %v2632, %v2757
      %v2784 = vmul.f32 %v2633, %v2757
      %v2785 = vmul.f32 %v2634, %v2757
      %v2786 = vmul.f32 %v2635, %v2757
      %v2787 = vmul.f32 %v2636, %v2757
      %v2788 = vmul.f32 %v2637, %v2757
      %v2789 = vmul.f32 %v2638, %v2757
      %v2790 = vmul.f32 %v2639, %v2757
      %v2791 = vmul.f32 %v2640, %v2757
      %v2792 = vmul.f32 %v2641, %v2757
      %v2793 = vmul.f32 %v2642, %v2757
      %v2794 = vmul.f32 %v2643, %v2757
      %v2795 = vmul.f32 %v2644, %v2757
      %v2796 = vmul.f32 %v2645, %v2757
      %v2797 = vmul.f32 %v2646, %v2757
      %v2798 = vmul.f32 %v2647, %v2757
      %v2799 = vmul.f32 %v2648, %v2757
      %v2800 = vmul.f32 %v2649, %v2757
      %v2801 = vmul.f32 %v2650, %v2757
      %v2802 = vmul.f32 %v2651, %v2757
      %v2803 = vmul.f32 %v2652, %v2757
      %v2804 = vmul.f32 %v2653, %v2757
      %v2805 = vmul.f32 %v2654, %v2757
      %v2806 = vmul.f32 %v2655, %v2757
      %v2807 = vmul.f32 %v2656, %v2757
      %v2808 = vmul.f32 %v2657, %v2757
      %v2809 = vmul.f32 %v2658, %v2757
      %v2810 = vmul.f32 %v2659, %v2757
      %v2811 = vmul.f32 %v2660, %v2757
      %v2812 = vmul.f32 %v2661, %v2757
      %v2813 = vmul.f32 %v2662, %v2757
      %v2814 = vmul.f32 %v2663, %v2757
      %v2815 = vmul.f32 %v2664, %v2757
      %v2816 = vmul.f32 %v2665, %v2757
      %v2817 = vmul.f32 %v2666, %v2757
      %v2818 = vmul.f32 %v2667, %v2757
      %v2819 = vmul.f32 %v2668, %v2757
      %v2820 = vmul.f32 %v2669, %v2757
      %v2821 = vmul.f32 %v2670, %v2757
      %v2822 = vmul.f32 %v2671, %v2757
      %v2823 = vmul.f32 %v2672, %v2757
      %v2824 = vmul.f32 %v2673, %v2757
      %v2825 = vmul.f32 %v2674, %v2757
      %v2826 = vmul.f32 %v2675, %v2757
      %v2827 = vmul.f32 %v2676, %v2757
      %v2828 = vmul.f32 %v2677, %v2757
      %v2829 = vmul.f32 %v2678, %v2757
      %v2830 = vmul.f32 %v2679, %v2757
      %v2831 = vmul.f32 %v2680, %v2757
      %v2832 = vmul.f32 %v2681, %v2757
      %v2833 = vmul.f32 %v2682, %v2757
      %v2834 = vmul.f32 %v2683, %v2757
      %v2835 = vmul.f32 %v2684, %v2757
      %v2836 = vmul.f32 %v2685, %v2757
      %v2837 = vmul.f32 %v2686, %v2757
      %v2838 = vmul.f32 %v2687, %v2757
      %v2839 = vmul.f32 %v2688, %v2757
      %v2840 = vmul.f32 %v2689, %v2757
      %v2841 = vmul.f32 %v2690, %v2757
      %v2842 = vmul.f32 %v2691, %v2757
      %v2843 = vmul.f32 %v2692, %v2757
      %v2844 = vmul.f32 %v2693, %v2757
      %v2845 = vmul.f32 %v2694, %v2757
      %v2846 = vmul.f32 %v2695, %v2757
      %v2847 = vmul.f32 %v2696, %v2757
      %v2848 = vmul.f32 %v2697, %v2757
      %v2849 = vmul.f32 %v2698, %v2757
      %v2850 = vmul.f32 %v2699, %v2757
      %v2851 = vmul.f32 %v2700, %v2757
      %v2852 = vmul.f32 %v2701, %v2757
      %v2853 = vmul.f32 %v2702, %v2757
      %v2854 = vmul.f32 %v2703, %v2757
      %v2855 = vmul.f32 %v2704, %v2757
      %v2856 = vmul.f32 %v2705, %v2757
      %v2857 = vmul.f32 %v2706, %v2757
      %v2858 = vmul.f32 %v2707, %v2757
      %v2859 = vmul.f32 %v2708, %v2757
      %v2860 = vmul.f32 %v2709, %v2757
      %v2861 = vmul.f32 %v2710, %v2757
      %v2862 = vmul.f32 %v2711, %v2757
      %v2863 = vmul.f32 %v2712, %v2757
      %v2864 = vmul.f32 %v2713, %v2757
      %v2865 = vmul.f32 %v2714, %v2757
      %v2866 = vmul.f32 %v2715, %v2757
      %v2867 = vmul.f32 %v2716, %v2757
      %v2868 = vmul.f32 %v2717, %v2757
      %v2869 = vmul.f32 %v2718, %v2757
      %v2870 = vmul.f32 %v2719, %v2757
      %v2871 = vmul.f32 %v2720, %v2757
      %v2872 = vmul.f32 %v2721, %v2757
      %v2873 = vmul.f32 %v2722, %v2757
      %v2874 = vmul.f32 %v2723, %v2757
      %v2875 = vmul.f32 %v2724, %v2757
      %v2876 = vmul.f32 %v2725, %v2757
      %v2877 = vmul.f32 %v2726, %v2757
      %v2878 = vmul.f32 %v2727, %v2757
      %v2879 = vmul.f32 %v2728, %v2757
      %v2880 = vmul.f32 %v2729, %v2757
      %v2881 = vmul.f32 %v2730, %v2757
      %v2882 = vmul.f32 %v2731, %v2757
      %v2883 = vmul.f32 %v2732, %v2757
      %v2884 = vmul.f32 %v2733, %v2757
      %v2885 = vmul.f32 %v2734, %v2757
      %v2886 = vmul.f32 %v2735, %v2757
      %v2887 = vmul.f32 %v2736, %v2757
      %v2888 = vmul.f32 %v2737, %v2757
      %v2889 = vmul.f32 %v2738, %v2757
      %v2890 = vmul.f32 %v2739, %v2757
      %v2891 = vmul.f32 %v2740, %v2757
      %v2892 = vmul.f32 %v2741, %v2757
      %v2893 = vmul.f32 %v2742, %v2757
      %v2894 = vmul.f32 %v2743, %v2757
      %v2895 = vmul.f32 %v2744, %v2757
      %v2896 = vmul.f32 %v2745, %v2757
      %v2897 = vmul.f32 %v2746, %v2757
      %v2898 = vmul.f32 %v2747, %v2757
      %v2899 = vmul.f32 %v2748, %v2757
      %v2900 = vmul.f32 %v2749, %v2757
      %v2901 = vmul.f32 %v2750, %v2757
      %v2902 = vmul.f32 %v2751, %v2757
      %v2903 = vld [vmem:[%s4] sm:$0x1]
      %v2905 = vlaneseq
      %v2906 = vshrl.u32 %v2905, 7
      %v2907 = vsub.s32 0, %v2906
      %v2908 = vrot.slane %v2903, %v2907
      %v2910 = vadd.f32 %v2759, %v2908
      %v2911 = vadd.f32 %v2760, %v2908
      %v2912 = vadd.f32 %v2761, %v2908
      %v2913 = vadd.f32 %v2762, %v2908
      %v2914 = vadd.f32 %v2763, %v2908
      %v2915 = vadd.f32 %v2764, %v2908
      %v2916 = vadd.f32 %v2765, %v2908
      %v2917 = vadd.f32 %v2766, %v2908
      %v2918 = vadd.f32 %v2767, %v2908
      %v2919 = vadd.f32 %v2768, %v2908
      %v2920 = vadd.f32 %v2769, %v2908
      %v2921 = vadd.f32 %v2770, %v2908
      %v2922 = vadd.f32 %v2771, %v2908
      %v2923 = vadd.f32 %v2772, %v2908
      %v2924 = vadd.f32 %v2773, %v2908
      %v2925 = vadd.f32 %v2774, %v2908
      %v2926 = vadd.f32 %v2775, %v2908
      %v2927 = vadd.f32 %v2776, %v2908
      %v2928 = vadd.f32 %v2777, %v2908
      %v2929 = vadd.f32 %v2778, %v2908
      %v2930 = vadd.f32 %v2779, %v2908
      %v2931 = vadd.f32 %v2780, %v2908
      %v2932 = vadd.f32 %v2781, %v2908
      %v2933 = vadd.f32 %v2782, %v2908
      %v2934 = vadd.f32 %v2783, %v2908
      %v2935 = vadd.f32 %v2784, %v2908
      %v2936 = vadd.f32 %v2785, %v2908
      %v2937 = vadd.f32 %v2786, %v2908
      %v2938 = vadd.f32 %v2787, %v2908
      %v2939 = vadd.f32 %v2788, %v2908
      %v2940 = vadd.f32 %v2789, %v2908
      %v2941 = vadd.f32 %v2790, %v2908
      %v2942 = vadd.f32 %v2791, %v2908
      %v2943 = vadd.f32 %v2792, %v2908
      %v2944 = vadd.f32 %v2793, %v2908
      %v2945 = vadd.f32 %v2794, %v2908
      %v2946 = vadd.f32 %v2795, %v2908
      %v2947 = vadd.f32 %v2796, %v2908
      %v2948 = vadd.f32 %v2797, %v2908
      %v2949 = vadd.f32 %v2798, %v2908
      %v2950 = vadd.f32 %v2799, %v2908
      %v2951 = vadd.f32 %v2800, %v2908
      %v2952 = vadd.f32 %v2801, %v2908
      %v2953 = vadd.f32 %v2802, %v2908
      %v2954 = vadd.f32 %v2803, %v2908
      %v2955 = vadd.f32 %v2804, %v2908
      %v2956 = vadd.f32 %v2805, %v2908
      %v2957 = vadd.f32 %v2806, %v2908
      %v2958 = vadd.f32 %v2807, %v2908
      %v2959 = vadd.f32 %v2808, %v2908
      %v2960 = vadd.f32 %v2809, %v2908
      %v2961 = vadd.f32 %v2810, %v2908
      %v2962 = vadd.f32 %v2811, %v2908
      %v2963 = vadd.f32 %v2812, %v2908
      %v2964 = vadd.f32 %v2813, %v2908
      %v2965 = vadd.f32 %v2814, %v2908
      %v2966 = vadd.f32 %v2815, %v2908
      %v2967 = vadd.f32 %v2816, %v2908
      %v2968 = vadd.f32 %v2817, %v2908
      %v2969 = vadd.f32 %v2818, %v2908
      %v2970 = vadd.f32 %v2819, %v2908
      %v2971 = vadd.f32 %v2820, %v2908
      %v2972 = vadd.f32 %v2821, %v2908
      %v2973 = vadd.f32 %v2822, %v2908
      %v2974 = vadd.f32 %v2823, %v2908
      %v2975 = vadd.f32 %v2824, %v2908
      %v2976 = vadd.f32 %v2825, %v2908
      %v2977 = vadd.f32 %v2826, %v2908
      %v2978 = vadd.f32 %v2827, %v2908
      %v2979 = vadd.f32 %v2828, %v2908
      %v2980 = vadd.f32 %v2829, %v2908
      %v2981 = vadd.f32 %v2830, %v2908
      %v2982 = vadd.f32 %v2831, %v2908
      %v2983 = vadd.f32 %v2832, %v2908
      %v2984 = vadd.f32 %v2833, %v2908
      %v2985 = vadd.f32 %v2834, %v2908
      %v2986 = vadd.f32 %v2835, %v2908
      %v2987 = vadd.f32 %v2836, %v2908
      %v2988 = vadd.f32 %v2837, %v2908
      %v2989 = vadd.f32 %v2838, %v2908
      %v2990 = vadd.f32 %v2839, %v2908
      %v2991 = vadd.f32 %v2840, %v2908
      %v2992 = vadd.f32 %v2841, %v2908
      %v2993 = vadd.f32 %v2842, %v2908
      %v2994 = vadd.f32 %v2843, %v2908
      %v2995 = vadd.f32 %v2844, %v2908
      %v2996 = vadd.f32 %v2845, %v2908
      %v2997 = vadd.f32 %v2846, %v2908
      %v2998 = vadd.f32 %v2847, %v2908
      %v2999 = vadd.f32 %v2848, %v2908
      %v3000 = vadd.f32 %v2849, %v2908
      %v3001 = vadd.f32 %v2850, %v2908
      %v3002 = vadd.f32 %v2851, %v2908
      %v3003 = vadd.f32 %v2852, %v2908
      %v3004 = vadd.f32 %v2853, %v2908
      %v3005 = vadd.f32 %v2854, %v2908
      %v3006 = vadd.f32 %v2855, %v2908
      %v3007 = vadd.f32 %v2856, %v2908
      %v3008 = vadd.f32 %v2857, %v2908
      %v3009 = vadd.f32 %v2858, %v2908
      %v3010 = vadd.f32 %v2859, %v2908
      %v3011 = vadd.f32 %v2860, %v2908
      %v3012 = vadd.f32 %v2861, %v2908
      %v3013 = vadd.f32 %v2862, %v2908
      %v3014 = vadd.f32 %v2863, %v2908
      %v3015 = vadd.f32 %v2864, %v2908
      %v3016 = vadd.f32 %v2865, %v2908
      %v3017 = vadd.f32 %v2866, %v2908
      %v3018 = vadd.f32 %v2867, %v2908
      %v3019 = vadd.f32 %v2868, %v2908
      %v3020 = vadd.f32 %v2869, %v2908
      %v3021 = vadd.f32 %v2870, %v2908
      %v3022 = vadd.f32 %v2871, %v2908
      %v3023 = vadd.f32 %v2872, %v2908
      %v3024 = vadd.f32 %v2873, %v2908
      %v3025 = vadd.f32 %v2874, %v2908
      %v3026 = vadd.f32 %v2875, %v2908
      %v3027 = vadd.f32 %v2876, %v2908
      %v3028 = vadd.f32 %v2877, %v2908
      %v3029 = vadd.f32 %v2878, %v2908
      %v3030 = vadd.f32 %v2879, %v2908
      %v3031 = vadd.f32 %v2880, %v2908
      %v3032 = vadd.f32 %v2881, %v2908
      %v3033 = vadd.f32 %v2882, %v2908
      %v3034 = vadd.f32 %v2883, %v2908
      %v3035 = vadd.f32 %v2884, %v2908
      %v3036 = vadd.f32 %v2885, %v2908
      %v3037 = vadd.f32 %v2886, %v2908
      %v3038 = vadd.f32 %v2887, %v2908
      %v3039 = vadd.f32 %v2888, %v2908
      %v3040 = vadd.f32 %v2889, %v2908
      %v3041 = vadd.f32 %v2890, %v2908
      %v3042 = vadd.f32 %v2891, %v2908
      %v3043 = vadd.f32 %v2892, %v2908
      %v3044 = vadd.f32 %v2893, %v2908
      %v3045 = vadd.f32 %v2894, %v2908
      %v3046 = vadd.f32 %v2895, %v2908
      %v3047 = vadd.f32 %v2896, %v2908
      %v3048 = vadd.f32 %v2897, %v2908
      %v3049 = vadd.f32 %v2898, %v2908
      %v3050 = vadd.f32 %v2899, %v2908
      %v3051 = vadd.f32 %v2900, %v2908
      %v3052 = vadd.f32 %v2901, %v2908
      %v3053 = vadd.f32 %v2902, %v2908
      %v3054 = vld [vmem:[#allocation2] sm:$0xff]
      %v3055 = vld [vmem:[#allocation2 + $0x8] sm:$0xff]
      %v3056 = vld [vmem:[#allocation2 + $0x10] sm:$0xff]
      %v3057 = vld [vmem:[#allocation2 + $0x18] sm:$0xff]
      %v3058 = vld [vmem:[#allocation2 + $0x20] sm:$0xff]
      %v3059 = vld [vmem:[#allocation2 + $0x28] sm:$0xff]
      %v3060 = vld [vmem:[#allocation2 + $0x30] sm:$0xff]
      %v3061 = vld [vmem:[#allocation2 + $0x38] sm:$0xff]
      %v3062 = vld [vmem:[#allocation2 + $0x40] sm:$0xff]
      %v3063 = vld [vmem:[#allocation2 + $0x48] sm:$0xff]
      %v3064 = vld [vmem:[#allocation2 + $0x50] sm:$0xff]
      %v3065 = vld [vmem:[#allocation2 + $0x58] sm:$0xff]
      %v3066 = vld [vmem:[#allocation2 + $0x60] sm:$0xff]
      %v3067 = vld [vmem:[#allocation2 + $0x68] sm:$0xff]
      %v3068 = vld [vmem:[#allocation2 + $0x70] sm:$0xff]
      %v3069 = vld [vmem:[#allocation2 + $0x78] sm:$0xff]
      %v3070 = vld [vmem:[#allocation2 + $0x80] sm:$0xff]
      %v3071 = vld [vmem:[#allocation2 + $0x88] sm:$0xff]
      %v3072 = vld [vmem:[#allocation2 + $0x90] sm:$0xff]
      %v3073 = vld [vmem:[#allocation2 + $0x98] sm:$0xff]
      %v3074 = vld [vmem:[#allocation2 + $0xa0] sm:$0xff]
      %v3075 = vld [vmem:[#allocation2 + $0xa8] sm:$0xff]
      %v3076 = vld [vmem:[#allocation2 + $0xb0] sm:$0xff]
      %v3077 = vld [vmem:[#allocation2 + $0xb8] sm:$0xff]
      %v3078 = vld [vmem:[#allocation2 + $0xc0] sm:$0xff]
      %v3079 = vld [vmem:[#allocation2 + $0xc8] sm:$0xff]
      %v3080 = vld [vmem:[#allocation2 + $0xd0] sm:$0xff]
      %v3081 = vld [vmem:[#allocation2 + $0xd8] sm:$0xff]
      %v3082 = vld [vmem:[#allocation2 + $0xe0] sm:$0xff]
      %v3083 = vld [vmem:[#allocation2 + $0xe8] sm:$0xff]
      %v3084 = vld [vmem:[#allocation2 + $0xf0] sm:$0xff]
      %v3085 = vld [vmem:[#allocation2 + $0xf8] sm:$0xff]
      %v3086 = vld [vmem:[#allocation2 + $0x100] sm:$0xff]
      %v3087 = vld [vmem:[#allocation2 + $0x108] sm:$0xff]
      %v3088 = vld [vmem:[#allocation2 + $0x110] sm:$0xff]
      %v3089 = vld [vmem:[#allocation2 + $0x118] sm:$0xff]
      %v3090 = vld [vmem:[#allocation2 + $0x120] sm:$0xff]
      %v3091 = vld [vmem:[#allocation2 + $0x128] sm:$0xff]
      %v3092 = vld [vmem:[#allocation2 + $0x130] sm:$0xff]
      %v3093 = vld [vmem:[#allocation2 + $0x138] sm:$0xff]
      %v3094 = vld [vmem:[#allocation2 + $0x140] sm:$0xff]
      %v3095 = vld [vmem:[#allocation2 + $0x148] sm:$0xff]
      %v3096 = vld [vmem:[#allocation2 + $0x150] sm:$0xff]
      %v3097 = vld [vmem:[#allocation2 + $0x158] sm:$0xff]
      %v3098 = vld [vmem:[#allocation2 + $0x160] sm:$0xff]
      %v3099 = vld [vmem:[#allocation2 + $0x168] sm:$0xff]
      %v3100 = vld [vmem:[#allocation2 + $0x170] sm:$0xff]
      %v3101 = vld [vmem:[#allocation2 + $0x178] sm:$0xff]
      %v3102 = vld [vmem:[#allocation2 + $0x180] sm:$0xff]
      %v3103 = vld [vmem:[#allocation2 + $0x188] sm:$0xff]
      %v3104 = vld [vmem:[#allocation2 + $0x190] sm:$0xff]
      %v3105 = vld [vmem:[#allocation2 + $0x198] sm:$0xff]
      %v3106 = vld [vmem:[#allocation2 + $0x1a0] sm:$0xff]
      %v3107 = vld [vmem:[#allocation2 + $0x1a8] sm:$0xff]
      %v3108 = vld [vmem:[#allocation2 + $0x1b0] sm:$0xff]
      %v3109 = vld [vmem:[#allocation2 + $0x1b8] sm:$0xff]
      %v3110 = vld [vmem:[#allocation2 + $0x1c0] sm:$0xff]
      %v3111 = vld [vmem:[#allocation2 + $0x1c8] sm:$0xff]
      %v3112 = vld [vmem:[#allocation2 + $0x1d0] sm:$0xff]
      %v3113 = vld [vmem:[#allocation2 + $0x1d8] sm:$0xff]
      %v3114 = vld [vmem:[#allocation2 + $0x1e0] sm:$0xff]
      %v3115 = vld [vmem:[#allocation2 + $0x1e8] sm:$0xff]
      %v3116 = vld [vmem:[#allocation2 + $0x1f0] sm:$0xff]
      %v3117 = vld [vmem:[#allocation2 + $0x1f8] sm:$0xff]
      %v3118 = vld [vmem:[#allocation2 + $0x200] sm:$0xff]
      %v3119 = vld [vmem:[#allocation2 + $0x208] sm:$0xff]
      %v3120 = vld [vmem:[#allocation2 + $0x210] sm:$0xff]
      %v3121 = vld [vmem:[#allocation2 + $0x218] sm:$0xff]
      %v3122 = vld [vmem:[#allocation2 + $0x220] sm:$0xff]
      %v3123 = vld [vmem:[#allocation2 + $0x228] sm:$0xff]
      %v3124 = vld [vmem:[#allocation2 + $0x230] sm:$0xff]
      %v3125 = vld [vmem:[#allocation2 + $0x238] sm:$0xff]
      %v3126 = vld [vmem:[#allocation2 + $0x240] sm:$0xff]
      %v3127 = vld [vmem:[#allocation2 + $0x248] sm:$0xff]
      %v3128 = vld [vmem:[#allocation2 + $0x250] sm:$0xff]
      %v3129 = vld [vmem:[#allocation2 + $0x258] sm:$0xff]
      %v3130 = vld [vmem:[#allocation2 + $0x260] sm:$0xff]
      %v3131 = vld [vmem:[#allocation2 + $0x268] sm:$0xff]
      %v3132 = vld [vmem:[#allocation2 + $0x270] sm:$0xff]
      %v3133 = vld [vmem:[#allocation2 + $0x278] sm:$0xff]
      %v3134 = vld [vmem:[#allocation2 + $0x280] sm:$0xff]
      %v3135 = vld [vmem:[#allocation2 + $0x288] sm:$0xff]
      %v3136 = vld [vmem:[#allocation2 + $0x290] sm:$0xff]
      %v3137 = vld [vmem:[#allocation2 + $0x298] sm:$0xff]
      %v3138 = vld [vmem:[#allocation2 + $0x2a0] sm:$0xff]
      %v3139 = vld [vmem:[#allocation2 + $0x2a8] sm:$0xff]
      %v3140 = vld [vmem:[#allocation2 + $0x2b0] sm:$0xff]
      %v3141 = vld [vmem:[#allocation2 + $0x2b8] sm:$0xff]
      %v3142 = vld [vmem:[#allocation2 + $0x2c0] sm:$0xff]
      %v3143 = vld [vmem:[#allocation2 + $0x2c8] sm:$0xff]
      %v3144 = vld [vmem:[#allocation2 + $0x2d0] sm:$0xff]
      %v3145 = vld [vmem:[#allocation2 + $0x2d8] sm:$0xff]
      %v3146 = vld [vmem:[#allocation2 + $0x2e0] sm:$0xff]
      %v3147 = vld [vmem:[#allocation2 + $0x2e8] sm:$0xff]
      %v3148 = vld [vmem:[#allocation2 + $0x2f0] sm:$0xff]
      %v3149 = vld [vmem:[#allocation2 + $0x2f8] sm:$0xff]
      %v3150 = vld [vmem:[#allocation2 + $0x300] sm:$0xff]
      %v3151 = vld [vmem:[#allocation2 + $0x308] sm:$0xff]
      %v3152 = vld [vmem:[#allocation2 + $0x310] sm:$0xff]
      %v3153 = vld [vmem:[#allocation2 + $0x318] sm:$0xff]
      %v3154 = vld [vmem:[#allocation2 + $0x320] sm:$0xff]
      %v3155 = vld [vmem:[#allocation2 + $0x328] sm:$0xff]
      %v3156 = vld [vmem:[#allocation2 + $0x330] sm:$0xff]
      %v3157 = vld [vmem:[#allocation2 + $0x338] sm:$0xff]
      %v3158 = vld [vmem:[#allocation2 + $0x340] sm:$0xff]
      %v3159 = vld [vmem:[#allocation2 + $0x348] sm:$0xff]
      %v3160 = vld [vmem:[#allocation2 + $0x350] sm:$0xff]
      %v3161 = vld [vmem:[#allocation2 + $0x358] sm:$0xff]
      %v3162 = vld [vmem:[#allocation2 + $0x360] sm:$0xff]
      %v3163 = vld [vmem:[#allocation2 + $0x368] sm:$0xff]
      %v3164 = vld [vmem:[#allocation2 + $0x370] sm:$0xff]
      %v3165 = vld [vmem:[#allocation2 + $0x378] sm:$0xff]
      %v3166 = vld [vmem:[#allocation2 + $0x380] sm:$0xff]
      %v3167 = vld [vmem:[#allocation2 + $0x388] sm:$0xff]
      %v3168 = vld [vmem:[#allocation2 + $0x390] sm:$0xff]
      %v3169 = vld [vmem:[#allocation2 + $0x398] sm:$0xff]
      %v3170 = vld [vmem:[#allocation2 + $0x3a0] sm:$0xff]
      %v3171 = vld [vmem:[#allocation2 + $0x3a8] sm:$0xff]
      %v3172 = vld [vmem:[#allocation2 + $0x3b0] sm:$0xff]
      %v3173 = vld [vmem:[#allocation2 + $0x3b8] sm:$0xff]
      %v3174 = vld [vmem:[#allocation2 + $0x3c0] sm:$0xff]
      %v3175 = vld [vmem:[#allocation2 + $0x3c8] sm:$0xff]
      %v3176 = vld [vmem:[#allocation2 + $0x3d0] sm:$0xff]
      %v3177 = vld [vmem:[#allocation2 + $0x3d8] sm:$0xff]
      %v3178 = vld [vmem:[#allocation2 + $0x3e0] sm:$0xff]
      %v3179 = vld [vmem:[#allocation2 + $0x3e8] sm:$0xff]
      %v3180 = vld [vmem:[#allocation2 + $0x3f0] sm:$0xff]
      %v3181 = vld [vmem:[#allocation2 + $0x3f8] sm:$0xff]
      %v3182 = vld [vmem:[#allocation2 + $0x400] sm:$0xff]
      %v3183 = vld [vmem:[#allocation2 + $0x408] sm:$0xff]
      %v3184 = vld [vmem:[#allocation2 + $0x410] sm:$0xff]
      %v3185 = vld [vmem:[#allocation2 + $0x418] sm:$0xff]
      %v3186 = vld [vmem:[#allocation2 + $0x420] sm:$0xff]
      %v3187 = vld [vmem:[#allocation2 + $0x428] sm:$0xff]
      %v3188 = vld [vmem:[#allocation2 + $0x430] sm:$0xff]
      %v3189 = vld [vmem:[#allocation2 + $0x438] sm:$0xff]
      %v3190 = vld [vmem:[#allocation2 + $0x440] sm:$0xff]
      %v3191 = vld [vmem:[#allocation2 + $0x448] sm:$0xff]
      %v3192 = vld [vmem:[#allocation2 + $0x450] sm:$0xff]
      %v3193 = vld [vmem:[#allocation2 + $0x458] sm:$0xff]
      %v3194 = vld [vmem:[#allocation2 + $0x460] sm:$0xff]
      %v3195 = vld [vmem:[#allocation2 + $0x468] sm:$0xff]
      %v3196 = vld [vmem:[#allocation2 + $0x470] sm:$0xff]
      %v3197 = vld [vmem:[#allocation2 + $0x478] sm:$0xff]
      %v3198 = vsub.f32 %v2910, %v3054
      %v3199 = vsub.f32 %v2911, %v3055
      %v3200 = vsub.f32 %v2912, %v3056
      %v3201 = vsub.f32 %v2913, %v3057
      %v3202 = vsub.f32 %v2914, %v3058
      %v3203 = vsub.f32 %v2915, %v3059
      %v3204 = vsub.f32 %v2916, %v3060
      %v3205 = vsub.f32 %v2917, %v3061
      %v3206 = vsub.f32 %v2918, %v3062
      %v3207 = vsub.f32 %v2919, %v3063
      %v3208 = vsub.f32 %v2920, %v3064
      %v3209 = vsub.f32 %v2921, %v3065
      %v3210 = vsub.f32 %v2922, %v3066
      %v3211 = vsub.f32 %v2923, %v3067
      %v3212 = vsub.f32 %v2924, %v3068
      %v3213 = vsub.f32 %v2925, %v3069
      %v3214 = vsub.f32 %v2926, %v3070
      %v3215 = vsub.f32 %v2927, %v3071
      %v3216 = vsub.f32 %v2928, %v3072
      %v3217 = vsub.f32 %v2929, %v3073
      %v3218 = vsub.f32 %v2930, %v3074
      %v3219 = vsub.f32 %v2931, %v3075
      %v3220 = vsub.f32 %v2932, %v3076
      %v3221 = vsub.f32 %v2933, %v3077
      %v3222 = vsub.f32 %v2934, %v3078
      %v3223 = vsub.f32 %v2935, %v3079
      %v3224 = vsub.f32 %v2936, %v3080
      %v3225 = vsub.f32 %v2937, %v3081
      %v3226 = vsub.f32 %v2938, %v3082
      %v3227 = vsub.f32 %v2939, %v3083
      %v3228 = vsub.f32 %v2940, %v3084
      %v3229 = vsub.f32 %v2941, %v3085
      %v3230 = vsub.f32 %v2942, %v3086
      %v3231 = vsub.f32 %v2943, %v3087
      %v3232 = vsub.f32 %v2944, %v3088
      %v3233 = vsub.f32 %v2945, %v3089
      %v3234 = vsub.f32 %v2946, %v3090
      %v3235 = vsub.f32 %v2947, %v3091
      %v3236 = vsub.f32 %v2948, %v3092
      %v3237 = vsub.f32 %v2949, %v3093
      %v3238 = vsub.f32 %v2950, %v3094
      %v3239 = vsub.f32 %v2951, %v3095
      %v3240 = vsub.f32 %v2952, %v3096
      %v3241 = vsub.f32 %v2953, %v3097
      %v3242 = vsub.f32 %v2954, %v3098
      %v3243 = vsub.f32 %v2955, %v3099
      %v3244 = vsub.f32 %v2956, %v3100
      %v3245 = vsub.f32 %v2957, %v3101
      %v3246 = vsub.f32 %v2958, %v3102
      %v3247 = vsub.f32 %v2959, %v3103
      %v3248 = vsub.f32 %v2960, %v3104
      %v3249 = vsub.f32 %v2961, %v3105
      %v3250 = vsub.f32 %v2962, %v3106
      %v3251 = vsub.f32 %v2963, %v3107
      %v3252 = vsub.f32 %v2964, %v3108
      %v3253 = vsub.f32 %v2965, %v3109
      %v3254 = vsub.f32 %v2966, %v3110
      %v3255 = vsub.f32 %v2967, %v3111
      %v3256 = vsub.f32 %v2968, %v3112
      %v3257 = vsub.f32 %v2969, %v3113
      %v3258 = vsub.f32 %v2970, %v3114
      %v3259 = vsub.f32 %v2971, %v3115
      %v3260 = vsub.f32 %v2972, %v3116
      %v3261 = vsub.f32 %v2973, %v3117
      %v3262 = vsub.f32 %v2974, %v3118
      %v3263 = vsub.f32 %v2975, %v3119
      %v3264 = vsub.f32 %v2976, %v3120
      %v3265 = vsub.f32 %v2977, %v3121
      %v3266 = vsub.f32 %v2978, %v3122
      %v3267 = vsub.f32 %v2979, %v3123
      %v3268 = vsub.f32 %v2980, %v3124
      %v3269 = vsub.f32 %v2981, %v3125
      %v3270 = vsub.f32 %v2982, %v3126
      %v3271 = vsub.f32 %v2983, %v3127
      %v3272 = vsub.f32 %v2984, %v3128
      %v3273 = vsub.f32 %v2985, %v3129
      %v3274 = vsub.f32 %v2986, %v3130
      %v3275 = vsub.f32 %v2987, %v3131
      %v3276 = vsub.f32 %v2988, %v3132
      %v3277 = vsub.f32 %v2989, %v3133
      %v3278 = vsub.f32 %v2990, %v3134
      %v3279 = vsub.f32 %v2991, %v3135
      %v3280 = vsub.f32 %v2992, %v3136
      %v3281 = vsub.f32 %v2993, %v3137
      %v3282 = vsub.f32 %v2994, %v3138
      %v3283 = vsub.f32 %v2995, %v3139
      %v3284 = vsub.f32 %v2996, %v3140
      %v3285 = vsub.f32 %v2997, %v3141
      %v3286 = vsub.f32 %v2998, %v3142
      %v3287 = vsub.f32 %v2999, %v3143
      %v3288 = vsub.f32 %v3000, %v3144
      %v3289 = vsub.f32 %v3001, %v3145
      %v3290 = vsub.f32 %v3002, %v3146
      %v3291 = vsub.f32 %v3003, %v3147
      %v3292 = vsub.f32 %v3004, %v3148
      %v3293 = vsub.f32 %v3005, %v3149
      %v3294 = vsub.f32 %v3006, %v3150
      %v3295 = vsub.f32 %v3007, %v3151
      %v3296 = vsub.f32 %v3008, %v3152
      %v3297 = vsub.f32 %v3009, %v3153
      %v3298 = vsub.f32 %v3010, %v3154
      %v3299 = vsub.f32 %v3011, %v3155
      %v3300 = vsub.f32 %v3012, %v3156
      %v3301 = vsub.f32 %v3013, %v3157
      %v3302 = vsub.f32 %v3014, %v3158
      %v3303 = vsub.f32 %v3015, %v3159
      %v3304 = vsub.f32 %v3016, %v3160
      %v3305 = vsub.f32 %v3017, %v3161
      %v3306 = vsub.f32 %v3018, %v3162
      %v3307 = vsub.f32 %v3019, %v3163
      %v3308 = vsub.f32 %v3020, %v3164
      %v3309 = vsub.f32 %v3021, %v3165
      %v3310 = vsub.f32 %v3022, %v3166
      %v3311 = vsub.f32 %v3023, %v3167
      %v3312 = vsub.f32 %v3024, %v3168
      %v3313 = vsub.f32 %v3025, %v3169
      %v3314 = vsub.f32 %v3026, %v3170
      %v3315 = vsub.f32 %v3027, %v3171
      %v3316 = vsub.f32 %v3028, %v3172
      %v3317 = vsub.f32 %v3029, %v3173
      %v3318 = vsub.f32 %v3030, %v3174
      %v3319 = vsub.f32 %v3031, %v3175
      %v3320 = vsub.f32 %v3032, %v3176
      %v3321 = vsub.f32 %v3033, %v3177
      %v3322 = vsub.f32 %v3034, %v3178
      %v3323 = vsub.f32 %v3035, %v3179
      %v3324 = vsub.f32 %v3036, %v3180
      %v3325 = vsub.f32 %v3037, %v3181
      %v3326 = vsub.f32 %v3038, %v3182
      %v3327 = vsub.f32 %v3039, %v3183
      %v3328 = vsub.f32 %v3040, %v3184
      %v3329 = vsub.f32 %v3041, %v3185
      %v3330 = vsub.f32 %v3042, %v3186
      %v3331 = vsub.f32 %v3043, %v3187
      %v3332 = vsub.f32 %v3044, %v3188
      %v3333 = vsub.f32 %v3045, %v3189
      %v3334 = vsub.f32 %v3046, %v3190
      %v3335 = vsub.f32 %v3047, %v3191
      %v3336 = vsub.f32 %v3048, %v3192
      %v3337 = vsub.f32 %v3049, %v3193
      %v3338 = vsub.f32 %v3050, %v3194
      %v3339 = vsub.f32 %v3051, %v3195
      %v3340 = vsub.f32 %v3052, %v3196
      %v3341 = vsub.f32 %v3053, %v3197
      %v3342 = vmul.f32 %v3198, 0.5
      %v3343 = vmul.f32 %v3199, 0.5
      %v3344 = vmul.f32 %v3200, 0.5
      %v3345 = vmul.f32 %v3201, 0.5
      %v3346 = vmul.f32 %v3202, 0.5
      %v3347 = vmul.f32 %v3203, 0.5
      %v3348 = vmul.f32 %v3204, 0.5
      %v3349 = vmul.f32 %v3205, 0.5
      %v3350 = vmul.f32 %v3206, 0.5
      %v3351 = vmul.f32 %v3207, 0.5
      %v3352 = vmul.f32 %v3208, 0.5
      %v3353 = vmul.f32 %v3209, 0.5
      %v3354 = vmul.f32 %v3210, 0.5
      %v3355 = vmul.f32 %v3211, 0.5
      %v3356 = vmul.f32 %v3212, 0.5
      %v3357 = vmul.f32 %v3213, 0.5
      %v3358 = vmul.f32 %v3214, 0.5
      %v3359 = vmul.f32 %v3215, 0.5
      %v3360 = vmul.f32 %v3216, 0.5
      %v3361 = vmul.f32 %v3217, 0.5
      %v3362 = vmul.f32 %v3218, 0.5
      %v3363 = vmul.f32 %v3219, 0.5
      %v3364 = vmul.f32 %v3220, 0.5
      %v3365 = vmul.f32 %v3221, 0.5
      %v3366 = vmul.f32 %v3222, 0.5
      %v3367 = vmul.f32 %v3223, 0.5
      %v3368 = vmul.f32 %v3224, 0.5
      %v3369 = vmul.f32 %v3225, 0.5
      %v3370 = vmul.f32 %v3226, 0.5
      %v3371 = vmul.f32 %v3227, 0.5
      %v3372 = vmul.f32 %v3228, 0.5
      %v3373 = vmul.f32 %v3229, 0.5
      %v3374 = vmul.f32 %v3230, 0.5
      %v3375 = vmul.f32 %v3231, 0.5
      %v3376 = vmul.f32 %v3232, 0.5
      %v3377 = vmul.f32 %v3233, 0.5
      %v3378 = vmul.f32 %v3234, 0.5
      %v3379 = vmul.f32 %v3235, 0.5
      %v3380 = vmul.f32 %v3236, 0.5
      %v3381 = vmul.f32 %v3237, 0.5
      %v3382 = vmul.f32 %v3238, 0.5
      %v3383 = vmul.f32 %v3239, 0.5
      %v3384 = vmul.f32 %v3240, 0.5
      %v3385 = vmul.f32 %v3241, 0.5
      %v3386 = vmul.f32 %v3242, 0.5
      %v3387 = vmul.f32 %v3243, 0.5
      %v3388 = vmul.f32 %v3244, 0.5
      %v3389 = vmul.f32 %v3245, 0.5
      %v3390 = vmul.f32 %v3246, 0.5
      %v3391 = vmul.f32 %v3247, 0.5
      %v3392 = vmul.f32 %v3248, 0.5
      %v3393 = vmul.f32 %v3249, 0.5
      %v3394 = vmul.f32 %v3250, 0.5
      %v3395 = vmul.f32 %v3251, 0.5
      %v3396 = vmul.f32 %v3252, 0.5
      %v3397 = vmul.f32 %v3253, 0.5
      %v3398 = vmul.f32 %v3254, 0.5
      %v3399 = vmul.f32 %v3255, 0.5
      %v3400 = vmul.f32 %v3256, 0.5
      %v3401 = vmul.f32 %v3257, 0.5
      %v3402 = vmul.f32 %v3258, 0.5
      %v3403 = vmul.f32 %v3259, 0.5
      %v3404 = vmul.f32 %v3260, 0.5
      %v3405 = vmul.f32 %v3261, 0.5
      %v3406 = vmul.f32 %v3262, 0.5
      %v3407 = vmul.f32 %v3263, 0.5
      %v3408 = vmul.f32 %v3264, 0.5
      %v3409 = vmul.f32 %v3265, 0.5
      %v3410 = vmul.f32 %v3266, 0.5
      %v3411 = vmul.f32 %v3267, 0.5
      %v3412 = vmul.f32 %v3268, 0.5
      %v3413 = vmul.f32 %v3269, 0.5
      %v3414 = vmul.f32 %v3270, 0.5
      %v3415 = vmul.f32 %v3271, 0.5
      %v3416 = vmul.f32 %v3272, 0.5
      %v3417 = vmul.f32 %v3273, 0.5
      %v3418 = vmul.f32 %v3274, 0.5
      %v3419 = vmul.f32 %v3275, 0.5
      %v3420 = vmul.f32 %v3276, 0.5
      %v3421 = vmul.f32 %v3277, 0.5
      %v3422 = vmul.f32 %v3278, 0.5
      %v3423 = vmul.f32 %v3279, 0.5
      %v3424 = vmul.f32 %v3280, 0.5
      %v3425 = vmul.f32 %v3281, 0.5
      %v3426 = vmul.f32 %v3282, 0.5
      %v3427 = vmul.f32 %v3283, 0.5
      %v3428 = vmul.f32 %v3284, 0.5
      %v3429 = vmul.f32 %v3285, 0.5
      %v3430 = vmul.f32 %v3286, 0.5
      %v3431 = vmul.f32 %v3287, 0.5
      %v3432 = vmul.f32 %v3288, 0.5
      %v3433 = vmul.f32 %v3289, 0.5
      %v3434 = vmul.f32 %v3290, 0.5
      %v3435 = vmul.f32 %v3291, 0.5
      %v3436 = vmul.f32 %v3292, 0.5
      %v3437 = vmul.f32 %v3293, 0.5
      %v3438 = vmul.f32 %v3294, 0.5
      %v3439 = vmul.f32 %v3295, 0.5
      %v3440 = vmul.f32 %v3296, 0.5
      %v3441 = vmul.f32 %v3297, 0.5
      %v3442 = vmul.f32 %v3298, 0.5
      %v3443 = vmul.f32 %v3299, 0.5
      %v3444 = vmul.f32 %v3300, 0.5
      %v3445 = vmul.f32 %v3301, 0.5
      %v3446 = vmul.f32 %v3302, 0.5
      %v3447 = vmul.f32 %v3303, 0.5
      %v3448 = vmul.f32 %v3304, 0.5
      %v3449 = vmul.f32 %v3305, 0.5
      %v3450 = vmul.f32 %v3306, 0.5
      %v3451 = vmul.f32 %v3307, 0.5
      %v3452 = vmul.f32 %v3308, 0.5
      %v3453 = vmul.f32 %v3309, 0.5
      %v3454 = vmul.f32 %v3310, 0.5
      %v3455 = vmul.f32 %v3311, 0.5
      %v3456 = vmul.f32 %v3312, 0.5
      %v3457 = vmul.f32 %v3313, 0.5
      %v3458 = vmul.f32 %v3314, 0.5
      %v3459 = vmul.f32 %v3315, 0.5
      %v3460 = vmul.f32 %v3316, 0.5
      %v3461 = vmul.f32 %v3317, 0.5
      %v3462 = vmul.f32 %v3318, 0.5
      %v3463 = vmul.f32 %v3319, 0.5
      %v3464 = vmul.f32 %v3320, 0.5
      %v3465 = vmul.f32 %v3321, 0.5
      %v3466 = vmul.f32 %v3322, 0.5
      %v3467 = vmul.f32 %v3323, 0.5
      %v3468 = vmul.f32 %v3324, 0.5
      %v3469 = vmul.f32 %v3325, 0.5
      %v3470 = vmul.f32 %v3326, 0.5
      %v3471 = vmul.f32 %v3327, 0.5
      %v3472 = vmul.f32 %v3328, 0.5
      %v3473 = vmul.f32 %v3329, 0.5
      %v3474 = vmul.f32 %v3330, 0.5
      %v3475 = vmul.f32 %v3331, 0.5
      %v3476 = vmul.f32 %v3332, 0.5
      %v3477 = vmul.f32 %v3333, 0.5
      %v3478 = vmul.f32 %v3334, 0.5
      %v3479 = vmul.f32 %v3335, 0.5
      %v3480 = vmul.f32 %v3336, 0.5
      %v3481 = vmul.f32 %v3337, 0.5
      %v3482 = vmul.f32 %v3338, 0.5
      %v3483 = vmul.f32 %v3339, 0.5
      %v3484 = vmul.f32 %v3340, 0.5
      %v3485 = vmul.f32 %v3341, 0.5
      %v3486 = vadd.f32 %v3054, %v3342
      %v3487 = vadd.f32 %v3055, %v3343
      %v3488 = vadd.f32 %v3056, %v3344
      %v3489 = vadd.f32 %v3057, %v3345
      %v3490 = vadd.f32 %v3058, %v3346
      %v3491 = vadd.f32 %v3059, %v3347
      %v3492 = vadd.f32 %v3060, %v3348
      %v3493 = vadd.f32 %v3061, %v3349
      %v3494 = vadd.f32 %v3062, %v3350
      %v3495 = vadd.f32 %v3063, %v3351
      %v3496 = vadd.f32 %v3064, %v3352
      %v3497 = vadd.f32 %v3065, %v3353
      %v3498 = vadd.f32 %v3066, %v3354
      %v3499 = vadd.f32 %v3067, %v3355
      %v3500 = vadd.f32 %v3068, %v3356
      %v3501 = vadd.f32 %v3069, %v3357
      %v3502 = vadd.f32 %v3070, %v3358
      %v3503 = vadd.f32 %v3071, %v3359
      %v3504 = vadd.f32 %v3072, %v3360
      %v3505 = vadd.f32 %v3073, %v3361
      %v3506 = vadd.f32 %v3074, %v3362
      %v3507 = vadd.f32 %v3075, %v3363
      %v3508 = vadd.f32 %v3076, %v3364
      %v3509 = vadd.f32 %v3077, %v3365
      %v3510 = vadd.f32 %v3078, %v3366
      %v3511 = vadd.f32 %v3079, %v3367
      %v3512 = vadd.f32 %v3080, %v3368
      %v3513 = vadd.f32 %v3081, %v3369
      %v3514 = vadd.f32 %v3082, %v3370
      %v3515 = vadd.f32 %v3083, %v3371
      %v3516 = vadd.f32 %v3084, %v3372
      %v3517 = vadd.f32 %v3085, %v3373
      %v3518 = vadd.f32 %v3086, %v3374
      %v3519 = vadd.f32 %v3087, %v3375
      %v3520 = vadd.f32 %v3088, %v3376
      %v3521 = vadd.f32 %v3089, %v3377
      %v3522 = vadd.f32 %v3090, %v3378
      %v3523 = vadd.f32 %v3091, %v3379
      %v3524 = vadd.f32 %v3092, %v3380
      %v3525 = vadd.f32 %v3093, %v3381
      %v3526 = vadd.f32 %v3094, %v3382
      %v3527 = vadd.f32 %v3095, %v3383
      %v3528 = vadd.f32 %v3096, %v3384
      %v3529 = vadd.f32 %v3097, %v3385
      %v3530 = vadd.f32 %v3098, %v3386
      %v3531 = vadd.f32 %v3099, %v3387
      %v3532 = vadd.f32 %v3100, %v3388
      %v3533 = vadd.f32 %v3101, %v3389
      %v3534 = vadd.f32 %v3102, %v3390
      %v3535 = vadd.f32 %v3103, %v3391
      %v3536 = vadd.f32 %v3104, %v3392
      %v3537 = vadd.f32 %v3105, %v3393
      %v3538 = vadd.f32 %v3106, %v3394
      %v3539 = vadd.f32 %v3107, %v3395
      %v3540 = vadd.f32 %v3108, %v3396
      %v3541 = vadd.f32 %v3109, %v3397
      %v3542 = vadd.f32 %v3110, %v3398
      %v3543 = vadd.f32 %v3111, %v3399
      %v3544 = vadd.f32 %v3112, %v3400
      %v3545 = vadd.f32 %v3113, %v3401
      %v3546 = vadd.f32 %v3114, %v3402
      %v3547 = vadd.f32 %v3115, %v3403
      %v3548 = vadd.f32 %v3116, %v3404
      %v3549 = vadd.f32 %v3117, %v3405
      %v3550 = vadd.f32 %v3118, %v3406
      %v3551 = vadd.f32 %v3119, %v3407
      %v3552 = vadd.f32 %v3120, %v3408
      %v3553 = vadd.f32 %v3121, %v3409
      %v3554 = vadd.f32 %v3122, %v3410
      %v3555 = vadd.f32 %v3123, %v3411
      %v3556 = vadd.f32 %v3124, %v3412
      %v3557 = vadd.f32 %v3125, %v3413
      %v3558 = vadd.f32 %v3126, %v3414
      %v3559 = vadd.f32 %v3127, %v3415
      %v3560 = vadd.f32 %v3128, %v3416
      %v3561 = vadd.f32 %v3129, %v3417
      %v3562 = vadd.f32 %v3130, %v3418
      %v3563 = vadd.f32 %v3131, %v3419
      %v3564 = vadd.f32 %v3132, %v3420
      %v3565 = vadd.f32 %v3133, %v3421
      %v3566 = vadd.f32 %v3134, %v3422
      %v3567 = vadd.f32 %v3135, %v3423
      %v3568 = vadd.f32 %v3136, %v3424
      %v3569 = vadd.f32 %v3137, %v3425
      %v3570 = vadd.f32 %v3138, %v3426
      %v3571 = vadd.f32 %v3139, %v3427
      %v3572 = vadd.f32 %v3140, %v3428
      %v3573 = vadd.f32 %v3141, %v3429
      %v3574 = vadd.f32 %v3142, %v3430
      %v3575 = vadd.f32 %v3143, %v3431
      %v3576 = vadd.f32 %v3144, %v3432
      %v3577 = vadd.f32 %v3145, %v3433
      %v3578 = vadd.f32 %v3146, %v3434
      %v3579 = vadd.f32 %v3147, %v3435
      %v3580 = vadd.f32 %v3148, %v3436
      %v3581 = vadd.f32 %v3149, %v3437
      %v3582 = vadd.f32 %v3150, %v3438
      %v3583 = vadd.f32 %v3151, %v3439
      %v3584 = vadd.f32 %v3152, %v3440
      %v3585 = vadd.f32 %v3153, %v3441
      %v3586 = vadd.f32 %v3154, %v3442
      %v3587 = vadd.f32 %v3155, %v3443
      %v3588 = vadd.f32 %v3156, %v3444
      %v3589 = vadd.f32 %v3157, %v3445
      %v3590 = vadd.f32 %v3158, %v3446
      %v3591 = vadd.f32 %v3159, %v3447
      %v3592 = vadd.f32 %v3160, %v3448
      %v3593 = vadd.f32 %v3161, %v3449
      %v3594 = vadd.f32 %v3162, %v3450
      %v3595 = vadd.f32 %v3163, %v3451
      %v3596 = vadd.f32 %v3164, %v3452
      %v3597 = vadd.f32 %v3165, %v3453
      %v3598 = vadd.f32 %v3166, %v3454
      %v3599 = vadd.f32 %v3167, %v3455
      %v3600 = vadd.f32 %v3168, %v3456
      %v3601 = vadd.f32 %v3169, %v3457
      %v3602 = vadd.f32 %v3170, %v3458
      %v3603 = vadd.f32 %v3171, %v3459
      %v3604 = vadd.f32 %v3172, %v3460
      %v3605 = vadd.f32 %v3173, %v3461
      %v3606 = vadd.f32 %v3174, %v3462
      %v3607 = vadd.f32 %v3175, %v3463
      %v3608 = vadd.f32 %v3176, %v3464
      %v3609 = vadd.f32 %v3177, %v3465
      %v3610 = vadd.f32 %v3178, %v3466
      %v3611 = vadd.f32 %v3179, %v3467
      %v3612 = vadd.f32 %v3180, %v3468
      %v3613 = vadd.f32 %v3181, %v3469
      %v3614 = vadd.f32 %v3182, %v3470
      %v3615 = vadd.f32 %v3183, %v3471
      %v3616 = vadd.f32 %v3184, %v3472
      %v3617 = vadd.f32 %v3185, %v3473
      %v3618 = vadd.f32 %v3186, %v3474
      %v3619 = vadd.f32 %v3187, %v3475
      %v3620 = vadd.f32 %v3188, %v3476
      %v3621 = vadd.f32 %v3189, %v3477
      %v3622 = vadd.f32 %v3190, %v3478
      %v3623 = vadd.f32 %v3191, %v3479
      %v3624 = vadd.f32 %v3192, %v3480
      %v3625 = vadd.f32 %v3193, %v3481
      %v3626 = vadd.f32 %v3194, %v3482
      %v3627 = vadd.f32 %v3195, %v3483
      %v3628 = vadd.f32 %v3196, %v3484
      %v3629 = vadd.f32 %v3197, %v3485
      %vm3630 = vcmp.ge.f32.partialorder %v3486, 1.0
      %vm3631 = vcmp.ge.f32.partialorder %v3487, 1.0
      %vm3632 = vcmp.ge.f32.partialorder %v3488, 1.0
      %vm3633 = vcmp.ge.f32.partialorder %v3489, 1.0
      %vm3634 = vcmp.ge.f32.partialorder %v3490, 1.0
      %vm3635 = vcmp.ge.f32.partialorder %v3491, 1.0
      %vm3636 = vcmp.ge.f32.partialorder %v3492, 1.0
      %vm3637 = vcmp.ge.f32.partialorder %v3493, 1.0
      %vm3638 = vcmp.ge.f32.partialorder %v3494, 1.0
      %vm3639 = vcmp.ge.f32.partialorder %v3495, 1.0
      %vm3640 = vcmp.ge.f32.partialorder %v3496, 1.0
      %vm3641 = vcmp.ge.f32.partialorder %v3497, 1.0
      %vm3642 = vcmp.ge.f32.partialorder %v3498, 1.0
      %vm3643 = vcmp.ge.f32.partialorder %v3499, 1.0
      %vm3644 = vcmp.ge.f32.partialorder %v3500, 1.0
      %vm3645 = vcmp.ge.f32.partialorder %v3501, 1.0
      %vm3646 = vcmp.ge.f32.partialorder %v3502, 1.0
      %vm3647 = vcmp.ge.f32.partialorder %v3503, 1.0
      %vm3648 = vcmp.ge.f32.partialorder %v3504, 1.0
      %vm3649 = vcmp.ge.f32.partialorder %v3505, 1.0
      %vm3650 = vcmp.ge.f32.partialorder %v3506, 1.0
      %vm3651 = vcmp.ge.f32.partialorder %v3507, 1.0
      %vm3652 = vcmp.ge.f32.partialorder %v3508, 1.0
      %vm3653 = vcmp.ge.f32.partialorder %v3509, 1.0
      %vm3654 = vcmp.ge.f32.partialorder %v3510, 1.0
      %vm3655 = vcmp.ge.f32.partialorder %v3511, 1.0
      %vm3656 = vcmp.ge.f32.partialorder %v3512, 1.0
      %vm3657 = vcmp.ge.f32.partialorder %v3513, 1.0
      %vm3658 = vcmp.ge.f32.partialorder %v3514, 1.0
      %vm3659 = vcmp.ge.f32.partialorder %v3515, 1.0
      %vm3660 = vcmp.ge.f32.partialorder %v3516, 1.0
      %vm3661 = vcmp.ge.f32.partialorder %v3517, 1.0
      %vm3662 = vcmp.ge.f32.partialorder %v3518, 1.0
      %vm3663 = vcmp.ge.f32.partialorder %v3519, 1.0
      %vm3664 = vcmp.ge.f32.partialorder %v3520, 1.0
      %vm3665 = vcmp.ge.f32.partialorder %v3521, 1.0
      %vm3666 = vcmp.ge.f32.partialorder %v3522, 1.0
      %vm3667 = vcmp.ge.f32.partialorder %v3523, 1.0
      %vm3668 = vcmp.ge.f32.partialorder %v3524, 1.0
      %vm3669 = vcmp.ge.f32.partialorder %v3525, 1.0
      %vm3670 = vcmp.ge.f32.partialorder %v3526, 1.0
      %vm3671 = vcmp.ge.f32.partialorder %v3527, 1.0
      %vm3672 = vcmp.ge.f32.partialorder %v3528, 1.0
      %vm3673 = vcmp.ge.f32.partialorder %v3529, 1.0
      %vm3674 = vcmp.ge.f32.partialorder %v3530, 1.0
      %vm3675 = vcmp.ge.f32.partialorder %v3531, 1.0
      %vm3676 = vcmp.ge.f32.partialorder %v3532, 1.0
      %vm3677 = vcmp.ge.f32.partialorder %v3533, 1.0
      %vm3678 = vcmp.ge.f32.partialorder %v3534, 1.0
      %vm3679 = vcmp.ge.f32.partialorder %v3535, 1.0
      %vm3680 = vcmp.ge.f32.partialorder %v3536, 1.0
      %vm3681 = vcmp.ge.f32.partialorder %v3537, 1.0
      %vm3682 = vcmp.ge.f32.partialorder %v3538, 1.0
      %vm3683 = vcmp.ge.f32.partialorder %v3539, 1.0
      %vm3684 = vcmp.ge.f32.partialorder %v3540, 1.0
      %vm3685 = vcmp.ge.f32.partialorder %v3541, 1.0
      %vm3686 = vcmp.ge.f32.partialorder %v3542, 1.0
      %vm3687 = vcmp.ge.f32.partialorder %v3543, 1.0
      %vm3688 = vcmp.ge.f32.partialorder %v3544, 1.0
      %vm3689 = vcmp.ge.f32.partialorder %v3545, 1.0
      %vm3690 = vcmp.ge.f32.partialorder %v3546, 1.0
      %vm3691 = vcmp.ge.f32.partialorder %v3547, 1.0
      %vm3692 = vcmp.ge.f32.partialorder %v3548, 1.0
      %vm3693 = vcmp.ge.f32.partialorder %v3549, 1.0
      %vm3694 = vcmp.ge.f32.partialorder %v3550, 1.0
      %vm3695 = vcmp.ge.f32.partialorder %v3551, 1.0
      %vm3696 = vcmp.ge.f32.partialorder %v3552, 1.0
      %vm3697 = vcmp.ge.f32.partialorder %v3553, 1.0
      %vm3698 = vcmp.ge.f32.partialorder %v3554, 1.0
      %vm3699 = vcmp.ge.f32.partialorder %v3555, 1.0
      %vm3700 = vcmp.ge.f32.partialorder %v3556, 1.0
      %vm3701 = vcmp.ge.f32.partialorder %v3557, 1.0
      %vm3702 = vcmp.ge.f32.partialorder %v3558, 1.0
      %vm3703 = vcmp.ge.f32.partialorder %v3559, 1.0
      %vm3704 = vcmp.ge.f32.partialorder %v3560, 1.0
      %vm3705 = vcmp.ge.f32.partialorder %v3561, 1.0
      %vm3706 = vcmp.ge.f32.partialorder %v3562, 1.0
      %vm3707 = vcmp.ge.f32.partialorder %v3563, 1.0
      %vm3708 = vcmp.ge.f32.partialorder %v3564, 1.0
      %vm3709 = vcmp.ge.f32.partialorder %v3565, 1.0
      %vm3710 = vcmp.ge.f32.partialorder %v3566, 1.0
      %vm3711 = vcmp.ge.f32.partialorder %v3567, 1.0
      %vm3712 = vcmp.ge.f32.partialorder %v3568, 1.0
      %vm3713 = vcmp.ge.f32.partialorder %v3569, 1.0
      %vm3714 = vcmp.ge.f32.partialorder %v3570, 1.0
      %vm3715 = vcmp.ge.f32.partialorder %v3571, 1.0
      %vm3716 = vcmp.ge.f32.partialorder %v3572, 1.0
      %vm3717 = vcmp.ge.f32.partialorder %v3573, 1.0
      %vm3718 = vcmp.ge.f32.partialorder %v3574, 1.0
      %vm3719 = vcmp.ge.f32.partialorder %v3575, 1.0
      %vm3720 = vcmp.ge.f32.partialorder %v3576, 1.0
      %vm3721 = vcmp.ge.f32.partialorder %v3577, 1.0
      %vm3722 = vcmp.ge.f32.partialorder %v3578, 1.0
      %vm3723 = vcmp.ge.f32.partialorder %v3579, 1.0
      %vm3724 = vcmp.ge.f32.partialorder %v3580, 1.0
      %vm3725 = vcmp.ge.f32.partialorder %v3581, 1.0
      %vm3726 = vcmp.ge.f32.partialorder %v3582, 1.0
      %vm3727 = vcmp.ge.f32.partialorder %v3583, 1.0
      %vm3728 = vcmp.ge.f32.partialorder %v3584, 1.0
      %vm3729 = vcmp.ge.f32.partialorder %v3585, 1.0
      %vm3730 = vcmp.ge.f32.partialorder %v3586, 1.0
      %vm3731 = vcmp.ge.f32.partialorder %v3587, 1.0
      %vm3732 = vcmp.ge.f32.partialorder %v3588, 1.0
      %vm3733 = vcmp.ge.f32.partialorder %v3589, 1.0
      %vm3734 = vcmp.ge.f32.partialorder %v3590, 1.0
      %vm3735 = vcmp.ge.f32.partialorder %v3591, 1.0
      %vm3736 = vcmp.ge.f32.partialorder %v3592, 1.0
      %vm3737 = vcmp.ge.f32.partialorder %v3593, 1.0
      %vm3738 = vcmp.ge.f32.partialorder %v3594, 1.0
      %vm3739 = vcmp.ge.f32.partialorder %v3595, 1.0
      %vm3740 = vcmp.ge.f32.partialorder %v3596, 1.0
      %vm3741 = vcmp.ge.f32.partialorder %v3597, 1.0
      %vm3742 = vcmp.ge.f32.partialorder %v3598, 1.0
      %vm3743 = vcmp.ge.f32.partialorder %v3599, 1.0
      %vm3744 = vcmp.ge.f32.partialorder %v3600, 1.0
      %vm3745 = vcmp.ge.f32.partialorder %v3601, 1.0
      %vm3746 = vcmp.ge.f32.partialorder %v3602, 1.0
      %vm3747 = vcmp.ge.f32.partialorder %v3603, 1.0
      %vm3748 = vcmp.ge.f32.partialorder %v3604, 1.0
      %vm3749 = vcmp.ge.f32.partialorder %v3605, 1.0
      %vm3750 = vcmp.ge.f32.partialorder %v3606, 1.0
      %vm3751 = vcmp.ge.f32.partialorder %v3607, 1.0
      %vm3752 = vcmp.ge.f32.partialorder %v3608, 1.0
      %vm3753 = vcmp.ge.f32.partialorder %v3609, 1.0
      %vm3754 = vcmp.ge.f32.partialorder %v3610, 1.0
      %vm3755 = vcmp.ge.f32.partialorder %v3611, 1.0
      %vm3756 = vcmp.ge.f32.partialorder %v3612, 1.0
      %vm3757 = vcmp.ge.f32.partialorder %v3613, 1.0
      %vm3758 = vcmp.ge.f32.partialorder %v3614, 1.0
      %vm3759 = vcmp.ge.f32.partialorder %v3615, 1.0
      %vm3760 = vcmp.ge.f32.partialorder %v3616, 1.0
      %vm3761 = vcmp.ge.f32.partialorder %v3617, 1.0
      %vm3762 = vcmp.ge.f32.partialorder %v3618, 1.0
      %vm3763 = vcmp.ge.f32.partialorder %v3619, 1.0
      %vm3764 = vcmp.ge.f32.partialorder %v3620, 1.0
      %vm3765 = vcmp.ge.f32.partialorder %v3621, 1.0
      %vm3766 = vcmp.ge.f32.partialorder %v3622, 1.0
      %vm3767 = vcmp.ge.f32.partialorder %v3623, 1.0
      %vm3768 = vcmp.ge.f32.partialorder %v3624, 1.0
      %vm3769 = vcmp.ge.f32.partialorder %v3625, 1.0
      %vm3770 = vcmp.ge.f32.partialorder %v3626, 1.0
      %vm3771 = vcmp.ge.f32.partialorder %v3627, 1.0
      %vm3772 = vcmp.ge.f32.partialorder %v3628, 1.0
      %vm3773 = vcmp.ge.f32.partialorder %v3629, 1.0
      %v3774 = vsel %vm3630, 1, 0
      %v3775 = vsel %vm3631, 1, 0
      %v3776 = vsel %vm3632, 1, 0
      %v3777 = vsel %vm3633, 1, 0
      %v3778 = vsel %vm3634, 1, 0
      %v3779 = vsel %vm3635, 1, 0
      %v3780 = vsel %vm3636, 1, 0
      %v3781 = vsel %vm3637, 1, 0
      %v3782 = vsel %vm3638, 1, 0
      %v3783 = vsel %vm3639, 1, 0
      %v3784 = vsel %vm3640, 1, 0
      %v3785 = vsel %vm3641, 1, 0
      %v3786 = vsel %vm3642, 1, 0
      %v3787 = vsel %vm3643, 1, 0
      %v3788 = vsel %vm3644, 1, 0
      %v3789 = vsel %vm3645, 1, 0
      %v3790 = vsel %vm3646, 1, 0
      %v3791 = vsel %vm3647, 1, 0
      %v3792 = vsel %vm3648, 1, 0
      %v3793 = vsel %vm3649, 1, 0
      %v3794 = vsel %vm3650, 1, 0
      %v3795 = vsel %vm3651, 1, 0
      %v3796 = vsel %vm3652, 1, 0
      %v3797 = vsel %vm3653, 1, 0
      %v3798 = vsel %vm3654, 1, 0
      %v3799 = vsel %vm3655, 1, 0
      %v3800 = vsel %vm3656, 1, 0
      %v3801 = vsel %vm3657, 1, 0
      %v3802 = vsel %vm3658, 1, 0
      %v3803 = vsel %vm3659, 1, 0
      %v3804 = vsel %vm3660, 1, 0
      %v3805 = vsel %vm3661, 1, 0
      %v3806 = vsel %vm3662, 1, 0
      %v3807 = vsel %vm3663, 1, 0
      %v3808 = vsel %vm3664, 1, 0
      %v3809 = vsel %vm3665, 1, 0
      %v3810 = vsel %vm3666, 1, 0
      %v3811 = vsel %vm3667, 1, 0
      %v3812 = vsel %vm3668, 1, 0
      %v3813 = vsel %vm3669, 1, 0
      %v3814 = vsel %vm3670, 1, 0
      %v3815 = vsel %vm3671, 1, 0
      %v3816 = vsel %vm3672, 1, 0
      %v3817 = vsel %vm3673, 1, 0
      %v3818 = vsel %vm3674, 1, 0
      %v3819 = vsel %vm3675, 1, 0
      %v3820 = vsel %vm3676, 1, 0
      %v3821 = vsel %vm3677, 1, 0
      %v3822 = vsel %vm3678, 1, 0
      %v3823 = vsel %vm3679, 1, 0
      %v3824 = vsel %vm3680, 1, 0
      %v3825 = vsel %vm3681, 1, 0
      %v3826 = vsel %vm3682, 1, 0
      %v3827 = vsel %vm3683, 1, 0
      %v3828 = vsel %vm3684, 1, 0
      %v3829 = vsel %vm3685, 1, 0
      %v3830 = vsel %vm3686, 1, 0
      %v3831 = vsel %vm3687, 1, 0
      %v3832 = vsel %vm3688, 1, 0
      %v3833 = vsel %vm3689, 1, 0
      %v3834 = vsel %vm3690, 1, 0
      %v3835 = vsel %vm3691, 1, 0
      %v3836 = vsel %vm3692, 1, 0
      %v3837 = vsel %vm3693, 1, 0
      %v3838 = vsel %vm3694, 1, 0
      %v3839 = vsel %vm3695, 1, 0
      %v3840 = vsel %vm3696, 1, 0
      %v3841 = vsel %vm3697, 1, 0
      %v3842 = vsel %vm3698, 1, 0
      %v3843 = vsel %vm3699, 1, 0
      %v3844 = vsel %vm3700, 1, 0
      %v3845 = vsel %vm3701, 1, 0
      %v3846 = vsel %vm3702, 1, 0
      %v3847 = vsel %vm3703, 1, 0
      %v3848 = vsel %vm3704, 1, 0
      %v3849 = vsel %vm3705, 1, 0
      %v3850 = vsel %vm3706, 1, 0
      %v3851 = vsel %vm3707, 1, 0
      %v3852 = vsel %vm3708, 1, 0
      %v3853 = vsel %vm3709, 1, 0
      %v3854 = vsel %vm3710, 1, 0
      %v3855 = vsel %vm3711, 1, 0
      %v3856 = vsel %vm3712, 1, 0
      %v3857 = vsel %vm3713, 1, 0
      %v3858 = vsel %vm3714, 1, 0
      %v3859 = vsel %vm3715, 1, 0
      %v3860 = vsel %vm3716, 1, 0
      %v3861 = vsel %vm3717, 1, 0
      %v3862 = vsel %vm3718, 1, 0
      %v3863 = vsel %vm3719, 1, 0
      %v3864 = vsel %vm3720, 1, 0
      %v3865 = vsel %vm3721, 1, 0
      %v3866 = vsel %vm3722, 1, 0
      %v3867 = vsel %vm3723, 1, 0
      %v3868 = vsel %vm3724, 1, 0
      %v3869 = vsel %vm3725, 1, 0
      %v3870 = vsel %vm3726, 1, 0
      %v3871 = vsel %vm3727, 1, 0
      %v3872 = vsel %vm3728, 1, 0
      %v3873 = vsel %vm3729, 1, 0
      %v3874 = vsel %vm3730, 1, 0
      %v3875 = vsel %vm3731, 1, 0
      %v3876 = vsel %vm3732, 1, 0
      %v3877 = vsel %vm3733, 1, 0
      %v3878 = vsel %vm3734, 1, 0
      %v3879 = vsel %vm3735, 1, 0
      %v3880 = vsel %vm3736, 1, 0
      %v3881 = vsel %vm3737, 1, 0
      %v3882 = vsel %vm3738, 1, 0
      %v3883 = vsel %vm3739, 1, 0
      %v3884 = vsel %vm3740, 1, 0
      %v3885 = vsel %vm3741, 1, 0
      %v3886 = vsel %vm3742, 1, 0
      %v3887 = vsel %vm3743, 1, 0
      %v3888 = vsel %vm3744, 1, 0
      %v3889 = vsel %vm3745, 1, 0
      %v3890 = vsel %vm3746, 1, 0
      %v3891 = vsel %vm3747, 1, 0
      %v3892 = vsel %vm3748, 1, 0
      %v3893 = vsel %vm3749, 1, 0
      %v3894 = vsel %vm3750, 1, 0
      %v3895 = vsel %vm3751, 1, 0
      %v3896 = vsel %vm3752, 1, 0
      %v3897 = vsel %vm3753, 1, 0
      %v3898 = vsel %vm3754, 1, 0
      %v3899 = vsel %vm3755, 1, 0
      %v3900 = vsel %vm3756, 1, 0
      %v3901 = vsel %vm3757, 1, 0
      %v3902 = vsel %vm3758, 1, 0
      %v3903 = vsel %vm3759, 1, 0
      %v3904 = vsel %vm3760, 1, 0
      %v3905 = vsel %vm3761, 1, 0
      %v3906 = vsel %vm3762, 1, 0
      %v3907 = vsel %vm3763, 1, 0
      %v3908 = vsel %vm3764, 1, 0
      %v3909 = vsel %vm3765, 1, 0
      %v3910 = vsel %vm3766, 1, 0
      %v3911 = vsel %vm3767, 1, 0
      %v3912 = vsel %vm3768, 1, 0
      %v3913 = vsel %vm3769, 1, 0
      %v3914 = vsel %vm3770, 1, 0
      %v3915 = vsel %vm3771, 1, 0
      %v3916 = vsel %vm3772, 1, 0
      %v3917 = vsel %vm3773, 1, 0
      %v3918 = vcvt.s32.f32 %v3774
      %v3919 = vcvt.s32.f32 %v3775
      %v3920 = vcvt.s32.f32 %v3776
      %v3921 = vcvt.s32.f32 %v3777
      %v3922 = vcvt.s32.f32 %v3778
      %v3923 = vcvt.s32.f32 %v3779
      %v3924 = vcvt.s32.f32 %v3780
      %v3925 = vcvt.s32.f32 %v3781
      %v3926 = vcvt.s32.f32 %v3782
      %v3927 = vcvt.s32.f32 %v3783
      %v3928 = vcvt.s32.f32 %v3784
      %v3929 = vcvt.s32.f32 %v3785
      %v3930 = vcvt.s32.f32 %v3786
      %v3931 = vcvt.s32.f32 %v3787
      %v3932 = vcvt.s32.f32 %v3788
      %v3933 = vcvt.s32.f32 %v3789
      %v3934 = vcvt.s32.f32 %v3790
      %v3935 = vcvt.s32.f32 %v3791
      %v3936 = vcvt.s32.f32 %v3792
      %v3937 = vcvt.s32.f32 %v3793
      %v3938 = vcvt.s32.f32 %v3794
      %v3939 = vcvt.s32.f32 %v3795
      %v3940 = vcvt.s32.f32 %v3796
      %v3941 = vcvt.s32.f32 %v3797
      %v3942 = vcvt.s32.f32 %v3798
      %v3943 = vcvt.s32.f32 %v3799
      %v3944 = vcvt.s32.f32 %v3800
      %v3945 = vcvt.s32.f32 %v3801
      %v3946 = vcvt.s32.f32 %v3802
      %v3947 = vcvt.s32.f32 %v3803
      %v3948 = vcvt.s32.f32 %v3804
      %v3949 = vcvt.s32.f32 %v3805
      %v3950 = vcvt.s32.f32 %v3806
      %v3951 = vcvt.s32.f32 %v3807
      %v3952 = vcvt.s32.f32 %v3808
      %v3953 = vcvt.s32.f32 %v3809
      %v3954 = vcvt.s32.f32 %v3810
      %v3955 = vcvt.s32.f32 %v3811
      %v3956 = vcvt.s32.f32 %v3812
      %v3957 = vcvt.s32.f32 %v3813
      %v3958 = vcvt.s32.f32 %v3814
      %v3959 = vcvt.s32.f32 %v3815
      %v3960 = vcvt.s32.f32 %v3816
      %v3961 = vcvt.s32.f32 %v3817
      %v3962 = vcvt.s32.f32 %v3818
      %v3963 = vcvt.s32.f32 %v3819
      %v3964 = vcvt.s32.f32 %v3820
      %v3965 = vcvt.s32.f32 %v3821
      %v3966 = vcvt.s32.f32 %v3822
      %v3967 = vcvt.s32.f32 %v3823
      %v3968 = vcvt.s32.f32 %v3824
      %v3969 = vcvt.s32.f32 %v3825
      %v3970 = vcvt.s32.f32 %v3826
      %v3971 = vcvt.s32.f32 %v3827
      %v3972 = vcvt.s32.f32 %v3828
      %v3973 = vcvt.s32.f32 %v3829
      %v3974 = vcvt.s32.f32 %v3830
      %v3975 = vcvt.s32.f32 %v3831
      %v3976 = vcvt.s32.f32 %v3832
      %v3977 = vcvt.s32.f32 %v3833
      %v3978 = vcvt.s32.f32 %v3834
      %v3979 = vcvt.s32.f32 %v3835
      %v3980 = vcvt.s32.f32 %v3836
      %v3981 = vcvt.s32.f32 %v3837
      %v3982 = vcvt.s32.f32 %v3838
      %v3983 = vcvt.s32.f32 %v3839
      %v3984 = vcvt.s32.f32 %v3840
      %v3985 = vcvt.s32.f32 %v3841
      %v3986 = vcvt.s32.f32 %v3842
      %v3987 = vcvt.s32.f32 %v3843
      %v3988 = vcvt.s32.f32 %v3844
      %v3989 = vcvt.s32.f32 %v3845
      %v3990 = vcvt.s32.f32 %v3846
      %v3991 = vcvt.s32.f32 %v3847
      %v3992 = vcvt.s32.f32 %v3848
      %v3993 = vcvt.s32.f32 %v3849
      %v3994 = vcvt.s32.f32 %v3850
      %v3995 = vcvt.s32.f32 %v3851
      %v3996 = vcvt.s32.f32 %v3852
      %v3997 = vcvt.s32.f32 %v3853
      %v3998 = vcvt.s32.f32 %v3854
      %v3999 = vcvt.s32.f32 %v3855
      %v4000 = vcvt.s32.f32 %v3856
      %v4001 = vcvt.s32.f32 %v3857
      %v4002 = vcvt.s32.f32 %v3858
      %v4003 = vcvt.s32.f32 %v3859
      %v4004 = vcvt.s32.f32 %v3860
      %v4005 = vcvt.s32.f32 %v3861
      %v4006 = vcvt.s32.f32 %v3862
      %v4007 = vcvt.s32.f32 %v3863
      %v4008 = vcvt.s32.f32 %v3864
      %v4009 = vcvt.s32.f32 %v3865
      %v4010 = vcvt.s32.f32 %v3866
      %v4011 = vcvt.s32.f32 %v3867
      %v4012 = vcvt.s32.f32 %v3868
      %v4013 = vcvt.s32.f32 %v3869
      %v4014 = vcvt.s32.f32 %v3870
      %v4015 = vcvt.s32.f32 %v3871
      %v4016 = vcvt.s32.f32 %v3872
      %v4017 = vcvt.s32.f32 %v3873
      %v4018 = vcvt.s32.f32 %v3874
      %v4019 = vcvt.s32.f32 %v3875
      %v4020 = vcvt.s32.f32 %v3876
      %v4021 = vcvt.s32.f32 %v3877
      %v4022 = vcvt.s32.f32 %v3878
      %v4023 = vcvt.s32.f32 %v3879
      %v4024 = vcvt.s32.f32 %v3880
      %v4025 = vcvt.s32.f32 %v3881
      %v4026 = vcvt.s32.f32 %v3882
      %v4027 = vcvt.s32.f32 %v3883
      %v4028 = vcvt.s32.f32 %v3884
      %v4029 = vcvt.s32.f32 %v3885
      %v4030 = vcvt.s32.f32 %v3886
      %v4031 = vcvt.s32.f32 %v3887
      %v4032 = vcvt.s32.f32 %v3888
      %v4033 = vcvt.s32.f32 %v3889
      %v4034 = vcvt.s32.f32 %v3890
      %v4035 = vcvt.s32.f32 %v3891
      %v4036 = vcvt.s32.f32 %v3892
      %v4037 = vcvt.s32.f32 %v3893
      %v4038 = vcvt.s32.f32 %v3894
      %v4039 = vcvt.s32.f32 %v3895
      %v4040 = vcvt.s32.f32 %v3896
      %v4041 = vcvt.s32.f32 %v3897
      %v4042 = vcvt.s32.f32 %v3898
      %v4043 = vcvt.s32.f32 %v3899
      %v4044 = vcvt.s32.f32 %v3900
      %v4045 = vcvt.s32.f32 %v3901
      %v4046 = vcvt.s32.f32 %v3902
      %v4047 = vcvt.s32.f32 %v3903
      %v4048 = vcvt.s32.f32 %v3904
      %v4049 = vcvt.s32.f32 %v3905
      %v4050 = vcvt.s32.f32 %v3906
      %v4051 = vcvt.s32.f32 %v3907
      %v4052 = vcvt.s32.f32 %v3908
      %v4053 = vcvt.s32.f32 %v3909
      %v4054 = vcvt.s32.f32 %v3910
      %v4055 = vcvt.s32.f32 %v3911
      %v4056 = vcvt.s32.f32 %v3912
      %v4057 = vcvt.s32.f32 %v3913
      %v4058 = vcvt.s32.f32 %v3914
      %v4059 = vcvt.s32.f32 %v3915
      %v4060 = vcvt.s32.f32 %v3916
      %v4061 = vcvt.s32.f32 %v3917
      %v4062 = vpack.c.bf16 %v3919, %v3918
      %v4063 = vpack.c.bf16 %v3921, %v3920
      %v4064 = vpack.c.bf16 %v3923, %v3922
      %v4065 = vpack.c.bf16 %v3925, %v3924
      %v4066 = vpack.c.bf16 %v3927, %v3926
      %v4067 = vpack.c.bf16 %v3929, %v3928
      %v4068 = vpack.c.bf16 %v3931, %v3930
      %v4069 = vpack.c.bf16 %v3933, %v3932
      %v4070 = vpack.c.bf16 %v3935, %v3934
      %v4071 = vpack.c.bf16 %v3937, %v3936
      %v4072 = vpack.c.bf16 %v3939, %v3938
      %v4073 = vpack.c.bf16 %v3941, %v3940
      %v4074 = vpack.c.bf16 %v3943, %v3942
      %v4075 = vpack.c.bf16 %v3945, %v3944
      %v4076 = vpack.c.bf16 %v3947, %v3946
      %v4077 = vpack.c.bf16 %v3949, %v3948
      %v4078 = vpack.c.bf16 %v3951, %v3950
      %v4079 = vpack.c.bf16 %v3953, %v3952
      %v4080 = vpack.c.bf16 %v3955, %v3954
      %v4081 = vpack.c.bf16 %v3957, %v3956
      %v4082 = vpack.c.bf16 %v3959, %v3958
      %v4083 = vpack.c.bf16 %v3961, %v3960
      %v4084 = vpack.c.bf16 %v3963, %v3962
      %v4085 = vpack.c.bf16 %v3965, %v3964
      %v4086 = vpack.c.bf16 %v3967, %v3966
      %v4087 = vpack.c.bf16 %v3969, %v3968
      %v4088 = vpack.c.bf16 %v3971, %v3970
      %v4089 = vpack.c.bf16 %v3973, %v3972
      %v4090 = vpack.c.bf16 %v3975, %v3974
      %v4091 = vpack.c.bf16 %v3977, %v3976
      %v4092 = vpack.c.bf16 %v3979, %v3978
      %v4093 = vpack.c.bf16 %v3981, %v3980
      %v4094 = vpack.c.bf16 %v3983, %v3982
      %v4095 = vpack.c.bf16 %v3985, %v3984
      %v4096 = vpack.c.bf16 %v3987, %v3986
      %v4097 = vpack.c.bf16 %v3989, %v3988
      %v4098 = vpack.c.bf16 %v3991, %v3990
      %v4099 = vpack.c.bf16 %v3993, %v3992
      %v4100 = vpack.c.bf16 %v3995, %v3994
      %v4101 = vpack.c.bf16 %v3997, %v3996
      %v4102 = vpack.c.bf16 %v3999, %v3998
      %v4103 = vpack.c.bf16 %v4001, %v4000
      %v4104 = vpack.c.bf16 %v4003, %v4002
      %v4105 = vpack.c.bf16 %v4005, %v4004
      %v4106 = vpack.c.bf16 %v4007, %v4006
      %v4107 = vpack.c.bf16 %v4009, %v4008
      %v4108 = vpack.c.bf16 %v4011, %v4010
      %v4109 = vpack.c.bf16 %v4013, %v4012
      %v4110 = vpack.c.bf16 %v4015, %v4014
      %v4111 = vpack.c.bf16 %v4017, %v4016
      %v4112 = vpack.c.bf16 %v4019, %v4018
      %v4113 = vpack.c.bf16 %v4021, %v4020
      %v4114 = vpack.c.bf16 %v4023, %v4022
      %v4115 = vpack.c.bf16 %v4025, %v4024
      %v4116 = vpack.c.bf16 %v4027, %v4026
      %v4117 = vpack.c.bf16 %v4029, %v4028
      %v4118 = vpack.c.bf16 %v4031, %v4030
      %v4119 = vpack.c.bf16 %v4033, %v4032
      %v4120 = vpack.c.bf16 %v4035, %v4034
      %v4121 = vpack.c.bf16 %v4037, %v4036
      %v4122 = vpack.c.bf16 %v4039, %v4038
      %v4123 = vpack.c.bf16 %v4041, %v4040
      %v4124 = vpack.c.bf16 %v4043, %v4042
      %v4125 = vpack.c.bf16 %v4045, %v4044
      %v4126 = vpack.c.bf16 %v4047, %v4046
      %v4127 = vpack.c.bf16 %v4049, %v4048
      %v4128 = vpack.c.bf16 %v4051, %v4050
      %v4129 = vpack.c.bf16 %v4053, %v4052
      %v4130 = vpack.c.bf16 %v4055, %v4054
      %v4131 = vpack.c.bf16 %v4057, %v4056
      %v4132 = vpack.c.bf16 %v4059, %v4058
      %v4133 = vpack.c.bf16 %v4061, %v4060
      %v4206 = vunpack.c.l.b16 %v4062
      %v4207 = vunpack.c.h.b16 %v4062
      %v4208 = vunpack.c.l.b16 %v4063
      %v4209 = vunpack.c.h.b16 %v4063
      %v4210 = vunpack.c.l.b16 %v4064
      %v4211 = vunpack.c.h.b16 %v4064
      %v4212 = vunpack.c.l.b16 %v4065
      %v4213 = vunpack.c.h.b16 %v4065
      %v4214 = vunpack.c.l.b16 %v4066
      %v4215 = vunpack.c.h.b16 %v4066
      %v4216 = vunpack.c.l.b16 %v4067
      %v4217 = vunpack.c.h.b16 %v4067
      %v4218 = vunpack.c.l.b16 %v4068
      %v4219 = vunpack.c.h.b16 %v4068
      %v4220 = vunpack.c.l.b16 %v4069
      %v4221 = vunpack.c.h.b16 %v4069
      %v4222 = vunpack.c.l.b16 %v4070
      %v4223 = vunpack.c.h.b16 %v4070
      %v4224 = vunpack.c.l.b16 %v4071
      %v4225 = vunpack.c.h.b16 %v4071
      %v4226 = vunpack.c.l.b16 %v4072
      %v4227 = vunpack.c.h.b16 %v4072
      %v4228 = vunpack.c.l.b16 %v4073
      %v4229 = vunpack.c.h.b16 %v4073
      %v4230 = vunpack.c.l.b16 %v4074
      %v4231 = vunpack.c.h.b16 %v4074
      %v4232 = vunpack.c.l.b16 %v4075
      %v4233 = vunpack.c.h.b16 %v4075
      %v4234 = vunpack.c.l.b16 %v4076
      %v4235 = vunpack.c.h.b16 %v4076
      %v4236 = vunpack.c.l.b16 %v4077
      %v4237 = vunpack.c.h.b16 %v4077
      %v4238 = vunpack.c.l.b16 %v4078
      %v4239 = vunpack.c.h.b16 %v4078
      %v4240 = vunpack.c.l.b16 %v4079
      %v4241 = vunpack.c.h.b16 %v4079
      %v4242 = vunpack.c.l.b16 %v4080
      %v4243 = vunpack.c.h.b16 %v4080
      %v4244 = vunpack.c.l.b16 %v4081
      %v4245 = vunpack.c.h.b16 %v4081
      %v4246 = vunpack.c.l.b16 %v4082
      %v4247 = vunpack.c.h.b16 %v4082
      %v4248 = vunpack.c.l.b16 %v4083
      %v4249 = vunpack.c.h.b16 %v4083
      %v4250 = vunpack.c.l.b16 %v4084
      %v4251 = vunpack.c.h.b16 %v4084
      %v4252 = vunpack.c.l.b16 %v4085
      %v4253 = vunpack.c.h.b16 %v4085
      %v4254 = vunpack.c.l.b16 %v4086
      %v4255 = vunpack.c.h.b16 %v4086
      %v4256 = vunpack.c.l.b16 %v4087
      %v4257 = vunpack.c.h.b16 %v4087
      %v4258 = vunpack.c.l.b16 %v4088
      %v4259 = vunpack.c.h.b16 %v4088
      %v4260 = vunpack.c.l.b16 %v4089
      %v4261 = vunpack.c.h.b16 %v4089
      %v4262 = vunpack.c.l.b16 %v4090
      %v4263 = vunpack.c.h.b16 %v4090
      %v4264 = vunpack.c.l.b16 %v4091
      %v4265 = vunpack.c.h.b16 %v4091
      %v4266 = vunpack.c.l.b16 %v4092
      %v4267 = vunpack.c.h.b16 %v4092
      %v4268 = vunpack.c.l.b16 %v4093
      %v4269 = vunpack.c.h.b16 %v4093
      %v4270 = vunpack.c.l.b16 %v4094
      %v4271 = vunpack.c.h.b16 %v4094
      %v4272 = vunpack.c.l.b16 %v4095
      %v4273 = vunpack.c.h.b16 %v4095
      %v4274 = vunpack.c.l.b16 %v4096
      %v4275 = vunpack.c.h.b16 %v4096
      %v4276 = vunpack.c.l.b16 %v4097
      %v4277 = vunpack.c.h.b16 %v4097
      %v4278 = vunpack.c.l.b16 %v4098
      %v4279 = vunpack.c.h.b16 %v4098
      %v4280 = vunpack.c.l.b16 %v4099
      %v4281 = vunpack.c.h.b16 %v4099
      %v4282 = vunpack.c.l.b16 %v4100
      %v4283 = vunpack.c.h.b16 %v4100
      %v4284 = vunpack.c.l.b16 %v4101
      %v4285 = vunpack.c.h.b16 %v4101
      %v4286 = vunpack.c.l.b16 %v4102
      %v4287 = vunpack.c.h.b16 %v4102
      %v4288 = vunpack.c.l.b16 %v4103
      %v4289 = vunpack.c.h.b16 %v4103
      %v4290 = vunpack.c.l.b16 %v4104
      %v4291 = vunpack.c.h.b16 %v4104
      %v4292 = vunpack.c.l.b16 %v4105
      %v4293 = vunpack.c.h.b16 %v4105
      %v4294 = vunpack.c.l.b16 %v4106
      %v4295 = vunpack.c.h.b16 %v4106
      %v4296 = vunpack.c.l.b16 %v4107
      %v4297 = vunpack.c.h.b16 %v4107
      %v4298 = vunpack.c.l.b16 %v4108
      %v4299 = vunpack.c.h.b16 %v4108
      %v4300 = vunpack.c.l.b16 %v4109
      %v4301 = vunpack.c.h.b16 %v4109
      %v4302 = vunpack.c.l.b16 %v4110
      %v4303 = vunpack.c.h.b16 %v4110
      %v4304 = vunpack.c.l.b16 %v4111
      %v4305 = vunpack.c.h.b16 %v4111
      %v4306 = vunpack.c.l.b16 %v4112
      %v4307 = vunpack.c.h.b16 %v4112
      %v4308 = vunpack.c.l.b16 %v4113
      %v4309 = vunpack.c.h.b16 %v4113
      %v4310 = vunpack.c.l.b16 %v4114
      %v4311 = vunpack.c.h.b16 %v4114
      %v4312 = vunpack.c.l.b16 %v4115
      %v4313 = vunpack.c.h.b16 %v4115
      %v4314 = vunpack.c.l.b16 %v4116
      %v4315 = vunpack.c.h.b16 %v4116
      %v4316 = vunpack.c.l.b16 %v4117
      %v4317 = vunpack.c.h.b16 %v4117
      %v4318 = vunpack.c.l.b16 %v4118
      %v4319 = vunpack.c.h.b16 %v4118
      %v4320 = vunpack.c.l.b16 %v4119
      %v4321 = vunpack.c.h.b16 %v4119
      %v4322 = vunpack.c.l.b16 %v4120
      %v4323 = vunpack.c.h.b16 %v4120
      %v4324 = vunpack.c.l.b16 %v4121
      %v4325 = vunpack.c.h.b16 %v4121
      %v4326 = vunpack.c.l.b16 %v4122
      %v4327 = vunpack.c.h.b16 %v4122
      %v4328 = vunpack.c.l.b16 %v4123
      %v4329 = vunpack.c.h.b16 %v4123
      %v4330 = vunpack.c.l.b16 %v4124
      %v4331 = vunpack.c.h.b16 %v4124
      %v4332 = vunpack.c.l.b16 %v4125
      %v4333 = vunpack.c.h.b16 %v4125
      %v4334 = vunpack.c.l.b16 %v4126
      %v4335 = vunpack.c.h.b16 %v4126
      %v4336 = vunpack.c.l.b16 %v4127
      %v4337 = vunpack.c.h.b16 %v4127
      %v4338 = vunpack.c.l.b16 %v4128
      %v4339 = vunpack.c.h.b16 %v4128
      %v4340 = vunpack.c.l.b16 %v4129
      %v4341 = vunpack.c.h.b16 %v4129
      %v4342 = vunpack.c.l.b16 %v4130
      %v4343 = vunpack.c.h.b16 %v4130
      %v4344 = vunpack.c.l.b16 %v4131
      %v4345 = vunpack.c.h.b16 %v4131
      %v4346 = vunpack.c.l.b16 %v4132
      %v4347 = vunpack.c.h.b16 %v4132
      %v4348 = vunpack.c.l.b16 %v4133
      %v4349 = vunpack.c.h.b16 %v4133
      %v4350 = vpack.c.b16 %v4206, %v4206
      %v4351 = vpack.c.b16 %v4207, %v4207
      %v4352 = vpack.c.b16 %v4208, %v4208
      %v4353 = vpack.c.b16 %v4209, %v4209
      %v4354 = vpack.c.b16 %v4210, %v4210
      %v4355 = vpack.c.b16 %v4211, %v4211
      %v4356 = vpack.c.b16 %v4212, %v4212
      %v4357 = vpack.c.b16 %v4213, %v4213
      %v4358 = vpack.c.b16 %v4214, %v4214
      %v4359 = vpack.c.b16 %v4215, %v4215
      %v4360 = vpack.c.b16 %v4216, %v4216
      %v4361 = vpack.c.b16 %v4217, %v4217
      %v4362 = vpack.c.b16 %v4218, %v4218
      %v4363 = vpack.c.b16 %v4219, %v4219
      %v4364 = vpack.c.b16 %v4220, %v4220
      %v4365 = vpack.c.b16 %v4221, %v4221
      %v4366 = vpack.c.b16 %v4222, %v4222
      %v4367 = vpack.c.b16 %v4223, %v4223
      %v4368 = vpack.c.b16 %v4224, %v4224
      %v4369 = vpack.c.b16 %v4225, %v4225
      %v4370 = vpack.c.b16 %v4226, %v4226
      %v4371 = vpack.c.b16 %v4227, %v4227
      %v4372 = vpack.c.b16 %v4228, %v4228
      %v4373 = vpack.c.b16 %v4229, %v4229
      %v4374 = vpack.c.b16 %v4230, %v4230
      %v4375 = vpack.c.b16 %v4231, %v4231
      %v4376 = vpack.c.b16 %v4232, %v4232
      %v4377 = vpack.c.b16 %v4233, %v4233
      %v4378 = vpack.c.b16 %v4234, %v4234
      %v4379 = vpack.c.b16 %v4235, %v4235
      %v4380 = vpack.c.b16 %v4236, %v4236
      %v4381 = vpack.c.b16 %v4237, %v4237
      %v4382 = vpack.c.b16 %v4238, %v4238
      %v4383 = vpack.c.b16 %v4239, %v4239
      %v4384 = vpack.c.b16 %v4240, %v4240
      %v4385 = vpack.c.b16 %v4241, %v4241
      %v4386 = vpack.c.b16 %v4242, %v4242
      %v4387 = vpack.c.b16 %v4243, %v4243
      %v4388 = vpack.c.b16 %v4244, %v4244
      %v4389 = vpack.c.b16 %v4245, %v4245
      %v4390 = vpack.c.b16 %v4246, %v4246
      %v4391 = vpack.c.b16 %v4247, %v4247
      %v4392 = vpack.c.b16 %v4248, %v4248
      %v4393 = vpack.c.b16 %v4249, %v4249
      %v4394 = vpack.c.b16 %v4250, %v4250
      %v4395 = vpack.c.b16 %v4251, %v4251
      %v4396 = vpack.c.b16 %v4252, %v4252
      %v4397 = vpack.c.b16 %v4253, %v4253
      %v4398 = vpack.c.b16 %v4254, %v4254
      %v4399 = vpack.c.b16 %v4255, %v4255
      %v4400 = vpack.c.b16 %v4256, %v4256
      %v4401 = vpack.c.b16 %v4257, %v4257
      %v4402 = vpack.c.b16 %v4258, %v4258
      %v4403 = vpack.c.b16 %v4259, %v4259
      %v4404 = vpack.c.b16 %v4260, %v4260
      %v4405 = vpack.c.b16 %v4261, %v4261
      %v4406 = vpack.c.b16 %v4262, %v4262
      %v4407 = vpack.c.b16 %v4263, %v4263
      %v4408 = vpack.c.b16 %v4264, %v4264
      %v4409 = vpack.c.b16 %v4265, %v4265
      %v4410 = vpack.c.b16 %v4266, %v4266
      %v4411 = vpack.c.b16 %v4267, %v4267
      %v4412 = vpack.c.b16 %v4268, %v4268
      %v4413 = vpack.c.b16 %v4269, %v4269
      %v4414 = vpack.c.b16 %v4270, %v4270
      %v4415 = vpack.c.b16 %v4271, %v4271
      %v4416 = vpack.c.b16 %v4272, %v4272
      %v4417 = vpack.c.b16 %v4273, %v4273
      %v4418 = vpack.c.b16 %v4274, %v4274
      %v4419 = vpack.c.b16 %v4275, %v4275
      %v4420 = vpack.c.b16 %v4276, %v4276
      %v4421 = vpack.c.b16 %v4277, %v4277
      %v4422 = vpack.c.b16 %v4278, %v4278
      %v4423 = vpack.c.b16 %v4279, %v4279
      %v4424 = vpack.c.b16 %v4280, %v4280
      %v4425 = vpack.c.b16 %v4281, %v4281
      %v4426 = vpack.c.b16 %v4282, %v4282
      %v4427 = vpack.c.b16 %v4283, %v4283
      %v4428 = vpack.c.b16 %v4284, %v4284
      %v4429 = vpack.c.b16 %v4285, %v4285
      %v4430 = vpack.c.b16 %v4286, %v4286
      %v4431 = vpack.c.b16 %v4287, %v4287
      %v4432 = vpack.c.b16 %v4288, %v4288
      %v4433 = vpack.c.b16 %v4289, %v4289
      %v4434 = vpack.c.b16 %v4290, %v4290
      %v4435 = vpack.c.b16 %v4291, %v4291
      %v4436 = vpack.c.b16 %v4292, %v4292
      %v4437 = vpack.c.b16 %v4293, %v4293
      %v4438 = vpack.c.b16 %v4294, %v4294
      %v4439 = vpack.c.b16 %v4295, %v4295
      %v4440 = vpack.c.b16 %v4296, %v4296
      %v4441 = vpack.c.b16 %v4297, %v4297
      %v4442 = vpack.c.b16 %v4298, %v4298
      %v4443 = vpack.c.b16 %v4299, %v4299
      %v4444 = vpack.c.b16 %v4300, %v4300
      %v4445 = vpack.c.b16 %v4301, %v4301
      %v4446 = vpack.c.b16 %v4302, %v4302
      %v4447 = vpack.c.b16 %v4303, %v4303
      %v4448 = vpack.c.b16 %v4304, %v4304
      %v4449 = vpack.c.b16 %v4305, %v4305
      %v4450 = vpack.c.b16 %v4306, %v4306
      %v4451 = vpack.c.b16 %v4307, %v4307
      %v4452 = vpack.c.b16 %v4308, %v4308
      %v4453 = vpack.c.b16 %v4309, %v4309
      %v4454 = vpack.c.b16 %v4310, %v4310
      %v4455 = vpack.c.b16 %v4311, %v4311
      %v4456 = vpack.c.b16 %v4312, %v4312
      %v4457 = vpack.c.b16 %v4313, %v4313
      %v4458 = vpack.c.b16 %v4314, %v4314
      %v4459 = vpack.c.b16 %v4315, %v4315
      %v4460 = vpack.c.b16 %v4316, %v4316
      %v4461 = vpack.c.b16 %v4317, %v4317
      %v4462 = vpack.c.b16 %v4318, %v4318
      %v4463 = vpack.c.b16 %v4319, %v4319
      %v4464 = vpack.c.b16 %v4320, %v4320
      %v4465 = vpack.c.b16 %v4321, %v4321
      %v4466 = vpack.c.b16 %v4322, %v4322
      %v4467 = vpack.c.b16 %v4323, %v4323
      %v4468 = vpack.c.b16 %v4324, %v4324
      %v4469 = vpack.c.b16 %v4325, %v4325
      %v4470 = vpack.c.b16 %v4326, %v4326
      %v4471 = vpack.c.b16 %v4327, %v4327
      %v4472 = vpack.c.b16 %v4328, %v4328
      %v4473 = vpack.c.b16 %v4329, %v4329
      %v4474 = vpack.c.b16 %v4330, %v4330
      %v4475 = vpack.c.b16 %v4331, %v4331
      %v4476 = vpack.c.b16 %v4332, %v4332
      %v4477 = vpack.c.b16 %v4333, %v4333
      %v4478 = vpack.c.b16 %v4334, %v4334
      %v4479 = vpack.c.b16 %v4335, %v4335
      %v4480 = vpack.c.b16 %v4336, %v4336
      %v4481 = vpack.c.b16 %v4337, %v4337
      %v4482 = vpack.c.b16 %v4338, %v4338
      %v4483 = vpack.c.b16 %v4339, %v4339
      %v4484 = vpack.c.b16 %v4340, %v4340
      %v4485 = vpack.c.b16 %v4341, %v4341
      %v4486 = vpack.c.b16 %v4342, %v4342
      %v4487 = vpack.c.b16 %v4343, %v4343
      %v4488 = vpack.c.b16 %v4344, %v4344
      %v4489 = vpack.c.b16 %v4345, %v4345
      %v4490 = vpack.c.b16 %v4346, %v4346
      %v4491 = vpack.c.b16 %v4347, %v4347
      %v4492 = vpack.c.b16 %v4348, %v4348
      %v4493 = vpack.c.b16 %v4349, %v4349
      %vm4638 = vcmask 257024
      %4639 = vst.msk [vmem:[%s224] sm:$0xf] %vm4638, %v4350
      %4640 = vst.msk [vmem:[%s224 + $0x4] sm:$0xf] %vm4638, %v4351
      %4641 = vst.msk [vmem:[%s224 + $0x8] sm:$0xf] %vm4638, %v4352
      %4642 = vst.msk [vmem:[%s224 + $0xc] sm:$0xf] %vm4638, %v4353
      %4643 = vst.msk [vmem:[%s224 + $0x10] sm:$0xf] %vm4638, %v4354
      %4644 = vst.msk [vmem:[%s224 + $0x14] sm:$0xf] %vm4638, %v4355
      %4645 = vst.msk [vmem:[%s224 + $0x18] sm:$0xf] %vm4638, %v4356
      %4646 = vst.msk [vmem:[%s224 + $0x1c] sm:$0xf] %vm4638, %v4357
      %4647 = vst.msk [vmem:[%s224 + $0x20] sm:$0xf] %vm4638, %v4358
      %4648 = vst.msk [vmem:[%s224 + $0x24] sm:$0xf] %vm4638, %v4359
      %4649 = vst.msk [vmem:[%s224 + $0x28] sm:$0xf] %vm4638, %v4360
      %4650 = vst.msk [vmem:[%s224 + $0x2c] sm:$0xf] %vm4638, %v4361
      %4651 = vst.msk [vmem:[%s224 + $0x30] sm:$0xf] %vm4638, %v4362
      %4652 = vst.msk [vmem:[%s224 + $0x34] sm:$0xf] %vm4638, %v4363
      %4653 = vst.msk [vmem:[%s224 + $0x38] sm:$0xf] %vm4638, %v4364
      %4654 = vst.msk [vmem:[%s224 + $0x3c] sm:$0xf] %vm4638, %v4365
      %4655 = vst.msk [vmem:[%s224 + $0x40] sm:$0xf] %vm4638, %v4366
      %4656 = vst.msk [vmem:[%s224 + $0x44] sm:$0xf] %vm4638, %v4367
      %4657 = vst.msk [vmem:[%s224 + $0x48] sm:$0xf] %vm4638, %v4368
      %4658 = vst.msk [vmem:[%s224 + $0x4c] sm:$0xf] %vm4638, %v4369
      %4659 = vst.msk [vmem:[%s224 + $0x50] sm:$0xf] %vm4638, %v4370
      %4660 = vst.msk [vmem:[%s224 + $0x54] sm:$0xf] %vm4638, %v4371
      %4661 = vst.msk [vmem:[%s224 + $0x58] sm:$0xf] %vm4638, %v4372
      %4662 = vst.msk [vmem:[%s224 + $0x5c] sm:$0xf] %vm4638, %v4373
      %4663 = vst.msk [vmem:[%s224 + $0x60] sm:$0xf] %vm4638, %v4374
      %4664 = vst.msk [vmem:[%s224 + $0x64] sm:$0xf] %vm4638, %v4375
      %4665 = vst.msk [vmem:[%s224 + $0x68] sm:$0xf] %vm4638, %v4376
      %4666 = vst.msk [vmem:[%s224 + $0x6c] sm:$0xf] %vm4638, %v4377
      %4667 = vst.msk [vmem:[%s224 + $0x70] sm:$0xf] %vm4638, %v4378
      %4668 = vst.msk [vmem:[%s224 + $0x74] sm:$0xf] %vm4638, %v4379
      %4669 = vst.msk [vmem:[%s224 + $0x78] sm:$0xf] %vm4638, %v4380
      %4670 = vst.msk [vmem:[%s224 + $0x7c] sm:$0xf] %vm4638, %v4381
      %4671 = vst.msk [vmem:[%s224 + $0x80] sm:$0xf] %vm4638, %v4382
      %4672 = vst.msk [vmem:[%s224 + $0x84] sm:$0xf] %vm4638, %v4383
      %4673 = vst.msk [vmem:[%s224 + $0x88] sm:$0xf] %vm4638, %v4384
      %4674 = vst.msk [vmem:[%s224 + $0x8c] sm:$0xf] %vm4638, %v4385
      %4675 = vst.msk [vmem:[%s224 + $0x90] sm:$0xf] %vm4638, %v4386
      %4676 = vst.msk [vmem:[%s224 + $0x94] sm:$0xf] %vm4638, %v4387
      %4677 = vst.msk [vmem:[%s224 + $0x98] sm:$0xf] %vm4638, %v4388
      %4678 = vst.msk [vmem:[%s224 + $0x9c] sm:$0xf] %vm4638, %v4389
      %4679 = vst.msk [vmem:[%s224 + $0xa0] sm:$0xf] %vm4638, %v4390
      %4680 = vst.msk [vmem:[%s224 + $0xa4] sm:$0xf] %vm4638, %v4391
      %4681 = vst.msk [vmem:[%s224 + $0xa8] sm:$0xf] %vm4638, %v4392
      %4682 = vst.msk [vmem:[%s224 + $0xac] sm:$0xf] %vm4638, %v4393
      %4683 = vst.msk [vmem:[%s224 + $0xb0] sm:$0xf] %vm4638, %v4394
      %4684 = vst.msk [vmem:[%s224 + $0xb4] sm:$0xf] %vm4638, %v4395
      %4685 = vst.msk [vmem:[%s224 + $0xb8] sm:$0xf] %vm4638, %v4396
      %4686 = vst.msk [vmem:[%s224 + $0xbc] sm:$0xf] %vm4638, %v4397
      %4687 = vst.msk [vmem:[%s224 + $0xc0] sm:$0xf] %vm4638, %v4398
      %4688 = vst.msk [vmem:[%s224 + $0xc4] sm:$0xf] %vm4638, %v4399
      %4689 = vst.msk [vmem:[%s224 + $0xc8] sm:$0xf] %vm4638, %v4400
      %4690 = vst.msk [vmem:[%s224 + $0xcc] sm:$0xf] %vm4638, %v4401
      %4691 = vst.msk [vmem:[%s224 + $0xd0] sm:$0xf] %vm4638, %v4402
      %4692 = vst.msk [vmem:[%s224 + $0xd4] sm:$0xf] %vm4638, %v4403
      %4693 = vst.msk [vmem:[%s224 + $0xd8] sm:$0xf] %vm4638, %v4404
      %4694 = vst.msk [vmem:[%s224 + $0xdc] sm:$0xf] %vm4638, %v4405
      %4695 = vst.msk [vmem:[%s224 + $0xe0] sm:$0xf] %vm4638, %v4406
      %4696 = vst.msk [vmem:[%s224 + $0xe4] sm:$0xf] %vm4638, %v4407
      %4697 = vst.msk [vmem:[%s224 + $0xe8] sm:$0xf] %vm4638, %v4408
      %4698 = vst.msk [vmem:[%s224 + $0xec] sm:$0xf] %vm4638, %v4409
      %4699 = vst.msk [vmem:[%s224 + $0xf0] sm:$0xf] %vm4638, %v4410
      %4700 = vst.msk [vmem:[%s224 + $0xf4] sm:$0xf] %vm4638, %v4411
      %4701 = vst.msk [vmem:[%s224 + $0xf8] sm:$0xf] %vm4638, %v4412
      %4702 = vst.msk [vmem:[%s224 + $0xfc] sm:$0xf] %vm4638, %v4413
      %4703 = vst.msk [vmem:[%s224 + $0x100] sm:$0xf] %vm4638, %v4414
      %4704 = vst.msk [vmem:[%s224 + $0x104] sm:$0xf] %vm4638, %v4415
      %4705 = vst.msk [vmem:[%s224 + $0x108] sm:$0xf] %vm4638, %v4416
      %4706 = vst.msk [vmem:[%s224 + $0x10c] sm:$0xf] %vm4638, %v4417
      %4707 = vst.msk [vmem:[%s224 + $0x110] sm:$0xf] %vm4638, %v4418
      %4708 = vst.msk [vmem:[%s224 + $0x114] sm:$0xf] %vm4638, %v4419
      %4709 = vst.msk [vmem:[%s224 + $0x118] sm:$0xf] %vm4638, %v4420
      %4710 = vst.msk [vmem:[%s224 + $0x11c] sm:$0xf] %vm4638, %v4421
      %4711 = vst.msk [vmem:[%s224 + $0x120] sm:$0xf] %vm4638, %v4422
      %4712 = vst.msk [vmem:[%s224 + $0x124] sm:$0xf] %vm4638, %v4423
      %4713 = vst.msk [vmem:[%s224 + $0x128] sm:$0xf] %vm4638, %v4424
      %4714 = vst.msk [vmem:[%s224 + $0x12c] sm:$0xf] %vm4638, %v4425
      %4715 = vst.msk [vmem:[%s224 + $0x130] sm:$0xf] %vm4638, %v4426
      %4716 = vst.msk [vmem:[%s224 + $0x134] sm:$0xf] %vm4638, %v4427
      %4717 = vst.msk [vmem:[%s224 + $0x138] sm:$0xf] %vm4638, %v4428
      %4718 = vst.msk [vmem:[%s224 + $0x13c] sm:$0xf] %vm4638, %v4429
      %4719 = vst.msk [vmem:[%s224 + $0x140] sm:$0xf] %vm4638, %v4430
      %4720 = vst.msk [vmem:[%s224 + $0x144] sm:$0xf] %vm4638, %v4431
      %4721 = vst.msk [vmem:[%s224 + $0x148] sm:$0xf] %vm4638, %v4432
      %4722 = vst.msk [vmem:[%s224 + $0x14c] sm:$0xf] %vm4638, %v4433
      %4723 = vst.msk [vmem:[%s224 + $0x150] sm:$0xf] %vm4638, %v4434
      %4724 = vst.msk [vmem:[%s224 + $0x154] sm:$0xf] %vm4638, %v4435
      %4725 = vst.msk [vmem:[%s224 + $0x158] sm:$0xf] %vm4638, %v4436
      %4726 = vst.msk [vmem:[%s224 + $0x15c] sm:$0xf] %vm4638, %v4437
      %4727 = vst.msk [vmem:[%s224 + $0x160] sm:$0xf] %vm4638, %v4438
      %4728 = vst.msk [vmem:[%s224 + $0x164] sm:$0xf] %vm4638, %v4439
      %4729 = vst.msk [vmem:[%s224 + $0x168] sm:$0xf] %vm4638, %v4440
      %4730 = vst.msk [vmem:[%s224 + $0x16c] sm:$0xf] %vm4638, %v4441
      %4731 = vst.msk [vmem:[%s224 + $0x170] sm:$0xf] %vm4638, %v4442
      %4732 = vst.msk [vmem:[%s224 + $0x174] sm:$0xf] %vm4638, %v4443
      %4733 = vst.msk [vmem:[%s224 + $0x178] sm:$0xf] %vm4638, %v4444
      %4734 = vst.msk [vmem:[%s224 + $0x17c] sm:$0xf] %vm4638, %v4445
      %4735 = vst.msk [vmem:[%s224 + $0x180] sm:$0xf] %vm4638, %v4446
      %4736 = vst.msk [vmem:[%s224 + $0x184] sm:$0xf] %vm4638, %v4447
      %4737 = vst.msk [vmem:[%s224 + $0x188] sm:$0xf] %vm4638, %v4448
      %4738 = vst.msk [vmem:[%s224 + $0x18c] sm:$0xf] %vm4638, %v4449
      %4739 = vst.msk [vmem:[%s224 + $0x190] sm:$0xf] %vm4638, %v4450
      %4740 = vst.msk [vmem:[%s224 + $0x194] sm:$0xf] %vm4638, %v4451
      %4741 = vst.msk [vmem:[%s224 + $0x198] sm:$0xf] %vm4638, %v4452
      %4742 = vst.msk [vmem:[%s224 + $0x19c] sm:$0xf] %vm4638, %v4453
      %4743 = vst.msk [vmem:[%s224 + $0x1a0] sm:$0xf] %vm4638, %v4454
      %4744 = vst.msk [vmem:[%s224 + $0x1a4] sm:$0xf] %vm4638, %v4455
      %4745 = vst.msk [vmem:[%s224 + $0x1a8] sm:$0xf] %vm4638, %v4456
      %4746 = vst.msk [vmem:[%s224 + $0x1ac] sm:$0xf] %vm4638, %v4457
      %4747 = vst.msk [vmem:[%s224 + $0x1b0] sm:$0xf] %vm4638, %v4458
      %4748 = vst.msk [vmem:[%s224 + $0x1b4] sm:$0xf] %vm4638, %v4459
      %4749 = vst.msk [vmem:[%s224 + $0x1b8] sm:$0xf] %vm4638, %v4460
      %4750 = vst.msk [vmem:[%s224 + $0x1bc] sm:$0xf] %vm4638, %v4461
      %4751 = vst.msk [vmem:[%s224 + $0x1c0] sm:$0xf] %vm4638, %v4462
      %4752 = vst.msk [vmem:[%s224 + $0x1c4] sm:$0xf] %vm4638, %v4463
      %4753 = vst.msk [vmem:[%s224 + $0x1c8] sm:$0xf] %vm4638, %v4464
      %4754 = vst.msk [vmem:[%s224 + $0x1cc] sm:$0xf] %vm4638, %v4465
      %4755 = vst.msk [vmem:[%s224 + $0x1d0] sm:$0xf] %vm4638, %v4466
      %4756 = vst.msk [vmem:[%s224 + $0x1d4] sm:$0xf] %vm4638, %v4467
      %4757 = vst.msk [vmem:[%s224 + $0x1d8] sm:$0xf] %vm4638, %v4468
      %4758 = vst.msk [vmem:[%s224 + $0x1dc] sm:$0xf] %vm4638, %v4469
      %4759 = vst.msk [vmem:[%s224 + $0x1e0] sm:$0xf] %vm4638, %v4470
      %4760 = vst.msk [vmem:[%s224 + $0x1e4] sm:$0xf] %vm4638, %v4471
      %4761 = vst.msk [vmem:[%s224 + $0x1e8] sm:$0xf] %vm4638, %v4472
      %4762 = vst.msk [vmem:[%s224 + $0x1ec] sm:$0xf] %vm4638, %v4473
      %4763 = vst.msk [vmem:[%s224 + $0x1f0] sm:$0xf] %vm4638, %v4474
      %4764 = vst.msk [vmem:[%s224 + $0x1f4] sm:$0xf] %vm4638, %v4475
      %4765 = vst.msk [vmem:[%s224 + $0x1f8] sm:$0xf] %vm4638, %v4476
      %4766 = vst.msk [vmem:[%s224 + $0x1fc] sm:$0xf] %vm4638, %v4477
      %4767 = vst.msk [vmem:[%s224 + $0x200] sm:$0xf] %vm4638, %v4478
      %4768 = vst.msk [vmem:[%s224 + $0x204] sm:$0xf] %vm4638, %v4479
      %4769 = vst.msk [vmem:[%s224 + $0x208] sm:$0xf] %vm4638, %v4480
      %4770 = vst.msk [vmem:[%s224 + $0x20c] sm:$0xf] %vm4638, %v4481
      %4771 = vst.msk [vmem:[%s224 + $0x210] sm:$0xf] %vm4638, %v4482
      %4772 = vst.msk [vmem:[%s224 + $0x214] sm:$0xf] %vm4638, %v4483
      %4773 = vst.msk [vmem:[%s224 + $0x218] sm:$0xf] %vm4638, %v4484
      %4774 = vst.msk [vmem:[%s224 + $0x21c] sm:$0xf] %vm4638, %v4485
      %4775 = vst.msk [vmem:[%s224 + $0x220] sm:$0xf] %vm4638, %v4486
      %4776 = vst.msk [vmem:[%s224 + $0x224] sm:$0xf] %vm4638, %v4487
      %4777 = vst.msk [vmem:[%s224 + $0x228] sm:$0xf] %vm4638, %v4488
      %4778 = vst.msk [vmem:[%s224 + $0x22c] sm:$0xf] %vm4638, %v4489
      %4779 = vst.msk [vmem:[%s224 + $0x230] sm:$0xf] %vm4638, %v4490
      %4780 = vst.msk [vmem:[%s224 + $0x234] sm:$0xf] %vm4638, %v4491
      %4781 = vst.msk [vmem:[%s224 + $0x238] sm:$0xf] %vm4638, %v4492
      %4782 = vst.msk [vmem:[%s224 + $0x23c] sm:$0xf] %vm4638, %v4493
      %v4783 = vsel %vm3630, 0.0, %v3486
      %v4784 = vsel %vm3631, 0.0, %v3487
      %v4785 = vsel %vm3632, 0.0, %v3488
      %v4786 = vsel %vm3633, 0.0, %v3489
      %v4787 = vsel %vm3634, 0.0, %v3490
      %v4788 = vsel %vm3635, 0.0, %v3491
      %v4789 = vsel %vm3636, 0.0, %v3492
      %v4790 = vsel %vm3637, 0.0, %v3493
      %v4791 = vsel %vm3638, 0.0, %v3494
      %v4792 = vsel %vm3639, 0.0, %v3495
      %v4793 = vsel %vm3640, 0.0, %v3496
      %v4794 = vsel %vm3641, 0.0, %v3497
      %v4795 = vsel %vm3642, 0.0, %v3498
      %v4796 = vsel %vm3643, 0.0, %v3499
      %v4797 = vsel %vm3644, 0.0, %v3500
      %v4798 = vsel %vm3645, 0.0, %v3501
      %v4799 = vsel %vm3646, 0.0, %v3502
      %v4800 = vsel %vm3647, 0.0, %v3503
      %v4801 = vsel %vm3648, 0.0, %v3504
      %v4802 = vsel %vm3649, 0.0, %v3505
      %v4803 = vsel %vm3650, 0.0, %v3506
      %v4804 = vsel %vm3651, 0.0, %v3507
      %v4805 = vsel %vm3652, 0.0, %v3508
      %v4806 = vsel %vm3653, 0.0, %v3509
      %v4807 = vsel %vm3654, 0.0, %v3510
      %v4808 = vsel %vm3655, 0.0, %v3511
      %v4809 = vsel %vm3656, 0.0, %v3512
      %v4810 = vsel %vm3657, 0.0, %v3513
      %v4811 = vsel %vm3658, 0.0, %v3514
      %v4812 = vsel %vm3659, 0.0, %v3515
      %v4813 = vsel %vm3660, 0.0, %v3516
      %v4814 = vsel %vm3661, 0.0, %v3517
      %v4815 = vsel %vm3662, 0.0, %v3518
      %v4816 = vsel %vm3663, 0.0, %v3519
      %v4817 = vsel %vm3664, 0.0, %v3520
      %v4818 = vsel %vm3665, 0.0, %v3521
      %v4819 = vsel %vm3666, 0.0, %v3522
      %v4820 = vsel %vm3667, 0.0, %v3523
      %v4821 = vsel %vm3668, 0.0, %v3524
      %v4822 = vsel %vm3669, 0.0, %v3525
      %v4823 = vsel %vm3670, 0.0, %v3526
      %v4824 = vsel %vm3671, 0.0, %v3527
      %v4825 = vsel %vm3672, 0.0, %v3528
      %v4826 = vsel %vm3673, 0.0, %v3529
      %v4827 = vsel %vm3674, 0.0, %v3530
      %v4828 = vsel %vm3675, 0.0, %v3531
      %v4829 = vsel %vm3676, 0.0, %v3532
      %v4830 = vsel %vm3677, 0.0, %v3533
      %v4831 = vsel %vm3678, 0.0, %v3534
      %v4832 = vsel %vm3679, 0.0, %v3535
      %v4833 = vsel %vm3680, 0.0, %v3536
      %v4834 = vsel %vm3681, 0.0, %v3537
      %v4835 = vsel %vm3682, 0.0, %v3538
      %v4836 = vsel %vm3683, 0.0, %v3539
      %v4837 = vsel %vm3684, 0.0, %v3540
      %v4838 = vsel %vm3685, 0.0, %v3541
      %v4839 = vsel %vm3686, 0.0, %v3542
      %v4840 = vsel %vm3687, 0.0, %v3543
      %v4841 = vsel %vm3688, 0.0, %v3544
      %v4842 = vsel %vm3689, 0.0, %v3545
      %v4843 = vsel %vm3690, 0.0, %v3546
      %v4844 = vsel %vm3691, 0.0, %v3547
      %v4845 = vsel %vm3692, 0.0, %v3548
      %v4846 = vsel %vm3693, 0.0, %v3549
      %v4847 = vsel %vm3694, 0.0, %v3550
      %v4848 = vsel %vm3695, 0.0, %v3551
      %v4849 = vsel %vm3696, 0.0, %v3552
      %v4850 = vsel %vm3697, 0.0, %v3553
      %v4851 = vsel %vm3698, 0.0, %v3554
      %v4852 = vsel %vm3699, 0.0, %v3555
      %v4853 = vsel %vm3700, 0.0, %v3556
      %v4854 = vsel %vm3701, 0.0, %v3557
      %v4855 = vsel %vm3702, 0.0, %v3558
      %v4856 = vsel %vm3703, 0.0, %v3559
      %v4857 = vsel %vm3704, 0.0, %v3560
      %v4858 = vsel %vm3705, 0.0, %v3561
      %v4859 = vsel %vm3706, 0.0, %v3562
      %v4860 = vsel %vm3707, 0.0, %v3563
      %v4861 = vsel %vm3708, 0.0, %v3564
      %v4862 = vsel %vm3709, 0.0, %v3565
      %v4863 = vsel %vm3710, 0.0, %v3566
      %v4864 = vsel %vm3711, 0.0, %v3567
      %v4865 = vsel %vm3712, 0.0, %v3568
      %v4866 = vsel %vm3713, 0.0, %v3569
      %v4867 = vsel %vm3714, 0.0, %v3570
      %v4868 = vsel %vm3715, 0.0, %v3571
      %v4869 = vsel %vm3716, 0.0, %v3572
      %v4870 = vsel %vm3717, 0.0, %v3573
      %v4871 = vsel %vm3718, 0.0, %v3574
      %v4872 = vsel %vm3719, 0.0, %v3575
      %v4873 = vsel %vm3720, 0.0, %v3576
      %v4874 = vsel %vm3721, 0.0, %v3577
      %v4875 = vsel %vm3722, 0.0, %v3578
      %v4876 = vsel %vm3723, 0.0, %v3579
      %v4877 = vsel %vm3724, 0.0, %v3580
      %v4878 = vsel %vm3725, 0.0, %v3581
      %v4879 = vsel %vm3726, 0.0, %v3582
      %v4880 = vsel %vm3727, 0.0, %v3583
      %v4881 = vsel %vm3728, 0.0, %v3584
      %v4882 = vsel %vm3729, 0.0, %v3585
      %v4883 = vsel %vm3730, 0.0, %v3586
      %v4884 = vsel %vm3731, 0.0, %v3587
      %v4885 = vsel %vm3732, 0.0, %v3588
      %v4886 = vsel %vm3733, 0.0, %v3589
      %v4887 = vsel %vm3734, 0.0, %v3590
      %v4888 = vsel %vm3735, 0.0, %v3591
      %v4889 = vsel %vm3736, 0.0, %v3592
      %v4890 = vsel %vm3737, 0.0, %v3593
      %v4891 = vsel %vm3738, 0.0, %v3594
      %v4892 = vsel %vm3739, 0.0, %v3595
      %v4893 = vsel %vm3740, 0.0, %v3596
      %v4894 = vsel %vm3741, 0.0, %v3597
      %v4895 = vsel %vm3742, 0.0, %v3598
      %v4896 = vsel %vm3743, 0.0, %v3599
      %v4897 = vsel %vm3744, 0.0, %v3600
      %v4898 = vsel %vm3745, 0.0, %v3601
      %v4899 = vsel %vm3746, 0.0, %v3602
      %v4900 = vsel %vm3747, 0.0, %v3603
      %v4901 = vsel %vm3748, 0.0, %v3604
      %v4902 = vsel %vm3749, 0.0, %v3605
      %v4903 = vsel %vm3750, 0.0, %v3606
      %v4904 = vsel %vm3751, 0.0, %v3607
      %v4905 = vsel %vm3752, 0.0, %v3608
      %v4906 = vsel %vm3753, 0.0, %v3609
      %v4907 = vsel %vm3754, 0.0, %v3610
      %v4908 = vsel %vm3755, 0.0, %v3611
      %v4909 = vsel %vm3756, 0.0, %v3612
      %v4910 = vsel %vm3757, 0.0, %v3613
      %v4911 = vsel %vm3758, 0.0, %v3614
      %v4912 = vsel %vm3759, 0.0, %v3615
      %v4913 = vsel %vm3760, 0.0, %v3616
      %v4914 = vsel %vm3761, 0.0, %v3617
      %v4915 = vsel %vm3762, 0.0, %v3618
      %v4916 = vsel %vm3763, 0.0, %v3619
      %v4917 = vsel %vm3764, 0.0, %v3620
      %v4918 = vsel %vm3765, 0.0, %v3621
      %v4919 = vsel %vm3766, 0.0, %v3622
      %v4920 = vsel %vm3767, 0.0, %v3623
      %v4921 = vsel %vm3768, 0.0, %v3624
      %v4922 = vsel %vm3769, 0.0, %v3625
      %v4923 = vsel %vm3770, 0.0, %v3626
      %v4924 = vsel %vm3771, 0.0, %v3627
      %v4925 = vsel %vm3772, 0.0, %v3628
      %v4926 = vsel %vm3773, 0.0, %v3629
      %4927 = vst.msk [vmem:[#allocation2] sm:$0xff] %vm902, %v4783
      %4928 = vst.msk [vmem:[#allocation2 + $0x8] sm:$0xff] %vm902, %v4784
      %4929 = vst.msk [vmem:[#allocation2 + $0x10] sm:$0xff] %vm902, %v4785
      %4930 = vst.msk [vmem:[#allocation2 + $0x18] sm:$0xff] %vm902, %v4786
      %4931 = vst.msk [vmem:[#allocation2 + $0x20] sm:$0xff] %vm902, %v4787
      %4932 = vst.msk [vmem:[#allocation2 + $0x28] sm:$0xff] %vm902, %v4788
      %4933 = vst.msk [vmem:[#allocation2 + $0x30] sm:$0xff] %vm902, %v4789
      %4934 = vst.msk [vmem:[#allocation2 + $0x38] sm:$0xff] %vm902, %v4790
      %4935 = vst.msk [vmem:[#allocation2 + $0x40] sm:$0xff] %vm902, %v4791
      %4936 = vst.msk [vmem:[#allocation2 + $0x48] sm:$0xff] %vm902, %v4792
      %4937 = vst.msk [vmem:[#allocation2 + $0x50] sm:$0xff] %vm902, %v4793
      %4938 = vst.msk [vmem:[#allocation2 + $0x58] sm:$0xff] %vm902, %v4794
      %4939 = vst.msk [vmem:[#allocation2 + $0x60] sm:$0xff] %vm902, %v4795
      %4940 = vst.msk [vmem:[#allocation2 + $0x68] sm:$0xff] %vm902, %v4796
      %4941 = vst.msk [vmem:[#allocation2 + $0x70] sm:$0xff] %vm902, %v4797
      %4942 = vst.msk [vmem:[#allocation2 + $0x78] sm:$0xff] %vm902, %v4798
      %4943 = vst.msk [vmem:[#allocation2 + $0x80] sm:$0xff] %vm902, %v4799
      %4944 = vst.msk [vmem:[#allocation2 + $0x88] sm:$0xff] %vm902, %v4800
      %4945 = vst.msk [vmem:[#allocation2 + $0x90] sm:$0xff] %vm902, %v4801
      %4946 = vst.msk [vmem:[#allocation2 + $0x98] sm:$0xff] %vm902, %v4802
      %4947 = vst.msk [vmem:[#allocation2 + $0xa0] sm:$0xff] %vm902, %v4803
      %4948 = vst.msk [vmem:[#allocation2 + $0xa8] sm:$0xff] %vm902, %v4804
      %4949 = vst.msk [vmem:[#allocation2 + $0xb0] sm:$0xff] %vm902, %v4805
      %4950 = vst.msk [vmem:[#allocation2 + $0xb8] sm:$0xff] %vm902, %v4806
      %4951 = vst.msk [vmem:[#allocation2 + $0xc0] sm:$0xff] %vm902, %v4807
      %4952 = vst.msk [vmem:[#allocation2 + $0xc8] sm:$0xff] %vm902, %v4808
      %4953 = vst.msk [vmem:[#allocation2 + $0xd0] sm:$0xff] %vm902, %v4809
      %4954 = vst.msk [vmem:[#allocation2 + $0xd8] sm:$0xff] %vm902, %v4810
      %4955 = vst.msk [vmem:[#allocation2 + $0xe0] sm:$0xff] %vm902, %v4811
      %4956 = vst.msk [vmem:[#allocation2 + $0xe8] sm:$0xff] %vm902, %v4812
      %4957 = vst.msk [vmem:[#allocation2 + $0xf0] sm:$0xff] %vm902, %v4813
      %4958 = vst.msk [vmem:[#allocation2 + $0xf8] sm:$0xff] %vm902, %v4814
      %4959 = vst.msk [vmem:[#allocation2 + $0x100] sm:$0xff] %vm902, %v4815
      %4960 = vst.msk [vmem:[#allocation2 + $0x108] sm:$0xff] %vm902, %v4816
      %4961 = vst.msk [vmem:[#allocation2 + $0x110] sm:$0xff] %vm902, %v4817
      %4962 = vst.msk [vmem:[#allocation2 + $0x118] sm:$0xff] %vm902, %v4818
      %4963 = vst.msk [vmem:[#allocation2 + $0x120] sm:$0xff] %vm902, %v4819
      %4964 = vst.msk [vmem:[#allocation2 + $0x128] sm:$0xff] %vm902, %v4820
      %4965 = vst.msk [vmem:[#allocation2 + $0x130] sm:$0xff] %vm902, %v4821
      %4966 = vst.msk [vmem:[#allocation2 + $0x138] sm:$0xff] %vm902, %v4822
      %4967 = vst.msk [vmem:[#allocation2 + $0x140] sm:$0xff] %vm902, %v4823
      %4968 = vst.msk [vmem:[#allocation2 + $0x148] sm:$0xff] %vm902, %v4824
      %4969 = vst.msk [vmem:[#allocation2 + $0x150] sm:$0xff] %vm902, %v4825
      %4970 = vst.msk [vmem:[#allocation2 + $0x158] sm:$0xff] %vm902, %v4826
      %4971 = vst.msk [vmem:[#allocation2 + $0x160] sm:$0xff] %vm902, %v4827
      %4972 = vst.msk [vmem:[#allocation2 + $0x168] sm:$0xff] %vm902, %v4828
      %4973 = vst.msk [vmem:[#allocation2 + $0x170] sm:$0xff] %vm902, %v4829
      %4974 = vst.msk [vmem:[#allocation2 + $0x178] sm:$0xff] %vm902, %v4830
      %4975 = vst.msk [vmem:[#allocation2 + $0x180] sm:$0xff] %vm902, %v4831
      %4976 = vst.msk [vmem:[#allocation2 + $0x188] sm:$0xff] %vm902, %v4832
      %4977 = vst.msk [vmem:[#allocation2 + $0x190] sm:$0xff] %vm902, %v4833
      %4978 = vst.msk [vmem:[#allocation2 + $0x198] sm:$0xff] %vm902, %v4834
      %4979 = vst.msk [vmem:[#allocation2 + $0x1a0] sm:$0xff] %vm902, %v4835
      %4980 = vst.msk [vmem:[#allocation2 + $0x1a8] sm:$0xff] %vm902, %v4836
      %4981 = vst.msk [vmem:[#allocation2 + $0x1b0] sm:$0xff] %vm902, %v4837
      %4982 = vst.msk [vmem:[#allocation2 + $0x1b8] sm:$0xff] %vm902, %v4838
      %4983 = vst.msk [vmem:[#allocation2 + $0x1c0] sm:$0xff] %vm902, %v4839
      %4984 = vst.msk [vmem:[#allocation2 + $0x1c8] sm:$0xff] %vm902, %v4840
      %4985 = vst.msk [vmem:[#allocation2 + $0x1d0] sm:$0xff] %vm902, %v4841
      %4986 = vst.msk [vmem:[#allocation2 + $0x1d8] sm:$0xff] %vm902, %v4842
      %4987 = vst.msk [vmem:[#allocation2 + $0x1e0] sm:$0xff] %vm902, %v4843
      %4988 = vst.msk [vmem:[#allocation2 + $0x1e8] sm:$0xff] %vm902, %v4844
      %4989 = vst.msk [vmem:[#allocation2 + $0x1f0] sm:$0xff] %vm902, %v4845
      %4990 = vst.msk [vmem:[#allocation2 + $0x1f8] sm:$0xff] %vm902, %v4846
      %4991 = vst.msk [vmem:[#allocation2 + $0x200] sm:$0xff] %vm902, %v4847
      %4992 = vst.msk [vmem:[#allocation2 + $0x208] sm:$0xff] %vm902, %v4848
      %4993 = vst.msk [vmem:[#allocation2 + $0x210] sm:$0xff] %vm902, %v4849
      %4994 = vst.msk [vmem:[#allocation2 + $0x218] sm:$0xff] %vm902, %v4850
      %4995 = vst.msk [vmem:[#allocation2 + $0x220] sm:$0xff] %vm902, %v4851
      %4996 = vst.msk [vmem:[#allocation2 + $0x228] sm:$0xff] %vm902, %v4852
      %4997 = vst.msk [vmem:[#allocation2 + $0x230] sm:$0xff] %vm902, %v4853
      %4998 = vst.msk [vmem:[#allocation2 + $0x238] sm:$0xff] %vm902, %v4854
      %4999 = vst.msk [vmem:[#allocation2 + $0x240] sm:$0xff] %vm902, %v4855
      %5000 = vst.msk [vmem:[#allocation2 + $0x248] sm:$0xff] %vm902, %v4856
      %5001 = vst.msk [vmem:[#allocation2 + $0x250] sm:$0xff] %vm902, %v4857
      %5002 = vst.msk [vmem:[#allocation2 + $0x258] sm:$0xff] %vm902, %v4858
      %5003 = vst.msk [vmem:[#allocation2 + $0x260] sm:$0xff] %vm902, %v4859
      %5004 = vst.msk [vmem:[#allocation2 + $0x268] sm:$0xff] %vm902, %v4860
      %5005 = vst.msk [vmem:[#allocation2 + $0x270] sm:$0xff] %vm902, %v4861
      %5006 = vst.msk [vmem:[#allocation2 + $0x278] sm:$0xff] %vm902, %v4862
      %5007 = vst.msk [vmem:[#allocation2 + $0x280] sm:$0xff] %vm902, %v4863
      %5008 = vst.msk [vmem:[#allocation2 + $0x288] sm:$0xff] %vm902, %v4864
      %5009 = vst.msk [vmem:[#allocation2 + $0x290] sm:$0xff] %vm902, %v4865
      %5010 = vst.msk [vmem:[#allocation2 + $0x298] sm:$0xff] %vm902, %v4866
      %5011 = vst.msk [vmem:[#allocation2 + $0x2a0] sm:$0xff] %vm902, %v4867
      %5012 = vst.msk [vmem:[#allocation2 + $0x2a8] sm:$0xff] %vm902, %v4868
      %5013 = vst.msk [vmem:[#allocation2 + $0x2b0] sm:$0xff] %vm902, %v4869
      %5014 = vst.msk [vmem:[#allocation2 + $0x2b8] sm:$0xff] %vm902, %v4870
      %5015 = vst.msk [vmem:[#allocation2 + $0x2c0] sm:$0xff] %vm902, %v4871
      %5016 = vst.msk [vmem:[#allocation2 + $0x2c8] sm:$0xff] %vm902, %v4872
      %5017 = vst.msk [vmem:[#allocation2 + $0x2d0] sm:$0xff] %vm902, %v4873
      %5018 = vst.msk [vmem:[#allocation2 + $0x2d8] sm:$0xff] %vm902, %v4874
      %5019 = vst.msk [vmem:[#allocation2 + $0x2e0] sm:$0xff] %vm902, %v4875
      %5020 = vst.msk [vmem:[#allocation2 + $0x2e8] sm:$0xff] %vm902, %v4876
      %5021 = vst.msk [vmem:[#allocation2 + $0x2f0] sm:$0xff] %vm902, %v4877
      %5022 = vst.msk [vmem:[#allocation2 + $0x2f8] sm:$0xff] %vm902, %v4878
      %5023 = vst.msk [vmem:[#allocation2 + $0x300] sm:$0xff] %vm902, %v4879
      %5024 = vst.msk [vmem:[#allocation2 + $0x308] sm:$0xff] %vm902, %v4880
      %5025 = vst.msk [vmem:[#allocation2 + $0x310] sm:$0xff] %vm902, %v4881
      %5026 = vst.msk [vmem:[#allocation2 + $0x318] sm:$0xff] %vm902, %v4882
      %5027 = vst.msk [vmem:[#allocation2 + $0x320] sm:$0xff] %vm902, %v4883
      %5028 = vst.msk [vmem:[#allocation2 + $0x328] sm:$0xff] %vm902, %v4884
      %5029 = vst.msk [vmem:[#allocation2 + $0x330] sm:$0xff] %vm902, %v4885
      %5030 = vst.msk [vmem:[#allocation2 + $0x338] sm:$0xff] %vm902, %v4886
      %5031 = vst.msk [vmem:[#allocation2 + $0x340] sm:$0xff] %vm902, %v4887
      %5032 = vst.msk [vmem:[#allocation2 + $0x348] sm:$0xff] %vm902, %v4888
      %5033 = vst.msk [vmem:[#allocation2 + $0x350] sm:$0xff] %vm902, %v4889
      %5034 = vst.msk [vmem:[#allocation2 + $0x358] sm:$0xff] %vm902, %v4890
      %5035 = vst.msk [vmem:[#allocation2 + $0x360] sm:$0xff] %vm902, %v4891
      %5036 = vst.msk [vmem:[#allocation2 + $0x368] sm:$0xff] %vm902, %v4892
      %5037 = vst.msk [vmem:[#allocation2 + $0x370] sm:$0xff] %vm902, %v4893
      %5038 = vst.msk [vmem:[#allocation2 + $0x378] sm:$0xff] %vm902, %v4894
      %5039 = vst.msk [vmem:[#allocation2 + $0x380] sm:$0xff] %vm902, %v4895
      %5040 = vst.msk [vmem:[#allocation2 + $0x388] sm:$0xff] %vm902, %v4896
      %5041 = vst.msk [vmem:[#allocation2 + $0x390] sm:$0xff] %vm902, %v4897
      %5042 = vst.msk [vmem:[#allocation2 + $0x398] sm:$0xff] %vm902, %v4898
      %5043 = vst.msk [vmem:[#allocation2 + $0x3a0] sm:$0xff] %vm902, %v4899
      %5044 = vst.msk [vmem:[#allocation2 + $0x3a8] sm:$0xff] %vm902, %v4900
      %5045 = vst.msk [vmem:[#allocation2 + $0x3b0] sm:$0xff] %vm902, %v4901
      %5046 = vst.msk [vmem:[#allocation2 + $0x3b8] sm:$0xff] %vm902, %v4902
      %5047 = vst.msk [vmem:[#allocation2 + $0x3c0] sm:$0xff] %vm902, %v4903
      %5048 = vst.msk [vmem:[#allocation2 + $0x3c8] sm:$0xff] %vm902, %v4904
      %5049 = vst.msk [vmem:[#allocation2 + $0x3d0] sm:$0xff] %vm902, %v4905
      %5050 = vst.msk [vmem:[#allocation2 + $0x3d8] sm:$0xff] %vm902, %v4906
      %5051 = vst.msk [vmem:[#allocation2 + $0x3e0] sm:$0xff] %vm902, %v4907
      %5052 = vst.msk [vmem:[#allocation2 + $0x3e8] sm:$0xff] %vm902, %v4908
      %5053 = vst.msk [vmem:[#allocation2 + $0x3f0] sm:$0xff] %vm902, %v4909
      %5054 = vst.msk [vmem:[#allocation2 + $0x3f8] sm:$0xff] %vm902, %v4910
      %5055 = vst.msk [vmem:[#allocation2 + $0x400] sm:$0xff] %vm902, %v4911
      %5056 = vst.msk [vmem:[#allocation2 + $0x408] sm:$0xff] %vm902, %v4912
      %5057 = vst.msk [vmem:[#allocation2 + $0x410] sm:$0xff] %vm902, %v4913
      %5058 = vst.msk [vmem:[#allocation2 + $0x418] sm:$0xff] %vm902, %v4914
      %5059 = vst.msk [vmem:[#allocation2 + $0x420] sm:$0xff] %vm902, %v4915
      %5060 = vst.msk [vmem:[#allocation2 + $0x428] sm:$0xff] %vm902, %v4916
      %5061 = vst.msk [vmem:[#allocation2 + $0x430] sm:$0xff] %vm902, %v4917
      %5062 = vst.msk [vmem:[#allocation2 + $0x438] sm:$0xff] %vm902, %v4918
      %5063 = vst.msk [vmem:[#allocation2 + $0x440] sm:$0xff] %vm902, %v4919
      %5064 = vst.msk [vmem:[#allocation2 + $0x448] sm:$0xff] %vm902, %v4920
      %5065 = vst.msk [vmem:[#allocation2 + $0x450] sm:$0xff] %vm902, %v4921
      %5066 = vst.msk [vmem:[#allocation2 + $0x458] sm:$0xff] %vm902, %v4922
      %5067 = vst.msk [vmem:[#allocation2 + $0x460] sm:$0xff] %vm902, %v4923
      %5068 = vst.msk [vmem:[#allocation2 + $0x468] sm:$0xff] %vm902, %v4924
      %5069 = vst.msk [vmem:[#allocation2 + $0x470] sm:$0xff] %vm902, %v4925
      %5070 = vst.msk [vmem:[#allocation2 + $0x478] sm:$0xff] %vm902, %v4926
      %p5071 = scmp.lt.s32.totalorder %s16, 3
      %s5072 = scalar_select %p5071, %s16, 3
      %s5073 = smul.addr %s5072, 144
      %s5074 = smul.addr %s5073, 4
      %s5075 = scalar_lea.vmem %s5, %s5074
      // Predicated region
      $region45: #{discriminator_forward.3} parent=39 // pred_check
        %p5076 = pneg %p144
      $region46: #{discriminator_forward.3} parent=39 // pred_check_branch
        %5078 = sbr.rel (%p5076) target = $region48
      $region47: #{discriminator_forward.3} parent=39 // pred_region
        _
      $region48: #{discriminator_forward.3} parent=39 // pred_fallthru
        _
    $region40: #{discriminator_forward.3} parent=5 // pred_fallthru
      _
    %p5079 = scmp.le.s32.totalorder 2, %s11
    // Predicated region
    $region49: #{discriminator_forward.3} parent=5 // pred_check
      %p5080 = pneg %p5079
    $region50: #{discriminator_forward.3} parent=5 // pred_check_branch
      %5082 = sbr.rel (%p5080) target = $region52
    $region51: #{discriminator_forward.3} parent=5 // pred_region
      %s5083 = ssub.s32 %s11, 2
      // Predicated region
      $region53: #{discriminator_forward.3} parent=51 // pred_check
        %p5084 = pneg %p150
      $region54: #{discriminator_forward.3} parent=51 // pred_check_branch
        %5086 = sbr.rel (%p5084) target = $region56
      $region55: #{discriminator_forward.3} parent=51 // pred_region
        %p5087 = scmp.lt.s32.totalorder %s17, 3
        %s5088 = scalar_select %p5087, %s17, 3
        %s5089 = smul.addr %s5088, 144
        %s5090 = smul.addr %s5089, 4
        %s5091 = scalar_lea.vmem %s5, %s5090
      $region56: #{discriminator_forward.3} parent=51 // pred_fallthru
        _
    $region52: #{discriminator_forward.3} parent=5 // pred_fallthru
      _
  $region6: #{discriminator_forward.3} parent=0 // loop_footer
    %s15 = sadd.s32 1, %s11
  $region7: #{discriminator_forward.3} parent=0 // loop_footer_branch
    %10 = sbr.rel target = $region3
  $region8: #{discriminator_forward.3} parent=0 // loop_exit
    _

// kernel: discriminator_forward.4
$region0: #{discriminator_forward.4}
  #allocation0 [shape = 'u32[]', space=smem, size = 0x4, offset = 0x4, fixed_abs, tag = 'smem constant byte address 0x4 - core index']
  #allocation1 [shape = 'u32[144,128]{1,0:T(1,128)}', space=vmem, size = 0x12000, scoped, tag = 'internal scratch']
  #allocation2 [shape = 'f32[128,64]{1,0:T(8,128)}', space=vmem, size = 0x10000, scoped, tag = 'scratch operand']
  %s0 = inlined_call_operand.vmem [shape: bf16[4,128,800], index: 0, kind: input, shape index: {}]
  %s1 = inlined_call_operand.vmem [shape: bf16[800,64], index: 1, kind: input, shape index: {}]
  %s2 = inlined_call_operand.vmem [shape: f32[1,64], index: 2, kind: input, shape index: {}]
  %s3 = inlined_call_operand.vmem [shape: f32[1,64], index: 3, kind: input, shape index: {}]
  %s4 = inlined_call_operand.vmem [shape: f32[1,64], index: 4, kind: input, shape index: {}]
  %s5 = inlined_call_operand.vmem [shape: bf16[4,128,64], index: 5, kind: output, shape index: {}]
  %s6 = sld [smem:[#allocation0]]
  $region57: #{discriminator_forward.4} parent=0
    _
  %s8 = ssub.s32 1, %s6
  %s9 = scalar_select 0, %s8, %s6
  loop: start=0, step=1, limit=6
  $region2: #{discriminator_forward.4} parent=0 // loop_pre_header
    _
  $region3: #{discriminator_forward.4} parent=0 // loop_header
    %s11 = sphi 0, %s15
    %p12 = scmp.ge.s32.totalorder %s11, 6
    %s21 = sphi 0, %s23
    %s24 = sphi 0, %s21
    %s25 = sphi 0, %s24
    %s41 = sphi 0, %s25
    %s45 = sphi 0, %s45
    %s47 = sphi 0, %s45
    %s48 = sphi 0, %s47
    %s62 = sphi 0, %s48
    %s66 = sphi 0, %s66
    %s68 = sphi 0, %s66
    %s69 = sphi 0, %s68
    %s83 = sphi 0, %s69
    %s87 = sphi 0, %s87
    %s89 = sphi 0, %s87
    %s90 = sphi 0, %s89
    %s104 = sphi 0, %s90
    %s108 = sphi 0, %s108
    %s110 = sphi 0, %s108
    %s111 = sphi 0, %s110
    %s125 = sphi 0, %s111
    %s131 = sphi 0, %s133
    %s134 = sphi 0, %s131
    %s135 = sphi 0, %s134
    %s151 = sphi 0, %s135
  $region4: #{discriminator_forward.4} parent=0 // loop_header_branch
    %14 = sbr.rel (%p12) target = $region8
  $region5: #{discriminator_forward.4} parent=0 // loop_body
    %s16 = ssub.s32 %s11, 1
    %s17 = ssub.s32 %s11, 2
    %s18 = sadd.s32 %s11, 1
    %s19 = ssub.s32 %s11, %s18
    %p20 = scmp.eq.s32.totalorder %s19, 0
    %s22 = sadd.s32 %s21, 1
    %s23 = scalar_select %p20, %s21, %s22
    %p26 = pneg %p20
    %p27 = scmp.eq.s32.totalorder %s11, 3
    %p28 = por %p26, %p27
    %p29 = scmp.ne.s32.totalorder %s21, %s24
    %p30 = scmp.eq.s32.totalorder %s11, 0
    %p31 = por %p29, %p30
    %p32 = scmp.ne.s32.totalorder %s21, %s24
    %p33 = scmp.eq.s32.totalorder %s16, 3
    %p34 = por %p32, %p33
    %p35 = scmp.ne.s32.totalorder %s24, %s25
    %p36 = scmp.eq.s32.totalorder %s16, 0
    %p37 = por %p35, %p36
    %p38 = scmp.ne.s32.totalorder %s24, %s25
    %p39 = scmp.eq.s32.totalorder %s17, 3
    %p40 = por %p38, %p39
    %p42 = scmp.ne.s32.totalorder %s25, %s41
    %p43 = scmp.eq.s32.totalorder %s17, 0
    %p44 = por %p42, %p43
    %s46 = sadd.s32 %s45, 1
    %p49 = scmp.eq.s32.totalorder %s11, 3
    %p50 = scmp.ne.s32.totalorder %s45, %s47
    %p51 = scmp.eq.s32.totalorder %s11, 0
    %p52 = por %p50, %p51
    %p53 = scmp.ne.s32.totalorder %s45, %s47
    %p54 = scmp.eq.s32.totalorder %s16, 3
    %p55 = por %p53, %p54
    %p56 = scmp.ne.s32.totalorder %s47, %s48
    %p57 = scmp.eq.s32.totalorder %s16, 0
    %p58 = por %p56, %p57
    %p59 = scmp.ne.s32.totalorder %s47, %s48
    %p60 = scmp.eq.s32.totalorder %s17, 3
    %p61 = por %p59, %p60
    %p63 = scmp.ne.s32.totalorder %s48, %s62
    %p64 = scmp.eq.s32.totalorder %s17, 0
    %p65 = por %p63, %p64
    %s67 = sadd.s32 %s66, 1
    %p70 = scmp.eq.s32.totalorder %s11, 3
    %p71 = scmp.ne.s32.totalorder %s66, %s68
    %p72 = scmp.eq.s32.totalorder %s11, 0
    %p73 = por %p71, %p72
    %p74 = scmp.ne.s32.totalorder %s66, %s68
    %p75 = scmp.eq.s32.totalorder %s16, 3
    %p76 = por %p74, %p75
    %p77 = scmp.ne.s32.totalorder %s68, %s69
    %p78 = scmp.eq.s32.totalorder %s16, 0
    %p79 = por %p77, %p78
    %p80 = scmp.ne.s32.totalorder %s68, %s69
    %p81 = scmp.eq.s32.totalorder %s17, 3
    %p82 = por %p80, %p81
    %p84 = scmp.ne.s32.totalorder %s69, %s83
    %p85 = scmp.eq.s32.totalorder %s17, 0
    %p86 = por %p84, %p85
    %s88 = sadd.s32 %s87, 1
    %p91 = scmp.eq.s32.totalorder %s11, 3
    %p92 = scmp.ne.s32.totalorder %s87, %s89
    %p93 = scmp.eq.s32.totalorder %s11, 0
    %p94 = por %p92, %p93
    %p95 = scmp.ne.s32.totalorder %s87, %s89
    %p96 = scmp.eq.s32.totalorder %s16, 3
    %p97 = por %p95, %p96
    %p98 = scmp.ne.s32.totalorder %s89, %s90
    %p99 = scmp.eq.s32.totalorder %s16, 0
    %p100 = por %p98, %p99
    %p101 = scmp.ne.s32.totalorder %s89, %s90
    %p102 = scmp.eq.s32.totalorder %s17, 3
    %p103 = por %p101, %p102
    %p105 = scmp.ne.s32.totalorder %s90, %s104
    %p106 = scmp.eq.s32.totalorder %s17, 0
    %p107 = por %p105, %p106
    %s109 = sadd.s32 %s108, 1
    %p112 = scmp.eq.s32.totalorder %s11, 3
    %p113 = scmp.ne.s32.totalorder %s108, %s110
    %p114 = scmp.eq.s32.totalorder %s11, 0
    %p115 = por %p113, %p114
    %p116 = scmp.ne.s32.totalorder %s108, %s110
    %p117 = scmp.eq.s32.totalorder %s16, 3
    %p118 = por %p116, %p117
    %p119 = scmp.ne.s32.totalorder %s110, %s111
    %p120 = scmp.eq.s32.totalorder %s16, 0
    %p121 = por %p119, %p120
    %p122 = scmp.ne.s32.totalorder %s110, %s111
    %p123 = scmp.eq.s32.totalorder %s17, 3
    %p124 = por %p122, %p123
    %p126 = scmp.ne.s32.totalorder %s111, %s125
    %p127 = scmp.eq.s32.totalorder %s17, 0
    %p128 = por %p126, %p127
    %s129 = ssub.s32 %s11, %s18
    %p130 = scmp.eq.s32.totalorder %s129, 0
    %s132 = sadd.s32 %s131, 1
    %s133 = scalar_select %p130, %s131, %s132
    %p136 = pneg %p130
    %p137 = scmp.eq.s32.totalorder %s11, 3
    %p138 = por %p136, %p137
    %p139 = scmp.ne.s32.totalorder %s131, %s134
    %p140 = scmp.eq.s32.totalorder %s11, 0
    %p141 = por %p139, %p140
    %p142 = scmp.ne.s32.totalorder %s131, %s134
    %p143 = scmp.eq.s32.totalorder %s16, 3
    %p144 = por %p142, %p143
    %p145 = scmp.ne.s32.totalorder %s134, %s135
    %p146 = scmp.eq.s32.totalorder %s16, 0
    %p147 = por %p145, %p146
    %p148 = scmp.ne.s32.totalorder %s134, %s135
    %p149 = scmp.eq.s32.totalorder %s17, 3
    %p150 = por %p148, %p149
    %p152 = scmp.ne.s32.totalorder %s135, %s151
    %p153 = scmp.eq.s32.totalorder %s17, 0
    %p154 = por %p152, %p153
    %p155 = scmp.le.s32.totalorder 1, %s11
    %p156 = scmp.lt.s32.totalorder %s11, 5
    %p157 = pnand %p155, %p156
    %p158 = pneg %p157
    // Predicated region
    $region9: #{discriminator_forward.4} parent=5 // pred_check
      _
    $region10: #{discriminator_forward.4} parent=5 // pred_check_branch
      %160 = sbr.rel (%p157) target = $region12
    $region11: #{discriminator_forward.4} parent=5 // pred_region
      %s161 = ssub.s32 %s11, 1
      // Predicated region
      $region13: #{discriminator_forward.4} parent=11 // pred_check
        %p162 = pneg %p58
      $region14: #{discriminator_forward.4} parent=11 // pred_check_branch
        %164 = sbr.rel (%p162) target = $region16
      $region15: #{discriminator_forward.4} parent=11 // pred_region
        _
      $region16: #{discriminator_forward.4} parent=11 // pred_fallthru
        _
      // Predicated region
      $region17: #{discriminator_forward.4} parent=11 // pred_check
        %p165 = pneg %p79
      $region18: #{discriminator_forward.4} parent=11 // pred_check_branch
        %167 = sbr.rel (%p165) target = $region20
      $region19: #{discriminator_forward.4} parent=11 // pred_region
        _
      $region20: #{discriminator_forward.4} parent=11 // pred_fallthru
        _
      // Predicated region
      $region21: #{discriminator_forward.4} parent=11 // pred_check
        %p168 = pneg %p100
      $region22: #{discriminator_forward.4} parent=11 // pred_check_branch
        %170 = sbr.rel (%p168) target = $region24
      $region23: #{discriminator_forward.4} parent=11 // pred_region
        _
      $region24: #{discriminator_forward.4} parent=11 // pred_fallthru
        _
      // Predicated region
      $region25: #{discriminator_forward.4} parent=11 // pred_check
        %p171 = pneg %p121
      $region26: #{discriminator_forward.4} parent=11 // pred_check_branch
        %173 = sbr.rel (%p171) target = $region28
      $region27: #{discriminator_forward.4} parent=11 // pred_region
        _
      $region28: #{discriminator_forward.4} parent=11 // pred_fallthru
        _
    $region12: #{discriminator_forward.4} parent=5 // pred_fallthru
      _
    %p174 = scmp.lt.s32.totalorder %s11, 4
    // Predicated region
    $region29: #{discriminator_forward.4} parent=5 // pred_check
      %p175 = pneg %p174
    $region30: #{discriminator_forward.4} parent=5 // pred_check_branch
      %177 = sbr.rel (%p175) target = $region32
    $region31: #{discriminator_forward.4} parent=5 // pred_region
      // Predicated region
      $region33: #{discriminator_forward.4} parent=31 // pred_check
        %p178 = pneg %p31
      $region34: #{discriminator_forward.4} parent=31 // pred_check_branch
        %180 = sbr.rel (%p178) target = $region36
      $region35: #{discriminator_forward.4} parent=31 // pred_region
        %p181 = scmp.lt.s32.totalorder %s11, 3
        %s182 = scalar_select %p181, %s11, 3
        %s183 = smul.addr %s182, 112
        %s184 = smul.addr %s183, 4
        %s185 = scalar_lea.vmem %s0, %s184
      $region36: #{discriminator_forward.4} parent=31 // pred_fallthru
        _
    $region32: #{discriminator_forward.4} parent=5 // pred_fallthru
      _
    %p186 = scmp.le.s32.totalorder 1, %s11
    %p187 = scmp.lt.s32.totalorder %s11, 5
    %p188 = pnand %p186, %p187
    %p189 = pneg %p188
    // Predicated region
    $region37: #{discriminator_forward.4} parent=5 // pred_check
      _
    $region38: #{discriminator_forward.4} parent=5 // pred_check_branch
      %191 = sbr.rel (%p188) target = $region40
    $region39: #{discriminator_forward.4} parent=5 // pred_region
      %s192 = ssub.s32 %s11, 1
      %p193 = scmp.lt.s32.totalorder %s16, 3
      %s194 = scalar_select %p193, %s16, 3
      %s195 = smul.addr %s194, 112
      %s196 = smul.addr %s195, 4
      %s197 = scalar_lea.vmem %s0, %s196
      %p198 = pneg %p37
      %p199 = pneg %p34
      %p200 = pneg %p58
      %p201 = pneg %p55
      %p202 = pneg %p79
      %p203 = pneg %p76
      %p204 = pneg %p100
      %p205 = pneg %p97
      %p206 = pneg %p121
      %p207 = pneg %p118
      %p208 = pneg %p147
      %p209 = pneg %p144
      %p210 = scmp.lt.s32.totalorder %s16, 3
      %s211 = scalar_select %p210, %s16, 3
      %s212 = smul.addr %s211, 16
      %s213 = smul.addr %s212, 4
      %s214 = scalar_lea.vmem %s5, %s213
      %p215 = scmp.lt.s32.totalorder %s16, 3
      %s216 = scalar_select %p215, %s16, 3
      %s217 = smul.addr %s216, 112
      %s218 = smul.addr %s217, 4
      %s219 = scalar_lea.vmem %s0, %s218
      %p220 = scmp.lt.s32.totalorder %s16, 3
      %s221 = scalar_select %p220, %s16, 3
      %s222 = smul.addr %s221, 16
      %s223 = smul.addr %s222, 4
      %s224 = scalar_lea.vmem %s5, %s223
      %p226 = scmp.eq.s32.totalorder %s16, 0
      // Predicated region
      $region41: #{discriminator_forward.4} parent=39 // pred_check
        %p227 = pneg %p226
      $region42: #{discriminator_forward.4} parent=39 // pred_check_branch
        %229 = sbr.rel (%p227) target = $region44
      $region43: #{discriminator_forward.4} parent=39 // pred_region
        %vm230 = vcmask 523264
        %231 = vst.msk [vmem:[#allocation2] sm:$0xff] %vm230, 0.0
        %232 = vst.msk [vmem:[#allocation2 + $0x8] sm:$0xff] %vm230, 0.0
        %233 = vst.msk [vmem:[#allocation2 + $0x10] sm:$0xff] %vm230, 0.0
        %234 = vst.msk [vmem:[#allocation2 + $0x18] sm:$0xff] %vm230, 0.0
        %235 = vst.msk [vmem:[#allocation2 + $0x20] sm:$0xff] %vm230, 0.0
        %236 = vst.msk [vmem:[#allocation2 + $0x28] sm:$0xff] %vm230, 0.0
        %237 = vst.msk [vmem:[#allocation2 + $0x30] sm:$0xff] %vm230, 0.0
        %238 = vst.msk [vmem:[#allocation2 + $0x38] sm:$0xff] %vm230, 0.0
        %239 = vst.msk [vmem:[#allocation2 + $0x40] sm:$0xff] %vm230, 0.0
        %240 = vst.msk [vmem:[#allocation2 + $0x48] sm:$0xff] %vm230, 0.0
        %241 = vst.msk [vmem:[#allocation2 + $0x50] sm:$0xff] %vm230, 0.0
        %242 = vst.msk [vmem:[#allocation2 + $0x58] sm:$0xff] %vm230, 0.0
        %243 = vst.msk [vmem:[#allocation2 + $0x60] sm:$0xff] %vm230, 0.0
        %244 = vst.msk [vmem:[#allocation2 + $0x68] sm:$0xff] %vm230, 0.0
        %245 = vst.msk [vmem:[#allocation2 + $0x70] sm:$0xff] %vm230, 0.0
        %246 = vst.msk [vmem:[#allocation2 + $0x78] sm:$0xff] %vm230, 0.0
      $region44: #{discriminator_forward.4} parent=39 // pred_fallthru
        _
      %v247 = vld [vmem:[%s219] sm:$0xff]
      %v248 = vld [vmem:[%s219 + $0x8] sm:$0xff]
      %v249 = vld [vmem:[%s219 + $0x10] sm:$0xff]
      %v250 = vld [vmem:[%s219 + $0x18] sm:$0xf]
      %v251 = vld [vmem:[%s219 + $0x1c] sm:$0xff]
      %v252 = vld [vmem:[%s219 + $0x24] sm:$0xff]
      %v253 = vld [vmem:[%s219 + $0x2c] sm:$0xff]
      %v254 = vld [vmem:[%s219 + $0x34] sm:$0xf]
      %v255 = vld [vmem:[%s219 + $0x38] sm:$0xff]
      %v256 = vld [vmem:[%s219 + $0x40] sm:$0xff]
      %v257 = vld [vmem:[%s219 + $0x48] sm:$0xff]
      %v258 = vld [vmem:[%s219 + $0x50] sm:$0xf]
      %v259 = vld [vmem:[%s219 + $0x54] sm:$0xff]
      %v260 = vld [vmem:[%s219 + $0x5c] sm:$0xff]
      %v261 = vld [vmem:[%s219 + $0x64] sm:$0xff]
      %v262 = vld [vmem:[%s219 + $0x6c] sm:$0xf]
      %v263 = vld [vmem:[%s219 + $0x70] sm:$0xff]
      %v264 = vld [vmem:[%s219 + $0x78] sm:$0xff]
      %v265 = vld [vmem:[%s219 + $0x80] sm:$0xff]
      %v266 = vld [vmem:[%s219 + $0x88] sm:$0xf]
      %v267 = vld [vmem:[%s219 + $0x8c] sm:$0xff]
      %v268 = vld [vmem:[%s219 + $0x94] sm:$0xff]
      %v269 = vld [vmem:[%s219 + $0x9c] sm:$0xff]
      %v270 = vld [vmem:[%s219 + $0xa4] sm:$0xf]
      %v271 = vld [vmem:[%s219 + $0xa8] sm:$0xff]
      %v272 = vld [vmem:[%s219 + $0xb0] sm:$0xff]
      %v273 = vld [vmem:[%s219 + $0xb8] sm:$0xff]
      %v274 = vld [vmem:[%s219 + $0xc0] sm:$0xf]
      %v275 = vld [vmem:[%s219 + $0xc4] sm:$0xff]
      %v276 = vld [vmem:[%s219 + $0xcc] sm:$0xff]
      %v277 = vld [vmem:[%s219 + $0xd4] sm:$0xff]
      %v278 = vld [vmem:[%s219 + $0xdc] sm:$0xf]
      %v279 = vld [vmem:[%s219 + $0xe0] sm:$0xff]
      %v280 = vld [vmem:[%s219 + $0xe8] sm:$0xff]
      %v281 = vld [vmem:[%s219 + $0xf0] sm:$0xff]
      %v282 = vld [vmem:[%s219 + $0xf8] sm:$0xf]
      %v283 = vld [vmem:[%s219 + $0xfc] sm:$0xff]
      %v284 = vld [vmem:[%s219 + $0x104] sm:$0xff]
      %v285 = vld [vmem:[%s219 + $0x10c] sm:$0xff]
      %v286 = vld [vmem:[%s219 + $0x114] sm:$0xf]
      %v287 = vld [vmem:[%s219 + $0x118] sm:$0xff]
      %v288 = vld [vmem:[%s219 + $0x120] sm:$0xff]
      %v289 = vld [vmem:[%s219 + $0x128] sm:$0xff]
      %v290 = vld [vmem:[%s219 + $0x130] sm:$0xf]
      %v291 = vld [vmem:[%s219 + $0x134] sm:$0xff]
      %v292 = vld [vmem:[%s219 + $0x13c] sm:$0xff]
      %v293 = vld [vmem:[%s219 + $0x144] sm:$0xff]
      %v294 = vld [vmem:[%s219 + $0x14c] sm:$0xf]
      %v295 = vld [vmem:[%s219 + $0x150] sm:$0xff]
      %v296 = vld [vmem:[%s219 + $0x158] sm:$0xff]
      %v297 = vld [vmem:[%s219 + $0x160] sm:$0xff]
      %v298 = vld [vmem:[%s219 + $0x168] sm:$0xf]
      %v299 = vld [vmem:[%s219 + $0x16c] sm:$0xff]
      %v300 = vld [vmem:[%s219 + $0x174] sm:$0xff]
      %v301 = vld [vmem:[%s219 + $0x17c] sm:$0xff]
      %v302 = vld [vmem:[%s219 + $0x184] sm:$0xf]
      %v303 = vld [vmem:[%s219 + $0x188] sm:$0xff]
      %v304 = vld [vmem:[%s219 + $0x190] sm:$0xff]
      %v305 = vld [vmem:[%s219 + $0x198] sm:$0xff]
      %v306 = vld [vmem:[%s219 + $0x1a0] sm:$0xf]
      %v307 = vld [vmem:[%s219 + $0x1a4] sm:$0xff]
      %v308 = vld [vmem:[%s219 + $0x1ac] sm:$0xff]
      %v309 = vld [vmem:[%s219 + $0x1b4] sm:$0xff]
      %v310 = vld [vmem:[%s219 + $0x1bc] sm:$0xf]
      %v311 = vld [vmem:[%s1] sm:$0xf]
      %v312 = vld [vmem:[%s1 + $0x4] sm:$0xf]
      %v313 = vld [vmem:[%s1 + $0x8] sm:$0xf]
      %v314 = vld [vmem:[%s1 + $0xc] sm:$0xf]
      %v315 = vld [vmem:[%s1 + $0x10] sm:$0xf]
      %v316 = vld [vmem:[%s1 + $0x14] sm:$0xf]
      %v317 = vld [vmem:[%s1 + $0x18] sm:$0xf]
      %v318 = vld [vmem:[%s1 + $0x1c] sm:$0xf]
      %v319 = vld [vmem:[%s1 + $0x20] sm:$0xf]
      %v320 = vld [vmem:[%s1 + $0x24] sm:$0xf]
      %v321 = vld [vmem:[%s1 + $0x28] sm:$0xf]
      %v322 = vld [vmem:[%s1 + $0x2c] sm:$0xf]
      %v323 = vld [vmem:[%s1 + $0x30] sm:$0xf]
      %v324 = vld [vmem:[%s1 + $0x34] sm:$0xf]
      %v325 = vld [vmem:[%s1 + $0x38] sm:$0xf]
      %v326 = vld [vmem:[%s1 + $0x3c] sm:$0xf]
      %v327 = vld [vmem:[%s1 + $0x40] sm:$0xf]
      %v328 = vld [vmem:[%s1 + $0x44] sm:$0xf]
      %v329 = vld [vmem:[%s1 + $0x48] sm:$0xf]
      %v330 = vld [vmem:[%s1 + $0x4c] sm:$0xf]
      %v331 = vld [vmem:[%s1 + $0x50] sm:$0xf]
      %v332 = vld [vmem:[%s1 + $0x54] sm:$0xf]
      %v333 = vld [vmem:[%s1 + $0x58] sm:$0xf]
      %v334 = vld [vmem:[%s1 + $0x5c] sm:$0xf]
      %v335 = vld [vmem:[%s1 + $0x60] sm:$0xf]
      %v336 = vld [vmem:[%s1 + $0x64] sm:$0xf]
      %v337 = vld [vmem:[%s1 + $0x68] sm:$0xf]
      %v338 = vld [vmem:[%s1 + $0x6c] sm:$0xf]
      %v339 = vld [vmem:[%s1 + $0x70] sm:$0xf]
      %v340 = vld [vmem:[%s1 + $0x74] sm:$0xf]
      %v341 = vld [vmem:[%s1 + $0x78] sm:$0xf]
      %v342 = vld [vmem:[%s1 + $0x7c] sm:$0xf]
      %v343 = vld [vmem:[%s1 + $0x80] sm:$0xf]
      %v344 = vld [vmem:[%s1 + $0x84] sm:$0xf]
      %v345 = vld [vmem:[%s1 + $0x88] sm:$0xf]
      %v346 = vld [vmem:[%s1 + $0x8c] sm:$0xf]
      %v347 = vld [vmem:[%s1 + $0x90] sm:$0xf]
      %v348 = vld [vmem:[%s1 + $0x94] sm:$0xf]
      %v349 = vld [vmem:[%s1 + $0x98] sm:$0xf]
      %v350 = vld [vmem:[%s1 + $0x9c] sm:$0xf]
      %v351 = vld [vmem:[%s1 + $0xa0] sm:$0xf]
      %v352 = vld [vmem:[%s1 + $0xa4] sm:$0xf]
      %v353 = vld [vmem:[%s1 + $0xa8] sm:$0xf]
      %v354 = vld [vmem:[%s1 + $0xac] sm:$0xf]
      %v355 = vld [vmem:[%s1 + $0xb0] sm:$0xf]
      %v356 = vld [vmem:[%s1 + $0xb4] sm:$0xf]
      %v357 = vld [vmem:[%s1 + $0xb8] sm:$0xf]
      %v358 = vld [vmem:[%s1 + $0xbc] sm:$0xf]
      %v359 = vld [vmem:[%s1 + $0xc0] sm:$0xf]
      %v360 = vld [vmem:[%s1 + $0xc4] sm:$0xf]
      %v361 = vld [vmem:[%s1 + $0xc8] sm:$0xf]
      %v362 = vld [vmem:[%s1 + $0xcc] sm:$0xf]
      %v363 = vld [vmem:[%s1 + $0xd0] sm:$0xf]
      %v364 = vld [vmem:[%s1 + $0xd4] sm:$0xf]
      %v365 = vld [vmem:[%s1 + $0xd8] sm:$0xf]
      %v366 = vld [vmem:[%s1 + $0xdc] sm:$0xf]
      %v367 = vld [vmem:[%s1 + $0xe0] sm:$0xf]
      %v368 = vld [vmem:[%s1 + $0xe4] sm:$0xf]
      %v369 = vld [vmem:[%s1 + $0xe8] sm:$0xf]
      %v370 = vld [vmem:[%s1 + $0xec] sm:$0xf]
      %v371 = vld [vmem:[%s1 + $0xf0] sm:$0xf]
      %v372 = vld [vmem:[%s1 + $0xf4] sm:$0xf]
      %v373 = vld [vmem:[%s1 + $0xf8] sm:$0xf]
      %v374 = vld [vmem:[%s1 + $0xfc] sm:$0xf]
      %v375 = vld [vmem:[%s1 + $0x100] sm:$0xf]
      %v376 = vld [vmem:[%s1 + $0x104] sm:$0xf]
      %v377 = vld [vmem:[%s1 + $0x108] sm:$0xf]
      %v378 = vld [vmem:[%s1 + $0x10c] sm:$0xf]
      %v379 = vld [vmem:[%s1 + $0x110] sm:$0xf]
      %v380 = vld [vmem:[%s1 + $0x114] sm:$0xf]
      %v381 = vld [vmem:[%s1 + $0x118] sm:$0xf]
      %v382 = vld [vmem:[%s1 + $0x11c] sm:$0xf]
      %v383 = vld [vmem:[%s1 + $0x120] sm:$0xf]
      %v384 = vld [vmem:[%s1 + $0x124] sm:$0xf]
      %v385 = vld [vmem:[%s1 + $0x128] sm:$0xf]
      %v386 = vld [vmem:[%s1 + $0x12c] sm:$0xf]
      %v387 = vld [vmem:[%s1 + $0x130] sm:$0xf]
      %v388 = vld [vmem:[%s1 + $0x134] sm:$0xf]
      %v389 = vld [vmem:[%s1 + $0x138] sm:$0xf]
      %v390 = vld [vmem:[%s1 + $0x13c] sm:$0xf]
      %v391 = vld [vmem:[%s1 + $0x140] sm:$0xf]
      %v392 = vld [vmem:[%s1 + $0x144] sm:$0xf]
      %v393 = vld [vmem:[%s1 + $0x148] sm:$0xf]
      %v394 = vld [vmem:[%s1 + $0x14c] sm:$0xf]
      %v395 = vld [vmem:[%s1 + $0x150] sm:$0xf]
      %v396 = vld [vmem:[%s1 + $0x154] sm:$0xf]
      %v397 = vld [vmem:[%s1 + $0x158] sm:$0xf]
      %v398 = vld [vmem:[%s1 + $0x15c] sm:$0xf]
      %v399 = vld [vmem:[%s1 + $0x160] sm:$0xf]
      %v400 = vld [vmem:[%s1 + $0x164] sm:$0xf]
      %v401 = vld [vmem:[%s1 + $0x168] sm:$0xf]
      %v402 = vld [vmem:[%s1 + $0x16c] sm:$0xf]
      %v403 = vld [vmem:[%s1 + $0x170] sm:$0xf]
      %v404 = vld [vmem:[%s1 + $0x174] sm:$0xf]
      %v405 = vld [vmem:[%s1 + $0x178] sm:$0xf]
      %v406 = vld [vmem:[%s1 + $0x17c] sm:$0xf]
      %v407 = vld [vmem:[%s1 + $0x180] sm:$0xf]
      %v408 = vld [vmem:[%s1 + $0x184] sm:$0xf]
      %v409 = vld [vmem:[%s1 + $0x188] sm:$0xf]
      %v410 = vld [vmem:[%s1 + $0x18c] sm:$0xf]
      %v411 = vld [vmem:[%s2] sm:$0x1]
      %v413 = vlaneseq
      %v414 = vshrl.u32 %v413, 7
      %v415 = vsub.s32 0, %v414
      %v416 = vrot.slane %v411, %v415
      %v482 = vunpack.c.l.b16 %v247
      %v483 = vunpack.c.h.b16 %v247
      %v484 = vunpack.c.l.b16 %v248
      %v485 = vunpack.c.h.b16 %v248
      %v486 = vunpack.c.l.b16 %v249
      %v487 = vunpack.c.h.b16 %v249
      %v488 = vunpack.c.l.b16 %v250
      %v489 = vunpack.c.l.b16 %v251
      %v490 = vunpack.c.h.b16 %v251
      %v491 = vunpack.c.l.b16 %v252
      %v492 = vunpack.c.h.b16 %v252
      %v493 = vunpack.c.l.b16 %v253
      %v494 = vunpack.c.h.b16 %v253
      %v495 = vunpack.c.l.b16 %v254
      %v496 = vunpack.c.l.b16 %v255
      %v497 = vunpack.c.h.b16 %v255
      %v498 = vunpack.c.l.b16 %v256
      %v499 = vunpack.c.h.b16 %v256
      %v500 = vunpack.c.l.b16 %v257
      %v501 = vunpack.c.h.b16 %v257
      %v502 = vunpack.c.l.b16 %v258
      %v503 = vunpack.c.l.b16 %v259
      %v504 = vunpack.c.h.b16 %v259
      %v505 = vunpack.c.l.b16 %v260
      %v506 = vunpack.c.h.b16 %v260
      %v507 = vunpack.c.l.b16 %v261
      %v508 = vunpack.c.h.b16 %v261
      %v509 = vunpack.c.l.b16 %v262
      %v510 = vunpack.c.l.b16 %v263
      %v511 = vunpack.c.h.b16 %v263
      %v512 = vunpack.c.l.b16 %v264
      %v513 = vunpack.c.h.b16 %v264
      %v514 = vunpack.c.l.b16 %v265
      %v515 = vunpack.c.h.b16 %v265
      %v516 = vunpack.c.l.b16 %v266
      %v517 = vunpack.c.l.b16 %v267
      %v518 = vunpack.c.h.b16 %v267
      %v519 = vunpack.c.l.b16 %v268
      %v520 = vunpack.c.h.b16 %v268
      %v521 = vunpack.c.l.b16 %v269
      %v522 = vunpack.c.h.b16 %v269
      %v523 = vunpack.c.l.b16 %v270
      %v524 = vunpack.c.l.b16 %v271
      %v525 = vunpack.c.h.b16 %v271
      %v526 = vunpack.c.l.b16 %v272
      %v527 = vunpack.c.h.b16 %v272
      %v528 = vunpack.c.l.b16 %v273
      %v529 = vunpack.c.h.b16 %v273
      %v530 = vunpack.c.l.b16 %v274
      %v531 = vunpack.c.l.b16 %v275
      %v532 = vunpack.c.h.b16 %v275
      %v533 = vunpack.c.l.b16 %v276
      %v534 = vunpack.c.h.b16 %v276
      %v535 = vunpack.c.l.b16 %v277
      %v536 = vunpack.c.h.b16 %v277
      %v537 = vunpack.c.l.b16 %v278
      %v538 = vunpack.c.l.b16 %v279
      %v539 = vunpack.c.h.b16 %v279
      %v540 = vunpack.c.l.b16 %v280
      %v541 = vunpack.c.h.b16 %v280
      %v542 = vunpack.c.l.b16 %v281
      %v543 = vunpack.c.h.b16 %v281
      %v544 = vunpack.c.l.b16 %v282
      %v545 = vunpack.c.l.b16 %v283
      %v546 = vunpack.c.h.b16 %v283
      %v547 = vunpack.c.l.b16 %v284
      %v548 = vunpack.c.h.b16 %v284
      %v549 = vunpack.c.l.b16 %v285
      %v550 = vunpack.c.h.b16 %v285
      %v551 = vunpack.c.l.b16 %v286
      %v552 = vunpack.c.l.b16 %v287
      %v553 = vunpack.c.h.b16 %v287
      %v554 = vunpack.c.l.b16 %v288
      %v555 = vunpack.c.h.b16 %v288
      %v556 = vunpack.c.l.b16 %v289
      %v557 = vunpack.c.h.b16 %v289
      %v558 = vunpack.c.l.b16 %v290
      %v559 = vunpack.c.l.b16 %v291
      %v560 = vunpack.c.h.b16 %v291
      %v561 = vunpack.c.l.b16 %v292
      %v562 = vunpack.c.h.b16 %v292
      %v563 = vunpack.c.l.b16 %v293
      %v564 = vunpack.c.h.b16 %v293
      %v565 = vunpack.c.l.b16 %v294
      %v566 = vunpack.c.l.b16 %v295
      %v567 = vunpack.c.h.b16 %v295
      %v568 = vunpack.c.l.b16 %v296
      %v569 = vunpack.c.h.b16 %v296
      %v570 = vunpack.c.l.b16 %v297
      %v571 = vunpack.c.h.b16 %v297
      %v572 = vunpack.c.l.b16 %v298
      %v573 = vunpack.c.l.b16 %v299
      %v574 = vunpack.c.h.b16 %v299
      %v575 = vunpack.c.l.b16 %v300
      %v576 = vunpack.c.h.b16 %v300
      %v577 = vunpack.c.l.b16 %v301
      %v578 = vunpack.c.h.b16 %v301
      %v579 = vunpack.c.l.b16 %v302
      %v580 = vunpack.c.l.b16 %v303
      %v581 = vunpack.c.h.b16 %v303
      %v582 = vunpack.c.l.b16 %v304
      %v583 = vunpack.c.h.b16 %v304
      %v584 = vunpack.c.l.b16 %v305
      %v585 = vunpack.c.h.b16 %v305
      %v586 = vunpack.c.l.b16 %v306
      %v587 = vunpack.c.l.b16 %v307
      %v588 = vunpack.c.h.b16 %v307
      %v589 = vunpack.c.l.b16 %v308
      %v590 = vunpack.c.h.b16 %v308
      %v591 = vunpack.c.l.b16 %v309
      %v592 = vunpack.c.h.b16 %v309
      %v593 = vunpack.c.l.b16 %v310
      %v594 = vpack.c.b16 %v489, %v482
      %v595 = vpack.c.b16 %v490, %v483
      %v596 = vpack.c.b16 %v491, %v484
      %v597 = vpack.c.b16 %v492, %v485
      %v598 = vpack.c.b16 %v493, %v486
      %v599 = vpack.c.b16 %v494, %v487
      %v600 = vpack.c.b16 %v495, %v488
      %v601 = vpack.c.b16 %v503, %v496
      %v602 = vpack.c.b16 %v504, %v497
      %v603 = vpack.c.b16 %v505, %v498
      %v604 = vpack.c.b16 %v506, %v499
      %v605 = vpack.c.b16 %v507, %v500
      %v606 = vpack.c.b16 %v508, %v501
      %v607 = vpack.c.b16 %v509, %v502
      %v608 = vpack.c.b16 %v517, %v510
      %v609 = vpack.c.b16 %v518, %v511
      %v610 = vpack.c.b16 %v519, %v512
      %v611 = vpack.c.b16 %v520, %v513
      %v612 = vpack.c.b16 %v521, %v514
      %v613 = vpack.c.b16 %v522, %v515
      %v614 = vpack.c.b16 %v523, %v516
      %v615 = vpack.c.b16 %v531, %v524
      %v616 = vpack.c.b16 %v532, %v525
      %v617 = vpack.c.b16 %v533, %v526
      %v618 = vpack.c.b16 %v534, %v527
      %v619 = vpack.c.b16 %v535, %v528
      %v620 = vpack.c.b16 %v536, %v529
      %v621 = vpack.c.b16 %v537, %v530
      %v622 = vpack.c.b16 %v545, %v538
      %v623 = vpack.c.b16 %v546, %v539
      %v624 = vpack.c.b16 %v547, %v540
      %v625 = vpack.c.b16 %v548, %v541
      %v626 = vpack.c.b16 %v549, %v542
      %v627 = vpack.c.b16 %v550, %v543
      %v628 = vpack.c.b16 %v551, %v544
      %v629 = vpack.c.b16 %v559, %v552
      %v630 = vpack.c.b16 %v560, %v553
      %v631 = vpack.c.b16 %v561, %v554
      %v632 = vpack.c.b16 %v562, %v555
      %v633 = vpack.c.b16 %v563, %v556
      %v634 = vpack.c.b16 %v564, %v557
      %v635 = vpack.c.b16 %v565, %v558
      %v636 = vpack.c.b16 %v573, %v566
      %v637 = vpack.c.b16 %v574, %v567
      %v638 = vpack.c.b16 %v575, %v568
      %v639 = vpack.c.b16 %v576, %v569
      %v640 = vpack.c.b16 %v577, %v570
      %v641 = vpack.c.b16 %v578, %v571
      %v642 = vpack.c.b16 %v579, %v572
      %v643 = vpack.c.b16 %v587, %v580
      %v644 = vpack.c.b16 %v588, %v581
      %v645 = vpack.c.b16 %v589, %v582
      %v646 = vpack.c.b16 %v590, %v583
      %v647 = vpack.c.b16 %v591, %v584
      %v648 = vpack.c.b16 %v592, %v585
      %v649 = vpack.c.b16 %v593, %v586
      %v798 = vunpack.c.l.b16 %v311
      %v799 = vunpack.c.l.b16 %v312
      %v800 = vunpack.c.l.b16 %v313
      %v801 = vunpack.c.l.b16 %v314
      %v802 = vunpack.c.l.b16 %v315
      %v803 = vunpack.c.l.b16 %v316
      %v804 = vunpack.c.l.b16 %v317
      %v805 = vunpack.c.l.b16 %v318
      %v806 = vunpack.c.l.b16 %v319
      %v807 = vunpack.c.l.b16 %v320
      %v808 = vunpack.c.l.b16 %v321
      %v809 = vunpack.c.l.b16 %v322
      %v810 = vunpack.c.l.b16 %v323
      %v811 = vunpack.c.l.b16 %v324
      %v812 = vunpack.c.l.b16 %v325
      %v813 = vunpack.c.l.b16 %v326
      %v814 = vunpack.c.l.b16 %v327
      %v815 = vunpack.c.l.b16 %v328
      %v816 = vunpack.c.l.b16 %v329
      %v817 = vunpack.c.l.b16 %v330
      %v818 = vunpack.c.l.b16 %v331
      %v819 = vunpack.c.l.b16 %v332
      %v820 = vunpack.c.l.b16 %v333
      %v821 = vunpack.c.l.b16 %v334
      %v822 = vunpack.c.l.b16 %v335
      %v823 = vunpack.c.l.b16 %v336
      %v824 = vunpack.c.l.b16 %v337
      %v825 = vunpack.c.l.b16 %v338
      %v826 = vunpack.c.l.b16 %v339
      %v827 = vunpack.c.l.b16 %v340
      %v828 = vunpack.c.l.b16 %v341
      %v829 = vunpack.c.l.b16 %v342
      %v830 = vunpack.c.l.b16 %v343
      %v831 = vunpack.c.l.b16 %v344
      %v832 = vunpack.c.l.b16 %v345
      %v833 = vunpack.c.l.b16 %v346
      %v834 = vunpack.c.l.b16 %v347
      %v835 = vunpack.c.l.b16 %v348
      %v836 = vunpack.c.l.b16 %v349
      %v837 = vunpack.c.l.b16 %v350
      %v838 = vunpack.c.l.b16 %v351
      %v839 = vunpack.c.l.b16 %v352
      %v840 = vunpack.c.l.b16 %v353
      %v841 = vunpack.c.l.b16 %v354
      %v842 = vunpack.c.l.b16 %v355
      %v843 = vunpack.c.l.b16 %v356
      %v844 = vunpack.c.l.b16 %v357
      %v845 = vunpack.c.l.b16 %v358
      %v846 = vunpack.c.l.b16 %v359
      %v847 = vunpack.c.l.b16 %v360
      %v848 = vunpack.c.l.b16 %v361
      %v849 = vunpack.c.l.b16 %v362
      %v850 = vunpack.c.l.b16 %v363
      %v851 = vunpack.c.l.b16 %v364
      %v852 = vunpack.c.l.b16 %v365
      %v853 = vunpack.c.l.b16 %v366
      %v854 = vunpack.c.l.b16 %v367
      %v855 = vunpack.c.l.b16 %v368
      %v856 = vunpack.c.l.b16 %v369
      %v857 = vunpack.c.l.b16 %v370
      %v858 = vunpack.c.l.b16 %v371
      %v859 = vunpack.c.l.b16 %v372
      %v860 = vunpack.c.l.b16 %v373
      %v861 = vunpack.c.l.b16 %v374
      %v862 = vunpack.c.l.b16 %v375
      %v863 = vunpack.c.l.b16 %v376
      %v864 = vunpack.c.l.b16 %v377
      %v865 = vunpack.c.l.b16 %v378
      %v866 = vunpack.c.l.b16 %v379
      %v867 = vunpack.c.l.b16 %v380
      %v868 = vunpack.c.l.b16 %v381
      %v869 = vunpack.c.l.b16 %v382
      %v870 = vunpack.c.l.b16 %v383
      %v871 = vunpack.c.l.b16 %v384
      %v872 = vunpack.c.l.b16 %v385
      %v873 = vunpack.c.l.b16 %v386
      %v874 = vunpack.c.l.b16 %v387
      %v875 = vunpack.c.l.b16 %v388
      %v876 = vunpack.c.l.b16 %v389
      %v877 = vunpack.c.l.b16 %v390
      %v878 = vunpack.c.l.b16 %v391
      %v879 = vunpack.c.l.b16 %v392
      %v880 = vunpack.c.l.b16 %v393
      %v881 = vunpack.c.l.b16 %v394
      %v882 = vunpack.c.l.b16 %v395
      %v883 = vunpack.c.l.b16 %v396
      %v884 = vunpack.c.l.b16 %v397
      %v885 = vunpack.c.l.b16 %v398
      %v886 = vunpack.c.l.b16 %v399
      %v887 = vunpack.c.l.b16 %v400
      %v888 = vunpack.c.l.b16 %v401
      %v889 = vunpack.c.l.b16 %v402
      %v890 = vunpack.c.l.b16 %v403
      %v891 = vunpack.c.l.b16 %v404
      %v892 = vunpack.c.l.b16 %v405
      %v893 = vunpack.c.l.b16 %v406
      %v894 = vunpack.c.l.b16 %v407
      %v895 = vunpack.c.l.b16 %v408
      %v896 = vunpack.c.l.b16 %v409
      %v897 = vunpack.c.l.b16 %v410
      %v898 = vpack.c.b16 %v799, %v798
      %v899 = vpack.c.b16 %v801, %v800
      %v900 = vpack.c.b16 %v803, %v802
      %v901 = vpack.c.b16 %v805, %v804
      %v902 = vpack.c.b16 %v807, %v806
      %v903 = vpack.c.b16 %v809, %v808
      %v904 = vpack.c.b16 %v811, %v810
      %v905 = vpack.c.b16 %v813, %v812
      %v906 = vpack.c.b16 %v815, %v814
      %v907 = vpack.c.b16 %v817, %v816
      %v908 = vpack.c.b16 %v819, %v818
      %v909 = vpack.c.b16 %v821, %v820
      %v910 = vpack.c.b16 %v823, %v822
      %v911 = vpack.c.b16 %v825, %v824
      %v912 = vpack.c.b16 %v827, %v826
      %v913 = vpack.c.b16 %v829, %v828
      %v914 = vpack.c.b16 %v831, %v830
      %v915 = vpack.c.b16 %v833, %v832
      %v916 = vpack.c.b16 %v835, %v834
      %v917 = vpack.c.b16 %v837, %v836
      %v918 = vpack.c.b16 %v839, %v838
      %v919 = vpack.c.b16 %v841, %v840
      %v920 = vpack.c.b16 %v843, %v842
      %v921 = vpack.c.b16 %v845, %v844
      %v922 = vpack.c.b16 %v847, %v846
      %v923 = vpack.c.b16 %v849, %v848
      %v924 = vpack.c.b16 %v851, %v850
      %v925 = vpack.c.b16 %v853, %v852
      %v926 = vpack.c.b16 %v855, %v854
      %v927 = vpack.c.b16 %v857, %v856
      %v928 = vpack.c.b16 %v859, %v858
      %v929 = vpack.c.b16 %v861, %v860
      %v930 = vpack.c.b16 %v863, %v862
      %v931 = vpack.c.b16 %v865, %v864
      %v932 = vpack.c.b16 %v867, %v866
      %v933 = vpack.c.b16 %v869, %v868
      %v934 = vpack.c.b16 %v871, %v870
      %v935 = vpack.c.b16 %v873, %v872
      %v936 = vpack.c.b16 %v875, %v874
      %v937 = vpack.c.b16 %v877, %v876
      %v938 = vpack.c.b16 %v879, %v878
      %v939 = vpack.c.b16 %v881, %v880
      %v940 = vpack.c.b16 %v883, %v882
      %v941 = vpack.c.b16 %v885, %v884
      %v942 = vpack.c.b16 %v887, %v886
      %v943 = vpack.c.b16 %v889, %v888
      %v944 = vpack.c.b16 %v891, %v890
      %v945 = vpack.c.b16 %v893, %v892
      %v946 = vpack.c.b16 %v895, %v894
      %v947 = vpack.c.b16 %v897, %v896
      %vm998 = vcmask 261120
      %v1000 = vsel %vm998, %v600, 0
      %v1003 = vsel %vm998, %v607, 0
      %v1006 = vsel %vm998, %v614, 0
      %v1009 = vsel %vm998, %v621, 0
      %v1012 = vsel %vm998, %v628, 0
      %v1015 = vsel %vm998, %v635, 0
      %v1018 = vsel %vm998, %v642, 0
      %v1021 = vsel %vm998, %v649, 0
      %1023 = vmatprep.subr.bf16.mxu0 0
      %1024 = vmatpush1.bf16.msra.mxu0 %v898
      %1025 = vmatprep.subr.bf16.mxu0 0
      %1026 = vmatpush1.bf16.msra.mxu0 %v899
      %1027 = vmatprep.subr.bf16.mxu0 0
      %1028 = vmatpush1.bf16.msra.mxu0 %v900
      %1029 = vmatprep.subr.bf16.mxu0 0
      %1030 = vmatpush1.bf16.msra.mxu0 %v901
      %1031 = vmatprep.subr.bf16.mxu0 0
      %1032 = vmatpush1.bf16.msra.mxu0 %v902
      %1033 = vmatprep.subr.bf16.mxu0 0
      %1034 = vmatpush1.bf16.msra.mxu0 %v903
      %1035 = vmatprep.subr.bf16.mxu0 0
      %1036 = vmatpush1.bf16.msra.mxu0 %v904
      %1037 = vmatprep.subr.bf16.mxu0 0
      %1038 = vmatpush1.bf16.msra.mxu0 %v905
      %1039 = vmatprep.subr.bf16.mxu0 0
      %1040 = vmatpush1.bf16.msra.mxu0 %v906
      %1041 = vmatprep.subr.bf16.mxu0 0
      %1042 = vmatpush1.bf16.msra.mxu0 %v907
      %1043 = vmatprep.subr.bf16.mxu0 0
      %1044 = vmatpush1.bf16.msra.mxu0 %v908
      %1045 = vmatprep.subr.bf16.mxu0 0
      %1046 = vmatpush1.bf16.msra.mxu0 %v909
      %1047 = vmatprep.subr.bf16.mxu0 0
      %1048 = vmatpush1.bf16.msra.mxu0 %v910
      %1049 = vmatprep.subr.bf16.mxu0 0
      %1050 = vmatpush1.bf16.msra.mxu0 %v911
      %1051 = vmatprep.subr.bf16.mxu0 0
      %1052 = vmatpush1.bf16.msra.mxu0 %v912
      %1053 = vmatprep.subr.bf16.mxu0 0
      %1054 = vmatpush1.bf16.msra.mxu0 %v913
      %1055 = vmatprep.mubr.bf16.mxu0 %v595
      %1056 = vmatmul.mubr.bf16.gmra.mrb[0].mxu0 %v594
      %v1057 = vpop.f32.mrb[0].mxu0
      %v1058 = vadd.f32 %v416, %v1057
      %v1059 = vpop.f32.mrb[0].mxu0
      %v1060 = vpop.f32.mrb[0].mxu0
      %v1061 = vadd.f32 %v416, %v1060
      %v1062 = vpop.f32.mrb[0].mxu0
      %1063 = vmatprep.mubr.bf16.mxu0 %v602
      %1064 = vmatmul.mubr.bf16.gmra.mrb[0].mxu0 %v601
      %v1065 = vpop.f32.mrb[0].mxu0
      %v1066 = vadd.f32 %v416, %v1065
      %v1067 = vpop.f32.mrb[0].mxu0
      %v1068 = vpop.f32.mrb[0].mxu0
      %v1069 = vadd.f32 %v416, %v1068
      %v1070 = vpop.f32.mrb[0].mxu0
      %1071 = vmatprep.mubr.bf16.mxu0 %v609
      %1072 = vmatmul.mubr.bf16.gmra.mrb[0].mxu0 %v608
      %v1073 = vpop.f32.mrb[0].mxu0
      %v1074 = vadd.f32 %v416, %v1073
      %v1075 = vpop.f32.mrb[0].mxu0
      %v1076 = vpop.f32.mrb[0].mxu0
      %v1077 = vadd.f32 %v416, %v1076
      %v1078 = vpop.f32.mrb[0].mxu0
      %1079 = vmatprep.mubr.bf16.mxu0 %v616
      %1080 = vmatmul.mubr.bf16.gmra.mrb[0].mxu0 %v615
      %v1081 = vpop.f32.mrb[0].mxu0
      %v1082 = vadd.f32 %v416, %v1081
      %v1083 = vpop.f32.mrb[0].mxu0
      %v1084 = vpop.f32.mrb[0].mxu0
      %v1085 = vadd.f32 %v416, %v1084
      %v1086 = vpop.f32.mrb[0].mxu0
      %1087 = vmatprep.mubr.bf16.mxu0 %v623
      %1088 = vmatmul.mubr.bf16.gmra.mrb[0].mxu0 %v622
      %v1089 = vpop.f32.mrb[0].mxu0
      %v1090 = vadd.f32 %v416, %v1089
      %v1091 = vpop.f32.mrb[0].mxu0
      %v1092 = vpop.f32.mrb[0].mxu0
      %v1093 = vadd.f32 %v416, %v1092
      %v1094 = vpop.f32.mrb[0].mxu0
      %1095 = vmatprep.mubr.bf16.mxu0 %v630
      %1096 = vmatmul.mubr.bf16.gmra.mrb[0].mxu0 %v629
      %v1097 = vpop.f32.mrb[0].mxu0
      %v1098 = vadd.f32 %v416, %v1097
      %v1099 = vpop.f32.mrb[0].mxu0
      %v1100 = vpop.f32.mrb[0].mxu0
      %v1101 = vadd.f32 %v416, %v1100
      %v1102 = vpop.f32.mrb[0].mxu0
      %1103 = vmatprep.mubr.bf16.mxu0 %v637
      %1104 = vmatmul.mubr.bf16.gmra.mrb[0].mxu0 %v636
      %v1105 = vpop.f32.mrb[0].mxu0
      %v1106 = vadd.f32 %v416, %v1105
      %v1107 = vpop.f32.mrb[0].mxu0
      %v1108 = vpop.f32.mrb[0].mxu0
      %v1109 = vadd.f32 %v416, %v1108
      %v1110 = vpop.f32.mrb[0].mxu0
      %1111 = vmatprep.mubr.bf16.mxu0 %v644
      %1112 = vmatmul.mubr.bf16.gmra.mrb[0].mxu0 %v643
      %v1113 = vpop.f32.mrb[0].mxu0
      %v1114 = vadd.f32 %v416, %v1113
      %v1115 = vpop.f32.mrb[0].mxu0
      %v1116 = vpop.f32.mrb[0].mxu0
      %v1117 = vadd.f32 %v416, %v1116
      %v1118 = vpop.f32.mrb[0].mxu0
      %1119 = vdwg.mxu0
      %1120 = vmatprep.subr.bf16.mxu0 0
      %1121 = vmatpush1.bf16.msra.mxu0 %v914
      %1122 = vmatprep.subr.bf16.mxu0 0
      %1123 = vmatpush1.bf16.msra.mxu0 %v915
      %1124 = vmatprep.subr.bf16.mxu0 0
      %1125 = vmatpush1.bf16.msra.mxu0 %v916
      %1126 = vmatprep.subr.bf16.mxu0 0
      %1127 = vmatpush1.bf16.msra.mxu0 %v917
      %1128 = vmatprep.subr.bf16.mxu0 0
      %1129 = vmatpush1.bf16.msra.mxu0 %v918
      %1130 = vmatprep.subr.bf16.mxu0 0
      %1131 = vmatpush1.bf16.msra.mxu0 %v919
      %1132 = vmatprep.subr.bf16.mxu0 0
      %1133 = vmatpush1.bf16.msra.mxu0 %v920
      %1134 = vmatprep.subr.bf16.mxu0 0
      %1135 = vmatpush1.bf16.msra.mxu0 %v921
      %1136 = vmatprep.subr.bf16.mxu0 0
      %1137 = vmatpush1.bf16.msra.mxu0 %v922
      %1138 = vmatprep.subr.bf16.mxu0 0
      %1139 = vmatpush1.bf16.msra.mxu0 %v923
      %1140 = vmatprep.subr.bf16.mxu0 0
      %1141 = vmatpush1.bf16.msra.mxu0 %v924
      %1142 = vmatprep.subr.bf16.mxu0 0
      %1143 = vmatpush1.bf16.msra.mxu0 %v925
      %1144 = vmatprep.subr.bf16.mxu0 0
      %1145 = vmatpush1.bf16.msra.mxu0 %v926
      %1146 = vmatprep.subr.bf16.mxu0 0
      %1147 = vmatpush1.bf16.msra.mxu0 %v927
      %1148 = vmatprep.subr.bf16.mxu0 0
      %1149 = vmatpush1.bf16.msra.mxu0 %v928
      %1150 = vmatprep.subr.bf16.mxu0 0
      %1151 = vmatpush1.bf16.msra.mxu0 %v929
      %1152 = vmatprep.mubr.bf16.mxu0 %v597
      %1153 = vmatmul.mubr.bf16.gmra.mrb[0].mxu0 %v596
      %v1154 = vpop.f32.mrb[0].mxu0
      %v1155 = vadd.f32 %v1058, %v1154
      %v1156 = vpop.f32.mrb[0].mxu0
      %v1157 = vpop.f32.mrb[0].mxu0
      %v1158 = vadd.f32 %v1061, %v1157
      %v1159 = vpop.f32.mrb[0].mxu0
      %1160 = vmatprep.mubr.bf16.mxu0 %v604
      %1161 = vmatmul.mubr.bf16.gmra.mrb[0].mxu0 %v603
      %v1162 = vpop.f32.mrb[0].mxu0
      %v1163 = vadd.f32 %v1066, %v1162
      %v1164 = vpop.f32.mrb[0].mxu0
      %v1165 = vpop.f32.mrb[0].mxu0
      %v1166 = vadd.f32 %v1069, %v1165
      %v1167 = vpop.f32.mrb[0].mxu0
      %1168 = vmatprep.mubr.bf16.mxu0 %v611
      %1169 = vmatmul.mubr.bf16.gmra.mrb[0].mxu0 %v610
      %v1170 = vpop.f32.mrb[0].mxu0
      %v1171 = vadd.f32 %v1074, %v1170
      %v1172 = vpop.f32.mrb[0].mxu0
      %v1173 = vpop.f32.mrb[0].mxu0
      %v1174 = vadd.f32 %v1077, %v1173
      %v1175 = vpop.f32.mrb[0].mxu0
      %1176 = vmatprep.mubr.bf16.mxu0 %v618
      %1177 = vmatmul.mubr.bf16.gmra.mrb[0].mxu0 %v617
      %v1178 = vpop.f32.mrb[0].mxu0
      %v1179 = vadd.f32 %v1082, %v1178
      %v1180 = vpop.f32.mrb[0].mxu0
      %v1181 = vpop.f32.mrb[0].mxu0
      %v1182 = vadd.f32 %v1085, %v1181
      %v1183 = vpop.f32.mrb[0].mxu0
      %1184 = vmatprep.mubr.bf16.mxu0 %v625
      %1185 = vmatmul.mubr.bf16.gmra.mrb[0].mxu0 %v624
      %v1186 = vpop.f32.mrb[0].mxu0
      %v1187 = vadd.f32 %v1090, %v1186
      %v1188 = vpop.f32.mrb[0].mxu0
      %v1189 = vpop.f32.mrb[0].mxu0
      %v1190 = vadd.f32 %v1093, %v1189
      %v1191 = vpop.f32.mrb[0].mxu0
      %1192 = vmatprep.mubr.bf16.mxu0 %v632
      %1193 = vmatmul.mubr.bf16.gmra.mrb[0].mxu0 %v631
      %v1194 = vpop.f32.mrb[0].mxu0
      %v1195 = vadd.f32 %v1098, %v1194
      %v1196 = vpop.f32.mrb[0].mxu0
      %v1197 = vpop.f32.mrb[0].mxu0
      %v1198 = vadd.f32 %v1101, %v1197
      %v1199 = vpop.f32.mrb[0].mxu0
      %1200 = vmatprep.mubr.bf16.mxu0 %v639
      %1201 = vmatmul.mubr.bf16.gmra.mrb[0].mxu0 %v638
      %v1202 = vpop.f32.mrb[0].mxu0
      %v1203 = vadd.f32 %v1106, %v1202
      %v1204 = vpop.f32.mrb[0].mxu0
      %v1205 = vpop.f32.mrb[0].mxu0
      %v1206 = vadd.f32 %v1109, %v1205
      %v1207 = vpop.f32.mrb[0].mxu0
      %1208 = vmatprep.mubr.bf16.mxu0 %v646
      %1209 = vmatmul.mubr.bf16.gmra.mrb[0].mxu0 %v645
      %v1210 = vpop.f32.mrb[0].mxu0
      %v1211 = vadd.f32 %v1114, %v1210
      %v1212 = vpop.f32.mrb[0].mxu0
      %v1213 = vpop.f32.mrb[0].mxu0
      %v1214 = vadd.f32 %v1117, %v1213
      %v1215 = vpop.f32.mrb[0].mxu0
      %1216 = vdwg.mxu0
      %1217 = vmatprep.subr.bf16.mxu0 0
      %1218 = vmatpush1.bf16.msra.mxu0 %v930
      %1219 = vmatprep.subr.bf16.mxu0 0
      %1220 = vmatpush1.bf16.msra.mxu0 %v931
      %1221 = vmatprep.subr.bf16.mxu0 0
      %1222 = vmatpush1.bf16.msra.mxu0 %v932
      %1223 = vmatprep.subr.bf16.mxu0 0
      %1224 = vmatpush1.bf16.msra.mxu0 %v933
      %1225 = vmatprep.subr.bf16.mxu0 0
      %1226 = vmatpush1.bf16.msra.mxu0 %v934
      %1227 = vmatprep.subr.bf16.mxu0 0
      %1228 = vmatpush1.bf16.msra.mxu0 %v935
      %1229 = vmatprep.subr.bf16.mxu0 0
      %1230 = vmatpush1.bf16.msra.mxu0 %v936
      %1231 = vmatprep.subr.bf16.mxu0 0
      %1232 = vmatpush1.bf16.msra.mxu0 %v937
      %1233 = vmatprep.subr.bf16.mxu0 0
      %1234 = vmatpush1.bf16.msra.mxu0 %v938
      %1235 = vmatprep.subr.bf16.mxu0 0
      %1236 = vmatpush1.bf16.msra.mxu0 %v939
      %1237 = vmatprep.subr.bf16.mxu0 0
      %1238 = vmatpush1.bf16.msra.mxu0 %v940
      %1239 = vmatprep.subr.bf16.mxu0 0
      %1240 = vmatpush1.bf16.msra.mxu0 %v941
      %1241 = vmatprep.subr.bf16.mxu0 0
      %1242 = vmatpush1.bf16.msra.mxu0 %v942
      %1243 = vmatprep.subr.bf16.mxu0 0
      %1244 = vmatpush1.bf16.msra.mxu0 %v943
      %1245 = vmatprep.subr.bf16.mxu0 0
      %1246 = vmatpush1.bf16.msra.mxu0 %v944
      %1247 = vmatprep.subr.bf16.mxu0 0
      %1248 = vmatpush1.bf16.msra.mxu0 %v945
      %1249 = vmatprep.mubr.bf16.mxu0 %v599
      %1250 = vmatmul.mubr.bf16.gmra.mrb[0].mxu0 %v598
      %v1251 = vpop.f32.mrb[0].mxu0
      %v1252 = vadd.f32 %v1155, %v1251
      %v1253 = vpop.f32.mrb[0].mxu0
      %v1254 = vpop.f32.mrb[0].mxu0
      %v1255 = vadd.f32 %v1158, %v1254
      %v1256 = vpop.f32.mrb[0].mxu0
      %1257 = vmatprep.mubr.bf16.mxu0 %v606
      %1258 = vmatmul.mubr.bf16.gmra.mrb[0].mxu0 %v605
      %v1259 = vpop.f32.mrb[0].mxu0
      %v1260 = vadd.f32 %v1163, %v1259
      %v1261 = vpop.f32.mrb[0].mxu0
      %v1262 = vpop.f32.mrb[0].mxu0
      %v1263 = vadd.f32 %v1166, %v1262
      %v1264 = vpop.f32.mrb[0].mxu0
      %1265 = vmatprep.mubr.bf16.mxu0 %v613
      %1266 = vmatmul.mubr.bf16.gmra.mrb[0].mxu0 %v612
      %v1267 = vpop.f32.mrb[0].mxu0
      %v1268 = vadd.f32 %v1171, %v1267
      %v1269 = vpop.f32.mrb[0].mxu0
      %v1270 = vpop.f32.mrb[0].mxu0
      %v1271 = vadd.f32 %v1174, %v1270
      %v1272 = vpop.f32.mrb[0].mxu0
      %1273 = vmatprep.mubr.bf16.mxu0 %v620
      %1274 = vmatmul.mubr.bf16.gmra.mrb[0].mxu0 %v619
      %v1275 = vpop.f32.mrb[0].mxu0
      %v1276 = vadd.f32 %v1179, %v1275
      %v1277 = vpop.f32.mrb[0].mxu0
      %v1278 = vpop.f32.mrb[0].mxu0
      %v1279 = vadd.f32 %v1182, %v1278
      %v1280 = vpop.f32.mrb[0].mxu0
      %1281 = vmatprep.mubr.bf16.mxu0 %v627
      %1282 = vmatmul.mubr.bf16.gmra.mrb[0].mxu0 %v626
      %v1283 = vpop.f32.mrb[0].mxu0
      %v1284 = vadd.f32 %v1187, %v1283
      %v1285 = vpop.f32.mrb[0].mxu0
      %v1286 = vpop.f32.mrb[0].mxu0
      %v1287 = vadd.f32 %v1190, %v1286
      %v1288 = vpop.f32.mrb[0].mxu0
      %1289 = vmatprep.mubr.bf16.mxu0 %v634
      %1290 = vmatmul.mubr.bf16.gmra.mrb[0].mxu0 %v633
      %v1291 = vpop.f32.mrb[0].mxu0
      %v1292 = vadd.f32 %v1195, %v1291
      %v1293 = vpop.f32.mrb[0].mxu0
      %v1294 = vpop.f32.mrb[0].mxu0
      %v1295 = vadd.f32 %v1198, %v1294
      %v1296 = vpop.f32.mrb[0].mxu0
      %1297 = vmatprep.mubr.bf16.mxu0 %v641
      %1298 = vmatmul.mubr.bf16.gmra.mrb[0].mxu0 %v640
      %v1299 = vpop.f32.mrb[0].mxu0
      %v1300 = vadd.f32 %v1203, %v1299
      %v1301 = vpop.f32.mrb[0].mxu0
      %v1302 = vpop.f32.mrb[0].mxu0
      %v1303 = vadd.f32 %v1206, %v1302
      %v1304 = vpop.f32.mrb[0].mxu0
      %1305 = vmatprep.mubr.bf16.mxu0 %v648
      %1306 = vmatmul.mubr.bf16.gmra.mrb[0].mxu0 %v647
      %v1307 = vpop.f32.mrb[0].mxu0
      %v1308 = vadd.f32 %v1211, %v1307
      %v1309 = vpop.f32.mrb[0].mxu0
      %v1310 = vpop.f32.mrb[0].mxu0
      %v1311 = vadd.f32 %v1214, %v1310
      %v1312 = vpop.f32.mrb[0].mxu0
      %1313 = vdwg.mxu0
      %1314 = vmatprep.subr.bf16.mxu0 0
      %1315 = vmatpush1.bf16.msra.mxu0 %v946
      %1316 = vmatprep.subr.bf16.mxu0 0
      %1317 = vmatpush1.bf16.msra.mxu0 %v947
      %1318 = vmatprep.subr.bf16.mxu0 0
      %1319 = vmatpush1.bf16.msra.mxu0 0
      %1320 = vmatprep.subr.bf16.mxu0 0
      %1321 = vmatpush1.bf16.msra.mxu0 0
      %1322 = vmatprep.subr.bf16.mxu0 0
      %1323 = vmatpush1.bf16.msra.mxu0 0
      %1324 = vmatprep.subr.bf16.mxu0 0
      %1325 = vmatpush1.bf16.msra.mxu0 0
      %1326 = vmatprep.subr.bf16.mxu0 0
      %1327 = vmatpush1.bf16.msra.mxu0 0
      %1328 = vmatprep.subr.bf16.mxu0 0
      %1329 = vmatpush1.bf16.msra.mxu0 0
      %1330 = vmatprep.subr.bf16.mxu0 0
      %1331 = vmatpush1.bf16.msra.mxu0 0
      %1332 = vmatprep.subr.bf16.mxu0 0
      %1333 = vmatpush1.bf16.msra.mxu0 0
      %1334 = vmatprep.subr.bf16.mxu0 0
      %1335 = vmatpush1.bf16.msra.mxu0 0
      %1336 = vmatprep.subr.bf16.mxu0 0
      %1337 = vmatpush1.bf16.msra.mxu0 0
      %1338 = vmatprep.subr.bf16.mxu0 0
      %1339 = vmatpush1.bf16.msra.mxu0 0
      %1340 = vmatprep.subr.bf16.mxu0 0
      %1341 = vmatpush1.bf16.msra.mxu0 0
      %1342 = vmatprep.subr.bf16.mxu0 0
      %1343 = vmatpush1.bf16.msra.mxu0 0
      %1344 = vmatprep.subr.bf16.mxu0 0
      %1345 = vmatpush1.bf16.msra.mxu0 0
      %1346 = vmatprep.mubr.bf16.mxu0 0
      %1347 = vmatmul.mubr.bf16.gmra.mrb[0].mxu0 %v1000
      %v1348 = vpop.f32.mrb[0].mxu0
      %v1349 = vadd.f32 %v1252, %v1348
      %v1350 = vpop.f32.mrb[0].mxu0
      %v1351 = vpop.f32.mrb[0].mxu0
      %v1352 = vadd.f32 %v1255, %v1351
      %v1353 = vpop.f32.mrb[0].mxu0
      %1354 = vmatprep.mubr.bf16.mxu0 0
      %1355 = vmatmul.mubr.bf16.gmra.mrb[0].mxu0 %v1003
      %v1356 = vpop.f32.mrb[0].mxu0
      %v1357 = vadd.f32 %v1260, %v1356
      %v1358 = vpop.f32.mrb[0].mxu0
      %v1359 = vpop.f32.mrb[0].mxu0
      %v1360 = vadd.f32 %v1263, %v1359
      %v1361 = vpop.f32.mrb[0].mxu0
      %1362 = vmatprep.mubr.bf16.mxu0 0
      %1363 = vmatmul.mubr.bf16.gmra.mrb[0].mxu0 %v1006
      %v1364 = vpop.f32.mrb[0].mxu0
      %v1365 = vadd.f32 %v1268, %v1364
      %v1366 = vpop.f32.mrb[0].mxu0
      %v1367 = vpop.f32.mrb[0].mxu0
      %v1368 = vadd.f32 %v1271, %v1367
      %v1369 = vpop.f32.mrb[0].mxu0
      %1370 = vmatprep.mubr.bf16.mxu0 0
      %1371 = vmatmul.mubr.bf16.gmra.mrb[0].mxu0 %v1009
      %v1372 = vpop.f32.mrb[0].mxu0
      %v1373 = vadd.f32 %v1276, %v1372
      %v1374 = vpop.f32.mrb[0].mxu0
      %v1375 = vpop.f32.mrb[0].mxu0
      %v1376 = vadd.f32 %v1279, %v1375
      %v1377 = vpop.f32.mrb[0].mxu0
      %1378 = vmatprep.mubr.bf16.mxu0 0
      %1379 = vmatmul.mubr.bf16.gmra.mrb[0].mxu0 %v1012
      %v1380 = vpop.f32.mrb[0].mxu0
      %v1381 = vadd.f32 %v1284, %v1380
      %v1382 = vpop.f32.mrb[0].mxu0
      %v1383 = vpop.f32.mrb[0].mxu0
      %v1384 = vadd.f32 %v1287, %v1383
      %v1385 = vpop.f32.mrb[0].mxu0
      %1386 = vmatprep.mubr.bf16.mxu0 0
      %1387 = vmatmul.mubr.bf16.gmra.mrb[0].mxu0 %v1015
      %v1388 = vpop.f32.mrb[0].mxu0
      %v1389 = vadd.f32 %v1292, %v1388
      %v1390 = vpop.f32.mrb[0].mxu0
      %v1391 = vpop.f32.mrb[0].mxu0
      %v1392 = vadd.f32 %v1295, %v1391
      %v1393 = vpop.f32.mrb[0].mxu0
      %1394 = vmatprep.mubr.bf16.mxu0 0
      %1395 = vmatmul.mubr.bf16.gmra.mrb[0].mxu0 %v1018
      %v1396 = vpop.f32.mrb[0].mxu0
      %v1397 = vadd.f32 %v1300, %v1396
      %v1398 = vpop.f32.mrb[0].mxu0
      %v1399 = vpop.f32.mrb[0].mxu0
      %v1400 = vadd.f32 %v1303, %v1399
      %v1401 = vpop.f32.mrb[0].mxu0
      %1402 = vmatprep.mubr.bf16.mxu0 0
      %1403 = vmatmul.mubr.bf16.gmra.mrb[0].mxu0 %v1021
      %v1404 = vpop.f32.mrb[0].mxu0
      %v1405 = vadd.f32 %v1308, %v1404
      %v1406 = vpop.f32.mrb[0].mxu0
      %v1407 = vpop.f32.mrb[0].mxu0
      %v1408 = vadd.f32 %v1311, %v1407
      %v1409 = vpop.f32.mrb[0].mxu0
      %1410 = vdwg.mxu0
      %vm1411 = vcmask 523264
      %v1412 = vsel %vm1411, %v1349, 0.0
      %v1413 = vsel %vm1411, %v1352, 0.0
      %v1414 = vadd.f32 %v1412, %v1413
      %v1415 = vsel %vm1411, %v1357, 0.0
      %v1416 = vadd.f32 %v1414, %v1415
      %v1417 = vsel %vm1411, %v1360, 0.0
      %v1418 = vadd.f32 %v1416, %v1417
      %v1419 = vsel %vm1411, %v1365, 0.0
      %v1420 = vadd.f32 %v1418, %v1419
      %v1421 = vsel %vm1411, %v1368, 0.0
      %v1422 = vadd.f32 %v1420, %v1421
      %v1423 = vsel %vm1411, %v1373, 0.0
      %v1424 = vadd.f32 %v1422, %v1423
      %v1425 = vsel %vm1411, %v1376, 0.0
      %v1426 = vadd.f32 %v1424, %v1425
      %v1427 = vsel %vm1411, %v1381, 0.0
      %v1428 = vadd.f32 %v1426, %v1427
      %v1429 = vsel %vm1411, %v1384, 0.0
      %v1430 = vadd.f32 %v1428, %v1429
      %v1431 = vsel %vm1411, %v1389, 0.0
      %v1432 = vadd.f32 %v1430, %v1431
      %v1433 = vsel %vm1411, %v1392, 0.0
      %v1434 = vadd.f32 %v1432, %v1433
      %v1435 = vsel %vm1411, %v1397, 0.0
      %v1436 = vadd.f32 %v1434, %v1435
      %v1437 = vsel %vm1411, %v1400, 0.0
      %v1438 = vadd.f32 %v1436, %v1437
      %v1439 = vsel %vm1411, %v1405, 0.0
      %v1440 = vadd.f32 %v1438, %v1439
      %v1441 = vsel %vm1411, %v1408, 0.0
      %v1442 = vadd.f32 %v1440, %v1441
      %v1443 = vrot.slane %v1442, 4
      %v1444 = vadd.f32 %v1442, %v1443
      %v1445 = vrot.slane %v1444, 2
      %v1446 = vadd.f32 %v1444, %v1445
      %v1447 = vrot.slane %v1446, 1
      %v1448 = vadd.f32 %v1446, %v1447
      %v1449 = vmul.f32 %v1349, %v1349
      %v1450 = vmul.f32 %v1352, %v1352
      %v1451 = vmul.f32 %v1357, %v1357
      %v1452 = vmul.f32 %v1360, %v1360
      %v1453 = vmul.f32 %v1365, %v1365
      %v1454 = vmul.f32 %v1368, %v1368
      %v1455 = vmul.f32 %v1373, %v1373
      %v1456 = vmul.f32 %v1376, %v1376
      %v1457 = vmul.f32 %v1381, %v1381
      %v1458 = vmul.f32 %v1384, %v1384
      %v1459 = vmul.f32 %v1389, %v1389
      %v1460 = vmul.f32 %v1392, %v1392
      %v1461 = vmul.f32 %v1397, %v1397
      %v1462 = vmul.f32 %v1400, %v1400
      %v1463 = vmul.f32 %v1405, %v1405
      %v1464 = vmul.f32 %v1408, %v1408
      %v1465 = vsel %vm1411, %v1449, 0.0
      %v1466 = vsel %vm1411, %v1450, 0.0
      %v1467 = vadd.f32 %v1465, %v1466
      %v1468 = vsel %vm1411, %v1451, 0.0
      %v1469 = vadd.f32 %v1467, %v1468
      %v1470 = vsel %vm1411, %v1452, 0.0
      %v1471 = vadd.f32 %v1469, %v1470
      %v1472 = vsel %vm1411, %v1453, 0.0
      %v1473 = vadd.f32 %v1471, %v1472
      %v1474 = vsel %vm1411, %v1454, 0.0
      %v1475 = vadd.f32 %v1473, %v1474
      %v1476 = vsel %vm1411, %v1455, 0.0
      %v1477 = vadd.f32 %v1475, %v1476
      %v1478 = vsel %vm1411, %v1456, 0.0
      %v1479 = vadd.f32 %v1477, %v1478
      %v1480 = vsel %vm1411, %v1457, 0.0
      %v1481 = vadd.f32 %v1479, %v1480
      %v1482 = vsel %vm1411, %v1458, 0.0
      %v1483 = vadd.f32 %v1481, %v1482
      %v1484 = vsel %vm1411, %v1459, 0.0
      %v1485 = vadd.f32 %v1483, %v1484
      %v1486 = vsel %vm1411, %v1460, 0.0
      %v1487 = vadd.f32 %v1485, %v1486
      %v1488 = vsel %vm1411, %v1461, 0.0
      %v1489 = vadd.f32 %v1487, %v1488
      %v1490 = vsel %vm1411, %v1462, 0.0
      %v1491 = vadd.f32 %v1489, %v1490
      %v1492 = vsel %vm1411, %v1463, 0.0
      %v1493 = vadd.f32 %v1491, %v1492
      %v1494 = vsel %vm1411, %v1464, 0.0
      %v1495 = vadd.f32 %v1493, %v1494
      %v1496 = vrot.slane %v1495, 4
      %v1497 = vadd.f32 %v1495, %v1496
      %v1498 = vrot.slane %v1497, 2
      %v1499 = vadd.f32 %v1497, %v1498
      %v1500 = vrot.slane %v1499, 1
      %v1501 = vadd.f32 %v1499, %v1500
      %v1502 = vmul.f32 %v1448, 0.0078125
      %v1503 = vmul.f32 %v1501, 0.0078125
      %v1504 = vmul.f32 %v1502, %v1502
      %v1505 = vsub.f32 %v1503, %v1504
      %v1506 = vsub.f32 %v1349, %v1502
      %v1507 = vsub.f32 %v1352, %v1502
      %v1508 = vsub.f32 %v1357, %v1502
      %v1509 = vsub.f32 %v1360, %v1502
      %v1510 = vsub.f32 %v1365, %v1502
      %v1511 = vsub.f32 %v1368, %v1502
      %v1512 = vsub.f32 %v1373, %v1502
      %v1513 = vsub.f32 %v1376, %v1502
      %v1514 = vsub.f32 %v1381, %v1502
      %v1515 = vsub.f32 %v1384, %v1502
      %v1516 = vsub.f32 %v1389, %v1502
      %v1517 = vsub.f32 %v1392, %v1502
      %v1518 = vsub.f32 %v1397, %v1502
      %v1519 = vsub.f32 %v1400, %v1502
      %v1520 = vsub.f32 %v1405, %v1502
      %v1521 = vsub.f32 %v1408, %v1502
      %v1522 = vadd.f32 %v1505, 1e-05
      %v1523 = vrsqrt.pop %v1522
      %v1524 = vmul.f32 %v1506, %v1523
      %v1525 = vmul.f32 %v1507, %v1523
      %v1526 = vmul.f32 %v1508, %v1523
      %v1527 = vmul.f32 %v1509, %v1523
      %v1528 = vmul.f32 %v1510, %v1523
      %v1529 = vmul.f32 %v1511, %v1523
      %v1530 = vmul.f32 %v1512, %v1523
      %v1531 = vmul.f32 %v1513, %v1523
      %v1532 = vmul.f32 %v1514, %v1523
      %v1533 = vmul.f32 %v1515, %v1523
      %v1534 = vmul.f32 %v1516, %v1523
      %v1535 = vmul.f32 %v1517, %v1523
      %v1536 = vmul.f32 %v1518, %v1523
      %v1537 = vmul.f32 %v1519, %v1523
      %v1538 = vmul.f32 %v1520, %v1523
      %v1539 = vmul.f32 %v1521, %v1523
      %v1540 = vld [vmem:[%s3] sm:$0x1]
      %v1542 = vlaneseq
      %v1543 = vshrl.u32 %v1542, 7
      %v1544 = vsub.s32 0, %v1543
      %v1545 = vrot.slane %v1540, %v1544
      %v1547 = vmul.f32 %v1524, %v1545
      %v1548 = vmul.f32 %v1525, %v1545
      %v1549 = vmul.f32 %v1526, %v1545
      %v1550 = vmul.f32 %v1527, %v1545
      %v1551 = vmul.f32 %v1528, %v1545
      %v1552 = vmul.f32 %v1529, %v1545
      %v1553 = vmul.f32 %v1530, %v1545
      %v1554 = vmul.f32 %v1531, %v1545
      %v1555 = vmul.f32 %v1532, %v1545
      %v1556 = vmul.f32 %v1533, %v1545
      %v1557 = vmul.f32 %v1534, %v1545
      %v1558 = vmul.f32 %v1535, %v1545
      %v1559 = vmul.f32 %v1536, %v1545
      %v1560 = vmul.f32 %v1537, %v1545
      %v1561 = vmul.f32 %v1538, %v1545
      %v1562 = vmul.f32 %v1539, %v1545
      %v1563 = vld [vmem:[%s4] sm:$0x1]
      %v1565 = vlaneseq
      %v1566 = vshrl.u32 %v1565, 7
      %v1567 = vsub.s32 0, %v1566
      %v1568 = vrot.slane %v1563, %v1567
      %v1570 = vadd.f32 %v1547, %v1568
      %v1571 = vadd.f32 %v1548, %v1568
      %v1572 = vadd.f32 %v1549, %v1568
      %v1573 = vadd.f32 %v1550, %v1568
      %v1574 = vadd.f32 %v1551, %v1568
      %v1575 = vadd.f32 %v1552, %v1568
      %v1576 = vadd.f32 %v1553, %v1568
      %v1577 = vadd.f32 %v1554, %v1568
      %v1578 = vadd.f32 %v1555, %v1568
      %v1579 = vadd.f32 %v1556, %v1568
      %v1580 = vadd.f32 %v1557, %v1568
      %v1581 = vadd.f32 %v1558, %v1568
      %v1582 = vadd.f32 %v1559, %v1568
      %v1583 = vadd.f32 %v1560, %v1568
      %v1584 = vadd.f32 %v1561, %v1568
      %v1585 = vadd.f32 %v1562, %v1568
      %v1586 = vld [vmem:[#allocation2] sm:$0xff]
      %v1587 = vld [vmem:[#allocation2 + $0x8] sm:$0xff]
      %v1588 = vld [vmem:[#allocation2 + $0x10] sm:$0xff]
      %v1589 = vld [vmem:[#allocation2 + $0x18] sm:$0xff]
      %v1590 = vld [vmem:[#allocation2 + $0x20] sm:$0xff]
      %v1591 = vld [vmem:[#allocation2 + $0x28] sm:$0xff]
      %v1592 = vld [vmem:[#allocation2 + $0x30] sm:$0xff]
      %v1593 = vld [vmem:[#allocation2 + $0x38] sm:$0xff]
      %v1594 = vld [vmem:[#allocation2 + $0x40] sm:$0xff]
      %v1595 = vld [vmem:[#allocation2 + $0x48] sm:$0xff]
      %v1596 = vld [vmem:[#allocation2 + $0x50] sm:$0xff]
      %v1597 = vld [vmem:[#allocation2 + $0x58] sm:$0xff]
      %v1598 = vld [vmem:[#allocation2 + $0x60] sm:$0xff]
      %v1599 = vld [vmem:[#allocation2 + $0x68] sm:$0xff]
      %v1600 = vld [vmem:[#allocation2 + $0x70] sm:$0xff]
      %v1601 = vld [vmem:[#allocation2 + $0x78] sm:$0xff]
      %v1602 = vsub.f32 %v1570, %v1586
      %v1603 = vsub.f32 %v1571, %v1587
      %v1604 = vsub.f32 %v1572, %v1588
      %v1605 = vsub.f32 %v1573, %v1589
      %v1606 = vsub.f32 %v1574, %v1590
      %v1607 = vsub.f32 %v1575, %v1591
      %v1608 = vsub.f32 %v1576, %v1592
      %v1609 = vsub.f32 %v1577, %v1593
      %v1610 = vsub.f32 %v1578, %v1594
      %v1611 = vsub.f32 %v1579, %v1595
      %v1612 = vsub.f32 %v1580, %v1596
      %v1613 = vsub.f32 %v1581, %v1597
      %v1614 = vsub.f32 %v1582, %v1598
      %v1615 = vsub.f32 %v1583, %v1599
      %v1616 = vsub.f32 %v1584, %v1600
      %v1617 = vsub.f32 %v1585, %v1601
      %v1618 = vmul.f32 %v1602, 0.5
      %v1619 = vmul.f32 %v1603, 0.5
      %v1620 = vmul.f32 %v1604, 0.5
      %v1621 = vmul.f32 %v1605, 0.5
      %v1622 = vmul.f32 %v1606, 0.5
      %v1623 = vmul.f32 %v1607, 0.5
      %v1624 = vmul.f32 %v1608, 0.5
      %v1625 = vmul.f32 %v1609, 0.5
      %v1626 = vmul.f32 %v1610, 0.5
      %v1627 = vmul.f32 %v1611, 0.5
      %v1628 = vmul.f32 %v1612, 0.5
      %v1629 = vmul.f32 %v1613, 0.5
      %v1630 = vmul.f32 %v1614, 0.5
      %v1631 = vmul.f32 %v1615, 0.5
      %v1632 = vmul.f32 %v1616, 0.5
      %v1633 = vmul.f32 %v1617, 0.5
      %v1634 = vadd.f32 %v1586, %v1618
      %v1635 = vadd.f32 %v1587, %v1619
      %v1636 = vadd.f32 %v1588, %v1620
      %v1637 = vadd.f32 %v1589, %v1621
      %v1638 = vadd.f32 %v1590, %v1622
      %v1639 = vadd.f32 %v1591, %v1623
      %v1640 = vadd.f32 %v1592, %v1624
      %v1641 = vadd.f32 %v1593, %v1625
      %v1642 = vadd.f32 %v1594, %v1626
      %v1643 = vadd.f32 %v1595, %v1627
      %v1644 = vadd.f32 %v1596, %v1628
      %v1645 = vadd.f32 %v1597, %v1629
      %v1646 = vadd.f32 %v1598, %v1630
      %v1647 = vadd.f32 %v1599, %v1631
      %v1648 = vadd.f32 %v1600, %v1632
      %v1649 = vadd.f32 %v1601, %v1633
      %vm1650 = vcmp.ge.f32.partialorder %v1634, 1.0
      %vm1651 = vcmp.ge.f32.partialorder %v1635, 1.0
      %vm1652 = vcmp.ge.f32.partialorder %v1636, 1.0
      %vm1653 = vcmp.ge.f32.partialorder %v1637, 1.0
      %vm1654 = vcmp.ge.f32.partialorder %v1638, 1.0
      %vm1655 = vcmp.ge.f32.partialorder %v1639, 1.0
      %vm1656 = vcmp.ge.f32.partialorder %v1640, 1.0
      %vm1657 = vcmp.ge.f32.partialorder %v1641, 1.0
      %vm1658 = vcmp.ge.f32.partialorder %v1642, 1.0
      %vm1659 = vcmp.ge.f32.partialorder %v1643, 1.0
      %vm1660 = vcmp.ge.f32.partialorder %v1644, 1.0
      %vm1661 = vcmp.ge.f32.partialorder %v1645, 1.0
      %vm1662 = vcmp.ge.f32.partialorder %v1646, 1.0
      %vm1663 = vcmp.ge.f32.partialorder %v1647, 1.0
      %vm1664 = vcmp.ge.f32.partialorder %v1648, 1.0
      %vm1665 = vcmp.ge.f32.partialorder %v1649, 1.0
      %v1666 = vsel %vm1650, 1, 0
      %v1667 = vsel %vm1651, 1, 0
      %v1668 = vsel %vm1652, 1, 0
      %v1669 = vsel %vm1653, 1, 0
      %v1670 = vsel %vm1654, 1, 0
      %v1671 = vsel %vm1655, 1, 0
      %v1672 = vsel %vm1656, 1, 0
      %v1673 = vsel %vm1657, 1, 0
      %v1674 = vsel %vm1658, 1, 0
      %v1675 = vsel %vm1659, 1, 0
      %v1676 = vsel %vm1660, 1, 0
      %v1677 = vsel %vm1661, 1, 0
      %v1678 = vsel %vm1662, 1, 0
      %v1679 = vsel %vm1663, 1, 0
      %v1680 = vsel %vm1664, 1, 0
      %v1681 = vsel %vm1665, 1, 0
      %v1682 = vcvt.s32.f32 %v1666
      %v1683 = vcvt.s32.f32 %v1667
      %v1684 = vcvt.s32.f32 %v1668
      %v1685 = vcvt.s32.f32 %v1669
      %v1686 = vcvt.s32.f32 %v1670
      %v1687 = vcvt.s32.f32 %v1671
      %v1688 = vcvt.s32.f32 %v1672
      %v1689 = vcvt.s32.f32 %v1673
      %v1690 = vcvt.s32.f32 %v1674
      %v1691 = vcvt.s32.f32 %v1675
      %v1692 = vcvt.s32.f32 %v1676
      %v1693 = vcvt.s32.f32 %v1677
      %v1694 = vcvt.s32.f32 %v1678
      %v1695 = vcvt.s32.f32 %v1679
      %v1696 = vcvt.s32.f32 %v1680
      %v1697 = vcvt.s32.f32 %v1681
      %v1698 = vpack.c.bf16 %v1683, %v1682
      %v1699 = vpack.c.bf16 %v1685, %v1684
      %v1700 = vpack.c.bf16 %v1687, %v1686
      %v1701 = vpack.c.bf16 %v1689, %v1688
      %v1702 = vpack.c.bf16 %v1691, %v1690
      %v1703 = vpack.c.bf16 %v1693, %v1692
      %v1704 = vpack.c.bf16 %v1695, %v1694
      %v1705 = vpack.c.bf16 %v1697, %v1696
      %v1714 = vunpack.c.l.b16 %v1698
      %v1715 = vunpack.c.h.b16 %v1698
      %v1716 = vunpack.c.l.b16 %v1699
      %v1717 = vunpack.c.h.b16 %v1699
      %v1718 = vunpack.c.l.b16 %v1700
      %v1719 = vunpack.c.h.b16 %v1700
      %v1720 = vunpack.c.l.b16 %v1701
      %v1721 = vunpack.c.h.b16 %v1701
      %v1722 = vunpack.c.l.b16 %v1702
      %v1723 = vunpack.c.h.b16 %v1702
      %v1724 = vunpack.c.l.b16 %v1703
      %v1725 = vunpack.c.h.b16 %v1703
      %v1726 = vunpack.c.l.b16 %v1704
      %v1727 = vunpack.c.h.b16 %v1704
      %v1728 = vunpack.c.l.b16 %v1705
      %v1729 = vunpack.c.h.b16 %v1705
      %v1730 = vpack.c.b16 %v1714, %v1714
      %v1731 = vpack.c.b16 %v1715, %v1715
      %v1732 = vpack.c.b16 %v1716, %v1716
      %v1733 = vpack.c.b16 %v1717, %v1717
      %v1734 = vpack.c.b16 %v1718, %v1718
      %v1735 = vpack.c.b16 %v1719, %v1719
      %v1736 = vpack.c.b16 %v1720, %v1720
      %v1737 = vpack.c.b16 %v1721, %v1721
      %v1738 = vpack.c.b16 %v1722, %v1722
      %v1739 = vpack.c.b16 %v1723, %v1723
      %v1740 = vpack.c.b16 %v1724, %v1724
      %v1741 = vpack.c.b16 %v1725, %v1725
      %v1742 = vpack.c.b16 %v1726, %v1726
      %v1743 = vpack.c.b16 %v1727, %v1727
      %v1744 = vpack.c.b16 %v1728, %v1728
      %v1745 = vpack.c.b16 %v1729, %v1729
      %vm1762 = vcmask 519168
      %1763 = vst.msk [vmem:[%s224] sm:$0xf] %vm1762, %v1730
      %1764 = vst.msk [vmem:[%s224 + $0x4] sm:$0xf] %vm1762, %v1731
      %1765 = vst.msk [vmem:[%s224 + $0x8] sm:$0xf] %vm1762, %v1732
      %1766 = vst.msk [vmem:[%s224 + $0xc] sm:$0xf] %vm1762, %v1733
      %1767 = vst.msk [vmem:[%s224 + $0x10] sm:$0xf] %vm1762, %v1734
      %1768 = vst.msk [vmem:[%s224 + $0x14] sm:$0xf] %vm1762, %v1735
      %1769 = vst.msk [vmem:[%s224 + $0x18] sm:$0xf] %vm1762, %v1736
      %1770 = vst.msk [vmem:[%s224 + $0x1c] sm:$0xf] %vm1762, %v1737
      %1771 = vst.msk [vmem:[%s224 + $0x20] sm:$0xf] %vm1762, %v1738
      %1772 = vst.msk [vmem:[%s224 + $0x24] sm:$0xf] %vm1762, %v1739
      %1773 = vst.msk [vmem:[%s224 + $0x28] sm:$0xf] %vm1762, %v1740
      %1774 = vst.msk [vmem:[%s224 + $0x2c] sm:$0xf] %vm1762, %v1741
      %1775 = vst.msk [vmem:[%s224 + $0x30] sm:$0xf] %vm1762, %v1742
      %1776 = vst.msk [vmem:[%s224 + $0x34] sm:$0xf] %vm1762, %v1743
      %1777 = vst.msk [vmem:[%s224 + $0x38] sm:$0xf] %vm1762, %v1744
      %1778 = vst.msk [vmem:[%s224 + $0x3c] sm:$0xf] %vm1762, %v1745
      %v1779 = vsel %vm1650, 0.0, %v1634
      %v1780 = vsel %vm1651, 0.0, %v1635
      %v1781 = vsel %vm1652, 0.0, %v1636
      %v1782 = vsel %vm1653, 0.0, %v1637
      %v1783 = vsel %vm1654, 0.0, %v1638
      %v1784 = vsel %vm1655, 0.0, %v1639
      %v1785 = vsel %vm1656, 0.0, %v1640
      %v1786 = vsel %vm1657, 0.0, %v1641
      %v1787 = vsel %vm1658, 0.0, %v1642
      %v1788 = vsel %vm1659, 0.0, %v1643
      %v1789 = vsel %vm1660, 0.0, %v1644
      %v1790 = vsel %vm1661, 0.0, %v1645
      %v1791 = vsel %vm1662, 0.0, %v1646
      %v1792 = vsel %vm1663, 0.0, %v1647
      %v1793 = vsel %vm1664, 0.0, %v1648
      %v1794 = vsel %vm1665, 0.0, %v1649
      %1795 = vst.msk [vmem:[#allocation2] sm:$0xff] %vm1411, %v1779
      %1796 = vst.msk [vmem:[#allocation2 + $0x8] sm:$0xff] %vm1411, %v1780
      %1797 = vst.msk [vmem:[#allocation2 + $0x10] sm:$0xff] %vm1411, %v1781
      %1798 = vst.msk [vmem:[#allocation2 + $0x18] sm:$0xff] %vm1411, %v1782
      %1799 = vst.msk [vmem:[#allocation2 + $0x20] sm:$0xff] %vm1411, %v1783
      %1800 = vst.msk [vmem:[#allocation2 + $0x28] sm:$0xff] %vm1411, %v1784
      %1801 = vst.msk [vmem:[#allocation2 + $0x30] sm:$0xff] %vm1411, %v1785
      %1802 = vst.msk [vmem:[#allocation2 + $0x38] sm:$0xff] %vm1411, %v1786
      %1803 = vst.msk [vmem:[#allocation2 + $0x40] sm:$0xff] %vm1411, %v1787
      %1804 = vst.msk [vmem:[#allocation2 + $0x48] sm:$0xff] %vm1411, %v1788
      %1805 = vst.msk [vmem:[#allocation2 + $0x50] sm:$0xff] %vm1411, %v1789
      %1806 = vst.msk [vmem:[#allocation2 + $0x58] sm:$0xff] %vm1411, %v1790
      %1807 = vst.msk [vmem:[#allocation2 + $0x60] sm:$0xff] %vm1411, %v1791
      %1808 = vst.msk [vmem:[#allocation2 + $0x68] sm:$0xff] %vm1411, %v1792
      %1809 = vst.msk [vmem:[#allocation2 + $0x70] sm:$0xff] %vm1411, %v1793
      %1810 = vst.msk [vmem:[#allocation2 + $0x78] sm:$0xff] %vm1411, %v1794
      %p1811 = scmp.lt.s32.totalorder %s16, 3
      %s1812 = scalar_select %p1811, %s16, 3
      %s1813 = smul.addr %s1812, 16
      %s1814 = smul.addr %s1813, 4
      %s1815 = scalar_lea.vmem %s5, %s1814
      // Predicated region
      $region45: #{discriminator_forward.4} parent=39 // pred_check
        %p1816 = pneg %p144
      $region46: #{discriminator_forward.4} parent=39 // pred_check_branch
        %1818 = sbr.rel (%p1816) target = $region48
      $region47: #{discriminator_forward.4} parent=39 // pred_region
        _
      $region48: #{discriminator_forward.4} parent=39 // pred_fallthru
        _
    $region40: #{discriminator_forward.4} parent=5 // pred_fallthru
      _
    %p1819 = scmp.le.s32.totalorder 2, %s11
    // Predicated region
    $region49: #{discriminator_forward.4} parent=5 // pred_check
      %p1820 = pneg %p1819
    $region50: #{discriminator_forward.4} parent=5 // pred_check_branch
      %1822 = sbr.rel (%p1820) target = $region52
    $region51: #{discriminator_forward.4} parent=5 // pred_region
      %s1823 = ssub.s32 %s11, 2
      // Predicated region
      $region53: #{discriminator_forward.4} parent=51 // pred_check
        %p1824 = pneg %p150
      $region54: #{discriminator_forward.4} parent=51 // pred_check_branch
        %1826 = sbr.rel (%p1824) target = $region56
      $region55: #{discriminator_forward.4} parent=51 // pred_region
        %p1827 = scmp.lt.s32.totalorder %s17, 3
        %s1828 = scalar_select %p1827, %s17, 3
        %s1829 = smul.addr %s1828, 16
        %s1830 = smul.addr %s1829, 4
        %s1831 = scalar_lea.vmem %s5, %s1830
      $region56: #{discriminator_forward.4} parent=51 // pred_fallthru
        _
    $region52: #{discriminator_forward.4} parent=5 // pred_fallthru
      _
  $region6: #{discriminator_forward.4} parent=0 // loop_footer
    %s15 = sadd.s32 1, %s11
  $region7: #{discriminator_forward.4} parent=0 // loop_footer_branch
    %10 = sbr.rel target = $region3
  $region8: #{discriminator_forward.4} parent=0 // loop_exit
    _

// kernel: discriminator_forward.5
$region0: #{discriminator_forward.5}
  #allocation0 [shape = 'u32[]', space=smem, size = 0x4, offset = 0x4, fixed_abs, tag = 'smem constant byte address 0x4 - core index']
  #allocation1 [shape = 'u32[144,128]{1,0:T(1,128)}', space=vmem, size = 0x12000, scoped, tag = 'internal scratch']
  #allocation2 [shape = 'f32[2,1024]{1,0:T(2,128)}', space=vmem, size = 0x2000, scoped, tag = 'scratch operand']
  #allocation3 [shape = 'f32[2,1]{1,0:T(2,128)}', space=vmem, size = 0x400, scoped, tag = 'scratch operand']
  #allocation4 [shape = 'f32[1,1]{1,0:T(1,128)S(1)}', space=vmem, size = 0x200, scoped, tag = 'scoped memory for discriminator_forward.5']
  %s0 = inlined_call_operand.vmem [shape: bf16[4,2,1024], index: 0, kind: input, shape index: {}]
  %s1 = inlined_call_operand.vmem [shape: bf16[1024,1024], index: 1, kind: input, shape index: {}]
  %s2 = inlined_call_operand.vmem [shape: f32[1,1024], index: 2, kind: input, shape index: {}]
  %s3 = inlined_call_operand.vmem [shape: f32[1,1024], index: 3, kind: input, shape index: {}]
  %s4 = inlined_call_operand.<no memory space> [shape: f32[1,1], index: 4, kind: input, shape index: {}]
  %s5 = inlined_call_operand.vmem [shape: f32[2,1], index: 5, kind: output, shape index: {}]
  %s6 = sld [smem:[#allocation0]]
  $region57: #{discriminator_forward.5} parent=0
    _
  %s8 = ssub.s32 1, %s6
  %s9 = scalar_select 0, %s8, %s6
  %v10 = vstv %s4
  %11 = vst [vmem:[#allocation4] sm:$0x1] %v10
  loop: start=0, step=1, limit=6
  $region2: #{discriminator_forward.5} parent=0 // loop_pre_header
    _
  $region3: #{discriminator_forward.5} parent=0 // loop_header
    %s13 = sphi 0, %s17
    %p14 = scmp.ge.s32.totalorder %s13, 6
    %s23 = sphi 0, %s25
    %s26 = sphi 0, %s23
    %s27 = sphi 0, %s26
    %s43 = sphi 0, %s27
    %s47 = sphi 0, %s47
    %s49 = sphi 0, %s47
    %s50 = sphi 0, %s49
    %s64 = sphi 0, %s50
    %s68 = sphi 0, %s68
    %s70 = sphi 0, %s68
    %s71 = sphi 0, %s70
    %s85 = sphi 0, %s71
    %s89 = sphi 0, %s89
    %s91 = sphi 0, %s89
    %s92 = sphi 0, %s91
    %s106 = sphi 0, %s92
    %s110 = sphi 0, %s110
    %s112 = sphi 0, %s110
    %s113 = sphi 0, %s112
    %s127 = sphi 0, %s113
    %s131 = sphi 0, %s131
    %s133 = sphi 0, %s131
    %s134 = sphi 0, %s133
    %s148 = sphi 0, %s134
  $region4: #{discriminator_forward.5} parent=0 // loop_header_branch
    %16 = sbr.rel (%p14) target = $region8
  $region5: #{discriminator_forward.5} parent=0 // loop_body
    %s18 = ssub.s32 %s13, 1
    %s19 = ssub.s32 %s13, 2
    %s20 = sadd.s32 %s13, 1
    %s21 = ssub.s32 %s13, %s20
    %p22 = scmp.eq.s32.totalorder %s21, 0
    %s24 = sadd.s32 %s23, 1
    %s25 = scalar_select %p22, %s23, %s24
    %p28 = pneg %p22
    %p29 = scmp.eq.s32.totalorder %s13, 3
    %p30 = por %p28, %p29
    %p31 = scmp.ne.s32.totalorder %s23, %s26
    %p32 = scmp.eq.s32.totalorder %s13, 0
    %p33 = por %p31, %p32
    %p34 = scmp.ne.s32.totalorder %s23, %s26
    %p35 = scmp.eq.s32.totalorder %s18, 3
    %p36 = por %p34, %p35
    %p37 = scmp.ne.s32.totalorder %s26, %s27
    %p38 = scmp.eq.s32.totalorder %s18, 0
    %p39 = por %p37, %p38
    %p40 = scmp.ne.s32.totalorder %s26, %s27
    %p41 = scmp.eq.s32.totalorder %s19, 3
    %p42 = por %p40, %p41
    %p44 = scmp.ne.s32.totalorder %s27, %s43
    %p45 = scmp.eq.s32.totalorder %s19, 0
    %p46 = por %p44, %p45
    %s48 = sadd.s32 %s47, 1
    %p51 = scmp.eq.s32.totalorder %s13, 3
    %p52 = scmp.ne.s32.totalorder %s47, %s49
    %p53 = scmp.eq.s32.totalorder %s13, 0
    %p54 = por %p52, %p53
    %p55 = scmp.ne.s32.totalorder %s47, %s49
    %p56 = scmp.eq.s32.totalorder %s18, 3
    %p57 = por %p55, %p56
    %p58 = scmp.ne.s32.totalorder %s49, %s50
    %p59 = scmp.eq.s32.totalorder %s18, 0
    %p60 = por %p58, %p59
    %p61 = scmp.ne.s32.totalorder %s49, %s50
    %p62 = scmp.eq.s32.totalorder %s19, 3
    %p63 = por %p61, %p62
    %p65 = scmp.ne.s32.totalorder %s50, %s64
    %p66 = scmp.eq.s32.totalorder %s19, 0
    %p67 = por %p65, %p66
    %s69 = sadd.s32 %s68, 1
    %p72 = scmp.eq.s32.totalorder %s13, 3
    %p73 = scmp.ne.s32.totalorder %s68, %s70
    %p74 = scmp.eq.s32.totalorder %s13, 0
    %p75 = por %p73, %p74
    %p76 = scmp.ne.s32.totalorder %s68, %s70
    %p77 = scmp.eq.s32.totalorder %s18, 3
    %p78 = por %p76, %p77
    %p79 = scmp.ne.s32.totalorder %s70, %s71
    %p80 = scmp.eq.s32.totalorder %s18, 0
    %p81 = por %p79, %p80
    %p82 = scmp.ne.s32.totalorder %s70, %s71
    %p83 = scmp.eq.s32.totalorder %s19, 3
    %p84 = por %p82, %p83
    %p86 = scmp.ne.s32.totalorder %s71, %s85
    %p87 = scmp.eq.s32.totalorder %s19, 0
    %p88 = por %p86, %p87
    %s90 = sadd.s32 %s89, 1
    %p93 = scmp.eq.s32.totalorder %s13, 3
    %p94 = scmp.ne.s32.totalorder %s89, %s91
    %p95 = scmp.eq.s32.totalorder %s13, 0
    %p96 = por %p94, %p95
    %p97 = scmp.ne.s32.totalorder %s89, %s91
    %p98 = scmp.eq.s32.totalorder %s18, 3
    %p99 = por %p97, %p98
    %p100 = scmp.ne.s32.totalorder %s91, %s92
    %p101 = scmp.eq.s32.totalorder %s18, 0
    %p102 = por %p100, %p101
    %p103 = scmp.ne.s32.totalorder %s91, %s92
    %p104 = scmp.eq.s32.totalorder %s19, 3
    %p105 = por %p103, %p104
    %p107 = scmp.ne.s32.totalorder %s92, %s106
    %p108 = scmp.eq.s32.totalorder %s19, 0
    %p109 = por %p107, %p108
    %s111 = sadd.s32 %s110, 1
    %p114 = scmp.eq.s32.totalorder %s13, 3
    %p115 = scmp.ne.s32.totalorder %s110, %s112
    %p116 = scmp.eq.s32.totalorder %s13, 0
    %p117 = por %p115, %p116
    %p118 = scmp.ne.s32.totalorder %s110, %s112
    %p119 = scmp.eq.s32.totalorder %s18, 3
    %p120 = por %p118, %p119
    %p121 = scmp.ne.s32.totalorder %s112, %s113
    %p122 = scmp.eq.s32.totalorder %s18, 0
    %p123 = por %p121, %p122
    %p124 = scmp.ne.s32.totalorder %s112, %s113
    %p125 = scmp.eq.s32.totalorder %s19, 3
    %p126 = por %p124, %p125
    %p128 = scmp.ne.s32.totalorder %s113, %s127
    %p129 = scmp.eq.s32.totalorder %s19, 0
    %p130 = por %p128, %p129
    %s132 = sadd.s32 %s131, 1
    %p135 = scmp.eq.s32.totalorder %s13, 3
    %p136 = scmp.ne.s32.totalorder %s131, %s133
    %p137 = scmp.eq.s32.totalorder %s13, 0
    %p138 = por %p136, %p137
    %p139 = scmp.ne.s32.totalorder %s131, %s133
    %p140 = scmp.eq.s32.totalorder %s18, 3
    %p141 = por %p139, %p140
    %p142 = scmp.ne.s32.totalorder %s133, %s134
    %p143 = scmp.eq.s32.totalorder %s18, 0
    %p144 = por %p142, %p143
    %p145 = scmp.ne.s32.totalorder %s133, %s134
    %p146 = scmp.eq.s32.totalorder %s19, 3
    %p147 = por %p145, %p146
    %p149 = scmp.ne.s32.totalorder %s134, %s148
    %p150 = scmp.eq.s32.totalorder %s19, 0
    %p151 = por %p149, %p150
    %p152 = scmp.le.s32.totalorder 1, %s13
    %p153 = scmp.lt.s32.totalorder %s13, 5
    %p154 = pnand %p152, %p153
    %p155 = pneg %p154
    // Predicated region
    $region9: #{discriminator_forward.5} parent=5 // pred_check
      _
    $region10: #{discriminator_forward.5} parent=5 // pred_check_branch
      %157 = sbr.rel (%p154) target = $region12
    $region11: #{discriminator_forward.5} parent=5 // pred_region
      %s158 = ssub.s32 %s13, 1
      // Predicated region
      $region13: #{discriminator_forward.5} parent=11 // pred_check
        %p159 = pneg %p60
      $region14: #{discriminator_forward.5} parent=11 // pred_check_branch
        %161 = sbr.rel (%p159) target = $region16
      $region15: #{discriminator_forward.5} parent=11 // pred_region
        _
      $region16: #{discriminator_forward.5} parent=11 // pred_fallthru
        _
      // Predicated region
      $region17: #{discriminator_forward.5} parent=11 // pred_check
        %p162 = pneg %p81
      $region18: #{discriminator_forward.5} parent=11 // pred_check_branch
        %164 = sbr.rel (%p162) target = $region20
      $region19: #{discriminator_forward.5} parent=11 // pred_region
        _
      $region20: #{discriminator_forward.5} parent=11 // pred_fallthru
        _
      // Predicated region
      $region21: #{discriminator_forward.5} parent=11 // pred_check
        %p165 = pneg %p102
      $region22: #{discriminator_forward.5} parent=11 // pred_check_branch
        %167 = sbr.rel (%p165) target = $region24
      $region23: #{discriminator_forward.5} parent=11 // pred_region
        _
      $region24: #{discriminator_forward.5} parent=11 // pred_fallthru
        _
      // Predicated region
      $region25: #{discriminator_forward.5} parent=11 // pred_check
        %p168 = pneg %p123
      $region26: #{discriminator_forward.5} parent=11 // pred_check_branch
        %170 = sbr.rel (%p168) target = $region28
      $region27: #{discriminator_forward.5} parent=11 // pred_region
        _
      $region28: #{discriminator_forward.5} parent=11 // pred_fallthru
        _
    $region12: #{discriminator_forward.5} parent=5 // pred_fallthru
      _
    %p171 = scmp.lt.s32.totalorder %s13, 4
    // Predicated region
    $region29: #{discriminator_forward.5} parent=5 // pred_check
      %p172 = pneg %p171
    $region30: #{discriminator_forward.5} parent=5 // pred_check_branch
      %174 = sbr.rel (%p172) target = $region32
    $region31: #{discriminator_forward.5} parent=5 // pred_region
      // Predicated region
      $region33: #{discriminator_forward.5} parent=31 // pred_check
        %p175 = pneg %p33
      $region34: #{discriminator_forward.5} parent=31 // pred_check_branch
        %177 = sbr.rel (%p175) target = $region36
      $region35: #{discriminator_forward.5} parent=31 // pred_region
        %p178 = scmp.lt.s32.totalorder %s13, 3
        %s179 = scalar_select %p178, %s13, 3
        %s180 = smul.addr %s179, 8
        %s181 = scalar_lea.vmem %s0, %s180
      $region36: #{discriminator_forward.5} parent=31 // pred_fallthru
        _
    $region32: #{discriminator_forward.5} parent=5 // pred_fallthru
      _
    %p182 = scmp.le.s32.totalorder 1, %s13
    %p183 = scmp.lt.s32.totalorder %s13, 5
    %p184 = pnand %p182, %p183
    %p185 = pneg %p184
    // Predicated region
    $region37: #{discriminator_forward.5} parent=5 // pred_check
      _
    $region38: #{discriminator_forward.5} parent=5 // pred_check_branch
      %187 = sbr.rel (%p184) target = $region40
    $region39: #{discriminator_forward.5} parent=5 // pred_region
      %s188 = ssub.s32 %s13, 1
      %p189 = scmp.lt.s32.totalorder %s18, 3
      %s190 = scalar_select %p189, %s18, 3
      %s191 = smul.addr %s190, 8
      %s192 = scalar_lea.vmem %s0, %s191
      %p193 = pneg %p39
      %p194 = pneg %p36
      %p195 = pneg %p60
      %p196 = pneg %p57
      %p197 = pneg %p81
      %p198 = pneg %p78
      %p199 = pneg %p102
      %p200 = pneg %p99
      %p201 = pneg %p123
      %p202 = pneg %p120
      %p203 = pneg %p144
      %p204 = pneg %p141
      %p205 = scmp.lt.s32.totalorder %s18, 3
      %s206 = scalar_select %p205, %s18, 3
      %s207 = smul.addr %s206, 8
      %s208 = scalar_lea.vmem %s0, %s207
      %p209 = scmp.eq.s32.totalorder %s18, 0
      // Predicated region
      $region41: #{discriminator_forward.5} parent=39 // pred_check
        %p210 = pneg %p209
      $region42: #{discriminator_forward.5} parent=39 // pred_check_branch
        %212 = sbr.rel (%p210) target = $region44
      $region43: #{discriminator_forward.5} parent=39 // pred_region
        %213 = vst [vmem:[#allocation2] sm:$0xff] 0.0
        %214 = vst [vmem:[#allocation2 + $0x8] sm:$0xff] 0.0
        %vm215 = vcmask 1024
        %216 = vst.msk [vmem:[#allocation3] sm:$0x3] %vm215, 0.0
      $region44: #{discriminator_forward.5} parent=39 // pred_fallthru
        _
      %v217 = vld [vmem:[%s208] sm:$0xff]
      %v218 = vld [vmem:[%s1] sm:$0xff]
      %v219 = vld [vmem:[%s1 + $0x8] sm:$0xff]
      %v220 = vld [vmem:[%s1 + $0x10] sm:$0xff]
      %v221 = vld [vmem:[%s1 + $0x18] sm:$0xff]
      %v222 = vld [vmem:[%s1 + $0x20] sm:$0xff]
      %v223 = vld [vmem:[%s1 + $0x28] sm:$0xff]
      %v224 = vld [vmem:[%s1 + $0x30] sm:$0xff]
      %v225 = vld [vmem:[%s1 + $0x38] sm:$0xff]
      %v226 = vld [vmem:[%s1 + $0x40] sm:$0xff]
      %v227 = vld [vmem:[%s1 + $0x48] sm:$0xff]
      %v228 = vld [vmem:[%s1 + $0x50] sm:$0xff]
      %v229 = vld [vmem:[%s1 + $0x58] sm:$0xff]
      %v230 = vld [vmem:[%s1 + $0x60] sm:$0xff]
      %v231 = vld [vmem:[%s1 + $0x68] sm:$0xff]
      %v232 = vld [vmem:[%s1 + $0x70] sm:$0xff]
      %v233 = vld [vmem:[%s1 + $0x78] sm:$0xff]
      %v234 = vld [vmem:[%s1 + $0x80] sm:$0xff]
      %v235 = vld [vmem:[%s1 + $0x88] sm:$0xff]
      %v236 = vld [vmem:[%s1 + $0x90] sm:$0xff]
      %v237 = vld [vmem:[%s1 + $0x98] sm:$0xff]
      %v238 = vld [vmem:[%s1 + $0xa0] sm:$0xff]
      %v239 = vld [vmem:[%s1 + $0xa8] sm:$0xff]
      %v240 = vld [vmem:[%s1 + $0xb0] sm:$0xff]
      %v241 = vld [vmem:[%s1 + $0xb8] sm:$0xff]
      %v242 = vld [vmem:[%s1 + $0xc0] sm:$0xff]
      %v243 = vld [vmem:[%s1 + $0xc8] sm:$0xff]
      %v244 = vld [vmem:[%s1 + $0xd0] sm:$0xff]
      %v245 = vld [vmem:[%s1 + $0xd8] sm:$0xff]
      %v246 = vld [vmem:[%s1 + $0xe0] sm:$0xff]
      %v247 = vld [vmem:[%s1 + $0xe8] sm:$0xff]
      %v248 = vld [vmem:[%s1 + $0xf0] sm:$0xff]
      %v249 = vld [vmem:[%s1 + $0xf8] sm:$0xff]
      %v250 = vld [vmem:[%s1 + $0x100] sm:$0xff]
      %v251 = vld [vmem:[%s1 + $0x108] sm:$0xff]
      %v252 = vld [vmem:[%s1 + $0x110] sm:$0xff]
      %v253 = vld [vmem:[%s1 + $0x118] sm:$0xff]
      %v254 = vld [vmem:[%s1 + $0x120] sm:$0xff]
      %v255 = vld [vmem:[%s1 + $0x128] sm:$0xff]
      %v256 = vld [vmem:[%s1 + $0x130] sm:$0xff]
      %v257 = vld [vmem:[%s1 + $0x138] sm:$0xff]
      %v258 = vld [vmem:[%s1 + $0x140] sm:$0xff]
      %v259 = vld [vmem:[%s1 + $0x148] sm:$0xff]
      %v260 = vld [vmem:[%s1 + $0x150] sm:$0xff]
      %v261 = vld [vmem:[%s1 + $0x158] sm:$0xff]
      %v262 = vld [vmem:[%s1 + $0x160] sm:$0xff]
      %v263 = vld [vmem:[%s1 + $0x168] sm:$0xff]
      %v264 = vld [vmem:[%s1 + $0x170] sm:$0xff]
      %v265 = vld [vmem:[%s1 + $0x178] sm:$0xff]
      %v266 = vld [vmem:[%s1 + $0x180] sm:$0xff]
      %v267 = vld [vmem:[%s1 + $0x188] sm:$0xff]
      %v268 = vld [vmem:[%s1 + $0x190] sm:$0xff]
      %v269 = vld [vmem:[%s1 + $0x198] sm:$0xff]
      %v270 = vld [vmem:[%s1 + $0x1a0] sm:$0xff]
      %v271 = vld [vmem:[%s1 + $0x1a8] sm:$0xff]
      %v272 = vld [vmem:[%s1 + $0x1b0] sm:$0xff]
      %v273 = vld [vmem:[%s1 + $0x1b8] sm:$0xff]
      %v274 = vld [vmem:[%s1 + $0x1c0] sm:$0xff]
      %v275 = vld [vmem:[%s1 + $0x1c8] sm:$0xff]
      %v276 = vld [vmem:[%s1 + $0x1d0] sm:$0xff]
      %v277 = vld [vmem:[%s1 + $0x1d8] sm:$0xff]
      %v278 = vld [vmem:[%s1 + $0x1e0] sm:$0xff]
      %v279 = vld [vmem:[%s1 + $0x1e8] sm:$0xff]
      %v280 = vld [vmem:[%s1 + $0x1f0] sm:$0xff]
      %v281 = vld [vmem:[%s1 + $0x1f8] sm:$0xff]
      %v282 = vld [vmem:[%s1 + $0x200] sm:$0xff]
      %v283 = vld [vmem:[%s1 + $0x208] sm:$0xff]
      %v284 = vld [vmem:[%s1 + $0x210] sm:$0xff]
      %v285 = vld [vmem:[%s1 + $0x218] sm:$0xff]
      %v286 = vld [vmem:[%s1 + $0x220] sm:$0xff]
      %v287 = vld [vmem:[%s1 + $0x228] sm:$0xff]
      %v288 = vld [vmem:[%s1 + $0x230] sm:$0xff]
      %v289 = vld [vmem:[%s1 + $0x238] sm:$0xff]
      %v290 = vld [vmem:[%s1 + $0x240] sm:$0xff]
      %v291 = vld [vmem:[%s1 + $0x248] sm:$0xff]
      %v292 = vld [vmem:[%s1 + $0x250] sm:$0xff]
      %v293 = vld [vmem:[%s1 + $0x258] sm:$0xff]
      %v294 = vld [vmem:[%s1 + $0x260] sm:$0xff]
      %v295 = vld [vmem:[%s1 + $0x268] sm:$0xff]
      %v296 = vld [vmem:[%s1 + $0x270] sm:$0xff]
      %v297 = vld [vmem:[%s1 + $0x278] sm:$0xff]
      %v298 = vld [vmem:[%s1 + $0x280] sm:$0xff]
      %v299 = vld [vmem:[%s1 + $0x288] sm:$0xff]
      %v300 = vld [vmem:[%s1 + $0x290] sm:$0xff]
      %v301 = vld [vmem:[%s1 + $0x298] sm:$0xff]
      %v302 = vld [vmem:[%s1 + $0x2a0] sm:$0xff]
      %v303 = vld [vmem:[%s1 + $0x2a8] sm:$0xff]
      %v304 = vld [vmem:[%s1 + $0x2b0] sm:$0xff]
      %v305 = vld [vmem:[%s1 + $0x2b8] sm:$0xff]
      %v306 = vld [vmem:[%s1 + $0x2c0] sm:$0xff]
      %v307 = vld [vmem:[%s1 + $0x2c8] sm:$0xff]
      %v308 = vld [vmem:[%s1 + $0x2d0] sm:$0xff]
      %v309 = vld [vmem:[%s1 + $0x2d8] sm:$0xff]
      %v310 = vld [vmem:[%s1 + $0x2e0] sm:$0xff]
      %v311 = vld [vmem:[%s1 + $0x2e8] sm:$0xff]
      %v312 = vld [vmem:[%s1 + $0x2f0] sm:$0xff]
      %v313 = vld [vmem:[%s1 + $0x2f8] sm:$0xff]
      %v314 = vld [vmem:[%s1 + $0x300] sm:$0xff]
      %v315 = vld [vmem:[%s1 + $0x308] sm:$0xff]
      %v316 = vld [vmem:[%s1 + $0x310] sm:$0xff]
      %v317 = vld [vmem:[%s1 + $0x318] sm:$0xff]
      %v318 = vld [vmem:[%s1 + $0x320] sm:$0xff]
      %v319 = vld [vmem:[%s1 + $0x328] sm:$0xff]
      %v320 = vld [vmem:[%s1 + $0x330] sm:$0xff]
      %v321 = vld [vmem:[%s1 + $0x338] sm:$0xff]
      %v322 = vld [vmem:[%s1 + $0x340] sm:$0xff]
      %v323 = vld [vmem:[%s1 + $0x348] sm:$0xff]
      %v324 = vld [vmem:[%s1 + $0x350] sm:$0xff]
      %v325 = vld [vmem:[%s1 + $0x358] sm:$0xff]
      %v326 = vld [vmem:[%s1 + $0x360] sm:$0xff]
      %v327 = vld [vmem:[%s1 + $0x368] sm:$0xff]
      %v328 = vld [vmem:[%s1 + $0x370] sm:$0xff]
      %v329 = vld [vmem:[%s1 + $0x378] sm:$0xff]
      %v330 = vld [vmem:[%s1 + $0x380] sm:$0xff]
      %v331 = vld [vmem:[%s1 + $0x388] sm:$0xff]
      %v332 = vld [vmem:[%s1 + $0x390] sm:$0xff]
      %v333 = vld [vmem:[%s1 + $0x398] sm:$0xff]
      %v334 = vld [vmem:[%s1 + $0x3a0] sm:$0xff]
      %v335 = vld [vmem:[%s1 + $0x3a8] sm:$0xff]
      %v336 = vld [vmem:[%s1 + $0x3b0] sm:$0xff]
      %v337 = vld [vmem:[%s1 + $0x3b8] sm:$0xff]
      %v338 = vld [vmem:[%s1 + $0x3c0] sm:$0xff]
      %v339 = vld [vmem:[%s1 + $0x3c8] sm:$0xff]
      %v340 = vld [vmem:[%s1 + $0x3d0] sm:$0xff]
      %v341 = vld [vmem:[%s1 + $0x3d8] sm:$0xff]
      %v342 = vld [vmem:[%s1 + $0x3e0] sm:$0xff]
      %v343 = vld [vmem:[%s1 + $0x3e8] sm:$0xff]
      %v344 = vld [vmem:[%s1 + $0x3f0] sm:$0xff]
      %v345 = vld [vmem:[%s1 + $0x3f8] sm:$0xff]
      %v346 = vld [vmem:[%s1 + $0x400] sm:$0xff]
      %v347 = vld [vmem:[%s1 + $0x408] sm:$0xff]
      %v348 = vld [vmem:[%s1 + $0x410] sm:$0xff]
      %v349 = vld [vmem:[%s1 + $0x418] sm:$0xff]
      %v350 = vld [vmem:[%s1 + $0x420] sm:$0xff]
      %v351 = vld [vmem:[%s1 + $0x428] sm:$0xff]
      %v352 = vld [vmem:[%s1 + $0x430] sm:$0xff]
      %v353 = vld [vmem:[%s1 + $0x438] sm:$0xff]
      %v354 = vld [vmem:[%s1 + $0x440] sm:$0xff]
      %v355 = vld [vmem:[%s1 + $0x448] sm:$0xff]
      %v356 = vld [vmem:[%s1 + $0x450] sm:$0xff]
      %v357 = vld [vmem:[%s1 + $0x458] sm:$0xff]
      %v358 = vld [vmem:[%s1 + $0x460] sm:$0xff]
      %v359 = vld [vmem:[%s1 + $0x468] sm:$0xff]
      %v360 = vld [vmem:[%s1 + $0x470] sm:$0xff]
      %v361 = vld [vmem:[%s1 + $0x478] sm:$0xff]
      %v362 = vld [vmem:[%s1 + $0x480] sm:$0xff]
      %v363 = vld [vmem:[%s1 + $0x488] sm:$0xff]
      %v364 = vld [vmem:[%s1 + $0x490] sm:$0xff]
      %v365 = vld [vmem:[%s1 + $0x498] sm:$0xff]
      %v366 = vld [vmem:[%s1 + $0x4a0] sm:$0xff]
      %v367 = vld [vmem:[%s1 + $0x4a8] sm:$0xff]
      %v368 = vld [vmem:[%s1 + $0x4b0] sm:$0xff]
      %v369 = vld [vmem:[%s1 + $0x4b8] sm:$0xff]
      %v370 = vld [vmem:[%s1 + $0x4c0] sm:$0xff]
      %v371 = vld [vmem:[%s1 + $0x4c8] sm:$0xff]
      %v372 = vld [vmem:[%s1 + $0x4d0] sm:$0xff]
      %v373 = vld [vmem:[%s1 + $0x4d8] sm:$0xff]
      %v374 = vld [vmem:[%s1 + $0x4e0] sm:$0xff]
      %v375 = vld [vmem:[%s1 + $0x4e8] sm:$0xff]
      %v376 = vld [vmem:[%s1 + $0x4f0] sm:$0xff]
      %v377 = vld [vmem:[%s1 + $0x4f8] sm:$0xff]
      %v378 = vld [vmem:[%s1 + $0x500] sm:$0xff]
      %v379 = vld [vmem:[%s1 + $0x508] sm:$0xff]
      %v380 = vld [vmem:[%s1 + $0x510] sm:$0xff]
      %v381 = vld [vmem:[%s1 + $0x518] sm:$0xff]
      %v382 = vld [vmem:[%s1 + $0x520] sm:$0xff]
      %v383 = vld [vmem:[%s1 + $0x528] sm:$0xff]
      %v384 = vld [vmem:[%s1 + $0x530] sm:$0xff]
      %v385 = vld [vmem:[%s1 + $0x538] sm:$0xff]
      %v386 = vld [vmem:[%s1 + $0x540] sm:$0xff]
      %v387 = vld [vmem:[%s1 + $0x548] sm:$0xff]
      %v388 = vld [vmem:[%s1 + $0x550] sm:$0xff]
      %v389 = vld [vmem:[%s1 + $0x558] sm:$0xff]
      %v390 = vld [vmem:[%s1 + $0x560] sm:$0xff]
      %v391 = vld [vmem:[%s1 + $0x568] sm:$0xff]
      %v392 = vld [vmem:[%s1 + $0x570] sm:$0xff]
      %v393 = vld [vmem:[%s1 + $0x578] sm:$0xff]
      %v394 = vld [vmem:[%s1 + $0x580] sm:$0xff]
      %v395 = vld [vmem:[%s1 + $0x588] sm:$0xff]
      %v396 = vld [vmem:[%s1 + $0x590] sm:$0xff]
      %v397 = vld [vmem:[%s1 + $0x598] sm:$0xff]
      %v398 = vld [vmem:[%s1 + $0x5a0] sm:$0xff]
      %v399 = vld [vmem:[%s1 + $0x5a8] sm:$0xff]
      %v400 = vld [vmem:[%s1 + $0x5b0] sm:$0xff]
      %v401 = vld [vmem:[%s1 + $0x5b8] sm:$0xff]
      %v402 = vld [vmem:[%s1 + $0x5c0] sm:$0xff]
      %v403 = vld [vmem:[%s1 + $0x5c8] sm:$0xff]
      %v404 = vld [vmem:[%s1 + $0x5d0] sm:$0xff]
      %v405 = vld [vmem:[%s1 + $0x5d8] sm:$0xff]
      %v406 = vld [vmem:[%s1 + $0x5e0] sm:$0xff]
      %v407 = vld [vmem:[%s1 + $0x5e8] sm:$0xff]
      %v408 = vld [vmem:[%s1 + $0x5f0] sm:$0xff]
      %v409 = vld [vmem:[%s1 + $0x5f8] sm:$0xff]
      %v410 = vld [vmem:[%s1 + $0x600] sm:$0xff]
      %v411 = vld [vmem:[%s1 + $0x608] sm:$0xff]
      %v412 = vld [vmem:[%s1 + $0x610] sm:$0xff]
      %v413 = vld [vmem:[%s1 + $0x618] sm:$0xff]
      %v414 = vld [vmem:[%s1 + $0x620] sm:$0xff]
      %v415 = vld [vmem:[%s1 + $0x628] sm:$0xff]
      %v416 = vld [vmem:[%s1 + $0x630] sm:$0xff]
      %v417 = vld [vmem:[%s1 + $0x638] sm:$0xff]
      %v418 = vld [vmem:[%s1 + $0x640] sm:$0xff]
      %v419 = vld [vmem:[%s1 + $0x648] sm:$0xff]
      %v420 = vld [vmem:[%s1 + $0x650] sm:$0xff]
      %v421 = vld [vmem:[%s1 + $0x658] sm:$0xff]
      %v422 = vld [vmem:[%s1 + $0x660] sm:$0xff]
      %v423 = vld [vmem:[%s1 + $0x668] sm:$0xff]
      %v424 = vld [vmem:[%s1 + $0x670] sm:$0xff]
      %v425 = vld [vmem:[%s1 + $0x678] sm:$0xff]
      %v426 = vld [vmem:[%s1 + $0x680] sm:$0xff]
      %v427 = vld [vmem:[%s1 + $0x688] sm:$0xff]
      %v428 = vld [vmem:[%s1 + $0x690] sm:$0xff]
      %v429 = vld [vmem:[%s1 + $0x698] sm:$0xff]
      %v430 = vld [vmem:[%s1 + $0x6a0] sm:$0xff]
      %v431 = vld [vmem:[%s1 + $0x6a8] sm:$0xff]
      %v432 = vld [vmem:[%s1 + $0x6b0] sm:$0xff]
      %v433 = vld [vmem:[%s1 + $0x6b8] sm:$0xff]
      %v434 = vld [vmem:[%s1 + $0x6c0] sm:$0xff]
      %v435 = vld [vmem:[%s1 + $0x6c8] sm:$0xff]
      %v436 = vld [vmem:[%s1 + $0x6d0] sm:$0xff]
      %v437 = vld [vmem:[%s1 + $0x6d8] sm:$0xff]
      %v438 = vld [vmem:[%s1 + $0x6e0] sm:$0xff]
      %v439 = vld [vmem:[%s1 + $0x6e8] sm:$0xff]
      %v440 = vld [vmem:[%s1 + $0x6f0] sm:$0xff]
      %v441 = vld [vmem:[%s1 + $0x6f8] sm:$0xff]
      %v442 = vld [vmem:[%s1 + $0x700] sm:$0xff]
      %v443 = vld [vmem:[%s1 + $0x708] sm:$0xff]
      %v444 = vld [vmem:[%s1 + $0x710] sm:$0xff]
      %v445 = vld [vmem:[%s1 + $0x718] sm:$0xff]
      %v446 = vld [vmem:[%s1 + $0x720] sm:$0xff]
      %v447 = vld [vmem:[%s1 + $0x728] sm:$0xff]
      %v448 = vld [vmem:[%s1 + $0x730] sm:$0xff]
      %v449 = vld [vmem:[%s1 + $0x738] sm:$0xff]
      %v450 = vld [vmem:[%s1 + $0x740] sm:$0xff]
      %v451 = vld [vmem:[%s1 + $0x748] sm:$0xff]
      %v452 = vld [vmem:[%s1 + $0x750] sm:$0xff]
      %v453 = vld [vmem:[%s1 + $0x758] sm:$0xff]
      %v454 = vld [vmem:[%s1 + $0x760] sm:$0xff]
      %v455 = vld [vmem:[%s1 + $0x768] sm:$0xff]
      %v456 = vld [vmem:[%s1 + $0x770] sm:$0xff]
      %v457 = vld [vmem:[%s1 + $0x778] sm:$0xff]
      %v458 = vld [vmem:[%s1 + $0x780] sm:$0xff]
      %v459 = vld [vmem:[%s1 + $0x788] sm:$0xff]
      %v460 = vld [vmem:[%s1 + $0x790] sm:$0xff]
      %v461 = vld [vmem:[%s1 + $0x798] sm:$0xff]
      %v462 = vld [vmem:[%s1 + $0x7a0] sm:$0xff]
      %v463 = vld [vmem:[%s1 + $0x7a8] sm:$0xff]
      %v464 = vld [vmem:[%s1 + $0x7b0] sm:$0xff]
      %v465 = vld [vmem:[%s1 + $0x7b8] sm:$0xff]
      %v466 = vld [vmem:[%s1 + $0x7c0] sm:$0xff]
      %v467 = vld [vmem:[%s1 + $0x7c8] sm:$0xff]
      %v468 = vld [vmem:[%s1 + $0x7d0] sm:$0xff]
      %v469 = vld [vmem:[%s1 + $0x7d8] sm:$0xff]
      %v470 = vld [vmem:[%s1 + $0x7e0] sm:$0xff]
      %v471 = vld [vmem:[%s1 + $0x7e8] sm:$0xff]
      %v472 = vld [vmem:[%s1 + $0x7f0] sm:$0xff]
      %v473 = vld [vmem:[%s1 + $0x7f8] sm:$0xff]
      %v474 = vld [vmem:[%s1 + $0x800] sm:$0xff]
      %v475 = vld [vmem:[%s1 + $0x808] sm:$0xff]
      %v476 = vld [vmem:[%s1 + $0x810] sm:$0xff]
      %v477 = vld [vmem:[%s1 + $0x818] sm:$0xff]
      %v478 = vld [vmem:[%s1 + $0x820] sm:$0xff]
      %v479 = vld [vmem:[%s1 + $0x828] sm:$0xff]
      %v480 = vld [vmem:[%s1 + $0x830] sm:$0xff]
      %v481 = vld [vmem:[%s1 + $0x838] sm:$0xff]
      %v482 = vld [vmem:[%s1 + $0x840] sm:$0xff]
      %v483 = vld [vmem:[%s1 + $0x848] sm:$0xff]
      %v484 = vld [vmem:[%s1 + $0x850] sm:$0xff]
      %v485 = vld [vmem:[%s1 + $0x858] sm:$0xff]
      %v486 = vld [vmem:[%s1 + $0x860] sm:$0xff]
      %v487 = vld [vmem:[%s1 + $0x868] sm:$0xff]
      %v488 = vld [vmem:[%s1 + $0x870] sm:$0xff]
      %v489 = vld [vmem:[%s1 + $0x878] sm:$0xff]
      %v490 = vld [vmem:[%s1 + $0x880] sm:$0xff]
      %v491 = vld [vmem:[%s1 + $0x888] sm:$0xff]
      %v492 = vld [vmem:[%s1 + $0x890] sm:$0xff]
      %v493 = vld [vmem:[%s1 + $0x898] sm:$0xff]
      %v494 = vld [vmem:[%s1 + $0x8a0] sm:$0xff]
      %v495 = vld [vmem:[%s1 + $0x8a8] sm:$0xff]
      %v496 = vld [vmem:[%s1 + $0x8b0] sm:$0xff]
      %v497 = vld [vmem:[%s1 + $0x8b8] sm:$0xff]
      %v498 = vld [vmem:[%s1 + $0x8c0] sm:$0xff]
      %v499 = vld [vmem:[%s1 + $0x8c8] sm:$0xff]
      %v500 = vld [vmem:[%s1 + $0x8d0] sm:$0xff]
      %v501 = vld [vmem:[%s1 + $0x8d8] sm:$0xff]
      %v502 = vld [vmem:[%s1 + $0x8e0] sm:$0xff]
      %v503 = vld [vmem:[%s1 + $0x8e8] sm:$0xff]
      %v504 = vld [vmem:[%s1 + $0x8f0] sm:$0xff]
      %v505 = vld [vmem:[%s1 + $0x8f8] sm:$0xff]
      %v506 = vld [vmem:[%s1 + $0x900] sm:$0xff]
      %v507 = vld [vmem:[%s1 + $0x908] sm:$0xff]
      %v508 = vld [vmem:[%s1 + $0x910] sm:$0xff]
      %v509 = vld [vmem:[%s1 + $0x918] sm:$0xff]
      %v510 = vld [vmem:[%s1 + $0x920] sm:$0xff]
      %v511 = vld [vmem:[%s1 + $0x928] sm:$0xff]
      %v512 = vld [vmem:[%s1 + $0x930] sm:$0xff]
      %v513 = vld [vmem:[%s1 + $0x938] sm:$0xff]
      %v514 = vld [vmem:[%s1 + $0x940] sm:$0xff]
      %v515 = vld [vmem:[%s1 + $0x948] sm:$0xff]
      %v516 = vld [vmem:[%s1 + $0x950] sm:$0xff]
      %v517 = vld [vmem:[%s1 + $0x958] sm:$0xff]
      %v518 = vld [vmem:[%s1 + $0x960] sm:$0xff]
      %v519 = vld [vmem:[%s1 + $0x968] sm:$0xff]
      %v520 = vld [vmem:[%s1 + $0x970] sm:$0xff]
      %v521 = vld [vmem:[%s1 + $0x978] sm:$0xff]
      %v522 = vld [vmem:[%s1 + $0x980] sm:$0xff]
      %v523 = vld [vmem:[%s1 + $0x988] sm:$0xff]
      %v524 = vld [vmem:[%s1 + $0x990] sm:$0xff]
      %v525 = vld [vmem:[%s1 + $0x998] sm:$0xff]
      %v526 = vld [vmem:[%s1 + $0x9a0] sm:$0xff]
      %v527 = vld [vmem:[%s1 + $0x9a8] sm:$0xff]
      %v528 = vld [vmem:[%s1 + $0x9b0] sm:$0xff]
      %v529 = vld [vmem:[%s1 + $0x9b8] sm:$0xff]
      %v530 = vld [vmem:[%s1 + $0x9c0] sm:$0xff]
      %v531 = vld [vmem:[%s1 + $0x9c8] sm:$0xff]
      %v532 = vld [vmem:[%s1 + $0x9d0] sm:$0xff]
      %v533 = vld [vmem:[%s1 + $0x9d8] sm:$0xff]
      %v534 = vld [vmem:[%s1 + $0x9e0] sm:$0xff]
      %v535 = vld [vmem:[%s1 + $0x9e8] sm:$0xff]
      %v536 = vld [vmem:[%s1 + $0x9f0] sm:$0xff]
      %v537 = vld [vmem:[%s1 + $0x9f8] sm:$0xff]
      %v538 = vld [vmem:[%s1 + $0xa00] sm:$0xff]
      %v539 = vld [vmem:[%s1 + $0xa08] sm:$0xff]
      %v540 = vld [vmem:[%s1 + $0xa10] sm:$0xff]
      %v541 = vld [vmem:[%s1 + $0xa18] sm:$0xff]
      %v542 = vld [vmem:[%s1 + $0xa20] sm:$0xff]
      %v543 = vld [vmem:[%s1 + $0xa28] sm:$0xff]
      %v544 = vld [vmem:[%s1 + $0xa30] sm:$0xff]
      %v545 = vld [vmem:[%s1 + $0xa38] sm:$0xff]
      %v546 = vld [vmem:[%s1 + $0xa40] sm:$0xff]
      %v547 = vld [vmem:[%s1 + $0xa48] sm:$0xff]
      %v548 = vld [vmem:[%s1 + $0xa50] sm:$0xff]
      %v549 = vld [vmem:[%s1 + $0xa58] sm:$0xff]
      %v550 = vld [vmem:[%s1 + $0xa60] sm:$0xff]
      %v551 = vld [vmem:[%s1 + $0xa68] sm:$0xff]
      %v552 = vld [vmem:[%s1 + $0xa70] sm:$0xff]
      %v553 = vld [vmem:[%s1 + $0xa78] sm:$0xff]
      %v554 = vld [vmem:[%s1 + $0xa80] sm:$0xff]
      %v555 = vld [vmem:[%s1 + $0xa88] sm:$0xff]
      %v556 = vld [vmem:[%s1 + $0xa90] sm:$0xff]
      %v557 = vld [vmem:[%s1 + $0xa98] sm:$0xff]
      %v558 = vld [vmem:[%s1 + $0xaa0] sm:$0xff]
      %v559 = vld [vmem:[%s1 + $0xaa8] sm:$0xff]
      %v560 = vld [vmem:[%s1 + $0xab0] sm:$0xff]
      %v561 = vld [vmem:[%s1 + $0xab8] sm:$0xff]
      %v562 = vld [vmem:[%s1 + $0xac0] sm:$0xff]
      %v563 = vld [vmem:[%s1 + $0xac8] sm:$0xff]
      %v564 = vld [vmem:[%s1 + $0xad0] sm:$0xff]
      %v565 = vld [vmem:[%s1 + $0xad8] sm:$0xff]
      %v566 = vld [vmem:[%s1 + $0xae0] sm:$0xff]
      %v567 = vld [vmem:[%s1 + $0xae8] sm:$0xff]
      %v568 = vld [vmem:[%s1 + $0xaf0] sm:$0xff]
      %v569 = vld [vmem:[%s1 + $0xaf8] sm:$0xff]
      %v570 = vld [vmem:[%s1 + $0xb00] sm:$0xff]
      %v571 = vld [vmem:[%s1 + $0xb08] sm:$0xff]
      %v572 = vld [vmem:[%s1 + $0xb10] sm:$0xff]
      %v573 = vld [vmem:[%s1 + $0xb18] sm:$0xff]
      %v574 = vld [vmem:[%s1 + $0xb20] sm:$0xff]
      %v575 = vld [vmem:[%s1 + $0xb28] sm:$0xff]
      %v576 = vld [vmem:[%s1 + $0xb30] sm:$0xff]
      %v577 = vld [vmem:[%s1 + $0xb38] sm:$0xff]
      %v578 = vld [vmem:[%s1 + $0xb40] sm:$0xff]
      %v579 = vld [vmem:[%s1 + $0xb48] sm:$0xff]
      %v580 = vld [vmem:[%s1 + $0xb50] sm:$0xff]
      %v581 = vld [vmem:[%s1 + $0xb58] sm:$0xff]
      %v582 = vld [vmem:[%s1 + $0xb60] sm:$0xff]
      %v583 = vld [vmem:[%s1 + $0xb68] sm:$0xff]
      %v584 = vld [vmem:[%s1 + $0xb70] sm:$0xff]
      %v585 = vld [vmem:[%s1 + $0xb78] sm:$0xff]
      %v586 = vld [vmem:[%s1 + $0xb80] sm:$0xff]
      %v587 = vld [vmem:[%s1 + $0xb88] sm:$0xff]
      %v588 = vld [vmem:[%s1 + $0xb90] sm:$0xff]
      %v589 = vld [vmem:[%s1 + $0xb98] sm:$0xff]
      %v590 = vld [vmem:[%s1 + $0xba0] sm:$0xff]
      %v591 = vld [vmem:[%s1 + $0xba8] sm:$0xff]
      %v592 = vld [vmem:[%s1 + $0xbb0] sm:$0xff]
      %v593 = vld [vmem:[%s1 + $0xbb8] sm:$0xff]
      %v594 = vld [vmem:[%s1 + $0xbc0] sm:$0xff]
      %v595 = vld [vmem:[%s1 + $0xbc8] sm:$0xff]
      %v596 = vld [vmem:[%s1 + $0xbd0] sm:$0xff]
      %v597 = vld [vmem:[%s1 + $0xbd8] sm:$0xff]
      %v598 = vld [vmem:[%s1 + $0xbe0] sm:$0xff]
      %v599 = vld [vmem:[%s1 + $0xbe8] sm:$0xff]
      %v600 = vld [vmem:[%s1 + $0xbf0] sm:$0xff]
      %v601 = vld [vmem:[%s1 + $0xbf8] sm:$0xff]
      %v602 = vld [vmem:[%s1 + $0xc00] sm:$0xff]
      %v603 = vld [vmem:[%s1 + $0xc08] sm:$0xff]
      %v604 = vld [vmem:[%s1 + $0xc10] sm:$0xff]
      %v605 = vld [vmem:[%s1 + $0xc18] sm:$0xff]
      %v606 = vld [vmem:[%s1 + $0xc20] sm:$0xff]
      %v607 = vld [vmem:[%s1 + $0xc28] sm:$0xff]
      %v608 = vld [vmem:[%s1 + $0xc30] sm:$0xff]
      %v609 = vld [vmem:[%s1 + $0xc38] sm:$0xff]
      %v610 = vld [vmem:[%s1 + $0xc40] sm:$0xff]
      %v611 = vld [vmem:[%s1 + $0xc48] sm:$0xff]
      %v612 = vld [vmem:[%s1 + $0xc50] sm:$0xff]
      %v613 = vld [vmem:[%s1 + $0xc58] sm:$0xff]
      %v614 = vld [vmem:[%s1 + $0xc60] sm:$0xff]
      %v615 = vld [vmem:[%s1 + $0xc68] sm:$0xff]
      %v616 = vld [vmem:[%s1 + $0xc70] sm:$0xff]
      %v617 = vld [vmem:[%s1 + $0xc78] sm:$0xff]
      %v618 = vld [vmem:[%s1 + $0xc80] sm:$0xff]
      %v619 = vld [vmem:[%s1 + $0xc88] sm:$0xff]
      %v620 = vld [vmem:[%s1 + $0xc90] sm:$0xff]
      %v621 = vld [vmem:[%s1 + $0xc98] sm:$0xff]
      %v622 = vld [vmem:[%s1 + $0xca0] sm:$0xff]
      %v623 = vld [vmem:[%s1 + $0xca8] sm:$0xff]
      %v624 = vld [vmem:[%s1 + $0xcb0] sm:$0xff]
      %v625 = vld [vmem:[%s1 + $0xcb8] sm:$0xff]
      %v626 = vld [vmem:[%s1 + $0xcc0] sm:$0xff]
      %v627 = vld [vmem:[%s1 + $0xcc8] sm:$0xff]
      %v628 = vld [vmem:[%s1 + $0xcd0] sm:$0xff]
      %v629 = vld [vmem:[%s1 + $0xcd8] sm:$0xff]
      %v630 = vld [vmem:[%s1 + $0xce0] sm:$0xff]
      %v631 = vld [vmem:[%s1 + $0xce8] sm:$0xff]
      %v632 = vld [vmem:[%s1 + $0xcf0] sm:$0xff]
      %v633 = vld [vmem:[%s1 + $0xcf8] sm:$0xff]
      %v634 = vld [vmem:[%s1 + $0xd00] sm:$0xff]
      %v635 = vld [vmem:[%s1 + $0xd08] sm:$0xff]
      %v636 = vld [vmem:[%s1 + $0xd10] sm:$0xff]
      %v637 = vld [vmem:[%s1 + $0xd18] sm:$0xff]
      %v638 = vld [vmem:[%s1 + $0xd20] sm:$0xff]
      %v639 = vld [vmem:[%s1 + $0xd28] sm:$0xff]
      %v640 = vld [vmem:[%s1 + $0xd30] sm:$0xff]
      %v641 = vld [vmem:[%s1 + $0xd38] sm:$0xff]
      %v642 = vld [vmem:[%s1 + $0xd40] sm:$0xff]
      %v643 = vld [vmem:[%s1 + $0xd48] sm:$0xff]
      %v644 = vld [vmem:[%s1 + $0xd50] sm:$0xff]
      %v645 = vld [vmem:[%s1 + $0xd58] sm:$0xff]
      %v646 = vld [vmem:[%s1 + $0xd60] sm:$0xff]
      %v647 = vld [vmem:[%s1 + $0xd68] sm:$0xff]
      %v648 = vld [vmem:[%s1 + $0xd70] sm:$0xff]
      %v649 = vld [vmem:[%s1 + $0xd78] sm:$0xff]
      %v650 = vld [vmem:[%s1 + $0xd80] sm:$0xff]
      %v651 = vld [vmem:[%s1 + $0xd88] sm:$0xff]
      %v652 = vld [vmem:[%s1 + $0xd90] sm:$0xff]
      %v653 = vld [vmem:[%s1 + $0xd98] sm:$0xff]
      %v654 = vld [vmem:[%s1 + $0xda0] sm:$0xff]
      %v655 = vld [vmem:[%s1 + $0xda8] sm:$0xff]
      %v656 = vld [vmem:[%s1 + $0xdb0] sm:$0xff]
      %v657 = vld [vmem:[%s1 + $0xdb8] sm:$0xff]
      %v658 = vld [vmem:[%s1 + $0xdc0] sm:$0xff]
      %v659 = vld [vmem:[%s1 + $0xdc8] sm:$0xff]
      %v660 = vld [vmem:[%s1 + $0xdd0] sm:$0xff]
      %v661 = vld [vmem:[%s1 + $0xdd8] sm:$0xff]
      %v662 = vld [vmem:[%s1 + $0xde0] sm:$0xff]
      %v663 = vld [vmem:[%s1 + $0xde8] sm:$0xff]
      %v664 = vld [vmem:[%s1 + $0xdf0] sm:$0xff]
      %v665 = vld [vmem:[%s1 + $0xdf8] sm:$0xff]
      %v666 = vld [vmem:[%s1 + $0xe00] sm:$0xff]
      %v667 = vld [vmem:[%s1 + $0xe08] sm:$0xff]
      %v668 = vld [vmem:[%s1 + $0xe10] sm:$0xff]
      %v669 = vld [vmem:[%s1 + $0xe18] sm:$0xff]
      %v670 = vld [vmem:[%s1 + $0xe20] sm:$0xff]
      %v671 = vld [vmem:[%s1 + $0xe28] sm:$0xff]
      %v672 = vld [vmem:[%s1 + $0xe30] sm:$0xff]
      %v673 = vld [vmem:[%s1 + $0xe38] sm:$0xff]
      %v674 = vld [vmem:[%s1 + $0xe40] sm:$0xff]
      %v675 = vld [vmem:[%s1 + $0xe48] sm:$0xff]
      %v676 = vld [vmem:[%s1 + $0xe50] sm:$0xff]
      %v677 = vld [vmem:[%s1 + $0xe58] sm:$0xff]
      %v678 = vld [vmem:[%s1 + $0xe60] sm:$0xff]
      %v679 = vld [vmem:[%s1 + $0xe68] sm:$0xff]
      %v680 = vld [vmem:[%s1 + $0xe70] sm:$0xff]
      %v681 = vld [vmem:[%s1 + $0xe78] sm:$0xff]
      %v682 = vld [vmem:[%s1 + $0xe80] sm:$0xff]
      %v683 = vld [vmem:[%s1 + $0xe88] sm:$0xff]
      %v684 = vld [vmem:[%s1 + $0xe90] sm:$0xff]
      %v685 = vld [vmem:[%s1 + $0xe98] sm:$0xff]
      %v686 = vld [vmem:[%s1 + $0xea0] sm:$0xff]
      %v687 = vld [vmem:[%s1 + $0xea8] sm:$0xff]
      %v688 = vld [vmem:[%s1 + $0xeb0] sm:$0xff]
      %v689 = vld [vmem:[%s1 + $0xeb8] sm:$0xff]
      %v690 = vld [vmem:[%s1 + $0xec0] sm:$0xff]
      %v691 = vld [vmem:[%s1 + $0xec8] sm:$0xff]
      %v692 = vld [vmem:[%s1 + $0xed0] sm:$0xff]
      %v693 = vld [vmem:[%s1 + $0xed8] sm:$0xff]
      %v694 = vld [vmem:[%s1 + $0xee0] sm:$0xff]
      %v695 = vld [vmem:[%s1 + $0xee8] sm:$0xff]
      %v696 = vld [vmem:[%s1 + $0xef0] sm:$0xff]
      %v697 = vld [vmem:[%s1 + $0xef8] sm:$0xff]
      %v698 = vld [vmem:[%s1 + $0xf00] sm:$0xff]
      %v699 = vld [vmem:[%s1 + $0xf08] sm:$0xff]
      %v700 = vld [vmem:[%s1 + $0xf10] sm:$0xff]
      %v701 = vld [vmem:[%s1 + $0xf18] sm:$0xff]
      %v702 = vld [vmem:[%s1 + $0xf20] sm:$0xff]
      %v703 = vld [vmem:[%s1 + $0xf28] sm:$0xff]
      %v704 = vld [vmem:[%s1 + $0xf30] sm:$0xff]
      %v705 = vld [vmem:[%s1 + $0xf38] sm:$0xff]
      %v706 = vld [vmem:[%s1 + $0xf40] sm:$0xff]
      %v707 = vld [vmem:[%s1 + $0xf48] sm:$0xff]
      %v708 = vld [vmem:[%s1 + $0xf50] sm:$0xff]
      %v709 = vld [vmem:[%s1 + $0xf58] sm:$0xff]
      %v710 = vld [vmem:[%s1 + $0xf60] sm:$0xff]
      %v711 = vld [vmem:[%s1 + $0xf68] sm:$0xff]
      %v712 = vld [vmem:[%s1 + $0xf70] sm:$0xff]
      %v713 = vld [vmem:[%s1 + $0xf78] sm:$0xff]
      %v714 = vld [vmem:[%s1 + $0xf80] sm:$0xff]
      %v715 = vld [vmem:[%s1 + $0xf88] sm:$0xff]
      %v716 = vld [vmem:[%s1 + $0xf90] sm:$0xff]
      %v717 = vld [vmem:[%s1 + $0xf98] sm:$0xff]
      %v718 = vld [vmem:[%s1 + $0xfa0] sm:$0xff]
      %v719 = vld [vmem:[%s1 + $0xfa8] sm:$0xff]
      %v720 = vld [vmem:[%s1 + $0xfb0] sm:$0xff]
      %v721 = vld [vmem:[%s1 + $0xfb8] sm:$0xff]
      %v722 = vld [vmem:[%s1 + $0xfc0] sm:$0xff]
      %v723 = vld [vmem:[%s1 + $0xfc8] sm:$0xff]
      %v724 = vld [vmem:[%s1 + $0xfd0] sm:$0xff]
      %v725 = vld [vmem:[%s1 + $0xfd8] sm:$0xff]
      %v726 = vld [vmem:[%s1 + $0xfe0] sm:$0xff]
      %v727 = vld [vmem:[%s1 + $0xfe8] sm:$0xff]
      %v728 = vld [vmem:[%s1 + $0xff0] sm:$0xff]
      %v729 = vld [vmem:[%s1 + $0xff8] sm:$0xff]
      %v730 = vld [vmem:[%s2] sm:$0xff]
      %v732 = vlaneseq
      %v733 = vshrl.u32 %v732, 7
      %v734 = vsub.s32 0, %v733
      %v735 = vrot.slane %v730, %v734
      %v736 = vlaneseq
      %v737 = vshrl.u32 %v736, 7
      %v738 = vsub.s32 1, %v737
      %v739 = vrot.slane %v730, %v738
      %v740 = vlaneseq
      %v741 = vshrl.u32 %v740, 7
      %v742 = vsub.s32 2, %v741
      %v743 = vrot.slane %v730, %v742
      %v744 = vlaneseq
      %v745 = vshrl.u32 %v744, 7
      %v746 = vsub.s32 3, %v745
      %v747 = vrot.slane %v730, %v746
      %v748 = vlaneseq
      %v749 = vshrl.u32 %v748, 7
      %v750 = vsub.s32 4, %v749
      %v751 = vrot.slane %v730, %v750
      %v752 = vlaneseq
      %v753 = vshrl.u32 %v752, 7
      %v754 = vsub.s32 5, %v753
      %v755 = vrot.slane %v730, %v754
      %v756 = vlaneseq
      %v757 = vshrl.u32 %v756, 7
      %v758 = vsub.s32 6, %v757
      %v759 = vrot.slane %v730, %v758
      %v760 = vlaneseq
      %v761 = vshrl.u32 %v760, 7
      %v762 = vsub.s32 7, %v761
      %v763 = vrot.slane %v730, %v762
      %v773 = vcombine.high %v217, %v217
      %v775 = vunpack.c.l.s4 1966171168
      %v776 = vunpack.c.0.s8 %v775
      %v777 = vlaneseq
      %v778 = vshrl.u32 %v777, 7
      %v779 = vsub.s32 %v776, %v778
      %v780 = vrot.slane %v217, %v779
      %v782 = vunpack.c.l.s4 1966171168
      %v783 = vunpack.c.0.s8 %v782
      %v784 = vlaneseq
      %v785 = vshrl.u32 %v784, 7
      %v786 = vsub.s32 %v783, %v785
      %v787 = vrot.slane %v773, %v786
      %v788 = vcombine.high %v780, %v780
      %v789 = vcombine.high %v787, %v787
      %v791 = vunpack.c.l.s4 1966171168
      %v792 = vunpack.c.0.s8 %v791
      %v793 = vlaneseq
      %v794 = vshrl.u32 %v793, 7
      %v795 = vsub.s32 %v792, %v794
      %v796 = vrot.slane %v780, %v795
      %v798 = vunpack.c.l.s4 1966171168
      %v799 = vunpack.c.0.s8 %v798
      %v800 = vlaneseq
      %v801 = vshrl.u32 %v800, 7
      %v802 = vsub.s32 %v799, %v801
      %v803 = vrot.slane %v787, %v802
      %v805 = vunpack.c.l.s4 1966171168
      %v806 = vunpack.c.0.s8 %v805
      %v807 = vlaneseq
      %v808 = vshrl.u32 %v807, 7
      %v809 = vsub.s32 %v806, %v808
      %v810 = vrot.slane %v788, %v809
      %v812 = vunpack.c.l.s4 1966171168
      %v813 = vunpack.c.0.s8 %v812
      %v814 = vlaneseq
      %v815 = vshrl.u32 %v814, 7
      %v816 = vsub.s32 %v813, %v815
      %v817 = vrot.slane %v789, %v816
      %v818 = vcombine.high %v796, %v796
      %v819 = vcombine.high %v803, %v803
      %v820 = vcombine.high %v810, %v810
      %v821 = vcombine.high %v817, %v817
      %v1342 = vunpack.c.l.b16 %v218
      %v1343 = vunpack.c.h.b16 %v218
      %v1344 = vunpack.c.l.b16 %v219
      %v1345 = vunpack.c.h.b16 %v219
      %v1346 = vunpack.c.l.b16 %v220
      %v1347 = vunpack.c.h.b16 %v220
      %v1348 = vunpack.c.l.b16 %v221
      %v1349 = vunpack.c.h.b16 %v221
      %v1350 = vunpack.c.l.b16 %v222
      %v1351 = vunpack.c.h.b16 %v222
      %v1352 = vunpack.c.l.b16 %v223
      %v1353 = vunpack.c.h.b16 %v223
      %v1354 = vunpack.c.l.b16 %v224
      %v1355 = vunpack.c.h.b16 %v224
      %v1356 = vunpack.c.l.b16 %v225
      %v1357 = vunpack.c.h.b16 %v225
      %v1358 = vunpack.c.l.b16 %v226
      %v1359 = vunpack.c.h.b16 %v226
      %v1360 = vunpack.c.l.b16 %v227
      %v1361 = vunpack.c.h.b16 %v227
      %v1362 = vunpack.c.l.b16 %v228
      %v1363 = vunpack.c.h.b16 %v228
      %v1364 = vunpack.c.l.b16 %v229
      %v1365 = vunpack.c.h.b16 %v229
      %v1366 = vunpack.c.l.b16 %v230
      %v1367 = vunpack.c.h.b16 %v230
      %v1368 = vunpack.c.l.b16 %v231
      %v1369 = vunpack.c.h.b16 %v231
      %v1370 = vunpack.c.l.b16 %v232
      %v1371 = vunpack.c.h.b16 %v232
      %v1372 = vunpack.c.l.b16 %v233
      %v1373 = vunpack.c.h.b16 %v233
      %v1374 = vunpack.c.l.b16 %v234
      %v1375 = vunpack.c.h.b16 %v234
      %v1376 = vunpack.c.l.b16 %v235
      %v1377 = vunpack.c.h.b16 %v235
      %v1378 = vunpack.c.l.b16 %v236
      %v1379 = vunpack.c.h.b16 %v236
      %v1380 = vunpack.c.l.b16 %v237
      %v1381 = vunpack.c.h.b16 %v237
      %v1382 = vunpack.c.l.b16 %v238
      %v1383 = vunpack.c.h.b16 %v238
      %v1384 = vunpack.c.l.b16 %v239
      %v1385 = vunpack.c.h.b16 %v239
      %v1386 = vunpack.c.l.b16 %v240
      %v1387 = vunpack.c.h.b16 %v240
      %v1388 = vunpack.c.l.b16 %v241
      %v1389 = vunpack.c.h.b16 %v241
      %v1390 = vunpack.c.l.b16 %v242
      %v1391 = vunpack.c.h.b16 %v242
      %v1392 = vunpack.c.l.b16 %v243
      %v1393 = vunpack.c.h.b16 %v243
      %v1394 = vunpack.c.l.b16 %v244
      %v1395 = vunpack.c.h.b16 %v244
      %v1396 = vunpack.c.l.b16 %v245
      %v1397 = vunpack.c.h.b16 %v245
      %v1398 = vunpack.c.l.b16 %v246
      %v1399 = vunpack.c.h.b16 %v246
      %v1400 = vunpack.c.l.b16 %v247
      %v1401 = vunpack.c.h.b16 %v247
      %v1402 = vunpack.c.l.b16 %v248
      %v1403 = vunpack.c.h.b16 %v248
      %v1404 = vunpack.c.l.b16 %v249
      %v1405 = vunpack.c.h.b16 %v249
      %v1406 = vunpack.c.l.b16 %v250
      %v1407 = vunpack.c.h.b16 %v250
      %v1408 = vunpack.c.l.b16 %v251
      %v1409 = vunpack.c.h.b16 %v251
      %v1410 = vunpack.c.l.b16 %v252
      %v1411 = vunpack.c.h.b16 %v252
      %v1412 = vunpack.c.l.b16 %v253
      %v1413 = vunpack.c.h.b16 %v253
      %v1414 = vunpack.c.l.b16 %v254
      %v1415 = vunpack.c.h.b16 %v254
      %v1416 = vunpack.c.l.b16 %v255
      %v1417 = vunpack.c.h.b16 %v255
      %v1418 = vunpack.c.l.b16 %v256
      %v1419 = vunpack.c.h.b16 %v256
      %v1420 = vunpack.c.l.b16 %v257
      %v1421 = vunpack.c.h.b16 %v257
      %v1422 = vunpack.c.l.b16 %v258
      %v1423 = vunpack.c.h.b16 %v258
      %v1424 = vunpack.c.l.b16 %v259
      %v1425 = vunpack.c.h.b16 %v259
      %v1426 = vunpack.c.l.b16 %v260
      %v1427 = vunpack.c.h.b16 %v260
      %v1428 = vunpack.c.l.b16 %v261
      %v1429 = vunpack.c.h.b16 %v261
      %v1430 = vunpack.c.l.b16 %v262
      %v1431 = vunpack.c.h.b16 %v262
      %v1432 = vunpack.c.l.b16 %v263
      %v1433 = vunpack.c.h.b16 %v263
      %v1434 = vunpack.c.l.b16 %v264
      %v1435 = vunpack.c.h.b16 %v264
      %v1436 = vunpack.c.l.b16 %v265
      %v1437 = vunpack.c.h.b16 %v265
      %v1438 = vunpack.c.l.b16 %v266
      %v1439 = vunpack.c.h.b16 %v266
      %v1440 = vunpack.c.l.b16 %v267
      %v1441 = vunpack.c.h.b16 %v267
      %v1442 = vunpack.c.l.b16 %v268
      %v1443 = vunpack.c.h.b16 %v268
      %v1444 = vunpack.c.l.b16 %v269
      %v1445 = vunpack.c.h.b16 %v269
      %v1446 = vunpack.c.l.b16 %v270
      %v1447 = vunpack.c.h.b16 %v270
      %v1448 = vunpack.c.l.b16 %v271
      %v1449 = vunpack.c.h.b16 %v271
      %v1450 = vunpack.c.l.b16 %v272
      %v1451 = vunpack.c.h.b16 %v272
      %v1452 = vunpack.c.l.b16 %v273
      %v1453 = vunpack.c.h.b16 %v273
      %v1454 = vunpack.c.l.b16 %v274
      %v1455 = vunpack.c.h.b16 %v274
      %v1456 = vunpack.c.l.b16 %v275
      %v1457 = vunpack.c.h.b16 %v275
      %v1458 = vunpack.c.l.b16 %v276
      %v1459 = vunpack.c.h.b16 %v276
      %v1460 = vunpack.c.l.b16 %v277
      %v1461 = vunpack.c.h.b16 %v277
      %v1462 = vunpack.c.l.b16 %v278
      %v1463 = vunpack.c.h.b16 %v278
      %v1464 = vunpack.c.l.b16 %v279
      %v1465 = vunpack.c.h.b16 %v279
      %v1466 = vunpack.c.l.b16 %v280
      %v1467 = vunpack.c.h.b16 %v280
      %v1468 = vunpack.c.l.b16 %v281
      %v1469 = vunpack.c.h.b16 %v281
      %v1470 = vunpack.c.l.b16 %v282
      %v1471 = vunpack.c.h.b16 %v282
      %v1472 = vunpack.c.l.b16 %v283
      %v1473 = vunpack.c.h.b16 %v283
      %v1474 = vunpack.c.l.b16 %v284
      %v1475 = vunpack.c.h.b16 %v284
      %v1476 = vunpack.c.l.b16 %v285
      %v1477 = vunpack.c.h.b16 %v285
      %v1478 = vunpack.c.l.b16 %v286
      %v1479 = vunpack.c.h.b16 %v286
      %v1480 = vunpack.c.l.b16 %v287
      %v1481 = vunpack.c.h.b16 %v287
      %v1482 = vunpack.c.l.b16 %v288
      %v1483 = vunpack.c.h.b16 %v288
      %v1484 = vunpack.c.l.b16 %v289
      %v1485 = vunpack.c.h.b16 %v289
      %v1486 = vunpack.c.l.b16 %v290
      %v1487 = vunpack.c.h.b16 %v290
      %v1488 = vunpack.c.l.b16 %v291
      %v1489 = vunpack.c.h.b16 %v291
      %v1490 = vunpack.c.l.b16 %v292
      %v1491 = vunpack.c.h.b16 %v292
      %v1492 = vunpack.c.l.b16 %v293
      %v1493 = vunpack.c.h.b16 %v293
      %v1494 = vunpack.c.l.b16 %v294
      %v1495 = vunpack.c.h.b16 %v294
      %v1496 = vunpack.c.l.b16 %v295
      %v1497 = vunpack.c.h.b16 %v295
      %v1498 = vunpack.c.l.b16 %v296
      %v1499 = vunpack.c.h.b16 %v296
      %v1500 = vunpack.c.l.b16 %v297
      %v1501 = vunpack.c.h.b16 %v297
      %v1502 = vunpack.c.l.b16 %v298
      %v1503 = vunpack.c.h.b16 %v298
      %v1504 = vunpack.c.l.b16 %v299
      %v1505 = vunpack.c.h.b16 %v299
      %v1506 = vunpack.c.l.b16 %v300
      %v1507 = vunpack.c.h.b16 %v300
      %v1508 = vunpack.c.l.b16 %v301
      %v1509 = vunpack.c.h.b16 %v301
      %v1510 = vunpack.c.l.b16 %v302
      %v1511 = vunpack.c.h.b16 %v302
      %v1512 = vunpack.c.l.b16 %v303
      %v1513 = vunpack.c.h.b16 %v303
      %v1514 = vunpack.c.l.b16 %v304
      %v1515 = vunpack.c.h.b16 %v304
      %v1516 = vunpack.c.l.b16 %v305
      %v1517 = vunpack.c.h.b16 %v305
      %v1518 = vunpack.c.l.b16 %v306
      %v1519 = vunpack.c.h.b16 %v306
      %v1520 = vunpack.c.l.b16 %v307
      %v1521 = vunpack.c.h.b16 %v307
      %v1522 = vunpack.c.l.b16 %v308
      %v1523 = vunpack.c.h.b16 %v308
      %v1524 = vunpack.c.l.b16 %v309
      %v1525 = vunpack.c.h.b16 %v309
      %v1526 = vunpack.c.l.b16 %v310
      %v1527 = vunpack.c.h.b16 %v310
      %v1528 = vunpack.c.l.b16 %v311
      %v1529 = vunpack.c.h.b16 %v311
      %v1530 = vunpack.c.l.b16 %v312
      %v1531 = vunpack.c.h.b16 %v312
      %v1532 = vunpack.c.l.b16 %v313
      %v1533 = vunpack.c.h.b16 %v313
      %v1534 = vunpack.c.l.b16 %v314
      %v1535 = vunpack.c.h.b16 %v314
      %v1536 = vunpack.c.l.b16 %v315
      %v1537 = vunpack.c.h.b16 %v315
      %v1538 = vunpack.c.l.b16 %v316
      %v1539 = vunpack.c.h.b16 %v316
      %v1540 = vunpack.c.l.b16 %v317
      %v1541 = vunpack.c.h.b16 %v317
      %v1542 = vunpack.c.l.b16 %v318
      %v1543 = vunpack.c.h.b16 %v318
      %v1544 = vunpack.c.l.b16 %v319
      %v1545 = vunpack.c.h.b16 %v319
      %v1546 = vunpack.c.l.b16 %v320
      %v1547 = vunpack.c.h.b16 %v320
      %v1548 = vunpack.c.l.b16 %v321
      %v1549 = vunpack.c.h.b16 %v321
      %v1550 = vunpack.c.l.b16 %v322
      %v1551 = vunpack.c.h.b16 %v322
      %v1552 = vunpack.c.l.b16 %v323
      %v1553 = vunpack.c.h.b16 %v323
      %v1554 = vunpack.c.l.b16 %v324
      %v1555 = vunpack.c.h.b16 %v324
      %v1556 = vunpack.c.l.b16 %v325
      %v1557 = vunpack.c.h.b16 %v325
      %v1558 = vunpack.c.l.b16 %v326
      %v1559 = vunpack.c.h.b16 %v326
      %v1560 = vunpack.c.l.b16 %v327
      %v1561 = vunpack.c.h.b16 %v327
      %v1562 = vunpack.c.l.b16 %v328
      %v1563 = vunpack.c.h.b16 %v328
      %v1564 = vunpack.c.l.b16 %v329
      %v1565 = vunpack.c.h.b16 %v329
      %v1566 = vunpack.c.l.b16 %v330
      %v1567 = vunpack.c.h.b16 %v330
      %v1568 = vunpack.c.l.b16 %v331
      %v1569 = vunpack.c.h.b16 %v331
      %v1570 = vunpack.c.l.b16 %v332
      %v1571 = vunpack.c.h.b16 %v332
      %v1572 = vunpack.c.l.b16 %v333
      %v1573 = vunpack.c.h.b16 %v333
      %v1574 = vunpack.c.l.b16 %v334
      %v1575 = vunpack.c.h.b16 %v334
      %v1576 = vunpack.c.l.b16 %v335
      %v1577 = vunpack.c.h.b16 %v335
      %v1578 = vunpack.c.l.b16 %v336
      %v1579 = vunpack.c.h.b16 %v336
      %v1580 = vunpack.c.l.b16 %v337
      %v1581 = vunpack.c.h.b16 %v337
      %v1582 = vunpack.c.l.b16 %v338
      %v1583 = vunpack.c.h.b16 %v338
      %v1584 = vunpack.c.l.b16 %v339
      %v1585 = vunpack.c.h.b16 %v339
      %v1586 = vunpack.c.l.b16 %v340
      %v1587 = vunpack.c.h.b16 %v340
      %v1588 = vunpack.c.l.b16 %v341
      %v1589 = vunpack.c.h.b16 %v341
      %v1590 = vunpack.c.l.b16 %v342
      %v1591 = vunpack.c.h.b16 %v342
      %v1592 = vunpack.c.l.b16 %v343
      %v1593 = vunpack.c.h.b16 %v343
      %v1594 = vunpack.c.l.b16 %v344
      %v1595 = vunpack.c.h.b16 %v344
      %v1596 = vunpack.c.l.b16 %v345
      %v1597 = vunpack.c.h.b16 %v345
      %v1598 = vunpack.c.l.b16 %v346
      %v1599 = vunpack.c.h.b16 %v346
      %v1600 = vunpack.c.l.b16 %v347
      %v1601 = vunpack.c.h.b16 %v347
      %v1602 = vunpack.c.l.b16 %v348
      %v1603 = vunpack.c.h.b16 %v348
      %v1604 = vunpack.c.l.b16 %v349
      %v1605 = vunpack.c.h.b16 %v349
      %v1606 = vunpack.c.l.b16 %v350
      %v1607 = vunpack.c.h.b16 %v350
      %v1608 = vunpack.c.l.b16 %v351
      %v1609 = vunpack.c.h.b16 %v351
      %v1610 = vunpack.c.l.b16 %v352
      %v1611 = vunpack.c.h.b16 %v352
      %v1612 = vunpack.c.l.b16 %v353
      %v1613 = vunpack.c.h.b16 %v353
      %v1614 = vunpack.c.l.b16 %v354
      %v1615 = vunpack.c.h.b16 %v354
      %v1616 = vunpack.c.l.b16 %v355
      %v1617 = vunpack.c.h.b16 %v355
      %v1618 = vunpack.c.l.b16 %v356
      %v1619 = vunpack.c.h.b16 %v356
      %v1620 = vunpack.c.l.b16 %v357
      %v1621 = vunpack.c.h.b16 %v357
      %v1622 = vunpack.c.l.b16 %v358
      %v1623 = vunpack.c.h.b16 %v358
      %v1624 = vunpack.c.l.b16 %v359
      %v1625 = vunpack.c.h.b16 %v359
      %v1626 = vunpack.c.l.b16 %v360
      %v1627 = vunpack.c.h.b16 %v360
      %v1628 = vunpack.c.l.b16 %v361
      %v1629 = vunpack.c.h.b16 %v361
      %v1630 = vunpack.c.l.b16 %v362
      %v1631 = vunpack.c.h.b16 %v362
      %v1632 = vunpack.c.l.b16 %v363
      %v1633 = vunpack.c.h.b16 %v363
      %v1634 = vunpack.c.l.b16 %v364
      %v1635 = vunpack.c.h.b16 %v364
      %v1636 = vunpack.c.l.b16 %v365
      %v1637 = vunpack.c.h.b16 %v365
      %v1638 = vunpack.c.l.b16 %v366
      %v1639 = vunpack.c.h.b16 %v366
      %v1640 = vunpack.c.l.b16 %v367
      %v1641 = vunpack.c.h.b16 %v367
      %v1642 = vunpack.c.l.b16 %v368
      %v1643 = vunpack.c.h.b16 %v368
      %v1644 = vunpack.c.l.b16 %v369
      %v1645 = vunpack.c.h.b16 %v369
      %v1646 = vunpack.c.l.b16 %v370
      %v1647 = vunpack.c.h.b16 %v370
      %v1648 = vunpack.c.l.b16 %v371
      %v1649 = vunpack.c.h.b16 %v371
      %v1650 = vunpack.c.l.b16 %v372
      %v1651 = vunpack.c.h.b16 %v372
      %v1652 = vunpack.c.l.b16 %v373
      %v1653 = vunpack.c.h.b16 %v373
      %v1654 = vunpack.c.l.b16 %v374
      %v1655 = vunpack.c.h.b16 %v374
      %v1656 = vunpack.c.l.b16 %v375
      %v1657 = vunpack.c.h.b16 %v375
      %v1658 = vunpack.c.l.b16 %v376
      %v1659 = vunpack.c.h.b16 %v376
      %v1660 = vunpack.c.l.b16 %v377
      %v1661 = vunpack.c.h.b16 %v377
      %v1662 = vunpack.c.l.b16 %v378
      %v1663 = vunpack.c.h.b16 %v378
      %v1664 = vunpack.c.l.b16 %v379
      %v1665 = vunpack.c.h.b16 %v379
      %v1666 = vunpack.c.l.b16 %v380
      %v1667 = vunpack.c.h.b16 %v380
      %v1668 = vunpack.c.l.b16 %v381
      %v1669 = vunpack.c.h.b16 %v381
      %v1670 = vunpack.c.l.b16 %v382
      %v1671 = vunpack.c.h.b16 %v382
      %v1672 = vunpack.c.l.b16 %v383
      %v1673 = vunpack.c.h.b16 %v383
      %v1674 = vunpack.c.l.b16 %v384
      %v1675 = vunpack.c.h.b16 %v384
      %v1676 = vunpack.c.l.b16 %v385
      %v1677 = vunpack.c.h.b16 %v385
      %v1678 = vunpack.c.l.b16 %v386
      %v1679 = vunpack.c.h.b16 %v386
      %v1680 = vunpack.c.l.b16 %v387
      %v1681 = vunpack.c.h.b16 %v387
      %v1682 = vunpack.c.l.b16 %v388
      %v1683 = vunpack.c.h.b16 %v388
      %v1684 = vunpack.c.l.b16 %v389
      %v1685 = vunpack.c.h.b16 %v389
      %v1686 = vunpack.c.l.b16 %v390
      %v1687 = vunpack.c.h.b16 %v390
      %v1688 = vunpack.c.l.b16 %v391
      %v1689 = vunpack.c.h.b16 %v391
      %v1690 = vunpack.c.l.b16 %v392
      %v1691 = vunpack.c.h.b16 %v392
      %v1692 = vunpack.c.l.b16 %v393
      %v1693 = vunpack.c.h.b16 %v393
      %v1694 = vunpack.c.l.b16 %v394
      %v1695 = vunpack.c.h.b16 %v394
      %v1696 = vunpack.c.l.b16 %v395
      %v1697 = vunpack.c.h.b16 %v395
      %v1698 = vunpack.c.l.b16 %v396
      %v1699 = vunpack.c.h.b16 %v396
      %v1700 = vunpack.c.l.b16 %v397
      %v1701 = vunpack.c.h.b16 %v397
      %v1702 = vunpack.c.l.b16 %v398
      %v1703 = vunpack.c.h.b16 %v398
      %v1704 = vunpack.c.l.b16 %v399
      %v1705 = vunpack.c.h.b16 %v399
      %v1706 = vunpack.c.l.b16 %v400
      %v1707 = vunpack.c.h.b16 %v400
      %v1708 = vunpack.c.l.b16 %v401
      %v1709 = vunpack.c.h.b16 %v401
      %v1710 = vunpack.c.l.b16 %v402
      %v1711 = vunpack.c.h.b16 %v402
      %v1712 = vunpack.c.l.b16 %v403
      %v1713 = vunpack.c.h.b16 %v403
      %v1714 = vunpack.c.l.b16 %v404
      %v1715 = vunpack.c.h.b16 %v404
      %v1716 = vunpack.c.l.b16 %v405
      %v1717 = vunpack.c.h.b16 %v405
      %v1718 = vunpack.c.l.b16 %v406
      %v1719 = vunpack.c.h.b16 %v406
      %v1720 = vunpack.c.l.b16 %v407
      %v1721 = vunpack.c.h.b16 %v407
      %v1722 = vunpack.c.l.b16 %v408
      %v1723 = vunpack.c.h.b16 %v408
      %v1724 = vunpack.c.l.b16 %v409
      %v1725 = vunpack.c.h.b16 %v409
      %v1726 = vunpack.c.l.b16 %v410
      %v1727 = vunpack.c.h.b16 %v410
      %v1728 = vunpack.c.l.b16 %v411
      %v1729 = vunpack.c.h.b16 %v411
      %v1730 = vunpack.c.l.b16 %v412
      %v1731 = vunpack.c.h.b16 %v412
      %v1732 = vunpack.c.l.b16 %v413
      %v1733 = vunpack.c.h.b16 %v413
      %v1734 = vunpack.c.l.b16 %v414
      %v1735 = vunpack.c.h.b16 %v414
      %v1736 = vunpack.c.l.b16 %v415
      %v1737 = vunpack.c.h.b16 %v415
      %v1738 = vunpack.c.l.b16 %v416
      %v1739 = vunpack.c.h.b16 %v416
      %v1740 = vunpack.c.l.b16 %v417
      %v1741 = vunpack.c.h.b16 %v417
      %v1742 = vunpack.c.l.b16 %v418
      %v1743 = vunpack.c.h.b16 %v418
      %v1744 = vunpack.c.l.b16 %v419
      %v1745 = vunpack.c.h.b16 %v419
      %v1746 = vunpack.c.l.b16 %v420
      %v1747 = vunpack.c.h.b16 %v420
      %v1748 = vunpack.c.l.b16 %v421
      %v1749 = vunpack.c.h.b16 %v421
      %v1750 = vunpack.c.l.b16 %v422
      %v1751 = vunpack.c.h.b16 %v422
      %v1752 = vunpack.c.l.b16 %v423
      %v1753 = vunpack.c.h.b16 %v423
      %v1754 = vunpack.c.l.b16 %v424
      %v1755 = vunpack.c.h.b16 %v424
      %v1756 = vunpack.c.l.b16 %v425
      %v1757 = vunpack.c.h.b16 %v425
      %v1758 = vunpack.c.l.b16 %v426
      %v1759 = vunpack.c.h.b16 %v426
      %v1760 = vunpack.c.l.b16 %v427
      %v1761 = vunpack.c.h.b16 %v427
      %v1762 = vunpack.c.l.b16 %v428
      %v1763 = vunpack.c.h.b16 %v428
      %v1764 = vunpack.c.l.b16 %v429
      %v1765 = vunpack.c.h.b16 %v429
      %v1766 = vunpack.c.l.b16 %v430
      %v1767 = vunpack.c.h.b16 %v430
      %v1768 = vunpack.c.l.b16 %v431
      %v1769 = vunpack.c.h.b16 %v431
      %v1770 = vunpack.c.l.b16 %v432
      %v1771 = vunpack.c.h.b16 %v432
      %v1772 = vunpack.c.l.b16 %v433
      %v1773 = vunpack.c.h.b16 %v433
      %v1774 = vunpack.c.l.b16 %v434
      %v1775 = vunpack.c.h.b16 %v434
      %v1776 = vunpack.c.l.b16 %v435
      %v1777 = vunpack.c.h.b16 %v435
      %v1778 = vunpack.c.l.b16 %v436
      %v1779 = vunpack.c.h.b16 %v436
      %v1780 = vunpack.c.l.b16 %v437
      %v1781 = vunpack.c.h.b16 %v437
      %v1782 = vunpack.c.l.b16 %v438
      %v1783 = vunpack.c.h.b16 %v438
      %v1784 = vunpack.c.l.b16 %v439
      %v1785 = vunpack.c.h.b16 %v439
      %v1786 = vunpack.c.l.b16 %v440
      %v1787 = vunpack.c.h.b16 %v440
      %v1788 = vunpack.c.l.b16 %v441
      %v1789 = vunpack.c.h.b16 %v441
      %v1790 = vunpack.c.l.b16 %v442
      %v1791 = vunpack.c.h.b16 %v442
      %v1792 = vunpack.c.l.b16 %v443
      %v1793 = vunpack.c.h.b16 %v443
      %v1794 = vunpack.c.l.b16 %v444
      %v1795 = vunpack.c.h.b16 %v444
      %v1796 = vunpack.c.l.b16 %v445
      %v1797 = vunpack.c.h.b16 %v445
      %v1798 = vunpack.c.l.b16 %v446
      %v1799 = vunpack.c.h.b16 %v446
      %v1800 = vunpack.c.l.b16 %v447
      %v1801 = vunpack.c.h.b16 %v447
      %v1802 = vunpack.c.l.b16 %v448
      %v1803 = vunpack.c.h.b16 %v448
      %v1804 = vunpack.c.l.b16 %v449
      %v1805 = vunpack.c.h.b16 %v449
      %v1806 = vunpack.c.l.b16 %v450
      %v1807 = vunpack.c.h.b16 %v450
      %v1808 = vunpack.c.l.b16 %v451
      %v1809 = vunpack.c.h.b16 %v451
      %v1810 = vunpack.c.l.b16 %v452
      %v1811 = vunpack.c.h.b16 %v452
      %v1812 = vunpack.c.l.b16 %v453
      %v1813 = vunpack.c.h.b16 %v453
      %v1814 = vunpack.c.l.b16 %v454
      %v1815 = vunpack.c.h.b16 %v454
      %v1816 = vunpack.c.l.b16 %v455
      %v1817 = vunpack.c.h.b16 %v455
      %v1818 = vunpack.c.l.b16 %v456
      %v1819 = vunpack.c.h.b16 %v456
      %v1820 = vunpack.c.l.b16 %v457
      %v1821 = vunpack.c.h.b16 %v457
      %v1822 = vunpack.c.l.b16 %v458
      %v1823 = vunpack.c.h.b16 %v458
      %v1824 = vunpack.c.l.b16 %v459
      %v1825 = vunpack.c.h.b16 %v459
      %v1826 = vunpack.c.l.b16 %v460
      %v1827 = vunpack.c.h.b16 %v460
      %v1828 = vunpack.c.l.b16 %v461
      %v1829 = vunpack.c.h.b16 %v461
      %v1830 = vunpack.c.l.b16 %v462
      %v1831 = vunpack.c.h.b16 %v462
      %v1832 = vunpack.c.l.b16 %v463
      %v1833 = vunpack.c.h.b16 %v463
      %v1834 = vunpack.c.l.b16 %v464
      %v1835 = vunpack.c.h.b16 %v464
      %v1836 = vunpack.c.l.b16 %v465
      %v1837 = vunpack.c.h.b16 %v465
      %v1838 = vunpack.c.l.b16 %v466
      %v1839 = vunpack.c.h.b16 %v466
      %v1840 = vunpack.c.l.b16 %v467
      %v1841 = vunpack.c.h.b16 %v467
      %v1842 = vunpack.c.l.b16 %v468
      %v1843 = vunpack.c.h.b16 %v468
      %v1844 = vunpack.c.l.b16 %v469
      %v1845 = vunpack.c.h.b16 %v469
      %v1846 = vunpack.c.l.b16 %v470
      %v1847 = vunpack.c.h.b16 %v470
      %v1848 = vunpack.c.l.b16 %v471
      %v1849 = vunpack.c.h.b16 %v471
      %v1850 = vunpack.c.l.b16 %v472
      %v1851 = vunpack.c.h.b16 %v472
      %v1852 = vunpack.c.l.b16 %v473
      %v1853 = vunpack.c.h.b16 %v473
      %v1854 = vunpack.c.l.b16 %v474
      %v1855 = vunpack.c.h.b16 %v474
      %v1856 = vunpack.c.l.b16 %v475
      %v1857 = vunpack.c.h.b16 %v475
      %v1858 = vunpack.c.l.b16 %v476
      %v1859 = vunpack.c.h.b16 %v476
      %v1860 = vunpack.c.l.b16 %v477
      %v1861 = vunpack.c.h.b16 %v477
      %v1862 = vunpack.c.l.b16 %v478
      %v1863 = vunpack.c.h.b16 %v478
      %v1864 = vunpack.c.l.b16 %v479
      %v1865 = vunpack.c.h.b16 %v479
      %v1866 = vunpack.c.l.b16 %v480
      %v1867 = vunpack.c.h.b16 %v480
      %v1868 = vunpack.c.l.b16 %v481
      %v1869 = vunpack.c.h.b16 %v481
      %v1870 = vunpack.c.l.b16 %v482
      %v1871 = vunpack.c.h.b16 %v482
      %v1872 = vunpack.c.l.b16 %v483
      %v1873 = vunpack.c.h.b16 %v483
      %v1874 = vunpack.c.l.b16 %v484
      %v1875 = vunpack.c.h.b16 %v484
      %v1876 = vunpack.c.l.b16 %v485
      %v1877 = vunpack.c.h.b16 %v485
      %v1878 = vunpack.c.l.b16 %v486
      %v1879 = vunpack.c.h.b16 %v486
      %v1880 = vunpack.c.l.b16 %v487
      %v1881 = vunpack.c.h.b16 %v487
      %v1882 = vunpack.c.l.b16 %v488
      %v1883 = vunpack.c.h.b16 %v488
      %v1884 = vunpack.c.l.b16 %v489
      %v1885 = vunpack.c.h.b16 %v489
      %v1886 = vunpack.c.l.b16 %v490
      %v1887 = vunpack.c.h.b16 %v490
      %v1888 = vunpack.c.l.b16 %v491
      %v1889 = vunpack.c.h.b16 %v491
      %v1890 = vunpack.c.l.b16 %v492
      %v1891 = vunpack.c.h.b16 %v492
      %v1892 = vunpack.c.l.b16 %v493
      %v1893 = vunpack.c.h.b16 %v493
      %v1894 = vunpack.c.l.b16 %v494
      %v1895 = vunpack.c.h.b16 %v494
      %v1896 = vunpack.c.l.b16 %v495
      %v1897 = vunpack.c.h.b16 %v495
      %v1898 = vunpack.c.l.b16 %v496
      %v1899 = vunpack.c.h.b16 %v496
      %v1900 = vunpack.c.l.b16 %v497
      %v1901 = vunpack.c.h.b16 %v497
      %v1902 = vunpack.c.l.b16 %v498
      %v1903 = vunpack.c.h.b16 %v498
      %v1904 = vunpack.c.l.b16 %v499
      %v1905 = vunpack.c.h.b16 %v499
      %v1906 = vunpack.c.l.b16 %v500
      %v1907 = vunpack.c.h.b16 %v500
      %v1908 = vunpack.c.l.b16 %v501
      %v1909 = vunpack.c.h.b16 %v501
      %v1910 = vunpack.c.l.b16 %v502
      %v1911 = vunpack.c.h.b16 %v502
      %v1912 = vunpack.c.l.b16 %v503
      %v1913 = vunpack.c.h.b16 %v503
      %v1914 = vunpack.c.l.b16 %v504
      %v1915 = vunpack.c.h.b16 %v504
      %v1916 = vunpack.c.l.b16 %v505
      %v1917 = vunpack.c.h.b16 %v505
      %v1918 = vunpack.c.l.b16 %v506
      %v1919 = vunpack.c.h.b16 %v506
      %v1920 = vunpack.c.l.b16 %v507
      %v1921 = vunpack.c.h.b16 %v507
      %v1922 = vunpack.c.l.b16 %v508
      %v1923 = vunpack.c.h.b16 %v508
      %v1924 = vunpack.c.l.b16 %v509
      %v1925 = vunpack.c.h.b16 %v509
      %v1926 = vunpack.c.l.b16 %v510
      %v1927 = vunpack.c.h.b16 %v510
      %v1928 = vunpack.c.l.b16 %v511
      %v1929 = vunpack.c.h.b16 %v511
      %v1930 = vunpack.c.l.b16 %v512
      %v1931 = vunpack.c.h.b16 %v512
      %v1932 = vunpack.c.l.b16 %v513
      %v1933 = vunpack.c.h.b16 %v513
      %v1934 = vunpack.c.l.b16 %v514
      %v1935 = vunpack.c.h.b16 %v514
      %v1936 = vunpack.c.l.b16 %v515
      %v1937 = vunpack.c.h.b16 %v515
      %v1938 = vunpack.c.l.b16 %v516
      %v1939 = vunpack.c.h.b16 %v516
      %v1940 = vunpack.c.l.b16 %v517
      %v1941 = vunpack.c.h.b16 %v517
      %v1942 = vunpack.c.l.b16 %v518
      %v1943 = vunpack.c.h.b16 %v518
      %v1944 = vunpack.c.l.b16 %v519
      %v1945 = vunpack.c.h.b16 %v519
      %v1946 = vunpack.c.l.b16 %v520
      %v1947 = vunpack.c.h.b16 %v520
      %v1948 = vunpack.c.l.b16 %v521
      %v1949 = vunpack.c.h.b16 %v521
      %v1950 = vunpack.c.l.b16 %v522
      %v1951 = vunpack.c.h.b16 %v522
      %v1952 = vunpack.c.l.b16 %v523
      %v1953 = vunpack.c.h.b16 %v523
      %v1954 = vunpack.c.l.b16 %v524
      %v1955 = vunpack.c.h.b16 %v524
      %v1956 = vunpack.c.l.b16 %v525
      %v1957 = vunpack.c.h.b16 %v525
      %v1958 = vunpack.c.l.b16 %v526
      %v1959 = vunpack.c.h.b16 %v526
      %v1960 = vunpack.c.l.b16 %v527
      %v1961 = vunpack.c.h.b16 %v527
      %v1962 = vunpack.c.l.b16 %v528
      %v1963 = vunpack.c.h.b16 %v528
      %v1964 = vunpack.c.l.b16 %v529
      %v1965 = vunpack.c.h.b16 %v529
      %v1966 = vunpack.c.l.b16 %v530
      %v1967 = vunpack.c.h.b16 %v530
      %v1968 = vunpack.c.l.b16 %v531
      %v1969 = vunpack.c.h.b16 %v531
      %v1970 = vunpack.c.l.b16 %v532
      %v1971 = vunpack.c.h.b16 %v532
      %v1972 = vunpack.c.l.b16 %v533
      %v1973 = vunpack.c.h.b16 %v533
      %v1974 = vunpack.c.l.b16 %v534
      %v1975 = vunpack.c.h.b16 %v534
      %v1976 = vunpack.c.l.b16 %v535
      %v1977 = vunpack.c.h.b16 %v535
      %v1978 = vunpack.c.l.b16 %v536
      %v1979 = vunpack.c.h.b16 %v536
      %v1980 = vunpack.c.l.b16 %v537
      %v1981 = vunpack.c.h.b16 %v537
      %v1982 = vunpack.c.l.b16 %v538
      %v1983 = vunpack.c.h.b16 %v538
      %v1984 = vunpack.c.l.b16 %v539
      %v1985 = vunpack.c.h.b16 %v539
      %v1986 = vunpack.c.l.b16 %v540
      %v1987 = vunpack.c.h.b16 %v540
      %v1988 = vunpack.c.l.b16 %v541
      %v1989 = vunpack.c.h.b16 %v541
      %v1990 = vunpack.c.l.b16 %v542
      %v1991 = vunpack.c.h.b16 %v542
      %v1992 = vunpack.c.l.b16 %v543
      %v1993 = vunpack.c.h.b16 %v543
      %v1994 = vunpack.c.l.b16 %v544
      %v1995 = vunpack.c.h.b16 %v544
      %v1996 = vunpack.c.l.b16 %v545
      %v1997 = vunpack.c.h.b16 %v545
      %v1998 = vunpack.c.l.b16 %v546
      %v1999 = vunpack.c.h.b16 %v546
      %v2000 = vunpack.c.l.b16 %v547
      %v2001 = vunpack.c.h.b16 %v547
      %v2002 = vunpack.c.l.b16 %v548
      %v2003 = vunpack.c.h.b16 %v548
      %v2004 = vunpack.c.l.b16 %v549
      %v2005 = vunpack.c.h.b16 %v549
      %v2006 = vunpack.c.l.b16 %v550
      %v2007 = vunpack.c.h.b16 %v550
      %v2008 = vunpack.c.l.b16 %v551
      %v2009 = vunpack.c.h.b16 %v551
      %v2010 = vunpack.c.l.b16 %v552
      %v2011 = vunpack.c.h.b16 %v552
      %v2012 = vunpack.c.l.b16 %v553
      %v2013 = vunpack.c.h.b16 %v553
      %v2014 = vunpack.c.l.b16 %v554
      %v2015 = vunpack.c.h.b16 %v554
      %v2016 = vunpack.c.l.b16 %v555
      %v2017 = vunpack.c.h.b16 %v555
      %v2018 = vunpack.c.l.b16 %v556
      %v2019 = vunpack.c.h.b16 %v556
      %v2020 = vunpack.c.l.b16 %v557
      %v2021 = vunpack.c.h.b16 %v557
      %v2022 = vunpack.c.l.b16 %v558
      %v2023 = vunpack.c.h.b16 %v558
      %v2024 = vunpack.c.l.b16 %v559
      %v2025 = vunpack.c.h.b16 %v559
      %v2026 = vunpack.c.l.b16 %v560
      %v2027 = vunpack.c.h.b16 %v560
      %v2028 = vunpack.c.l.b16 %v561
      %v2029 = vunpack.c.h.b16 %v561
      %v2030 = vunpack.c.l.b16 %v562
      %v2031 = vunpack.c.h.b16 %v562
      %v2032 = vunpack.c.l.b16 %v563
      %v2033 = vunpack.c.h.b16 %v563
      %v2034 = vunpack.c.l.b16 %v564
      %v2035 = vunpack.c.h.b16 %v564
      %v2036 = vunpack.c.l.b16 %v565
      %v2037 = vunpack.c.h.b16 %v565
      %v2038 = vunpack.c.l.b16 %v566
      %v2039 = vunpack.c.h.b16 %v566
      %v2040 = vunpack.c.l.b16 %v567
      %v2041 = vunpack.c.h.b16 %v567
      %v2042 = vunpack.c.l.b16 %v568
      %v2043 = vunpack.c.h.b16 %v568
      %v2044 = vunpack.c.l.b16 %v569
      %v2045 = vunpack.c.h.b16 %v569
      %v2046 = vunpack.c.l.b16 %v570
      %v2047 = vunpack.c.h.b16 %v570
      %v2048 = vunpack.c.l.b16 %v571
      %v2049 = vunpack.c.h.b16 %v571
      %v2050 = vunpack.c.l.b16 %v572
      %v2051 = vunpack.c.h.b16 %v572
      %v2052 = vunpack.c.l.b16 %v573
      %v2053 = vunpack.c.h.b16 %v573
      %v2054 = vunpack.c.l.b16 %v574
      %v2055 = vunpack.c.h.b16 %v574
      %v2056 = vunpack.c.l.b16 %v575
      %v2057 = vunpack.c.h.b16 %v575
      %v2058 = vunpack.c.l.b16 %v576
      %v2059 = vunpack.c.h.b16 %v576
      %v2060 = vunpack.c.l.b16 %v577
      %v2061 = vunpack.c.h.b16 %v577
      %v2062 = vunpack.c.l.b16 %v578
      %v2063 = vunpack.c.h.b16 %v578
      %v2064 = vunpack.c.l.b16 %v579
      %v2065 = vunpack.c.h.b16 %v579
      %v2066 = vunpack.c.l.b16 %v580
      %v2067 = vunpack.c.h.b16 %v580
      %v2068 = vunpack.c.l.b16 %v581
      %v2069 = vunpack.c.h.b16 %v581
      %v2070 = vunpack.c.l.b16 %v582
      %v2071 = vunpack.c.h.b16 %v582
      %v2072 = vunpack.c.l.b16 %v583
      %v2073 = vunpack.c.h.b16 %v583
      %v2074 = vunpack.c.l.b16 %v584
      %v2075 = vunpack.c.h.b16 %v584
      %v2076 = vunpack.c.l.b16 %v585
      %v2077 = vunpack.c.h.b16 %v585
      %v2078 = vunpack.c.l.b16 %v586
      %v2079 = vunpack.c.h.b16 %v586
      %v2080 = vunpack.c.l.b16 %v587
      %v2081 = vunpack.c.h.b16 %v587
      %v2082 = vunpack.c.l.b16 %v588
      %v2083 = vunpack.c.h.b16 %v588
      %v2084 = vunpack.c.l.b16 %v589
      %v2085 = vunpack.c.h.b16 %v589
      %v2086 = vunpack.c.l.b16 %v590
      %v2087 = vunpack.c.h.b16 %v590
      %v2088 = vunpack.c.l.b16 %v591
      %v2089 = vunpack.c.h.b16 %v591
      %v2090 = vunpack.c.l.b16 %v592
      %v2091 = vunpack.c.h.b16 %v592
      %v2092 = vunpack.c.l.b16 %v593
      %v2093 = vunpack.c.h.b16 %v593
      %v2094 = vunpack.c.l.b16 %v594
      %v2095 = vunpack.c.h.b16 %v594
      %v2096 = vunpack.c.l.b16 %v595
      %v2097 = vunpack.c.h.b16 %v595
      %v2098 = vunpack.c.l.b16 %v596
      %v2099 = vunpack.c.h.b16 %v596
      %v2100 = vunpack.c.l.b16 %v597
      %v2101 = vunpack.c.h.b16 %v597
      %v2102 = vunpack.c.l.b16 %v598
      %v2103 = vunpack.c.h.b16 %v598
      %v2104 = vunpack.c.l.b16 %v599
      %v2105 = vunpack.c.h.b16 %v599
      %v2106 = vunpack.c.l.b16 %v600
      %v2107 = vunpack.c.h.b16 %v600
      %v2108 = vunpack.c.l.b16 %v601
      %v2109 = vunpack.c.h.b16 %v601
      %v2110 = vunpack.c.l.b16 %v602
      %v2111 = vunpack.c.h.b16 %v602
      %v2112 = vunpack.c.l.b16 %v603
      %v2113 = vunpack.c.h.b16 %v603
      %v2114 = vunpack.c.l.b16 %v604
      %v2115 = vunpack.c.h.b16 %v604
      %v2116 = vunpack.c.l.b16 %v605
      %v2117 = vunpack.c.h.b16 %v605
      %v2118 = vunpack.c.l.b16 %v606
      %v2119 = vunpack.c.h.b16 %v606
      %v2120 = vunpack.c.l.b16 %v607
      %v2121 = vunpack.c.h.b16 %v607
      %v2122 = vunpack.c.l.b16 %v608
      %v2123 = vunpack.c.h.b16 %v608
      %v2124 = vunpack.c.l.b16 %v609
      %v2125 = vunpack.c.h.b16 %v609
      %v2126 = vunpack.c.l.b16 %v610
      %v2127 = vunpack.c.h.b16 %v610
      %v2128 = vunpack.c.l.b16 %v611
      %v2129 = vunpack.c.h.b16 %v611
      %v2130 = vunpack.c.l.b16 %v612
      %v2131 = vunpack.c.h.b16 %v612
      %v2132 = vunpack.c.l.b16 %v613
      %v2133 = vunpack.c.h.b16 %v613
      %v2134 = vunpack.c.l.b16 %v614
      %v2135 = vunpack.c.h.b16 %v614
      %v2136 = vunpack.c.l.b16 %v615
      %v2137 = vunpack.c.h.b16 %v615
      %v2138 = vunpack.c.l.b16 %v616
      %v2139 = vunpack.c.h.b16 %v616
      %v2140 = vunpack.c.l.b16 %v617
      %v2141 = vunpack.c.h.b16 %v617
      %v2142 = vunpack.c.l.b16 %v618
      %v2143 = vunpack.c.h.b16 %v618
      %v2144 = vunpack.c.l.b16 %v619
      %v2145 = vunpack.c.h.b16 %v619
      %v2146 = vunpack.c.l.b16 %v620
      %v2147 = vunpack.c.h.b16 %v620
      %v2148 = vunpack.c.l.b16 %v621
      %v2149 = vunpack.c.h.b16 %v621
      %v2150 = vunpack.c.l.b16 %v622
      %v2151 = vunpack.c.h.b16 %v622
      %v2152 = vunpack.c.l.b16 %v623
      %v2153 = vunpack.c.h.b16 %v623
      %v2154 = vunpack.c.l.b16 %v624
      %v2155 = vunpack.c.h.b16 %v624
      %v2156 = vunpack.c.l.b16 %v625
      %v2157 = vunpack.c.h.b16 %v625
      %v2158 = vunpack.c.l.b16 %v626
      %v2159 = vunpack.c.h.b16 %v626
      %v2160 = vunpack.c.l.b16 %v627
      %v2161 = vunpack.c.h.b16 %v627
      %v2162 = vunpack.c.l.b16 %v628
      %v2163 = vunpack.c.h.b16 %v628
      %v2164 = vunpack.c.l.b16 %v629
      %v2165 = vunpack.c.h.b16 %v629
      %v2166 = vunpack.c.l.b16 %v630
      %v2167 = vunpack.c.h.b16 %v630
      %v2168 = vunpack.c.l.b16 %v631
      %v2169 = vunpack.c.h.b16 %v631
      %v2170 = vunpack.c.l.b16 %v632
      %v2171 = vunpack.c.h.b16 %v632
      %v2172 = vunpack.c.l.b16 %v633
      %v2173 = vunpack.c.h.b16 %v633
      %v2174 = vunpack.c.l.b16 %v634
      %v2175 = vunpack.c.h.b16 %v634
      %v2176 = vunpack.c.l.b16 %v635
      %v2177 = vunpack.c.h.b16 %v635
      %v2178 = vunpack.c.l.b16 %v636
      %v2179 = vunpack.c.h.b16 %v636
      %v2180 = vunpack.c.l.b16 %v637
      %v2181 = vunpack.c.h.b16 %v637
      %v2182 = vunpack.c.l.b16 %v638
      %v2183 = vunpack.c.h.b16 %v638
      %v2184 = vunpack.c.l.b16 %v639
      %v2185 = vunpack.c.h.b16 %v639
      %v2186 = vunpack.c.l.b16 %v640
      %v2187 = vunpack.c.h.b16 %v640
      %v2188 = vunpack.c.l.b16 %v641
      %v2189 = vunpack.c.h.b16 %v641
      %v2190 = vunpack.c.l.b16 %v642
      %v2191 = vunpack.c.h.b16 %v642
      %v2192 = vunpack.c.l.b16 %v643
      %v2193 = vunpack.c.h.b16 %v643
      %v2194 = vunpack.c.l.b16 %v644
      %v2195 = vunpack.c.h.b16 %v644
      %v2196 = vunpack.c.l.b16 %v645
      %v2197 = vunpack.c.h.b16 %v645
      %v2198 = vunpack.c.l.b16 %v646
      %v2199 = vunpack.c.h.b16 %v646
      %v2200 = vunpack.c.l.b16 %v647
      %v2201 = vunpack.c.h.b16 %v647
      %v2202 = vunpack.c.l.b16 %v648
      %v2203 = vunpack.c.h.b16 %v648
      %v2204 = vunpack.c.l.b16 %v649
      %v2205 = vunpack.c.h.b16 %v649
      %v2206 = vunpack.c.l.b16 %v650
      %v2207 = vunpack.c.h.b16 %v650
      %v2208 = vunpack.c.l.b16 %v651
      %v2209 = vunpack.c.h.b16 %v651
      %v2210 = vunpack.c.l.b16 %v652
      %v2211 = vunpack.c.h.b16 %v652
      %v2212 = vunpack.c.l.b16 %v653
      %v2213 = vunpack.c.h.b16 %v653
      %v2214 = vunpack.c.l.b16 %v654
      %v2215 = vunpack.c.h.b16 %v654
      %v2216 = vunpack.c.l.b16 %v655
      %v2217 = vunpack.c.h.b16 %v655
      %v2218 = vunpack.c.l.b16 %v656
      %v2219 = vunpack.c.h.b16 %v656
      %v2220 = vunpack.c.l.b16 %v657
      %v2221 = vunpack.c.h.b16 %v657
      %v2222 = vunpack.c.l.b16 %v658
      %v2223 = vunpack.c.h.b16 %v658
      %v2224 = vunpack.c.l.b16 %v659
      %v2225 = vunpack.c.h.b16 %v659
      %v2226 = vunpack.c.l.b16 %v660
      %v2227 = vunpack.c.h.b16 %v660
      %v2228 = vunpack.c.l.b16 %v661
      %v2229 = vunpack.c.h.b16 %v661
      %v2230 = vunpack.c.l.b16 %v662
      %v2231 = vunpack.c.h.b16 %v662
      %v2232 = vunpack.c.l.b16 %v663
      %v2233 = vunpack.c.h.b16 %v663
      %v2234 = vunpack.c.l.b16 %v664
      %v2235 = vunpack.c.h.b16 %v664
      %v2236 = vunpack.c.l.b16 %v665
      %v2237 = vunpack.c.h.b16 %v665
      %v2238 = vunpack.c.l.b16 %v666
      %v2239 = vunpack.c.h.b16 %v666
      %v2240 = vunpack.c.l.b16 %v667
      %v2241 = vunpack.c.h.b16 %v667
      %v2242 = vunpack.c.l.b16 %v668
      %v2243 = vunpack.c.h.b16 %v668
      %v2244 = vunpack.c.l.b16 %v669
      %v2245 = vunpack.c.h.b16 %v669
      %v2246 = vunpack.c.l.b16 %v670
      %v2247 = vunpack.c.h.b16 %v670
      %v2248 = vunpack.c.l.b16 %v671
      %v2249 = vunpack.c.h.b16 %v671
      %v2250 = vunpack.c.l.b16 %v672
      %v2251 = vunpack.c.h.b16 %v672
      %v2252 = vunpack.c.l.b16 %v673
      %v2253 = vunpack.c.h.b16 %v673
      %v2254 = vunpack.c.l.b16 %v674
      %v2255 = vunpack.c.h.b16 %v674
      %v2256 = vunpack.c.l.b16 %v675
      %v2257 = vunpack.c.h.b16 %v675
      %v2258 = vunpack.c.l.b16 %v676
      %v2259 = vunpack.c.h.b16 %v676
      %v2260 = vunpack.c.l.b16 %v677
      %v2261 = vunpack.c.h.b16 %v677
      %v2262 = vunpack.c.l.b16 %v678
      %v2263 = vunpack.c.h.b16 %v678
      %v2264 = vunpack.c.l.b16 %v679
      %v2265 = vunpack.c.h.b16 %v679
      %v2266 = vunpack.c.l.b16 %v680
      %v2267 = vunpack.c.h.b16 %v680
      %v2268 = vunpack.c.l.b16 %v681
      %v2269 = vunpack.c.h.b16 %v681
      %v2270 = vunpack.c.l.b16 %v682
      %v2271 = vunpack.c.h.b16 %v682
      %v2272 = vunpack.c.l.b16 %v683
      %v2273 = vunpack.c.h.b16 %v683
      %v2274 = vunpack.c.l.b16 %v684
      %v2275 = vunpack.c.h.b16 %v684
      %v2276 = vunpack.c.l.b16 %v685
      %v2277 = vunpack.c.h.b16 %v685
      %v2278 = vunpack.c.l.b16 %v686
      %v2279 = vunpack.c.h.b16 %v686
      %v2280 = vunpack.c.l.b16 %v687
      %v2281 = vunpack.c.h.b16 %v687
      %v2282 = vunpack.c.l.b16 %v688
      %v2283 = vunpack.c.h.b16 %v688
      %v2284 = vunpack.c.l.b16 %v689
      %v2285 = vunpack.c.h.b16 %v689
      %v2286 = vunpack.c.l.b16 %v690
      %v2287 = vunpack.c.h.b16 %v690
      %v2288 = vunpack.c.l.b16 %v691
      %v2289 = vunpack.c.h.b16 %v691
      %v2290 = vunpack.c.l.b16 %v692
      %v2291 = vunpack.c.h.b16 %v692
      %v2292 = vunpack.c.l.b16 %v693
      %v2293 = vunpack.c.h.b16 %v693
      %v2294 = vunpack.c.l.b16 %v694
      %v2295 = vunpack.c.h.b16 %v694
      %v2296 = vunpack.c.l.b16 %v695
      %v2297 = vunpack.c.h.b16 %v695
      %v2298 = vunpack.c.l.b16 %v696
      %v2299 = vunpack.c.h.b16 %v696
      %v2300 = vunpack.c.l.b16 %v697
      %v2301 = vunpack.c.h.b16 %v697
      %v2302 = vunpack.c.l.b16 %v698
      %v2303 = vunpack.c.h.b16 %v698
      %v2304 = vunpack.c.l.b16 %v699
      %v2305 = vunpack.c.h.b16 %v699
      %v2306 = vunpack.c.l.b16 %v700
      %v2307 = vunpack.c.h.b16 %v700
      %v2308 = vunpack.c.l.b16 %v701
      %v2309 = vunpack.c.h.b16 %v701
      %v2310 = vunpack.c.l.b16 %v702
      %v2311 = vunpack.c.h.b16 %v702
      %v2312 = vunpack.c.l.b16 %v703
      %v2313 = vunpack.c.h.b16 %v703
      %v2314 = vunpack.c.l.b16 %v704
      %v2315 = vunpack.c.h.b16 %v704
      %v2316 = vunpack.c.l.b16 %v705
      %v2317 = vunpack.c.h.b16 %v705
      %v2318 = vunpack.c.l.b16 %v706
      %v2319 = vunpack.c.h.b16 %v706
      %v2320 = vunpack.c.l.b16 %v707
      %v2321 = vunpack.c.h.b16 %v707
      %v2322 = vunpack.c.l.b16 %v708
      %v2323 = vunpack.c.h.b16 %v708
      %v2324 = vunpack.c.l.b16 %v709
      %v2325 = vunpack.c.h.b16 %v709
      %v2326 = vunpack.c.l.b16 %v710
      %v2327 = vunpack.c.h.b16 %v710
      %v2328 = vunpack.c.l.b16 %v711
      %v2329 = vunpack.c.h.b16 %v711
      %v2330 = vunpack.c.l.b16 %v712
      %v2331 = vunpack.c.h.b16 %v712
      %v2332 = vunpack.c.l.b16 %v713
      %v2333 = vunpack.c.h.b16 %v713
      %v2334 = vunpack.c.l.b16 %v714
      %v2335 = vunpack.c.h.b16 %v714
      %v2336 = vunpack.c.l.b16 %v715
      %v2337 = vunpack.c.h.b16 %v715
      %v2338 = vunpack.c.l.b16 %v716
      %v2339 = vunpack.c.h.b16 %v716
      %v2340 = vunpack.c.l.b16 %v717
      %v2341 = vunpack.c.h.b16 %v717
      %v2342 = vunpack.c.l.b16 %v718
      %v2343 = vunpack.c.h.b16 %v718
      %v2344 = vunpack.c.l.b16 %v719
      %v2345 = vunpack.c.h.b16 %v719
      %v2346 = vunpack.c.l.b16 %v720
      %v2347 = vunpack.c.h.b16 %v720
      %v2348 = vunpack.c.l.b16 %v721
      %v2349 = vunpack.c.h.b16 %v721
      %v2350 = vunpack.c.l.b16 %v722
      %v2351 = vunpack.c.h.b16 %v722
      %v2352 = vunpack.c.l.b16 %v723
      %v2353 = vunpack.c.h.b16 %v723
      %v2354 = vunpack.c.l.b16 %v724
      %v2355 = vunpack.c.h.b16 %v724
      %v2356 = vunpack.c.l.b16 %v725
      %v2357 = vunpack.c.h.b16 %v725
      %v2358 = vunpack.c.l.b16 %v726
      %v2359 = vunpack.c.h.b16 %v726
      %v2360 = vunpack.c.l.b16 %v727
      %v2361 = vunpack.c.h.b16 %v727
      %v2362 = vunpack.c.l.b16 %v728
      %v2363 = vunpack.c.h.b16 %v728
      %v2364 = vunpack.c.l.b16 %v729
      %v2365 = vunpack.c.h.b16 %v729
      %v2366 = vpack.c.b16 %v1350, %v1342
      %v2367 = vpack.c.b16 %v1351, %v1343
      %v2368 = vpack.c.b16 %v1352, %v1344
      %v2369 = vpack.c.b16 %v1353, %v1345
      %v2370 = vpack.c.b16 %v1354, %v1346
      %v2371 = vpack.c.b16 %v1355, %v1347
      %v2372 = vpack.c.b16 %v1356, %v1348
      %v2373 = vpack.c.b16 %v1357, %v1349
      %v2374 = vpack.c.b16 %v1366, %v1358
      %v2375 = vpack.c.b16 %v1367, %v1359
      %v2376 = vpack.c.b16 %v1368, %v1360
      %v2377 = vpack.c.b16 %v1369, %v1361
      %v2378 = vpack.c.b16 %v1370, %v1362
      %v2379 = vpack.c.b16 %v1371, %v1363
      %v2380 = vpack.c.b16 %v1372, %v1364
      %v2381 = vpack.c.b16 %v1373, %v1365
      %v2382 = vpack.c.b16 %v1382, %v1374
      %v2383 = vpack.c.b16 %v1383, %v1375
      %v2384 = vpack.c.b16 %v1384, %v1376
      %v2385 = vpack.c.b16 %v1385, %v1377
      %v2386 = vpack.c.b16 %v1386, %v1378
      %v2387 = vpack.c.b16 %v1387, %v1379
      %v2388 = vpack.c.b16 %v1388, %v1380
      %v2389 = vpack.c.b16 %v1389, %v1381
      %v2390 = vpack.c.b16 %v1398, %v1390
      %v2391 = vpack.c.b16 %v1399, %v1391
      %v2392 = vpack.c.b16 %v1400, %v1392
      %v2393 = vpack.c.b16 %v1401, %v1393
      %v2394 = vpack.c.b16 %v1402, %v1394
      %v2395 = vpack.c.b16 %v1403, %v1395
      %v2396 = vpack.c.b16 %v1404, %v1396
      %v2397 = vpack.c.b16 %v1405, %v1397
      %v2398 = vpack.c.b16 %v1414, %v1406
      %v2399 = vpack.c.b16 %v1415, %v1407
      %v2400 = vpack.c.b16 %v1416, %v1408
      %v2401 = vpack.c.b16 %v1417, %v1409
      %v2402 = vpack.c.b16 %v1418, %v1410
      %v2403 = vpack.c.b16 %v1419, %v1411
      %v2404 = vpack.c.b16 %v1420, %v1412
      %v2405 = vpack.c.b16 %v1421, %v1413
      %v2406 = vpack.c.b16 %v1430, %v1422
      %v2407 = vpack.c.b16 %v1431, %v1423
      %v2408 = vpack.c.b16 %v1432, %v1424
      %v2409 = vpack.c.b16 %v1433, %v1425
      %v2410 = vpack.c.b16 %v1434, %v1426
      %v2411 = vpack.c.b16 %v1435, %v1427
      %v2412 = vpack.c.b16 %v1436, %v1428
      %v2413 = vpack.c.b16 %v1437, %v1429
      %v2414 = vpack.c.b16 %v1446, %v1438
      %v2415 = vpack.c.b16 %v1447, %v1439
      %v2416 = vpack.c.b16 %v1448, %v1440
      %v2417 = vpack.c.b16 %v1449, %v1441
      %v2418 = vpack.c.b16 %v1450, %v1442
      %v2419 = vpack.c.b16 %v1451, %v1443
      %v2420 = vpack.c.b16 %v1452, %v1444
      %v2421 = vpack.c.b16 %v1453, %v1445
      %v2422 = vpack.c.b16 %v1462, %v1454
      %v2423 = vpack.c.b16 %v1463, %v1455
      %v2424 = vpack.c.b16 %v1464, %v1456
      %v2425 = vpack.c.b16 %v1465, %v1457
      %v2426 = vpack.c.b16 %v1466, %v1458
      %v2427 = vpack.c.b16 %v1467, %v1459
      %v2428 = vpack.c.b16 %v1468, %v1460
      %v2429 = vpack.c.b16 %v1469, %v1461
      %v2430 = vpack.c.b16 %v1478, %v1470
      %v2431 = vpack.c.b16 %v1479, %v1471
      %v2432 = vpack.c.b16 %v1480, %v1472
      %v2433 = vpack.c.b16 %v1481, %v1473
      %v2434 = vpack.c.b16 %v1482, %v1474
      %v2435 = vpack.c.b16 %v1483, %v1475
      %v2436 = vpack.c.b16 %v1484, %v1476
      %v2437 = vpack.c.b16 %v1485, %v1477
      %v2438 = vpack.c.b16 %v1494, %v1486
      %v2439 = vpack.c.b16 %v1495, %v1487
      %v2440 = vpack.c.b16 %v1496, %v1488
      %v2441 = vpack.c.b16 %v1497, %v1489
      %v2442 = vpack.c.b16 %v1498, %v1490
      %v2443 = vpack.c.b16 %v1499, %v1491
      %v2444 = vpack.c.b16 %v1500, %v1492
      %v2445 = vpack.c.b16 %v1501, %v1493
      %v2446 = vpack.c.b16 %v1510, %v1502
      %v2447 = vpack.c.b16 %v1511, %v1503
      %v2448 = vpack.c.b16 %v1512, %v1504
      %v2449 = vpack.c.b16 %v1513, %v1505
      %v2450 = vpack.c.b16 %v1514, %v1506
      %v2451 = vpack.c.b16 %v1515, %v1507
      %v2452 = vpack.c.b16 %v1516, %v1508
      %v2453 = vpack.c.b16 %v1517, %v1509
      %v2454 = vpack.c.b16 %v1526, %v1518
      %v2455 = vpack.c.b16 %v1527, %v1519
      %v2456 = vpack.c.b16 %v1528, %v1520
      %v2457 = vpack.c.b16 %v1529, %v1521
      %v2458 = vpack.c.b16 %v1530, %v1522
      %v2459 = vpack.c.b16 %v1531, %v1523
      %v2460 = vpack.c.b16 %v1532, %v1524
      %v2461 = vpack.c.b16 %v1533, %v1525
      %v2462 = vpack.c.b16 %v1542, %v1534
      %v2463 = vpack.c.b16 %v1543, %v1535
      %v2464 = vpack.c.b16 %v1544, %v1536
      %v2465 = vpack.c.b16 %v1545, %v1537
      %v2466 = vpack.c.b16 %v1546, %v1538
      %v2467 = vpack.c.b16 %v1547, %v1539
      %v2468 = vpack.c.b16 %v1548, %v1540
      %v2469 = vpack.c.b16 %v1549, %v1541
      %v2470 = vpack.c.b16 %v1558, %v1550
      %v2471 = vpack.c.b16 %v1559, %v1551
      %v2472 = vpack.c.b16 %v1560, %v1552
      %v2473 = vpack.c.b16 %v1561, %v1553
      %v2474 = vpack.c.b16 %v1562, %v1554
      %v2475 = vpack.c.b16 %v1563, %v1555
      %v2476 = vpack.c.b16 %v1564, %v1556
      %v2477 = vpack.c.b16 %v1565, %v1557
      %v2478 = vpack.c.b16 %v1574, %v1566
      %v2479 = vpack.c.b16 %v1575, %v1567
      %v2480 = vpack.c.b16 %v1576, %v1568
      %v2481 = vpack.c.b16 %v1577, %v1569
      %v2482 = vpack.c.b16 %v1578, %v1570
      %v2483 = vpack.c.b16 %v1579, %v1571
      %v2484 = vpack.c.b16 %v1580, %v1572
      %v2485 = vpack.c.b16 %v1581, %v1573
      %v2486 = vpack.c.b16 %v1590, %v1582
      %v2487 = vpack.c.b16 %v1591, %v1583
      %v2488 = vpack.c.b16 %v1592, %v1584
      %v2489 = vpack.c.b16 %v1593, %v1585
      %v2490 = vpack.c.b16 %v1594, %v1586
      %v2491 = vpack.c.b16 %v1595, %v1587
      %v2492 = vpack.c.b16 %v1596, %v1588
      %v2493 = vpack.c.b16 %v1597, %v1589
      %v2494 = vpack.c.b16 %v1606, %v1598
      %v2495 = vpack.c.b16 %v1607, %v1599
      %v2496 = vpack.c.b16 %v1608, %v1600
      %v2497 = vpack.c.b16 %v1609, %v1601
      %v2498 = vpack.c.b16 %v1610, %v1602
      %v2499 = vpack.c.b16 %v1611, %v1603
      %v2500 = vpack.c.b16 %v1612, %v1604
      %v2501 = vpack.c.b16 %v1613, %v1605
      %v2502 = vpack.c.b16 %v1622, %v1614
      %v2503 = vpack.c.b16 %v1623, %v1615
      %v2504 = vpack.c.b16 %v1624, %v1616
      %v2505 = vpack.c.b16 %v1625, %v1617
      %v2506 = vpack.c.b16 %v1626, %v1618
      %v2507 = vpack.c.b16 %v1627, %v1619
      %v2508 = vpack.c.b16 %v1628, %v1620
      %v2509 = vpack.c.b16 %v1629, %v1621
      %v2510 = vpack.c.b16 %v1638, %v1630
      %v2511 = vpack.c.b16 %v1639, %v1631
      %v2512 = vpack.c.b16 %v1640, %v1632
      %v2513 = vpack.c.b16 %v1641, %v1633
      %v2514 = vpack.c.b16 %v1642, %v1634
      %v2515 = vpack.c.b16 %v1643, %v1635
      %v2516 = vpack.c.b16 %v1644, %v1636
      %v2517 = vpack.c.b16 %v1645, %v1637
      %v2518 = vpack.c.b16 %v1654, %v1646
      %v2519 = vpack.c.b16 %v1655, %v1647
      %v2520 = vpack.c.b16 %v1656, %v1648
      %v2521 = vpack.c.b16 %v1657, %v1649
      %v2522 = vpack.c.b16 %v1658, %v1650
      %v2523 = vpack.c.b16 %v1659, %v1651
      %v2524 = vpack.c.b16 %v1660, %v1652
      %v2525 = vpack.c.b16 %v1661, %v1653
      %v2526 = vpack.c.b16 %v1670, %v1662
      %v2527 = vpack.c.b16 %v1671, %v1663
      %v2528 = vpack.c.b16 %v1672, %v1664
      %v2529 = vpack.c.b16 %v1673, %v1665
      %v2530 = vpack.c.b16 %v1674, %v1666
      %v2531 = vpack.c.b16 %v1675, %v1667
      %v2532 = vpack.c.b16 %v1676, %v1668
      %v2533 = vpack.c.b16 %v1677, %v1669
      %v2534 = vpack.c.b16 %v1686, %v1678
      %v2535 = vpack.c.b16 %v1687, %v1679
      %v2536 = vpack.c.b16 %v1688, %v1680
      %v2537 = vpack.c.b16 %v1689, %v1681
      %v2538 = vpack.c.b16 %v1690, %v1682
      %v2539 = vpack.c.b16 %v1691, %v1683
      %v2540 = vpack.c.b16 %v1692, %v1684
      %v2541 = vpack.c.b16 %v1693, %v1685
      %v2542 = vpack.c.b16 %v1702, %v1694
      %v2543 = vpack.c.b16 %v1703, %v1695
      %v2544 = vpack.c.b16 %v1704, %v1696
      %v2545 = vpack.c.b16 %v1705, %v1697
      %v2546 = vpack.c.b16 %v1706, %v1698
      %v2547 = vpack.c.b16 %v1707, %v1699
      %v2548 = vpack.c.b16 %v1708, %v1700
      %v2549 = vpack.c.b16 %v1709, %v1701
      %v2550 = vpack.c.b16 %v1718, %v1710
      %v2551 = vpack.c.b16 %v1719, %v1711
      %v2552 = vpack.c.b16 %v1720, %v1712
      %v2553 = vpack.c.b16 %v1721, %v1713
      %v2554 = vpack.c.b16 %v1722, %v1714
      %v2555 = vpack.c.b16 %v1723, %v1715
      %v2556 = vpack.c.b16 %v1724, %v1716
      %v2557 = vpack.c.b16 %v1725, %v1717
      %v2558 = vpack.c.b16 %v1734, %v1726
      %v2559 = vpack.c.b16 %v1735, %v1727
      %v2560 = vpack.c.b16 %v1736, %v1728
      %v2561 = vpack.c.b16 %v1737, %v1729
      %v2562 = vpack.c.b16 %v1738, %v1730
      %v2563 = vpack.c.b16 %v1739, %v1731
      %v2564 = vpack.c.b16 %v1740, %v1732
      %v2565 = vpack.c.b16 %v1741, %v1733
      %v2566 = vpack.c.b16 %v1750, %v1742
      %v2567 = vpack.c.b16 %v1751, %v1743
      %v2568 = vpack.c.b16 %v1752, %v1744
      %v2569 = vpack.c.b16 %v1753, %v1745
      %v2570 = vpack.c.b16 %v1754, %v1746
      %v2571 = vpack.c.b16 %v1755, %v1747
      %v2572 = vpack.c.b16 %v1756, %v1748
      %v2573 = vpack.c.b16 %v1757, %v1749
      %v2574 = vpack.c.b16 %v1766, %v1758
      %v2575 = vpack.c.b16 %v1767, %v1759
      %v2576 = vpack.c.b16 %v1768, %v1760
      %v2577 = vpack.c.b16 %v1769, %v1761
      %v2578 = vpack.c.b16 %v1770, %v1762
      %v2579 = vpack.c.b16 %v1771, %v1763
      %v2580 = vpack.c.b16 %v1772, %v1764
      %v2581 = vpack.c.b16 %v1773, %v1765
      %v2582 = vpack.c.b16 %v1782, %v1774
      %v2583 = vpack.c.b16 %v1783, %v1775
      %v2584 = vpack.c.b16 %v1784, %v1776
      %v2585 = vpack.c.b16 %v1785, %v1777
      %v2586 = vpack.c.b16 %v1786, %v1778
      %v2587 = vpack.c.b16 %v1787, %v1779
      %v2588 = vpack.c.b16 %v1788, %v1780
      %v2589 = vpack.c.b16 %v1789, %v1781
      %v2590 = vpack.c.b16 %v1798, %v1790
      %v2591 = vpack.c.b16 %v1799, %v1791
      %v2592 = vpack.c.b16 %v1800, %v1792
      %v2593 = vpack.c.b16 %v1801, %v1793
      %v2594 = vpack.c.b16 %v1802, %v1794
      %v2595 = vpack.c.b16 %v1803, %v1795
      %v2596 = vpack.c.b16 %v1804, %v1796
      %v2597 = vpack.c.b16 %v1805, %v1797
      %v2598 = vpack.c.b16 %v1814, %v1806
      %v2599 = vpack.c.b16 %v1815, %v1807
      %v2600 = vpack.c.b16 %v1816, %v1808
      %v2601 = vpack.c.b16 %v1817, %v1809
      %v2602 = vpack.c.b16 %v1818, %v1810
      %v2603 = vpack.c.b16 %v1819, %v1811
      %v2604 = vpack.c.b16 %v1820, %v1812
      %v2605 = vpack.c.b16 %v1821, %v1813
      %v2606 = vpack.c.b16 %v1830, %v1822
      %v2607 = vpack.c.b16 %v1831, %v1823
      %v2608 = vpack.c.b16 %v1832, %v1824
      %v2609 = vpack.c.b16 %v1833, %v1825
      %v2610 = vpack.c.b16 %v1834, %v1826
      %v2611 = vpack.c.b16 %v1835, %v1827
      %v2612 = vpack.c.b16 %v1836, %v1828
      %v2613 = vpack.c.b16 %v1837, %v1829
      %v2614 = vpack.c.b16 %v1846, %v1838
      %v2615 = vpack.c.b16 %v1847, %v1839
      %v2616 = vpack.c.b16 %v1848, %v1840
      %v2617 = vpack.c.b16 %v1849, %v1841
      %v2618 = vpack.c.b16 %v1850, %v1842
      %v2619 = vpack.c.b16 %v1851, %v1843
      %v2620 = vpack.c.b16 %v1852, %v1844
      %v2621 = vpack.c.b16 %v1853, %v1845
      %v2622 = vpack.c.b16 %v1862, %v1854
      %v2623 = vpack.c.b16 %v1863, %v1855
      %v2624 = vpack.c.b16 %v1864, %v1856
      %v2625 = vpack.c.b16 %v1865, %v1857
      %v2626 = vpack.c.b16 %v1866, %v1858
      %v2627 = vpack.c.b16 %v1867, %v1859
      %v2628 = vpack.c.b16 %v1868, %v1860
      %v2629 = vpack.c.b16 %v1869, %v1861
      %v2630 = vpack.c.b16 %v1878, %v1870
      %v2631 = vpack.c.b16 %v1879, %v1871
      %v2632 = vpack.c.b16 %v1880, %v1872
      %v2633 = vpack.c.b16 %v1881, %v1873
      %v2634 = vpack.c.b16 %v1882, %v1874
      %v2635 = vpack.c.b16 %v1883, %v1875
      %v2636 = vpack.c.b16 %v1884, %v1876
      %v2637 = vpack.c.b16 %v1885, %v1877
      %v2638 = vpack.c.b16 %v1894, %v1886
      %v2639 = vpack.c.b16 %v1895, %v1887
      %v2640 = vpack.c.b16 %v1896, %v1888
      %v2641 = vpack.c.b16 %v1897, %v1889
      %v2642 = vpack.c.b16 %v1898, %v1890
      %v2643 = vpack.c.b16 %v1899, %v1891
      %v2644 = vpack.c.b16 %v1900, %v1892
      %v2645 = vpack.c.b16 %v1901, %v1893
      %v2646 = vpack.c.b16 %v1910, %v1902
      %v2647 = vpack.c.b16 %v1911, %v1903
      %v2648 = vpack.c.b16 %v1912, %v1904
      %v2649 = vpack.c.b16 %v1913, %v1905
      %v2650 = vpack.c.b16 %v1914, %v1906
      %v2651 = vpack.c.b16 %v1915, %v1907
      %v2652 = vpack.c.b16 %v1916, %v1908
      %v2653 = vpack.c.b16 %v1917, %v1909
      %v2654 = vpack.c.b16 %v1926, %v1918
      %v2655 = vpack.c.b16 %v1927, %v1919
      %v2656 = vpack.c.b16 %v1928, %v1920
      %v2657 = vpack.c.b16 %v1929, %v1921
      %v2658 = vpack.c.b16 %v1930, %v1922
      %v2659 = vpack.c.b16 %v1931, %v1923
      %v2660 = vpack.c.b16 %v1932, %v1924
      %v2661 = vpack.c.b16 %v1933, %v1925
      %v2662 = vpack.c.b16 %v1942, %v1934
      %v2663 = vpack.c.b16 %v1943, %v1935
      %v2664 = vpack.c.b16 %v1944, %v1936
      %v2665 = vpack.c.b16 %v1945, %v1937
      %v2666 = vpack.c.b16 %v1946, %v1938
      %v2667 = vpack.c.b16 %v1947, %v1939
      %v2668 = vpack.c.b16 %v1948, %v1940
      %v2669 = vpack.c.b16 %v1949, %v1941
      %v2670 = vpack.c.b16 %v1958, %v1950
      %v2671 = vpack.c.b16 %v1959, %v1951
      %v2672 = vpack.c.b16 %v1960, %v1952
      %v2673 = vpack.c.b16 %v1961, %v1953
      %v2674 = vpack.c.b16 %v1962, %v1954
      %v2675 = vpack.c.b16 %v1963, %v1955
      %v2676 = vpack.c.b16 %v1964, %v1956
      %v2677 = vpack.c.b16 %v1965, %v1957
      %v2678 = vpack.c.b16 %v1974, %v1966
      %v2679 = vpack.c.b16 %v1975, %v1967
      %v2680 = vpack.c.b16 %v1976, %v1968
      %v2681 = vpack.c.b16 %v1977, %v1969
      %v2682 = vpack.c.b16 %v1978, %v1970
      %v2683 = vpack.c.b16 %v1979, %v1971
      %v2684 = vpack.c.b16 %v1980, %v1972
      %v2685 = vpack.c.b16 %v1981, %v1973
      %v2686 = vpack.c.b16 %v1990, %v1982
      %v2687 = vpack.c.b16 %v1991, %v1983
      %v2688 = vpack.c.b16 %v1992, %v1984
      %v2689 = vpack.c.b16 %v1993, %v1985
      %v2690 = vpack.c.b16 %v1994, %v1986
      %v2691 = vpack.c.b16 %v1995, %v1987
      %v2692 = vpack.c.b16 %v1996, %v1988
      %v2693 = vpack.c.b16 %v1997, %v1989
      %v2694 = vpack.c.b16 %v2006, %v1998
      %v2695 = vpack.c.b16 %v2007, %v1999
      %v2696 = vpack.c.b16 %v2008, %v2000
      %v2697 = vpack.c.b16 %v2009, %v2001
      %v2698 = vpack.c.b16 %v2010, %v2002
      %v2699 = vpack.c.b16 %v2011, %v2003
      %v2700 = vpack.c.b16 %v2012, %v2004
      %v2701 = vpack.c.b16 %v2013, %v2005
      %v2702 = vpack.c.b16 %v2022, %v2014
      %v2703 = vpack.c.b16 %v2023, %v2015
      %v2704 = vpack.c.b16 %v2024, %v2016
      %v2705 = vpack.c.b16 %v2025, %v2017
      %v2706 = vpack.c.b16 %v2026, %v2018
      %v2707 = vpack.c.b16 %v2027, %v2019
      %v2708 = vpack.c.b16 %v2028, %v2020
      %v2709 = vpack.c.b16 %v2029, %v2021
      %v2710 = vpack.c.b16 %v2038, %v2030
      %v2711 = vpack.c.b16 %v2039, %v2031
      %v2712 = vpack.c.b16 %v2040, %v2032
      %v2713 = vpack.c.b16 %v2041, %v2033
      %v2714 = vpack.c.b16 %v2042, %v2034
      %v2715 = vpack.c.b16 %v2043, %v2035
      %v2716 = vpack.c.b16 %v2044, %v2036
      %v2717 = vpack.c.b16 %v2045, %v2037
      %v2718 = vpack.c.b16 %v2054, %v2046
      %v2719 = vpack.c.b16 %v2055, %v2047
      %v2720 = vpack.c.b16 %v2056, %v2048
      %v2721 = vpack.c.b16 %v2057, %v2049
      %v2722 = vpack.c.b16 %v2058, %v2050
      %v2723 = vpack.c.b16 %v2059, %v2051
      %v2724 = vpack.c.b16 %v2060, %v2052
      %v2725 = vpack.c.b16 %v2061, %v2053
      %v2726 = vpack.c.b16 %v2070, %v2062
      %v2727 = vpack.c.b16 %v2071, %v2063
      %v2728 = vpack.c.b16 %v2072, %v2064
      %v2729 = vpack.c.b16 %v2073, %v2065
      %v2730 = vpack.c.b16 %v2074, %v2066
      %v2731 = vpack.c.b16 %v2075, %v2067
      %v2732 = vpack.c.b16 %v2076, %v2068
      %v2733 = vpack.c.b16 %v2077, %v2069
      %v2734 = vpack.c.b16 %v2086, %v2078
      %v2735 = vpack.c.b16 %v2087, %v2079
      %v2736 = vpack.c.b16 %v2088, %v2080
      %v2737 = vpack.c.b16 %v2089, %v2081
      %v2738 = vpack.c.b16 %v2090, %v2082
      %v2739 = vpack.c.b16 %v2091, %v2083
      %v2740 = vpack.c.b16 %v2092, %v2084
      %v2741 = vpack.c.b16 %v2093, %v2085
      %v2742 = vpack.c.b16 %v2102, %v2094
      %v2743 = vpack.c.b16 %v2103, %v2095
      %v2744 = vpack.c.b16 %v2104, %v2096
      %v2745 = vpack.c.b16 %v2105, %v2097
      %v2746 = vpack.c.b16 %v2106, %v2098
      %v2747 = vpack.c.b16 %v2107, %v2099
      %v2748 = vpack.c.b16 %v2108, %v2100
      %v2749 = vpack.c.b16 %v2109, %v2101
      %v2750 = vpack.c.b16 %v2118, %v2110
      %v2751 = vpack.c.b16 %v2119, %v2111
      %v2752 = vpack.c.b16 %v2120, %v2112
      %v2753 = vpack.c.b16 %v2121, %v2113
      %v2754 = vpack.c.b16 %v2122, %v2114
      %v2755 = vpack.c.b16 %v2123, %v2115
      %v2756 = vpack.c.b16 %v2124, %v2116
      %v2757 = vpack.c.b16 %v2125, %v2117
      %v2758 = vpack.c.b16 %v2134, %v2126
      %v2759 = vpack.c.b16 %v2135, %v2127
      %v2760 = vpack.c.b16 %v2136, %v2128
      %v2761 = vpack.c.b16 %v2137, %v2129
      %v2762 = vpack.c.b16 %v2138, %v2130
      %v2763 = vpack.c.b16 %v2139, %v2131
      %v2764 = vpack.c.b16 %v2140, %v2132
      %v2765 = vpack.c.b16 %v2141, %v2133
      %v2766 = vpack.c.b16 %v2150, %v2142
      %v2767 = vpack.c.b16 %v2151, %v2143
      %v2768 = vpack.c.b16 %v2152, %v2144
      %v2769 = vpack.c.b16 %v2153, %v2145
      %v2770 = vpack.c.b16 %v2154, %v2146
      %v2771 = vpack.c.b16 %v2155, %v2147
      %v2772 = vpack.c.b16 %v2156, %v2148
      %v2773 = vpack.c.b16 %v2157, %v2149
      %v2774 = vpack.c.b16 %v2166, %v2158
      %v2775 = vpack.c.b16 %v2167, %v2159
      %v2776 = vpack.c.b16 %v2168, %v2160
      %v2777 = vpack.c.b16 %v2169, %v2161
      %v2778 = vpack.c.b16 %v2170, %v2162
      %v2779 = vpack.c.b16 %v2171, %v2163
      %v2780 = vpack.c.b16 %v2172, %v2164
      %v2781 = vpack.c.b16 %v2173, %v2165
      %v2782 = vpack.c.b16 %v2182, %v2174
      %v2783 = vpack.c.b16 %v2183, %v2175
      %v2784 = vpack.c.b16 %v2184, %v2176
      %v2785 = vpack.c.b16 %v2185, %v2177
      %v2786 = vpack.c.b16 %v2186, %v2178
      %v2787 = vpack.c.b16 %v2187, %v2179
      %v2788 = vpack.c.b16 %v2188, %v2180
      %v2789 = vpack.c.b16 %v2189, %v2181
      %v2790 = vpack.c.b16 %v2198, %v2190
      %v2791 = vpack.c.b16 %v2199, %v2191
      %v2792 = vpack.c.b16 %v2200, %v2192
      %v2793 = vpack.c.b16 %v2201, %v2193
      %v2794 = vpack.c.b16 %v2202, %v2194
      %v2795 = vpack.c.b16 %v2203, %v2195
      %v2796 = vpack.c.b16 %v2204, %v2196
      %v2797 = vpack.c.b16 %v2205, %v2197
      %v2798 = vpack.c.b16 %v2214, %v2206
      %v2799 = vpack.c.b16 %v2215, %v2207
      %v2800 = vpack.c.b16 %v2216, %v2208
      %v2801 = vpack.c.b16 %v2217, %v2209
      %v2802 = vpack.c.b16 %v2218, %v2210
      %v2803 = vpack.c.b16 %v2219, %v2211
      %v2804 = vpack.c.b16 %v2220, %v2212
      %v2805 = vpack.c.b16 %v2221, %v2213
      %v2806 = vpack.c.b16 %v2230, %v2222
      %v2807 = vpack.c.b16 %v2231, %v2223
      %v2808 = vpack.c.b16 %v2232, %v2224
      %v2809 = vpack.c.b16 %v2233, %v2225
      %v2810 = vpack.c.b16 %v2234, %v2226
      %v2811 = vpack.c.b16 %v2235, %v2227
      %v2812 = vpack.c.b16 %v2236, %v2228
      %v2813 = vpack.c.b16 %v2237, %v2229
      %v2814 = vpack.c.b16 %v2246, %v2238
      %v2815 = vpack.c.b16 %v2247, %v2239
      %v2816 = vpack.c.b16 %v2248, %v2240
      %v2817 = vpack.c.b16 %v2249, %v2241
      %v2818 = vpack.c.b16 %v2250, %v2242
      %v2819 = vpack.c.b16 %v2251, %v2243
      %v2820 = vpack.c.b16 %v2252, %v2244
      %v2821 = vpack.c.b16 %v2253, %v2245
      %v2822 = vpack.c.b16 %v2262, %v2254
      %v2823 = vpack.c.b16 %v2263, %v2255
      %v2824 = vpack.c.b16 %v2264, %v2256
      %v2825 = vpack.c.b16 %v2265, %v2257
      %v2826 = vpack.c.b16 %v2266, %v2258
      %v2827 = vpack.c.b16 %v2267, %v2259
      %v2828 = vpack.c.b16 %v2268, %v2260
      %v2829 = vpack.c.b16 %v2269, %v2261
      %v2830 = vpack.c.b16 %v2278, %v2270
      %v2831 = vpack.c.b16 %v2279, %v2271
      %v2832 = vpack.c.b16 %v2280, %v2272
      %v2833 = vpack.c.b16 %v2281, %v2273
      %v2834 = vpack.c.b16 %v2282, %v2274
      %v2835 = vpack.c.b16 %v2283, %v2275
      %v2836 = vpack.c.b16 %v2284, %v2276
      %v2837 = vpack.c.b16 %v2285, %v2277
      %v2838 = vpack.c.b16 %v2294, %v2286
      %v2839 = vpack.c.b16 %v2295, %v2287
      %v2840 = vpack.c.b16 %v2296, %v2288
      %v2841 = vpack.c.b16 %v2297, %v2289
      %v2842 = vpack.c.b16 %v2298, %v2290
      %v2843 = vpack.c.b16 %v2299, %v2291
      %v2844 = vpack.c.b16 %v2300, %v2292
      %v2845 = vpack.c.b16 %v2301, %v2293
      %v2846 = vpack.c.b16 %v2310, %v2302
      %v2847 = vpack.c.b16 %v2311, %v2303
      %v2848 = vpack.c.b16 %v2312, %v2304
      %v2849 = vpack.c.b16 %v2313, %v2305
      %v2850 = vpack.c.b16 %v2314, %v2306
      %v2851 = vpack.c.b16 %v2315, %v2307
      %v2852 = vpack.c.b16 %v2316, %v2308
      %v2853 = vpack.c.b16 %v2317, %v2309
      %v2854 = vpack.c.b16 %v2326, %v2318
      %v2855 = vpack.c.b16 %v2327, %v2319
      %v2856 = vpack.c.b16 %v2328, %v2320
      %v2857 = vpack.c.b16 %v2329, %v2321
      %v2858 = vpack.c.b16 %v2330, %v2322
      %v2859 = vpack.c.b16 %v2331, %v2323
      %v2860 = vpack.c.b16 %v2332, %v2324
      %v2861 = vpack.c.b16 %v2333, %v2325
      %v2862 = vpack.c.b16 %v2342, %v2334
      %v2863 = vpack.c.b16 %v2343, %v2335
      %v2864 = vpack.c.b16 %v2344, %v2336
      %v2865 = vpack.c.b16 %v2345, %v2337
      %v2866 = vpack.c.b16 %v2346, %v2338
      %v2867 = vpack.c.b16 %v2347, %v2339
      %v2868 = vpack.c.b16 %v2348, %v2340
      %v2869 = vpack.c.b16 %v2349, %v2341
      %v2870 = vpack.c.b16 %v2358, %v2350
      %v2871 = vpack.c.b16 %v2359, %v2351
      %v2872 = vpack.c.b16 %v2360, %v2352
      %v2873 = vpack.c.b16 %v2361, %v2353
      %v2874 = vpack.c.b16 %v2362, %v2354
      %v2875 = vpack.c.b16 %v2363, %v2355
      %v2876 = vpack.c.b16 %v2364, %v2356
      %v2877 = vpack.c.b16 %v2365, %v2357
      %3390 = vmatprep.subr.bf16.mxu0 %v2367
      %3391 = vmatpush1.bf16.msra.mxu0 %v2366
      %3392 = vmatprep.subr.bf16.mxu0 %v2375
      %3393 = vmatpush1.bf16.msra.mxu0 %v2374
      %3394 = vmatprep.subr.bf16.mxu0 %v2383
      %3395 = vmatpush1.bf16.msra.mxu0 %v2382
      %3396 = vmatprep.subr.bf16.mxu0 %v2391
      %3397 = vmatpush1.bf16.msra.mxu0 %v2390
      %3398 = vmatprep.subr.bf16.mxu0 %v2399
      %3399 = vmatpush1.bf16.msra.mxu0 %v2398
      %3400 = vmatprep.subr.bf16.mxu0 %v2407
      %3401 = vmatpush1.bf16.msra.mxu0 %v2406
      %3402 = vmatprep.subr.bf16.mxu0 %v2415
      %3403 = vmatpush1.bf16.msra.mxu0 %v2414
      %3404 = vmatprep.subr.bf16.mxu0 %v2423
      %3405 = vmatpush1.bf16.msra.mxu0 %v2422
      %3406 = vmatprep.subr.bf16.mxu0 %v2431
      %3407 = vmatpush1.bf16.msra.mxu0 %v2430
      %3408 = vmatprep.subr.bf16.mxu0 %v2439
      %3409 = vmatpush1.bf16.msra.mxu0 %v2438
      %3410 = vmatprep.subr.bf16.mxu0 %v2447
      %3411 = vmatpush1.bf16.msra.mxu0 %v2446
      %3412 = vmatprep.subr.bf16.mxu0 %v2455
      %3413 = vmatpush1.bf16.msra.mxu0 %v2454
      %3414 = vmatprep.subr.bf16.mxu0 %v2463
      %3415 = vmatpush1.bf16.msra.mxu0 %v2462
      %3416 = vmatprep.subr.bf16.mxu0 %v2471
      %3417 = vmatpush1.bf16.msra.mxu0 %v2470
      %3418 = vmatprep.subr.bf16.mxu0 %v2479
      %3419 = vmatpush1.bf16.msra.mxu0 %v2478
      %3420 = vmatprep.subr.bf16.mxu0 %v2487
      %3421 = vmatpush1.bf16.msra.mxu0 %v2486
      %3422 = vmatprep.mubr.bf16.mxu0 %v810
      %3423 = vmatmul.mubr.bf16.gmra.mrb[0].mxu0 %v796
      %v3424 = vpop.f32.mrb[0].mxu0
      %v3425 = vadd.f32 %v735, %v3424
      %v3426 = vpop.f32.mrb[0].mxu0
      %v3427 = vadd.f32 %v739, %v3426
      %v3428 = vpop.f32.mrb[0].mxu0
      %v3429 = vpop.f32.mrb[0].mxu0
      %3430 = vdwg.mxu0
      %3431 = vmatprep.subr.bf16.mxu0 %v2495
      %3432 = vmatpush1.bf16.msra.mxu0 %v2494
      %3433 = vmatprep.subr.bf16.mxu0 %v2503
      %3434 = vmatpush1.bf16.msra.mxu0 %v2502
      %3435 = vmatprep.subr.bf16.mxu0 %v2511
      %3436 = vmatpush1.bf16.msra.mxu0 %v2510
      %3437 = vmatprep.subr.bf16.mxu0 %v2519
      %3438 = vmatpush1.bf16.msra.mxu0 %v2518
      %3439 = vmatprep.subr.bf16.mxu0 %v2527
      %3440 = vmatpush1.bf16.msra.mxu0 %v2526
      %3441 = vmatprep.subr.bf16.mxu0 %v2535
      %3442 = vmatpush1.bf16.msra.mxu0 %v2534
      %3443 = vmatprep.subr.bf16.mxu0 %v2543
      %3444 = vmatpush1.bf16.msra.mxu0 %v2542
      %3445 = vmatprep.subr.bf16.mxu0 %v2551
      %3446 = vmatpush1.bf16.msra.mxu0 %v2550
      %3447 = vmatprep.subr.bf16.mxu0 %v2559
      %3448 = vmatpush1.bf16.msra.mxu0 %v2558
      %3449 = vmatprep.subr.bf16.mxu0 %v2567
      %3450 = vmatpush1.bf16.msra.mxu0 %v2566
      %3451 = vmatprep.subr.bf16.mxu0 %v2575
      %3452 = vmatpush1.bf16.msra.mxu0 %v2574
      %3453 = vmatprep.subr.bf16.mxu0 %v2583
      %3454 = vmatpush1.bf16.msra.mxu0 %v2582
      %3455 = vmatprep.subr.bf16.mxu0 %v2591
      %3456 = vmatpush1.bf16.msra.mxu0 %v2590
      %3457 = vmatprep.subr.bf16.mxu0 %v2599
      %3458 = vmatpush1.bf16.msra.mxu0 %v2598
      %3459 = vmatprep.subr.bf16.mxu0 %v2607
      %3460 = vmatpush1.bf16.msra.mxu0 %v2606
      %3461 = vmatprep.subr.bf16.mxu0 %v2615
      %3462 = vmatpush1.bf16.msra.mxu0 %v2614
      %3463 = vmatprep.mubr.bf16.mxu0 %v820
      %3464 = vmatmul.mubr.bf16.gmra.mrb[0].mxu0 %v818
      %v3465 = vpop.f32.mrb[0].mxu0
      %v3466 = vadd.f32 %v3425, %v3465
      %v3467 = vpop.f32.mrb[0].mxu0
      %v3468 = vadd.f32 %v3427, %v3467
      %v3469 = vpop.f32.mrb[0].mxu0
      %v3470 = vpop.f32.mrb[0].mxu0
      %3471 = vdwg.mxu0
      %3472 = vmatprep.subr.bf16.mxu0 %v2623
      %3473 = vmatpush1.bf16.msra.mxu0 %v2622
      %3474 = vmatprep.subr.bf16.mxu0 %v2631
      %3475 = vmatpush1.bf16.msra.mxu0 %v2630
      %3476 = vmatprep.subr.bf16.mxu0 %v2639
      %3477 = vmatpush1.bf16.msra.mxu0 %v2638
      %3478 = vmatprep.subr.bf16.mxu0 %v2647
      %3479 = vmatpush1.bf16.msra.mxu0 %v2646
      %3480 = vmatprep.subr.bf16.mxu0 %v2655
      %3481 = vmatpush1.bf16.msra.mxu0 %v2654
      %3482 = vmatprep.subr.bf16.mxu0 %v2663
      %3483 = vmatpush1.bf16.msra.mxu0 %v2662
      %3484 = vmatprep.subr.bf16.mxu0 %v2671
      %3485 = vmatpush1.bf16.msra.mxu0 %v2670
      %3486 = vmatprep.subr.bf16.mxu0 %v2679
      %3487 = vmatpush1.bf16.msra.mxu0 %v2678
      %3488 = vmatprep.subr.bf16.mxu0 %v2687
      %3489 = vmatpush1.bf16.msra.mxu0 %v2686
      %3490 = vmatprep.subr.bf16.mxu0 %v2695
      %3491 = vmatpush1.bf16.msra.mxu0 %v2694
      %3492 = vmatprep.subr.bf16.mxu0 %v2703
      %3493 = vmatpush1.bf16.msra.mxu0 %v2702
      %3494 = vmatprep.subr.bf16.mxu0 %v2711
      %3495 = vmatpush1.bf16.msra.mxu0 %v2710
      %3496 = vmatprep.subr.bf16.mxu0 %v2719
      %3497 = vmatpush1.bf16.msra.mxu0 %v2718
      %3498 = vmatprep.subr.bf16.mxu0 %v2727
      %3499 = vmatpush1.bf16.msra.mxu0 %v2726
      %3500 = vmatprep.subr.bf16.mxu0 %v2735
      %3501 = vmatpush1.bf16.msra.mxu0 %v2734
      %3502 = vmatprep.subr.bf16.mxu0 %v2743
      %3503 = vmatpush1.bf16.msra.mxu0 %v2742
      %3504 = vmatprep.mubr.bf16.mxu0 %v817
      %3505 = vmatmul.mubr.bf16.gmra.mrb[0].mxu0 %v803
      %v3506 = vpop.f32.mrb[0].mxu0
      %v3507 = vadd.f32 %v3466, %v3506
      %v3508 = vpop.f32.mrb[0].mxu0
      %v3509 = vadd.f32 %v3468, %v3508
      %v3510 = vpop.f32.mrb[0].mxu0
      %v3511 = vpop.f32.mrb[0].mxu0
      %3512 = vdwg.mxu0
      %3513 = vmatprep.subr.bf16.mxu0 %v2751
      %3514 = vmatpush1.bf16.msra.mxu0 %v2750
      %3515 = vmatprep.subr.bf16.mxu0 %v2759
      %3516 = vmatpush1.bf16.msra.mxu0 %v2758
      %3517 = vmatprep.subr.bf16.mxu0 %v2767
      %3518 = vmatpush1.bf16.msra.mxu0 %v2766
      %3519 = vmatprep.subr.bf16.mxu0 %v2775
      %3520 = vmatpush1.bf16.msra.mxu0 %v2774
      %3521 = vmatprep.subr.bf16.mxu0 %v2783
      %3522 = vmatpush1.bf16.msra.mxu0 %v2782
      %3523 = vmatprep.subr.bf16.mxu0 %v2791
      %3524 = vmatpush1.bf16.msra.mxu0 %v2790
      %3525 = vmatprep.subr.bf16.mxu0 %v2799
      %3526 = vmatpush1.bf16.msra.mxu0 %v2798
      %3527 = vmatprep.subr.bf16.mxu0 %v2807
      %3528 = vmatpush1.bf16.msra.mxu0 %v2806
      %3529 = vmatprep.subr.bf16.mxu0 %v2815
      %3530 = vmatpush1.bf16.msra.mxu0 %v2814
      %3531 = vmatprep.subr.bf16.mxu0 %v2823
      %3532 = vmatpush1.bf16.msra.mxu0 %v2822
      %3533 = vmatprep.subr.bf16.mxu0 %v2831
      %3534 = vmatpush1.bf16.msra.mxu0 %v2830
      %3535 = vmatprep.subr.bf16.mxu0 %v2839
      %3536 = vmatpush1.bf16.msra.mxu0 %v2838
      %3537 = vmatprep.subr.bf16.mxu0 %v2847
      %3538 = vmatpush1.bf16.msra.mxu0 %v2846
      %3539 = vmatprep.subr.bf16.mxu0 %v2855
      %3540 = vmatpush1.bf16.msra.mxu0 %v2854
      %3541 = vmatprep.subr.bf16.mxu0 %v2863
      %3542 = vmatpush1.bf16.msra.mxu0 %v2862
      %3543 = vmatprep.subr.bf16.mxu0 %v2871
      %3544 = vmatpush1.bf16.msra.mxu0 %v2870
      %3545 = vmatprep.mubr.bf16.mxu0 %v821
      %3546 = vmatmul.mubr.bf16.gmra.mrb[0].mxu0 %v819
      %v3547 = vpop.f32.mrb[0].mxu0
      %v3548 = vadd.f32 %v3507, %v3547
      %v3549 = vpop.f32.mrb[0].mxu0
      %v3550 = vadd.f32 %v3509, %v3549
      %v3551 = vpop.f32.mrb[0].mxu0
      %v3552 = vpop.f32.mrb[0].mxu0
      %3553 = vdwg.mxu0
      %3554 = vmatprep.subr.bf16.mxu0 %v2369
      %3555 = vmatpush1.bf16.msra.mxu0 %v2368
      %3556 = vmatprep.subr.bf16.mxu0 %v2377
      %3557 = vmatpush1.bf16.msra.mxu0 %v2376
      %3558 = vmatprep.subr.bf16.mxu0 %v2385
      %3559 = vmatpush1.bf16.msra.mxu0 %v2384
      %3560 = vmatprep.subr.bf16.mxu0 %v2393
      %3561 = vmatpush1.bf16.msra.mxu0 %v2392
      %3562 = vmatprep.subr.bf16.mxu0 %v2401
      %3563 = vmatpush1.bf16.msra.mxu0 %v2400
      %3564 = vmatprep.subr.bf16.mxu0 %v2409
      %3565 = vmatpush1.bf16.msra.mxu0 %v2408
      %3566 = vmatprep.subr.bf16.mxu0 %v2417
      %3567 = vmatpush1.bf16.msra.mxu0 %v2416
      %3568 = vmatprep.subr.bf16.mxu0 %v2425
      %3569 = vmatpush1.bf16.msra.mxu0 %v2424
      %3570 = vmatprep.subr.bf16.mxu0 %v2433
      %3571 = vmatpush1.bf16.msra.mxu0 %v2432
      %3572 = vmatprep.subr.bf16.mxu0 %v2441
      %3573 = vmatpush1.bf16.msra.mxu0 %v2440
      %3574 = vmatprep.subr.bf16.mxu0 %v2449
      %3575 = vmatpush1.bf16.msra.mxu0 %v2448
      %3576 = vmatprep.subr.bf16.mxu0 %v2457
      %3577 = vmatpush1.bf16.msra.mxu0 %v2456
      %3578 = vmatprep.subr.bf16.mxu0 %v2465
      %3579 = vmatpush1.bf16.msra.mxu0 %v2464
      %3580 = vmatprep.subr.bf16.mxu0 %v2473
      %3581 = vmatpush1.bf16.msra.mxu0 %v2472
      %3582 = vmatprep.subr.bf16.mxu0 %v2481
      %3583 = vmatpush1.bf16.msra.mxu0 %v2480
      %3584 = vmatprep.subr.bf16.mxu0 %v2489
      %3585 = vmatpush1.bf16.msra.mxu0 %v2488
      %3586 = vmatprep.mubr.bf16.mxu0 %v810
      %3587 = vmatmul.mubr.bf16.gmra.mrb[0].mxu0 %v796
      %v3588 = vpop.f32.mrb[0].mxu0
      %v3589 = vadd.f32 %v743, %v3588
      %v3590 = vpop.f32.mrb[0].mxu0
      %v3591 = vadd.f32 %v747, %v3590
      %v3592 = vpop.f32.mrb[0].mxu0
      %v3593 = vpop.f32.mrb[0].mxu0
      %3594 = vdwg.mxu0
      %3595 = vmatprep.subr.bf16.mxu0 %v2497
      %3596 = vmatpush1.bf16.msra.mxu0 %v2496
      %3597 = vmatprep.subr.bf16.mxu0 %v2505
      %3598 = vmatpush1.bf16.msra.mxu0 %v2504
      %3599 = vmatprep.subr.bf16.mxu0 %v2513
      %3600 = vmatpush1.bf16.msra.mxu0 %v2512
      %3601 = vmatprep.subr.bf16.mxu0 %v2521
      %3602 = vmatpush1.bf16.msra.mxu0 %v2520
      %3603 = vmatprep.subr.bf16.mxu0 %v2529
      %3604 = vmatpush1.bf16.msra.mxu0 %v2528
      %3605 = vmatprep.subr.bf16.mxu0 %v2537
      %3606 = vmatpush1.bf16.msra.mxu0 %v2536
      %3607 = vmatprep.subr.bf16.mxu0 %v2545
      %3608 = vmatpush1.bf16.msra.mxu0 %v2544
      %3609 = vmatprep.subr.bf16.mxu0 %v2553
      %3610 = vmatpush1.bf16.msra.mxu0 %v2552
      %3611 = vmatprep.subr.bf16.mxu0 %v2561
      %3612 = vmatpush1.bf16.msra.mxu0 %v2560
      %3613 = vmatprep.subr.bf16.mxu0 %v2569
      %3614 = vmatpush1.bf16.msra.mxu0 %v2568
      %3615 = vmatprep.subr.bf16.mxu0 %v2577
      %3616 = vmatpush1.bf16.msra.mxu0 %v2576
      %3617 = vmatprep.subr.bf16.mxu0 %v2585
      %3618 = vmatpush1.bf16.msra.mxu0 %v2584
      %3619 = vmatprep.subr.bf16.mxu0 %v2593
      %3620 = vmatpush1.bf16.msra.mxu0 %v2592
      %3621 = vmatprep.subr.bf16.mxu0 %v2601
      %3622 = vmatpush1.bf16.msra.mxu0 %v2600
      %3623 = vmatprep.subr.bf16.mxu0 %v2609
      %3624 = vmatpush1.bf16.msra.mxu0 %v2608
      %3625 = vmatprep.subr.bf16.mxu0 %v2617
      %3626 = vmatpush1.bf16.msra.mxu0 %v2616
      %3627 = vmatprep.mubr.bf16.mxu0 %v820
      %3628 = vmatmul.mubr.bf16.gmra.mrb[0].mxu0 %v818
      %v3629 = vpop.f32.mrb[0].mxu0
      %v3630 = vadd.f32 %v3589, %v3629
      %v3631 = vpop.f32.mrb[0].mxu0
      %v3632 = vadd.f32 %v3591, %v3631
      %v3633 = vpop.f32.mrb[0].mxu0
      %v3634 = vpop.f32.mrb[0].mxu0
      %3635 = vdwg.mxu0
      %3636 = vmatprep.subr.bf16.mxu0 %v2625
      %3637 = vmatpush1.bf16.msra.mxu0 %v2624
      %3638 = vmatprep.subr.bf16.mxu0 %v2633
      %3639 = vmatpush1.bf16.msra.mxu0 %v2632
      %3640 = vmatprep.subr.bf16.mxu0 %v2641
      %3641 = vmatpush1.bf16.msra.mxu0 %v2640
      %3642 = vmatprep.subr.bf16.mxu0 %v2649
      %3643 = vmatpush1.bf16.msra.mxu0 %v2648
      %3644 = vmatprep.subr.bf16.mxu0 %v2657
      %3645 = vmatpush1.bf16.msra.mxu0 %v2656
      %3646 = vmatprep.subr.bf16.mxu0 %v2665
      %3647 = vmatpush1.bf16.msra.mxu0 %v2664
      %3648 = vmatprep.subr.bf16.mxu0 %v2673
      %3649 = vmatpush1.bf16.msra.mxu0 %v2672
      %3650 = vmatprep.subr.bf16.mxu0 %v2681
      %3651 = vmatpush1.bf16.msra.mxu0 %v2680
      %3652 = vmatprep.subr.bf16.mxu0 %v2689
      %3653 = vmatpush1.bf16.msra.mxu0 %v2688
      %3654 = vmatprep.subr.bf16.mxu0 %v2697
      %3655 = vmatpush1.bf16.msra.mxu0 %v2696
      %3656 = vmatprep.subr.bf16.mxu0 %v2705
      %3657 = vmatpush1.bf16.msra.mxu0 %v2704
      %3658 = vmatprep.subr.bf16.mxu0 %v2713
      %3659 = vmatpush1.bf16.msra.mxu0 %v2712
      %3660 = vmatprep.subr.bf16.mxu0 %v2721
      %3661 = vmatpush1.bf16.msra.mxu0 %v2720
      %3662 = vmatprep.subr.bf16.mxu0 %v2729
      %3663 = vmatpush1.bf16.msra.mxu0 %v2728
      %3664 = vmatprep.subr.bf16.mxu0 %v2737
      %3665 = vmatpush1.bf16.msra.mxu0 %v2736
      %3666 = vmatprep.subr.bf16.mxu0 %v2745
      %3667 = vmatpush1.bf16.msra.mxu0 %v2744
      %3668 = vmatprep.mubr.bf16.mxu0 %v817
      %3669 = vmatmul.mubr.bf16.gmra.mrb[0].mxu0 %v803
      %v3670 = vpop.f32.mrb[0].mxu0
      %v3671 = vadd.f32 %v3630, %v3670
      %v3672 = vpop.f32.mrb[0].mxu0
      %v3673 = vadd.f32 %v3632, %v3672
      %v3674 = vpop.f32.mrb[0].mxu0
      %v3675 = vpop.f32.mrb[0].mxu0
      %3676 = vdwg.mxu0
      %3677 = vmatprep.subr.bf16.mxu0 %v2753
      %3678 = vmatpush1.bf16.msra.mxu0 %v2752
      %3679 = vmatprep.subr.bf16.mxu0 %v2761
      %3680 = vmatpush1.bf16.msra.mxu0 %v2760
      %3681 = vmatprep.subr.bf16.mxu0 %v2769
      %3682 = vmatpush1.bf16.msra.mxu0 %v2768
      %3683 = vmatprep.subr.bf16.mxu0 %v2777
      %3684 = vmatpush1.bf16.msra.mxu0 %v2776
      %3685 = vmatprep.subr.bf16.mxu0 %v2785
      %3686 = vmatpush1.bf16.msra.mxu0 %v2784
      %3687 = vmatprep.subr.bf16.mxu0 %v2793
      %3688 = vmatpush1.bf16.msra.mxu0 %v2792
      %3689 = vmatprep.subr.bf16.mxu0 %v2801
      %3690 = vmatpush1.bf16.msra.mxu0 %v2800
      %3691 = vmatprep.subr.bf16.mxu0 %v2809
      %3692 = vmatpush1.bf16.msra.mxu0 %v2808
      %3693 = vmatprep.subr.bf16.mxu0 %v2817
      %3694 = vmatpush1.bf16.msra.mxu0 %v2816
      %3695 = vmatprep.subr.bf16.mxu0 %v2825
      %3696 = vmatpush1.bf16.msra.mxu0 %v2824
      %3697 = vmatprep.subr.bf16.mxu0 %v2833
      %3698 = vmatpush1.bf16.msra.mxu0 %v2832
      %3699 = vmatprep.subr.bf16.mxu0 %v2841
      %3700 = vmatpush1.bf16.msra.mxu0 %v2840
      %3701 = vmatprep.subr.bf16.mxu0 %v2849
      %3702 = vmatpush1.bf16.msra.mxu0 %v2848
      %3703 = vmatprep.subr.bf16.mxu0 %v2857
      %3704 = vmatpush1.bf16.msra.mxu0 %v2856
      %3705 = vmatprep.subr.bf16.mxu0 %v2865
      %3706 = vmatpush1.bf16.msra.mxu0 %v2864
      %3707 = vmatprep.subr.bf16.mxu0 %v2873
      %3708 = vmatpush1.bf16.msra.mxu0 %v2872
      %3709 = vmatprep.mubr.bf16.mxu0 %v821
      %3710 = vmatmul.mubr.bf16.gmra.mrb[0].mxu0 %v819
      %v3711 = vpop.f32.mrb[0].mxu0
      %v3712 = vadd.f32 %v3671, %v3711
      %v3713 = vpop.f32.mrb[0].mxu0
      %v3714 = vadd.f32 %v3673, %v3713
      %v3715 = vpop.f32.mrb[0].mxu0
      %v3716 = vpop.f32.mrb[0].mxu0
      %3717 = vdwg.mxu0
      %3718 = vmatprep.subr.bf16.mxu0 %v2371
      %3719 = vmatpush1.bf16.msra.mxu0 %v2370
      %3720 = vmatprep.subr.bf16.mxu0 %v2379
      %3721 = vmatpush1.bf16.msra.mxu0 %v2378
      %3722 = vmatprep.subr.bf16.mxu0 %v2387
      %3723 = vmatpush1.bf16.msra.mxu0 %v2386
      %3724 = vmatprep.subr.bf16.mxu0 %v2395
      %3725 = vmatpush1.bf16.msra.mxu0 %v2394
      %3726 = vmatprep.subr.bf16.mxu0 %v2403
      %3727 = vmatpush1.bf16.msra.mxu0 %v2402
      %3728 = vmatprep.subr.bf16.mxu0 %v2411
      %3729 = vmatpush1.bf16.msra.mxu0 %v2410
      %3730 = vmatprep.subr.bf16.mxu0 %v2419
      %3731 = vmatpush1.bf16.msra.mxu0 %v2418
      %3732 = vmatprep.subr.bf16.mxu0 %v2427
      %3733 = vmatpush1.bf16.msra.mxu0 %v2426
      %3734 = vmatprep.subr.bf16.mxu0 %v2435
      %3735 = vmatpush1.bf16.msra.mxu0 %v2434
      %3736 = vmatprep.subr.bf16.mxu0 %v2443
      %3737 = vmatpush1.bf16.msra.mxu0 %v2442
      %3738 = vmatprep.subr.bf16.mxu0 %v2451
      %3739 = vmatpush1.bf16.msra.mxu0 %v2450
      %3740 = vmatprep.subr.bf16.mxu0 %v2459
      %3741 = vmatpush1.bf16.msra.mxu0 %v2458
      %3742 = vmatprep.subr.bf16.mxu0 %v2467
      %3743 = vmatpush1.bf16.msra.mxu0 %v2466
      %3744 = vmatprep.subr.bf16.mxu0 %v2475
      %3745 = vmatpush1.bf16.msra.mxu0 %v2474
      %3746 = vmatprep.subr.bf16.mxu0 %v2483
      %3747 = vmatpush1.bf16.msra.mxu0 %v2482
      %3748 = vmatprep.subr.bf16.mxu0 %v2491
      %3749 = vmatpush1.bf16.msra.mxu0 %v2490
      %3750 = vmatprep.mubr.bf16.mxu0 %v810
      %3751 = vmatmul.mubr.bf16.gmra.mrb[0].mxu0 %v796
      %v3752 = vpop.f32.mrb[0].mxu0
      %v3753 = vadd.f32 %v751, %v3752
      %v3754 = vpop.f32.mrb[0].mxu0
      %v3755 = vadd.f32 %v755, %v3754
      %v3756 = vpop.f32.mrb[0].mxu0
      %v3757 = vpop.f32.mrb[0].mxu0
      %3758 = vdwg.mxu0
      %3759 = vmatprep.subr.bf16.mxu0 %v2499
      %3760 = vmatpush1.bf16.msra.mxu0 %v2498
      %3761 = vmatprep.subr.bf16.mxu0 %v2507
      %3762 = vmatpush1.bf16.msra.mxu0 %v2506
      %3763 = vmatprep.subr.bf16.mxu0 %v2515
      %3764 = vmatpush1.bf16.msra.mxu0 %v2514
      %3765 = vmatprep.subr.bf16.mxu0 %v2523
      %3766 = vmatpush1.bf16.msra.mxu0 %v2522
      %3767 = vmatprep.subr.bf16.mxu0 %v2531
      %3768 = vmatpush1.bf16.msra.mxu0 %v2530
      %3769 = vmatprep.subr.bf16.mxu0 %v2539
      %3770 = vmatpush1.bf16.msra.mxu0 %v2538
      %3771 = vmatprep.subr.bf16.mxu0 %v2547
      %3772 = vmatpush1.bf16.msra.mxu0 %v2546
      %3773 = vmatprep.subr.bf16.mxu0 %v2555
      %3774 = vmatpush1.bf16.msra.mxu0 %v2554
      %3775 = vmatprep.subr.bf16.mxu0 %v2563
      %3776 = vmatpush1.bf16.msra.mxu0 %v2562
      %3777 = vmatprep.subr.bf16.mxu0 %v2571
      %3778 = vmatpush1.bf16.msra.mxu0 %v2570
      %3779 = vmatprep.subr.bf16.mxu0 %v2579
      %3780 = vmatpush1.bf16.msra.mxu0 %v2578
      %3781 = vmatprep.subr.bf16.mxu0 %v2587
      %3782 = vmatpush1.bf16.msra.mxu0 %v2586
      %3783 = vmatprep.subr.bf16.mxu0 %v2595
      %3784 = vmatpush1.bf16.msra.mxu0 %v2594
      %3785 = vmatprep.subr.bf16.mxu0 %v2603
      %3786 = vmatpush1.bf16.msra.mxu0 %v2602
      %3787 = vmatprep.subr.bf16.mxu0 %v2611
      %3788 = vmatpush1.bf16.msra.mxu0 %v2610
      %3789 = vmatprep.subr.bf16.mxu0 %v2619
      %3790 = vmatpush1.bf16.msra.mxu0 %v2618
      %3791 = vmatprep.mubr.bf16.mxu0 %v820
      %3792 = vmatmul.mubr.bf16.gmra.mrb[0].mxu0 %v818
      %v3793 = vpop.f32.mrb[0].mxu0
      %v3794 = vadd.f32 %v3753, %v3793
      %v3795 = vpop.f32.mrb[0].mxu0
      %v3796 = vadd.f32 %v3755, %v3795
      %v3797 = vpop.f32.mrb[0].mxu0
      %v3798 = vpop.f32.mrb[0].mxu0
      %3799 = vdwg.mxu0
      %3800 = vmatprep.subr.bf16.mxu0 %v2627
      %3801 = vmatpush1.bf16.msra.mxu0 %v2626
      %3802 = vmatprep.subr.bf16.mxu0 %v2635
      %3803 = vmatpush1.bf16.msra.mxu0 %v2634
      %3804 = vmatprep.subr.bf16.mxu0 %v2643
      %3805 = vmatpush1.bf16.msra.mxu0 %v2642
      %3806 = vmatprep.subr.bf16.mxu0 %v2651
      %3807 = vmatpush1.bf16.msra.mxu0 %v2650
      %3808 = vmatprep.subr.bf16.mxu0 %v2659
      %3809 = vmatpush1.bf16.msra.mxu0 %v2658
      %3810 = vmatprep.subr.bf16.mxu0 %v2667
      %3811 = vmatpush1.bf16.msra.mxu0 %v2666
      %3812 = vmatprep.subr.bf16.mxu0 %v2675
      %3813 = vmatpush1.bf16.msra.mxu0 %v2674
      %3814 = vmatprep.subr.bf16.mxu0 %v2683
      %3815 = vmatpush1.bf16.msra.mxu0 %v2682
      %3816 = vmatprep.subr.bf16.mxu0 %v2691
      %3817 = vmatpush1.bf16.msra.mxu0 %v2690
      %3818 = vmatprep.subr.bf16.mxu0 %v2699
      %3819 = vmatpush1.bf16.msra.mxu0 %v2698
      %3820 = vmatprep.subr.bf16.mxu0 %v2707
      %3821 = vmatpush1.bf16.msra.mxu0 %v2706
      %3822 = vmatprep.subr.bf16.mxu0 %v2715
      %3823 = vmatpush1.bf16.msra.mxu0 %v2714
      %3824 = vmatprep.subr.bf16.mxu0 %v2723
      %3825 = vmatpush1.bf16.msra.mxu0 %v2722
      %3826 = vmatprep.subr.bf16.mxu0 %v2731
      %3827 = vmatpush1.bf16.msra.mxu0 %v2730
      %3828 = vmatprep.subr.bf16.mxu0 %v2739
      %3829 = vmatpush1.bf16.msra.mxu0 %v2738
      %3830 = vmatprep.subr.bf16.mxu0 %v2747
      %3831 = vmatpush1.bf16.msra.mxu0 %v2746
      %3832 = vmatprep.mubr.bf16.mxu0 %v817
      %3833 = vmatmul.mubr.bf16.gmra.mrb[0].mxu0 %v803
      %v3834 = vpop.f32.mrb[0].mxu0
      %v3835 = vadd.f32 %v3794, %v3834
      %v3836 = vpop.f32.mrb[0].mxu0
      %v3837 = vadd.f32 %v3796, %v3836
      %v3838 = vpop.f32.mrb[0].mxu0
      %v3839 = vpop.f32.mrb[0].mxu0
      %3840 = vdwg.mxu0
      %3841 = vmatprep.subr.bf16.mxu0 %v2755
      %3842 = vmatpush1.bf16.msra.mxu0 %v2754
      %3843 = vmatprep.subr.bf16.mxu0 %v2763
      %3844 = vmatpush1.bf16.msra.mxu0 %v2762
      %3845 = vmatprep.subr.bf16.mxu0 %v2771
      %3846 = vmatpush1.bf16.msra.mxu0 %v2770
      %3847 = vmatprep.subr.bf16.mxu0 %v2779
      %3848 = vmatpush1.bf16.msra.mxu0 %v2778
      %3849 = vmatprep.subr.bf16.mxu0 %v2787
      %3850 = vmatpush1.bf16.msra.mxu0 %v2786
      %3851 = vmatprep.subr.bf16.mxu0 %v2795
      %3852 = vmatpush1.bf16.msra.mxu0 %v2794
      %3853 = vmatprep.subr.bf16.mxu0 %v2803
      %3854 = vmatpush1.bf16.msra.mxu0 %v2802
      %3855 = vmatprep.subr.bf16.mxu0 %v2811
      %3856 = vmatpush1.bf16.msra.mxu0 %v2810
      %3857 = vmatprep.subr.bf16.mxu0 %v2819
      %3858 = vmatpush1.bf16.msra.mxu0 %v2818
      %3859 = vmatprep.subr.bf16.mxu0 %v2827
      %3860 = vmatpush1.bf16.msra.mxu0 %v2826
      %3861 = vmatprep.subr.bf16.mxu0 %v2835
      %3862 = vmatpush1.bf16.msra.mxu0 %v2834
      %3863 = vmatprep.subr.bf16.mxu0 %v2843
      %3864 = vmatpush1.bf16.msra.mxu0 %v2842
      %3865 = vmatprep.subr.bf16.mxu0 %v2851
      %3866 = vmatpush1.bf16.msra.mxu0 %v2850
      %3867 = vmatprep.subr.bf16.mxu0 %v2859
      %3868 = vmatpush1.bf16.msra.mxu0 %v2858
      %3869 = vmatprep.subr.bf16.mxu0 %v2867
      %3870 = vmatpush1.bf16.msra.mxu0 %v2866
      %3871 = vmatprep.subr.bf16.mxu0 %v2875
      %3872 = vmatpush1.bf16.msra.mxu0 %v2874
      %3873 = vmatprep.mubr.bf16.mxu0 %v821
      %3874 = vmatmul.mubr.bf16.gmra.mrb[0].mxu0 %v819
      %v3875 = vpop.f32.mrb[0].mxu0
      %v3876 = vadd.f32 %v3835, %v3875
      %v3877 = vpop.f32.mrb[0].mxu0
      %v3878 = vadd.f32 %v3837, %v3877
      %v3879 = vpop.f32.mrb[0].mxu0
      %v3880 = vpop.f32.mrb[0].mxu0
      %3881 = vdwg.mxu0
      %3882 = vmatprep.subr.bf16.mxu0 %v2373
      %3883 = vmatpush1.bf16.msra.mxu0 %v2372
      %3884 = vmatprep.subr.bf16.mxu0 %v2381
      %3885 = vmatpush1.bf16.msra.mxu0 %v2380
      %3886 = vmatprep.subr.bf16.mxu0 %v2389
      %3887 = vmatpush1.bf16.msra.mxu0 %v2388
      %3888 = vmatprep.subr.bf16.mxu0 %v2397
      %3889 = vmatpush1.bf16.msra.mxu0 %v2396
      %3890 = vmatprep.subr.bf16.mxu0 %v2405
      %3891 = vmatpush1.bf16.msra.mxu0 %v2404
      %3892 = vmatprep.subr.bf16.mxu0 %v2413
      %3893 = vmatpush1.bf16.msra.mxu0 %v2412
      %3894 = vmatprep.subr.bf16.mxu0 %v2421
      %3895 = vmatpush1.bf16.msra.mxu0 %v2420
      %3896 = vmatprep.subr.bf16.mxu0 %v2429
      %3897 = vmatpush1.bf16.msra.mxu0 %v2428
      %3898 = vmatprep.subr.bf16.mxu0 %v2437
      %3899 = vmatpush1.bf16.msra.mxu0 %v2436
      %3900 = vmatprep.subr.bf16.mxu0 %v2445
      %3901 = vmatpush1.bf16.msra.mxu0 %v2444
      %3902 = vmatprep.subr.bf16.mxu0 %v2453
      %3903 = vmatpush1.bf16.msra.mxu0 %v2452
      %3904 = vmatprep.subr.bf16.mxu0 %v2461
      %3905 = vmatpush1.bf16.msra.mxu0 %v2460
      %3906 = vmatprep.subr.bf16.mxu0 %v2469
      %3907 = vmatpush1.bf16.msra.mxu0 %v2468
      %3908 = vmatprep.subr.bf16.mxu0 %v2477
      %3909 = vmatpush1.bf16.msra.mxu0 %v2476
      %3910 = vmatprep.subr.bf16.mxu0 %v2485
      %3911 = vmatpush1.bf16.msra.mxu0 %v2484
      %3912 = vmatprep.subr.bf16.mxu0 %v2493
      %3913 = vmatpush1.bf16.msra.mxu0 %v2492
      %3914 = vmatprep.mubr.bf16.mxu0 %v810
      %3915 = vmatmul.mubr.bf16.gmra.mrb[0].mxu0 %v796
      %v3916 = vpop.f32.mrb[0].mxu0
      %v3917 = vadd.f32 %v759, %v3916
      %v3918 = vpop.f32.mrb[0].mxu0
      %v3919 = vadd.f32 %v763, %v3918
      %v3920 = vpop.f32.mrb[0].mxu0
      %v3921 = vpop.f32.mrb[0].mxu0
      %3922 = vdwg.mxu0
      %3923 = vmatprep.subr.bf16.mxu0 %v2501
      %3924 = vmatpush1.bf16.msra.mxu0 %v2500
      %3925 = vmatprep.subr.bf16.mxu0 %v2509
      %3926 = vmatpush1.bf16.msra.mxu0 %v2508
      %3927 = vmatprep.subr.bf16.mxu0 %v2517
      %3928 = vmatpush1.bf16.msra.mxu0 %v2516
      %3929 = vmatprep.subr.bf16.mxu0 %v2525
      %3930 = vmatpush1.bf16.msra.mxu0 %v2524
      %3931 = vmatprep.subr.bf16.mxu0 %v2533
      %3932 = vmatpush1.bf16.msra.mxu0 %v2532
      %3933 = vmatprep.subr.bf16.mxu0 %v2541
      %3934 = vmatpush1.bf16.msra.mxu0 %v2540
      %3935 = vmatprep.subr.bf16.mxu0 %v2549
      %3936 = vmatpush1.bf16.msra.mxu0 %v2548
      %3937 = vmatprep.subr.bf16.mxu0 %v2557
      %3938 = vmatpush1.bf16.msra.mxu0 %v2556
      %3939 = vmatprep.subr.bf16.mxu0 %v2565
      %3940 = vmatpush1.bf16.msra.mxu0 %v2564
      %3941 = vmatprep.subr.bf16.mxu0 %v2573
      %3942 = vmatpush1.bf16.msra.mxu0 %v2572
      %3943 = vmatprep.subr.bf16.mxu0 %v2581
      %3944 = vmatpush1.bf16.msra.mxu0 %v2580
      %3945 = vmatprep.subr.bf16.mxu0 %v2589
      %3946 = vmatpush1.bf16.msra.mxu0 %v2588
      %3947 = vmatprep.subr.bf16.mxu0 %v2597
      %3948 = vmatpush1.bf16.msra.mxu0 %v2596
      %3949 = vmatprep.subr.bf16.mxu0 %v2605
      %3950 = vmatpush1.bf16.msra.mxu0 %v2604
      %3951 = vmatprep.subr.bf16.mxu0 %v2613
      %3952 = vmatpush1.bf16.msra.mxu0 %v2612
      %3953 = vmatprep.subr.bf16.mxu0 %v2621
      %3954 = vmatpush1.bf16.msra.mxu0 %v2620
      %3955 = vmatprep.mubr.bf16.mxu0 %v820
      %3956 = vmatmul.mubr.bf16.gmra.mrb[0].mxu0 %v818
      %v3957 = vpop.f32.mrb[0].mxu0
      %v3958 = vadd.f32 %v3917, %v3957
      %v3959 = vpop.f32.mrb[0].mxu0
      %v3960 = vadd.f32 %v3919, %v3959
      %v3961 = vpop.f32.mrb[0].mxu0
      %v3962 = vpop.f32.mrb[0].mxu0
      %3963 = vdwg.mxu0
      %3964 = vmatprep.subr.bf16.mxu0 %v2629
      %3965 = vmatpush1.bf16.msra.mxu0 %v2628
      %3966 = vmatprep.subr.bf16.mxu0 %v2637
      %3967 = vmatpush1.bf16.msra.mxu0 %v2636
      %3968 = vmatprep.subr.bf16.mxu0 %v2645
      %3969 = vmatpush1.bf16.msra.mxu0 %v2644
      %3970 = vmatprep.subr.bf16.mxu0 %v2653
      %3971 = vmatpush1.bf16.msra.mxu0 %v2652
      %3972 = vmatprep.subr.bf16.mxu0 %v2661
      %3973 = vmatpush1.bf16.msra.mxu0 %v2660
      %3974 = vmatprep.subr.bf16.mxu0 %v2669
      %3975 = vmatpush1.bf16.msra.mxu0 %v2668
      %3976 = vmatprep.subr.bf16.mxu0 %v2677
      %3977 = vmatpush1.bf16.msra.mxu0 %v2676
      %3978 = vmatprep.subr.bf16.mxu0 %v2685
      %3979 = vmatpush1.bf16.msra.mxu0 %v2684
      %3980 = vmatprep.subr.bf16.mxu0 %v2693
      %3981 = vmatpush1.bf16.msra.mxu0 %v2692
      %3982 = vmatprep.subr.bf16.mxu0 %v2701
      %3983 = vmatpush1.bf16.msra.mxu0 %v2700
      %3984 = vmatprep.subr.bf16.mxu0 %v2709
      %3985 = vmatpush1.bf16.msra.mxu0 %v2708
      %3986 = vmatprep.subr.bf16.mxu0 %v2717
      %3987 = vmatpush1.bf16.msra.mxu0 %v2716
      %3988 = vmatprep.subr.bf16.mxu0 %v2725
      %3989 = vmatpush1.bf16.msra.mxu0 %v2724
      %3990 = vmatprep.subr.bf16.mxu0 %v2733
      %3991 = vmatpush1.bf16.msra.mxu0 %v2732
      %3992 = vmatprep.subr.bf16.mxu0 %v2741
      %3993 = vmatpush1.bf16.msra.mxu0 %v2740
      %3994 = vmatprep.subr.bf16.mxu0 %v2749
      %3995 = vmatpush1.bf16.msra.mxu0 %v2748
      %3996 = vmatprep.mubr.bf16.mxu0 %v817
      %3997 = vmatmul.mubr.bf16.gmra.mrb[0].mxu0 %v803
      %v3998 = vpop.f32.mrb[0].mxu0
      %v3999 = vadd.f32 %v3958, %v3998
      %v4000 = vpop.f32.mrb[0].mxu0
      %v4001 = vadd.f32 %v3960, %v4000
      %v4002 = vpop.f32.mrb[0].mxu0
      %v4003 = vpop.f32.mrb[0].mxu0
      %4004 = vdwg.mxu0
      %4005 = vmatprep.subr.bf16.mxu0 %v2757
      %4006 = vmatpush1.bf16.msra.mxu0 %v2756
      %4007 = vmatprep.subr.bf16.mxu0 %v2765
      %4008 = vmatpush1.bf16.msra.mxu0 %v2764
      %4009 = vmatprep.subr.bf16.mxu0 %v2773
      %4010 = vmatpush1.bf16.msra.mxu0 %v2772
      %4011 = vmatprep.subr.bf16.mxu0 %v2781
      %4012 = vmatpush1.bf16.msra.mxu0 %v2780
      %4013 = vmatprep.subr.bf16.mxu0 %v2789
      %4014 = vmatpush1.bf16.msra.mxu0 %v2788
      %4015 = vmatprep.subr.bf16.mxu0 %v2797
      %4016 = vmatpush1.bf16.msra.mxu0 %v2796
      %4017 = vmatprep.subr.bf16.mxu0 %v2805
      %4018 = vmatpush1.bf16.msra.mxu0 %v2804
      %4019 = vmatprep.subr.bf16.mxu0 %v2813
      %4020 = vmatpush1.bf16.msra.mxu0 %v2812
      %4021 = vmatprep.subr.bf16.mxu0 %v2821
      %4022 = vmatpush1.bf16.msra.mxu0 %v2820
      %4023 = vmatprep.subr.bf16.mxu0 %v2829
      %4024 = vmatpush1.bf16.msra.mxu0 %v2828
      %4025 = vmatprep.subr.bf16.mxu0 %v2837
      %4026 = vmatpush1.bf16.msra.mxu0 %v2836
      %4027 = vmatprep.subr.bf16.mxu0 %v2845
      %4028 = vmatpush1.bf16.msra.mxu0 %v2844
      %4029 = vmatprep.subr.bf16.mxu0 %v2853
      %4030 = vmatpush1.bf16.msra.mxu0 %v2852
      %4031 = vmatprep.subr.bf16.mxu0 %v2861
      %4032 = vmatpush1.bf16.msra.mxu0 %v2860
      %4033 = vmatprep.subr.bf16.mxu0 %v2869
      %4034 = vmatpush1.bf16.msra.mxu0 %v2868
      %4035 = vmatprep.subr.bf16.mxu0 %v2877
      %4036 = vmatpush1.bf16.msra.mxu0 %v2876
      %4037 = vmatprep.mubr.bf16.mxu0 %v821
      %4038 = vmatmul.mubr.bf16.gmra.mrb[0].mxu0 %v819
      %v4039 = vpop.f32.mrb[0].mxu0
      %v4040 = vadd.f32 %v3999, %v4039
      %v4041 = vpop.f32.mrb[0].mxu0
      %v4042 = vadd.f32 %v4001, %v4041
      %v4043 = vpop.f32.mrb[0].mxu0
      %v4044 = vpop.f32.mrb[0].mxu0
      %4045 = vdwg.mxu0
      %v4046 = vld [vmem:[#allocation2] sm:$0xff]
      %v4047 = vld [vmem:[#allocation2 + $0x8] sm:$0xff]
      %v4050 = vcombine.high %v4046, %v4046
      %v4052 = vunpack.c.l.s4 1983009808
      %v4053 = vunpack.c.0.s8 %v4052
      %v4054 = vlaneseq
      %v4055 = vshrl.u32 %v4054, 7
      %v4056 = vsub.s32 %v4053, %v4055
      %v4057 = vrot.slane %v4046, %v4056
      %v4059 = vunpack.c.l.s4 1983009808
      %v4060 = vunpack.c.0.s8 %v4059
      %v4061 = vlaneseq
      %v4062 = vshrl.u32 %v4061, 7
      %v4063 = vsub.s32 %v4060, %v4062
      %v4064 = vrot.slane %v4050, %v4063
      %v4065 = vcombine.high %v4057, %v4057
      %v4066 = vcombine.high %v4064, %v4064
      %v4067 = vcombine.high %v4047, %v4047
      %v4069 = vunpack.c.l.s4 1983009808
      %v4070 = vunpack.c.0.s8 %v4069
      %v4071 = vlaneseq
      %v4072 = vshrl.u32 %v4071, 7
      %v4073 = vsub.s32 %v4070, %v4072
      %v4074 = vrot.slane %v4047, %v4073
      %v4076 = vunpack.c.l.s4 1983009808
      %v4077 = vunpack.c.0.s8 %v4076
      %v4078 = vlaneseq
      %v4079 = vshrl.u32 %v4078, 7
      %v4080 = vsub.s32 %v4077, %v4079
      %v4081 = vrot.slane %v4067, %v4080
      %v4082 = vcombine.high %v4074, %v4074
      %v4083 = vcombine.high %v4081, %v4081
      %v4092 = vsub.f32 %v3548, %v4057
      %v4093 = vsub.f32 %v3550, %v4065
      %v4094 = vsub.f32 %v3712, %v4064
      %v4095 = vsub.f32 %v3714, %v4066
      %v4096 = vsub.f32 %v3876, %v4074
      %v4097 = vsub.f32 %v3878, %v4082
      %v4098 = vsub.f32 %v4040, %v4081
      %v4099 = vsub.f32 %v4042, %v4083
      %v4100 = vmul.f32 %v4092, 0.5
      %v4101 = vmul.f32 %v4093, 0.5
      %v4102 = vmul.f32 %v4094, 0.5
      %v4103 = vmul.f32 %v4095, 0.5
      %v4104 = vmul.f32 %v4096, 0.5
      %v4105 = vmul.f32 %v4097, 0.5
      %v4106 = vmul.f32 %v4098, 0.5
      %v4107 = vmul.f32 %v4099, 0.5
      %v4116 = vcombine.low %v4100, %v4101
      %v4117 = vcombine.low %v4102, %v4103
      %v4119 = vunpack.c.l.s4 1983009808
      %v4120 = vunpack.c.0.s8 %v4119
      %v4121 = vlaneseq
      %v4122 = vshrl.u32 %v4121, 7
      %v4123 = vsub.s32 %v4120, %v4122
      %v4124 = vrot.slane %v4116, %v4123
      %v4126 = vunpack.c.l.s4 1983009808
      %v4127 = vunpack.c.0.s8 %v4126
      %v4128 = vlaneseq
      %v4129 = vshrl.u32 %v4128, 7
      %v4130 = vsub.s32 %v4127, %v4129
      %v4131 = vrot.slane %v4117, %v4130
      %v4132 = vcombine.low %v4124, %v4131
      %v4133 = vcombine.low %v4104, %v4105
      %v4134 = vcombine.low %v4106, %v4107
      %v4136 = vunpack.c.l.s4 1983009808
      %v4137 = vunpack.c.0.s8 %v4136
      %v4138 = vlaneseq
      %v4139 = vshrl.u32 %v4138, 7
      %v4140 = vsub.s32 %v4137, %v4139
      %v4141 = vrot.slane %v4133, %v4140
      %v4143 = vunpack.c.l.s4 1983009808
      %v4144 = vunpack.c.0.s8 %v4143
      %v4145 = vlaneseq
      %v4146 = vshrl.u32 %v4145, 7
      %v4147 = vsub.s32 %v4144, %v4146
      %v4148 = vrot.slane %v4134, %v4147
      %v4149 = vcombine.low %v4141, %v4148
      %v4152 = vadd.f32 %v4046, %v4132
      %v4153 = vadd.f32 %v4047, %v4149
      %vm4154 = vcmp.ge.f32.partialorder %v4152, 1.0
      %vm4155 = vcmp.ge.f32.partialorder %v4153, 1.0
      %v4156 = vsel %vm4154, 0.0, %v4152
      %v4157 = vsel %vm4155, 0.0, %v4153
      %4158 = vst [vmem:[#allocation2] sm:$0xff] %v4156
      %4159 = vst [vmem:[#allocation2 + $0x8] sm:$0xff] %v4157
      %v4160 = vsel %vm4154, 1, 0
      %v4161 = vsel %vm4155, 1, 0
      %v4162 = vcvt.s32.f32 %v4160
      %v4163 = vcvt.s32.f32 %v4161
      %v4164 = vld [vmem:[%s3] sm:$0xff]
      %v4166 = vlaneseq
      %v4167 = vshrl.u32 %v4166, 7
      %v4168 = vsub.s32 0, %v4167
      %v4169 = vrot.slane %v4164, %v4168
      %v4170 = vlaneseq
      %v4171 = vshrl.u32 %v4170, 7
      %v4172 = vsub.s32 1, %v4171
      %v4173 = vrot.slane %v4164, %v4172
      %v4174 = vlaneseq
      %v4175 = vshrl.u32 %v4174, 7
      %v4176 = vsub.s32 2, %v4175
      %v4177 = vrot.slane %v4164, %v4176
      %v4178 = vlaneseq
      %v4179 = vshrl.u32 %v4178, 7
      %v4180 = vsub.s32 3, %v4179
      %v4181 = vrot.slane %v4164, %v4180
      %v4182 = vlaneseq
      %v4183 = vshrl.u32 %v4182, 7
      %v4184 = vsub.s32 4, %v4183
      %v4185 = vrot.slane %v4164, %v4184
      %v4186 = vlaneseq
      %v4187 = vshrl.u32 %v4186, 7
      %v4188 = vsub.s32 5, %v4187
      %v4189 = vrot.slane %v4164, %v4188
      %v4190 = vlaneseq
      %v4191 = vshrl.u32 %v4190, 7
      %v4192 = vsub.s32 6, %v4191
      %v4193 = vrot.slane %v4164, %v4192
      %v4194 = vlaneseq
      %v4195 = vshrl.u32 %v4194, 7
      %v4196 = vsub.s32 7, %v4195
      %v4197 = vrot.slane %v4164, %v4196
      %v4198 = vcombine.low %v4169, %v4173
      %v4199 = vcombine.low %v4177, %v4181
      %v4201 = vunpack.c.l.s4 1983009808
      %v4202 = vunpack.c.0.s8 %v4201
      %v4203 = vlaneseq
      %v4204 = vshrl.u32 %v4203, 7
      %v4205 = vsub.s32 %v4202, %v4204
      %v4206 = vrot.slane %v4198, %v4205
      %v4208 = vunpack.c.l.s4 1983009808
      %v4209 = vunpack.c.0.s8 %v4208
      %v4210 = vlaneseq
      %v4211 = vshrl.u32 %v4210, 7
      %v4212 = vsub.s32 %v4209, %v4211
      %v4213 = vrot.slane %v4199, %v4212
      %v4214 = vcombine.low %v4206, %v4213
      %v4215 = vcombine.low %v4185, %v4189
      %v4216 = vcombine.low %v4193, %v4197
      %v4218 = vunpack.c.l.s4 1983009808
      %v4219 = vunpack.c.0.s8 %v4218
      %v4220 = vlaneseq
      %v4221 = vshrl.u32 %v4220, 7
      %v4222 = vsub.s32 %v4219, %v4221
      %v4223 = vrot.slane %v4215, %v4222
      %v4225 = vunpack.c.l.s4 1983009808
      %v4226 = vunpack.c.0.s8 %v4225
      %v4227 = vlaneseq
      %v4228 = vshrl.u32 %v4227, 7
      %v4229 = vsub.s32 %v4226, %v4228
      %v4230 = vrot.slane %v4216, %v4229
      %v4231 = vcombine.low %v4223, %v4230
      %v4234 = vmul.f32 %v4162, %v4214
      %v4235 = vmul.f32 %v4163, %v4231
      %v4238 = vcombine.high %v4234, %v4234
      %v4240 = vunpack.c.l.s4 1983009808
      %v4241 = vunpack.c.0.s8 %v4240
      %v4242 = vlaneseq
      %v4243 = vshrl.u32 %v4242, 7
      %v4244 = vsub.s32 %v4241, %v4243
      %v4245 = vrot.slane %v4234, %v4244
      %v4247 = vunpack.c.l.s4 1983009808
      %v4248 = vunpack.c.0.s8 %v4247
      %v4249 = vlaneseq
      %v4250 = vshrl.u32 %v4249, 7
      %v4251 = vsub.s32 %v4248, %v4250
      %v4252 = vrot.slane %v4238, %v4251
      %v4253 = vcombine.high %v4245, %v4245
      %v4254 = vcombine.high %v4252, %v4252
      %v4255 = vcombine.high %v4235, %v4235
      %v4257 = vunpack.c.l.s4 1983009808
      %v4258 = vunpack.c.0.s8 %v4257
      %v4259 = vlaneseq
      %v4260 = vshrl.u32 %v4259, 7
      %v4261 = vsub.s32 %v4258, %v4260
      %v4262 = vrot.slane %v4235, %v4261
      %v4264 = vunpack.c.l.s4 1983009808
      %v4265 = vunpack.c.0.s8 %v4264
      %v4266 = vlaneseq
      %v4267 = vshrl.u32 %v4266, 7
      %v4268 = vsub.s32 %v4265, %v4267
      %v4269 = vrot.slane %v4255, %v4268
      %v4270 = vcombine.high %v4262, %v4262
      %v4271 = vcombine.high %v4269, %v4269
      %vm4280 = vcmask 1041408
      %v4281 = vsel %vm4280, %v4245, 0.0
      %v4282 = vsel %vm4280, %v4253, 0.0
      %v4283 = vadd.f32 %v4281, %v4282
      %v4284 = vsel %vm4280, %v4252, 0.0
      %v4285 = vadd.f32 %v4283, %v4284
      %v4286 = vsel %vm4280, %v4254, 0.0
      %v4287 = vadd.f32 %v4285, %v4286
      %v4288 = vsel %vm4280, %v4262, 0.0
      %v4289 = vadd.f32 %v4287, %v4288
      %v4290 = vsel %vm4280, %v4270, 0.0
      %v4291 = vadd.f32 %v4289, %v4290
      %v4292 = vsel %vm4280, %v4269, 0.0
      %v4293 = vadd.f32 %v4291, %v4292
      %v4294 = vsel %vm4280, %v4271, 0.0
      %v4295 = vadd.f32 %v4293, %v4294
      %4296 = vadd.xlane.f32.xlu0 %v4295
      %v4297 = vpop.xlane.xlu0 %4296
      %v4298 = vld [vmem:[#allocation4] sm:$0x1]
      %v4300 = vlaneseq
      %v4301 = vshrl.u32 %v4300, 7
      %v4302 = vsub.s32 0, %v4301
      %v4303 = vrot.slane %v4298, %v4302
      %v4305 = vadd.f32 %v4297, %v4303
      %v4306 = vld [vmem:[#allocation3] sm:$0x3]
      %v4307 = vadd.f32 %v4306, %v4305
      %vm4308 = vcmask 1024
      %4309 = vst.msk [vmem:[#allocation3] sm:$0x3] %vm4308, %v4307
      %v4310 = vmul.f32 %v4307, 0.25
      %4311 = vst.msk [vmem:[%s5] sm:$0x3] %vm4308, %v4310
      // Predicated region
      $region45: #{discriminator_forward.5} parent=39 // pred_check
        %p4312 = pneg %p141
      $region46: #{discriminator_forward.5} parent=39 // pred_check_branch
        %4314 = sbr.rel (%p4312) target = $region48
      $region47: #{discriminator_forward.5} parent=39 // pred_region
        _
      $region48: #{discriminator_forward.5} parent=39 // pred_fallthru
        _
      // Predicated region
      $region49: #{discriminator_forward.5} parent=39 // pred_check
        %p4315 = pneg %p141
      $region50: #{discriminator_forward.5} parent=39 // pred_check_branch
        %4317 = sbr.rel (%p4315) target = $region52
      $region51: #{discriminator_forward.5} parent=39 // pred_region
        _
      $region52: #{discriminator_forward.5} parent=39 // pred_fallthru
        _
    $region40: #{discriminator_forward.5} parent=5 // pred_fallthru
      _
    %p4318 = scmp.le.s32.totalorder 2, %s13
    // Predicated region
    $region53: #{discriminator_forward.5} parent=5 // pred_check
      %p4319 = pneg %p4318
    $region54: #{discriminator_forward.5} parent=5 // pred_check_branch
      %4321 = sbr.rel (%p4319) target = $region56
    $region55: #{discriminator_forward.5} parent=5 // pred_region
      %s4322 = ssub.s32 %s13, 2
    $region56: #{discriminator_forward.5} parent=5 // pred_fallthru
      _
  $region6: #{discriminator_forward.5} parent=0 // loop_footer
    %s17 = sadd.s32 1, %s13
  $region7: #{discriminator_forward.5} parent=0 // loop_footer_branch
    %12 = sbr.rel target = $region3
  $region8: #{discriminator_forward.5} parent=0 // loop_exit
    _

</llo_original>
